<compile_context>
chip_gen: v6e
topology: v6e:2x2x1
jax: 0.10.0
libtpu: 0.0.40
codegen_flags: <defaults>
</compile_context>

<pallas_src>
import functools

import numpy as np
import jax
import jax.numpy as jnp
from jax.experimental import pallas as pl
from jax.experimental.pallas import tpu as pltpu

LANE = 128  # TPU lane width; all channel dims are padded to this


# ----------------------------------------------------------------------------
# Pallas kernel 1: fused 3x3 conv (+bias, +ReLU, +2x2 maxpool) — backbone path
# ----------------------------------------------------------------------------
def _conv3x3_kernel(*refs, n_taps, relu, pool):
    """One grid step = one (pooled) output row of one image.

    refs: n_taps input-row refs (the padded input passed with different row
    offsets), then w_ref (3,3,Cin,Cout) bf16, b_ref (1,Cout) f32, o_ref.
    """
    rows = [refs[i][0, 0] for i in range(n_taps)]            # each (W+2, Cin)
    w_ref, b_ref, o_ref = refs[n_taps], refs[n_taps + 1], refs[n_taps + 2]
    W = rows[0].shape[0] - 2
    Cout = w_ref.shape[-1]

    def conv_row(r0, r1, r2):
        acc = jnp.zeros((W, Cout), jnp.float32)
        for di, r in enumerate((r0, r1, r2)):
            for dj in range(3):
                acc = acc + jnp.dot(r[dj:dj + W, :], w_ref[di, dj],
                                    preferred_element_type=jnp.float32)
        return acc + b_ref[...]

    if pool:
        y0 = conv_row(rows[0], rows[1], rows[2])
        y1 = conv_row(rows[1], rows[2], rows[3])
        if relu:
            y0 = jnp.maximum(y0, 0.0)
            y1 = jnp.maximum(y1, 0.0)
        yp = jnp.maximum(y0, y1)               # pool across the two conv rows
        # Width pool via 0/1 selection matmuls (MXU) — avoids sublane reshapes
        # or strided value slices that Mosaic may refuse to lower.
        half = W // 2
        kk = jax.lax.broadcasted_iota(jnp.int32, (half, W), 0)
        ii = jax.lax.broadcasted_iota(jnp.int32, (half, W), 1)
        sel_e = (ii == 2 * kk).astype(jnp.float32)
        sel_o = (ii == 2 * kk + 1).astype(jnp.float32)
        out = jnp.maximum(
            jnp.dot(sel_e, yp, preferred_element_type=jnp.float32),
            jnp.dot(sel_o, yp, preferred_element_type=jnp.float32))
        o_ref[0, 0] = out.astype(o_ref.dtype)
    else:
        y = conv_row(rows[0], rows[1], rows[2])
        if relu:
            y = jnp.maximum(y, 0.0)
        o_ref[0, 0] = y.astype(o_ref.dtype)


def conv3x3(x, w, b, *, relu, pool, out_dtype):
    """'same' 3x3 conv with optional fused ReLU + 2x2/stride-2 maxpool.

    x: (B,H,W,Cin) bf16, w: (3,3,Cin,Cout) bf16 (Cout = 128-padded),
    b: (1,Cout) f32.  The padded input is passed n_taps times with
    row-shifted index maps (halo without im2col); grid pipelines the row DMAs.
    """
    B, H, W, Cin = x.shape
    Cout = w.shape[-1]
    xp = jnp.pad(x, ((0, 0), (1, 1), (1, 1), (0, 0)))        # spatial 'same' pad

    n_taps = 4 if pool else 3       # pooled step consumes 4 input rows (2 conv rows)
    step = 2 if pool else 1
    h_out = H // 2 if pool else H
    w_out = W // 2 if pool else W

    row_specs = [
        pl.BlockSpec((1, 1, W + 2, Cin),
                     lambda bb, r, di=di: (bb, step * r + di, 0, 0))
        for di in range(n_taps)
    ]
    in_specs = row_specs + [
        pl.BlockSpec((3, 3, Cin, Cout), lambda bb, r: (0, 0, 0, 0)),  # resident
        pl.BlockSpec((1, Cout), lambda bb, r: (0, 0)),
    ]
    out_spec = pl.BlockSpec((1, 1, w_out, Cout), lambda bb, r: (bb, r, 0, 0))

    kernel = functools.partial(_conv3x3_kernel, n_taps=n_taps, relu=relu, pool=pool)
    return pl.pallas_call(
        kernel,
        out_shape=jax.ShapeDtypeStruct((B, h_out, w_out, Cout), out_dtype),
        grid=(B, h_out),
        in_specs=in_specs,
        out_specs=out_spec,
        compiler_params=pltpu.CompilerParams(
            dimension_semantics=("parallel", "parallel"),
            vmem_limit_bytes=32 * 1024 * 1024),
    )(*([xp] * n_taps), w, b)


# ----------------------------------------------------------------------------
# Pallas kernel 2: whole-batch YOLO loss partial sums (single grid step)
# ----------------------------------------------------------------------------
def make_loss_kernel(bbox_num, num_classes, bg_class, S):
    def kernel(f_ref, gtb_ref, gtc_ref, gtcf_ref, o_ref):
        feat = f_ref[...].astype(jnp.float32)       # (B, S, 128) — pad cols unused
        gt_bbox = gtb_ref[...]                      # (B, S, 4) f32
        gt_cat = gtc_ref[...]                       # (B, S, 1) int32
        gt_conf = gtcf_ref[...]                     # (B, S, 1) f32

        mask = gt_cat != bg_class
        maskf = mask.astype(jnp.float32)

        # max confidence + argmax over the bbox_num predicted boxes (raw logits,
        # like torch.max in the reference; sigmoid applied only inside the loss)
        max_conf = feat[:, :, 4:5]
        max_idx = jnp.zeros_like(max_conf)
        for j in range(1, bbox_num):
            cj = feat[:, :, 5 * j + 4:5 * j + 5]
            max_idx = jnp.where(cj > max_conf, jnp.float32(j), max_idx)
            max_conf = jnp.maximum(max_conf, cj)

        # confidence losses: masked squared error of sigmoid(conf) vs gt_conf
        sq = (jax.nn.sigmoid(max_conf) - gt_conf) ** 2
        s_conf_obj = jnp.sum(sq * maskf, axis=1, keepdims=True)          # (B,1,1)
        n_obj = jnp.sum(maskf, axis=1, keepdims=True)
        s_conf_noobj = jnp.sum(sq * (1.0 - maskf), axis=1, keepdims=True)
        n_noobj = jnp.float32(S) - n_obj

        # coord loss on the argmax box of each responsible (masked) cell
        sel = jnp.zeros_like(gt_bbox)
        for j in range(bbox_num):
            sel = jnp.where(max_idx == jnp.float32(j),
                            feat[:, :, 5 * j:5 * j + 4], sel)
        selp = jax.nn.sigmoid(sel)
        gx, gy = gt_bbox[:, :, 0:1], gt_bbox[:, :, 1:2]
        gw = jnp.where(mask, gt_bbox[:, :, 2:3], 1.0)   # avoid sqrt(-1) on bg cells
        gh = jnp.where(mask, gt_bbox[:, :, 3:4], 1.0)
        per_cell = ((selp[:, :, 0:1] - gx) ** 2
                    + (selp[:, :, 1:2] - gy) ** 2
                    + (jnp.sqrt(selp[:, :, 2:3]) - jnp.sqrt(gw)) ** 2
                    + (jnp.sqrt(selp[:, :, 3:4]) - jnp.sqrt(gh)) ** 2)
        s_coord = jnp.sum(per_cell * maskf, axis=1, keepdims=True)

        # cross-entropy over classes with ignore_index == bg_class
        logits = feat[:, :, bbox_num * 5: bbox_num * 5 + num_classes]
        mlog = jnp.max(logits, axis=-1, keepdims=True)
        lse = mlog + jnp.log(jnp.sum(jnp.exp(logits - mlog), axis=-1, keepdims=True))
        cls_iota = jax.lax.broadcasted_iota(jnp.int32, logits.shape, 2)
        logit_gt = jnp.sum(jnp.where(cls_iota == gt_cat, logits, 0.0),
                           axis=-1, keepdims=True)
        s_ce = jnp.sum((lse - logit_gt) * maskf, axis=1, keepdims=True)

        lanes = jnp.ones((1, 1, 128), jnp.float32)
        zero = jnp.zeros_like(n_obj)
        o_ref[...] = jnp.concatenate(
            [s_conf_obj * lanes, n_obj * lanes, s_conf_noobj * lanes,
             n_noobj * lanes, s_coord * lanes, s_ce * lanes,
             zero * lanes, zero * lanes], axis=1)                       # (B,8,128)
    return kernel


# ----------------------------------------------------------------------------
# Ground-truth assignment (host-side glue, mirrors YOLO1.config_gt exactly)
# ----------------------------------------------------------------------------
def config_gt_np(cats, bboxes, grid_size, scale, bg_class):
    h, w = grid_size
    gt_bbox = -np.ones((h * w, 4), np.float32)
    gt_cat = np.full((h * w,), bg_class, np.int32)
    gt_conf = np.zeros((h * w,), np.float32)
    for cat, bbox in zip(cats, bboxes):
        if cat == bg_class:
            continue
        bbox = np.asarray(bbox, np.float32).copy()
        bbox[0] += bbox[2] / 2.0
        bbox[1] += bbox[3] / 2.0
        x_gt, y_gt, w_gt, h_gt = bbox
        x_idx, y_idx = int(x_gt // scale), int(y_gt // scale)
        cell = x_idx + y_idx * w
        gt_bbox[cell, 0] = x_gt / scale - x_idx
        gt_bbox[cell, 1] = y_gt / scale - y_idx
        gt_bbox[cell, 2] = w_gt / (scale * w)
        gt_bbox[cell, 3] = h_gt / (scale * h)
        gt_cat[cell] = cat
        gt_conf[cell] = 1.0
    return gt_bbox, gt_cat, gt_conf


# ----------------------------------------------------------------------------
# Device-side forward (training branch of YOLO1.forward)
# ----------------------------------------------------------------------------
def _pad_to(a, axis, target):
    pad = target - a.shape[axis]
    if pad <= 0:
        return a
    widths = [(0, 0)] * a.ndim
    widths[axis] = (0, pad)
    return jnp.pad(a, widths)


@functools.partial(jax.jit, static_argnames=("num_classes", "bbox_num"))
def _yolo1_device(params, imgs_nchw, gt_bbox, gt_cat, gt_conf, *,
                  num_classes, bbox_num):
    bg_class = num_classes - 1

    # layout: transpose NCHW -> NHWC once at the boundary; bf16 for the MXU
    x = jnp.transpose(imgs_nchw, (0, 2, 3, 1)).astype(jnp.bfloat16)
    B = x.shape[0]

    # lane-pad every Cout (and downstream Cin) to 128; extra channels are 0.
    # First-layer Cin stays at its native width to avoid inflating HBM reads.
    w1 = _pad_to(params["w1"], 3, LANE).astype(jnp.bfloat16)
    w2 = _pad_to(_pad_to(params["w2"], 2, LANE), 3, LANE).astype(jnp.bfloat16)
    w3 = _pad_to(_pad_to(params["w3"], 2, LANE), 3, LANE).astype(jnp.bfloat16)
    b1 = _pad_to(params["b1"].reshape(1, -1), 1, LANE).astype(jnp.float32)
    b2 = _pad_to(params["b2"].reshape(1, -1), 1, LANE).astype(jnp.float32)
    b3 = _pad_to(params["b3"].reshape(1, -1), 1, LANE).astype(jnp.float32)

    # VGG-style backbone: conv+ReLU+pool, conv+ReLU+pool, conv (features)
    x = conv3x3(x, w1, b1, relu=True, pool=True, out_dtype=jnp.bfloat16)
    x = conv3x3(x, w2, b2, relu=True, pool=True, out_dtype=jnp.bfloat16)
    feats = conv3x3(x, w3, b3, relu=False, pool=False, out_dtype=jnp.float32)

    _, Hf, Wf, Cp = feats.shape
    S = Hf * Wf
    feats_flat = feats.reshape(B, S, Cp)        # == permute_and_flatten (padded)

    stats = pl.pallas_call(
        make_loss_kernel(bbox_num, num_classes, bg_class, S),
        out_shape=jax.ShapeDtypeStruct((B, 8, 128), jnp.float32),
        grid=(1,),
        in_specs=[
            pl.BlockSpec((B, S, Cp), lambda i: (0, 0, 0)),
            pl.BlockSpec((B, S, 4), lambda i: (0, 0, 0)),
            pl.BlockSpec((B, S, 1), lambda i: (0, 0, 0)),
            pl.BlockSpec((B, S, 1), lambda i: (0, 0, 0)),
        ],
        out_specs=pl.BlockSpec((B, 8, 128), lambda i: (0, 0, 0)),
        compiler_params=pltpu.CompilerParams(
            dimension_semantics=("arbitrary",)),
    )(feats_flat, gt_bbox, gt_cat, gt_conf)

    st = stats[:, :6, 0]                        # (B, 6) per-image partial sums
    s_conf_obj, n_obj, s_conf_noobj, n_noobj, s_coord, s_ce = (
        st[:, 0], st[:, 1], st[:, 2], st[:, 3], st[:, 4], st[:, 5])

    # per-image weighting exactly as in the PyTorch reference
    a1 = n_obj / S
    a2 = n_noobj / S
    conf_w_obj = jnp.where(n_obj > 0, s_conf_obj / jnp.maximum(n_obj, 1.0), 0.0) * a2
    conf_wo_obj = jnp.where(n_noobj > 0,
                            s_conf_noobj / jnp.maximum(n_noobj, 1.0), 0.0) * a1
    coord = jnp.where(n_obj > 0, s_coord / jnp.maximum(n_obj, 1.0), 0.0)

    loss_coord = jnp.sum(coord) / B
    loss_conf_w_obj = jnp.sum(conf_w_obj) / B
    loss_conf_wo_obj = jnp.sum(conf_wo_obj) / B
    total_n_obj = jnp.sum(n_obj)
    # CE mean over non-ignored targets, guarded against an all-background batch
    loss_class = jnp.where(total_n_obj > 0,
                           jnp.sum(s_ce) / jnp.maximum(total_n_obj, 1.0), 0.0)

    total_loss = (5.0 * loss_coord + 0.5 * loss_conf_wo_obj
                  + loss_conf_w_obj + loss_class)
    return {"total_loss": total_loss}


def yolo1_forward(params, imgs_nchw, cats, bboxes, *, num_classes, bbox_num):
    bg_class = num_classes - 1
    B, _, H, W = imgs_nchw.shape
    Hf, Wf = H // 4, W // 4            # two fused 2x2/stride-2 maxpools
    scale = H // Hf

    # ground-truth assignment (host side, small python GT lists)
    gtb, gtc, gtcf = [], [], []
    for c_list, b_list in zip(cats, bboxes):
        b_, c_, f_ = config_gt_np(c_list, b_list, (Hf, Wf), scale, bg_class)
        gtb.append(b_), gtc.append(c_), gtcf.append(f_)
    gt_bbox = jnp.asarray(np.stack(gtb, axis=0))              # (B, S, 4)
    gt_cat = jnp.asarray(np.stack(gtc, axis=0))[..., None]    # (B, S, 1) int32
    gt_conf = jnp.asarray(np.stack(gtcf, axis=0))[..., None]  # (B, S, 1)

    return _yolo1_device(params, imgs_nchw, gt_bbox, gt_cat, gt_conf,
                         num_classes=num_classes, bbox_num=bbox_num)


# ----------------------------------------------------------------------------
# Deterministic parameter init + example run
# ----------------------------------------------------------------------------
def init_params(key, in_ch, num_classes, bbox_num):
    c_out = bbox_num * 5 + num_classes
    k1, k2, k3 = jax.random.split(key, 3)
    return {
        "w1": 0.1 * jax.random.normal(k1, (3, 3, in_ch, 16), jnp.float32),
        "b1": jnp.zeros((16,), jnp.float32),
        "w2": 0.1 * jax.random.normal(k2, (3, 3, 16, 32), jnp.float32),
        "b2": jnp.zeros((32,), jnp.float32),
        "w3": 0.1 * jax.random.normal(k3, (3, 3, 32, c_out), jnp.float32),
        "b3": jnp.zeros((c_out,), jnp.float32),
    }


if __name__ == "__main__":
    num_classes = 6          # bg_class = 5
    bbox_num = 2             # backbone output channels = 2*5 + 6 = 16
    B, Cin, H, W = 2, 4, 16, 16

    key = jax.random.PRNGKey(0)
    k_img, k_par = jax.random.split(key)
    imgs = jax.random.normal(k_img, (B, Cin, H, W), jnp.float32)   # NCHW input

    # small deterministic ground truth (per-image category / bbox lists, xywh)
    cats = [[0, 2], [3]]
    bboxes = [[[2.0, 3.0, 4.0, 5.0], [9.0, 8.0, 5.0, 6.0]],
              [[1.0, 10.0, 3.0, 4.0]]]

    params = init_params(k_par, Cin, num_classes, bbox_num)

    out = yolo1_forward(params, imgs, cats, bboxes,
                        num_classes=num_classes, bbox_num=bbox_num)
    total = jax.block_until_ready(out["total_loss"])
    assert np.isfinite(np.asarray(total)), "non-finite loss"
    print("KERNEL_OK")
</pallas_src>

<mosaic_0001>
module attributes {stable_mosaic.version = 11 : i64} {
  func.func @_conv3x3_kernel(%arg0: i32, %arg1: i32, %arg2: memref<1x1x18x4xbf16, #tpu.memory_space<vmem>>, %arg3: memref<1x1x18x4xbf16, #tpu.memory_space<vmem>>, %arg4: memref<1x1x18x4xbf16, #tpu.memory_space<vmem>>, %arg5: memref<1x1x18x4xbf16, #tpu.memory_space<vmem>>, %arg6: memref<3x3x4x128xbf16, #tpu.memory_space<vmem>>, %arg7: memref<1x128xf32, #tpu.memory_space<vmem>>, %arg8: memref<1x1x8x128xbf16, #tpu.memory_space<vmem>>) attributes {dimension_semantics = [#tpu.dimension_semantics<parallel>, #tpu.dimension_semantics<parallel>], iteration_bounds = array<i64: 2, 8>, scalar_prefetch = 0 : i64, scratch_operands = 0 : i64, tpu.core_type = #tpu.core_type<tc>, window_params = [{transform_indices = @transform_0, window_bounds = array<i64: 1, 1, 18, 4>}, {transform_indices = @transform_1, window_bounds = array<i64: 1, 1, 18, 4>}, {transform_indices = @transform_2, window_bounds = array<i64: 1, 1, 18, 4>}, {transform_indices = @transform_3, window_bounds = array<i64: 1, 1, 18, 4>}, {pipeline_mode = #tpu.pipeline_mode<synchronous>, transform_indices = @transform_4, window_bounds = array<i64: 3, 3, 4, 128>}, {pipeline_mode = #tpu.pipeline_mode<synchronous>, transform_indices = @transform_5, window_bounds = array<i64: 1, 128>}, {transform_indices = @transform_6, window_bounds = array<i64: 1, 1, 8, 128>}]} {
    %c0 = arith.constant 0 : index
    %c0_0 = arith.constant 0 : index
    %c0_1 = arith.constant 0 : index
    %c0_2 = arith.constant 0 : index
    %0 = vector.load %arg2[%c0, %c0_0, %c0_1, %c0_2] : memref<1x1x18x4xbf16, #tpu.memory_space<vmem>>, vector<1x1x18x4xbf16>
    %1 = vector.shape_cast %0 : vector<1x1x18x4xbf16> to vector<18x4xbf16>
    %c0_3 = arith.constant 0 : index
    %c0_4 = arith.constant 0 : index
    %c0_5 = arith.constant 0 : index
    %c0_6 = arith.constant 0 : index
    %2 = vector.load %arg3[%c0_3, %c0_4, %c0_5, %c0_6] : memref<1x1x18x4xbf16, #tpu.memory_space<vmem>>, vector<1x1x18x4xbf16>
    %3 = vector.shape_cast %2 : vector<1x1x18x4xbf16> to vector<18x4xbf16>
    %c0_7 = arith.constant 0 : index
    %c0_8 = arith.constant 0 : index
    %c0_9 = arith.constant 0 : index
    %c0_10 = arith.constant 0 : index
    %4 = vector.load %arg4[%c0_7, %c0_8, %c0_9, %c0_10] : memref<1x1x18x4xbf16, #tpu.memory_space<vmem>>, vector<1x1x18x4xbf16>
    %5 = vector.shape_cast %4 : vector<1x1x18x4xbf16> to vector<18x4xbf16>
    %c0_11 = arith.constant 0 : index
    %c0_12 = arith.constant 0 : index
    %c0_13 = arith.constant 0 : index
    %c0_14 = arith.constant 0 : index
    %6 = vector.load %arg5[%c0_11, %c0_12, %c0_13, %c0_14] : memref<1x1x18x4xbf16, #tpu.memory_space<vmem>>, vector<1x1x18x4xbf16>
    %7 = vector.shape_cast %6 : vector<1x1x18x4xbf16> to vector<18x4xbf16>
    %cst = arith.constant 0.000000e+00 : f32
    %8 = vector.broadcast %cst : f32 to vector<16x128xf32>
    %9 = vector.extract_strided_slice %1 {offsets = [0, 0], sizes = [16, 4], strides = [1, 1]} : vector<18x4xbf16> to vector<16x4xbf16>
    %c0_15 = arith.constant 0 : index
    %c0_16 = arith.constant 0 : index
    %c0_17 = arith.constant 0 : index
    %c0_18 = arith.constant 0 : index
    %10 = vector.load %arg6[%c0_15, %c0_16, %c0_17, %c0_18] : memref<3x3x4x128xbf16, #tpu.memory_space<vmem>>, vector<1x1x4x128xbf16>
    %11 = vector.shape_cast %10 : vector<1x1x4x128xbf16> to vector<4x128xbf16>
    %cst_19 = arith.constant dense<0.000000e+00> : vector<16x128xf32>
    %12 = tpu.matmul %9, %11, %cst_19 {dimension_numbers = #tpu.dot_dimension_numbers<[1], [0], [0], [1], [0, 0, 1, 1], [], []>} : vector<16x4xbf16>, vector<4x128xbf16>, vector<16x128xf32> -> vector<16x128xf32>
    %13 = arith.addf %8, %12 : vector<16x128xf32>
    %14 = vector.extract_strided_slice %1 {offsets = [1, 0], sizes = [16, 4], strides = [1, 1]} : vector<18x4xbf16> to vector<16x4xbf16>
    %c0_20 = arith.constant 0 : index
    %c1 = arith.constant 1 : index
    %c0_21 = arith.constant 0 : index
    %c0_22 = arith.constant 0 : index
    %15 = vector.load %arg6[%c0_20, %c1, %c0_21, %c0_22] : memref<3x3x4x128xbf16, #tpu.memory_space<vmem>>, vector<1x1x4x128xbf16>
    %16 = vector.shape_cast %15 : vector<1x1x4x128xbf16> to vector<4x128xbf16>
    %cst_23 = arith.constant dense<0.000000e+00> : vector<16x128xf32>
    %17 = tpu.matmul %14, %16, %cst_23 {dimension_numbers = #tpu.dot_dimension_numbers<[1], [0], [0], [1], [0, 0, 1, 1], [], []>} : vector<16x4xbf16>, vector<4x128xbf16>, vector<16x128xf32> -> vector<16x128xf32>
    %18 = arith.addf %13, %17 : vector<16x128xf32>
    %19 = vector.extract_strided_slice %1 {offsets = [2, 0], sizes = [16, 4], strides = [1, 1]} : vector<18x4xbf16> to vector<16x4xbf16>
    %c0_24 = arith.constant 0 : index
    %c2 = arith.constant 2 : index
    %c0_25 = arith.constant 0 : index
    %c0_26 = arith.constant 0 : index
    %20 = vector.load %arg6[%c0_24, %c2, %c0_25, %c0_26] : memref<3x3x4x128xbf16, #tpu.memory_space<vmem>>, vector<1x1x4x128xbf16>
    %21 = vector.shape_cast %20 : vector<1x1x4x128xbf16> to vector<4x128xbf16>
    %cst_27 = arith.constant dense<0.000000e+00> : vector<16x128xf32>
    %22 = tpu.matmul %19, %21, %cst_27 {dimension_numbers = #tpu.dot_dimension_numbers<[1], [0], [0], [1], [0, 0, 1, 1], [], []>} : vector<16x4xbf16>, vector<4x128xbf16>, vector<16x128xf32> -> vector<16x128xf32>
    %23 = arith.addf %18, %22 : vector<16x128xf32>
    %24 = vector.extract_strided_slice %3 {offsets = [0, 0], sizes = [16, 4], strides = [1, 1]} : vector<18x4xbf16> to vector<16x4xbf16>
    %c1_28 = arith.constant 1 : index
    %c0_29 = arith.constant 0 : index
    %c0_30 = arith.constant 0 : index
    %c0_31 = arith.constant 0 : index
    %25 = vector.load %arg6[%c1_28, %c0_29, %c0_30, %c0_31] : memref<3x3x4x128xbf16, #tpu.memory_space<vmem>>, vector<1x1x4x128xbf16>
    %26 = vector.shape_cast %25 : vector<1x1x4x128xbf16> to vector<4x128xbf16>
    %cst_32 = arith.constant dense<0.000000e+00> : vector<16x128xf32>
    %27 = tpu.matmul %24, %26, %cst_32 {dimension_numbers = #tpu.dot_dimension_numbers<[1], [0], [0], [1], [0, 0, 1, 1], [], []>} : vector<16x4xbf16>, vector<4x128xbf16>, vector<16x128xf32> -> vector<16x128xf32>
    %28 = arith.addf %23, %27 : vector<16x128xf32>
    %29 = vector.extract_strided_slice %3 {offsets = [1, 0], sizes = [16, 4], strides = [1, 1]} : vector<18x4xbf16> to vector<16x4xbf16>
    %c1_33 = arith.constant 1 : index
    %c1_34 = arith.constant 1 : index
    %c0_35 = arith.constant 0 : index
    %c0_36 = arith.constant 0 : index
    %30 = vector.load %arg6[%c1_33, %c1_34, %c0_35, %c0_36] : memref<3x3x4x128xbf16, #tpu.memory_space<vmem>>, vector<1x1x4x128xbf16>
    %31 = vector.shape_cast %30 : vector<1x1x4x128xbf16> to vector<4x128xbf16>
    %cst_37 = arith.constant dense<0.000000e+00> : vector<16x128xf32>
    %32 = tpu.matmul %29, %31, %cst_37 {dimension_numbers = #tpu.dot_dimension_numbers<[1], [0], [0], [1], [0, 0, 1, 1], [], []>} : vector<16x4xbf16>, vector<4x128xbf16>, vector<16x128xf32> -> vector<16x128xf32>
    %33 = arith.addf %28, %32 : vector<16x128xf32>
    %34 = vector.extract_strided_slice %3 {offsets = [2, 0], sizes = [16, 4], strides = [1, 1]} : vector<18x4xbf16> to vector<16x4xbf16>
    %c1_38 = arith.constant 1 : index
    %c2_39 = arith.constant 2 : index
    %c0_40 = arith.constant 0 : index
    %c0_41 = arith.constant 0 : index
    %35 = vector.load %arg6[%c1_38, %c2_39, %c0_40, %c0_41] : memref<3x3x4x128xbf16, #tpu.memory_space<vmem>>, vector<1x1x4x128xbf16>
    %36 = vector.shape_cast %35 : vector<1x1x4x128xbf16> to vector<4x128xbf16>
    %cst_42 = arith.constant dense<0.000000e+00> : vector<16x128xf32>
    %37 = tpu.matmul %34, %36, %cst_42 {dimension_numbers = #tpu.dot_dimension_numbers<[1], [0], [0], [1], [0, 0, 1, 1], [], []>} : vector<16x4xbf16>, vector<4x128xbf16>, vector<16x128xf32> -> vector<16x128xf32>
    %38 = arith.addf %33, %37 : vector<16x128xf32>
    %39 = vector.extract_strided_slice %5 {offsets = [0, 0], sizes = [16, 4], strides = [1, 1]} : vector<18x4xbf16> to vector<16x4xbf16>
    %c2_43 = arith.constant 2 : index
    %c0_44 = arith.constant 0 : index
    %c0_45 = arith.constant 0 : index
    %c0_46 = arith.constant 0 : index
    %40 = vector.load %arg6[%c2_43, %c0_44, %c0_45, %c0_46] : memref<3x3x4x128xbf16, #tpu.memory_space<vmem>>, vector<1x1x4x128xbf16>
    %41 = vector.shape_cast %40 : vector<1x1x4x128xbf16> to vector<4x128xbf16>
    %cst_47 = arith.constant dense<0.000000e+00> : vector<16x128xf32>
    %42 = tpu.matmul %39, %41, %cst_47 {dimension_numbers = #tpu.dot_dimension_numbers<[1], [0], [0], [1], [0, 0, 1, 1], [], []>} : vector<16x4xbf16>, vector<4x128xbf16>, vector<16x128xf32> -> vector<16x128xf32>
    %43 = arith.addf %38, %42 : vector<16x128xf32>
    %44 = vector.extract_strided_slice %5 {offsets = [1, 0], sizes = [16, 4], strides = [1, 1]} : vector<18x4xbf16> to vector<16x4xbf16>
    %c2_48 = arith.constant 2 : index
    %c1_49 = arith.constant 1 : index
    %c0_50 = arith.constant 0 : index
    %c0_51 = arith.constant 0 : index
    %45 = vector.load %arg6[%c2_48, %c1_49, %c0_50, %c0_51] : memref<3x3x4x128xbf16, #tpu.memory_space<vmem>>, vector<1x1x4x128xbf16>
    %46 = vector.shape_cast %45 : vector<1x1x4x128xbf16> to vector<4x128xbf16>
    %cst_52 = arith.constant dense<0.000000e+00> : vector<16x128xf32>
    %47 = tpu.matmul %44, %46, %cst_52 {dimension_numbers = #tpu.dot_dimension_numbers<[1], [0], [0], [1], [0, 0, 1, 1], [], []>} : vector<16x4xbf16>, vector<4x128xbf16>, vector<16x128xf32> -> vector<16x128xf32>
    %48 = arith.addf %43, %47 : vector<16x128xf32>
    %49 = vector.extract_strided_slice %5 {offsets = [2, 0], sizes = [16, 4], strides = [1, 1]} : vector<18x4xbf16> to vector<16x4xbf16>
    %c2_53 = arith.constant 2 : index
    %c2_54 = arith.constant 2 : index
    %c0_55 = arith.constant 0 : index
    %c0_56 = arith.constant 0 : index
    %50 = vector.load %arg6[%c2_53, %c2_54, %c0_55, %c0_56] : memref<3x3x4x128xbf16, #tpu.memory_space<vmem>>, vector<1x1x4x128xbf16>
    %51 = vector.shape_cast %50 : vector<1x1x4x128xbf16> to vector<4x128xbf16>
    %cst_57 = arith.constant dense<0.000000e+00> : vector<16x128xf32>
    %52 = tpu.matmul %49, %51, %cst_57 {dimension_numbers = #tpu.dot_dimension_numbers<[1], [0], [0], [1], [0, 0, 1, 1], [], []>} : vector<16x4xbf16>, vector<4x128xbf16>, vector<16x128xf32> -> vector<16x128xf32>
    %53 = arith.addf %48, %52 : vector<16x128xf32>
    %c0_58 = arith.constant 0 : index
    %c0_59 = arith.constant 0 : index
    %54 = vector.load %arg7[%c0_58, %c0_59] : memref<1x128xf32, #tpu.memory_space<vmem>>, vector<1x128xf32>
    %55 = vector.broadcast %54 : vector<1x128xf32> to vector<16x128xf32>
    %56 = arith.addf %53, %55 : vector<16x128xf32>
    %cst_60 = arith.constant 0.000000e+00 : f32
    %57 = vector.broadcast %cst_60 : f32 to vector<16x128xf32>
    %58 = vector.extract_strided_slice %3 {offsets = [0, 0], sizes = [16, 4], strides = [1, 1]} : vector<18x4xbf16> to vector<16x4xbf16>
    %c0_61 = arith.constant 0 : index
    %c0_62 = arith.constant 0 : index
    %c0_63 = arith.constant 0 : index
    %c0_64 = arith.constant 0 : index
    %59 = vector.load %arg6[%c0_61, %c0_62, %c0_63, %c0_64] : memref<3x3x4x128xbf16, #tpu.memory_space<vmem>>, vector<1x1x4x128xbf16>
    %60 = vector.shape_cast %59 : vector<1x1x4x128xbf16> to vector<4x128xbf16>
    %cst_65 = arith.constant dense<0.000000e+00> : vector<16x128xf32>
    %61 = tpu.matmul %58, %60, %cst_65 {dimension_numbers = #tpu.dot_dimension_numbers<[1], [0], [0], [1], [0, 0, 1, 1], [], []>} : vector<16x4xbf16>, vector<4x128xbf16>, vector<16x128xf32> -> vector<16x128xf32>
    %62 = arith.addf %57, %61 : vector<16x128xf32>
    %63 = vector.extract_strided_slice %3 {offsets = [1, 0], sizes = [16, 4], strides = [1, 1]} : vector<18x4xbf16> to vector<16x4xbf16>
    %c0_66 = arith.constant 0 : index
    %c1_67 = arith.constant 1 : index
    %c0_68 = arith.constant 0 : index
    %c0_69 = arith.constant 0 : index
    %64 = vector.load %arg6[%c0_66, %c1_67, %c0_68, %c0_69] : memref<3x3x4x128xbf16, #tpu.memory_space<vmem>>, vector<1x1x4x128xbf16>
    %65 = vector.shape_cast %64 : vector<1x1x4x128xbf16> to vector<4x128xbf16>
    %cst_70 = arith.constant dense<0.000000e+00> : vector<16x128xf32>
    %66 = tpu.matmul %63, %65, %cst_70 {dimension_numbers = #tpu.dot_dimension_numbers<[1], [0], [0], [1], [0, 0, 1, 1], [], []>} : vector<16x4xbf16>, vector<4x128xbf16>, vector<16x128xf32> -> vector<16x128xf32>
    %67 = arith.addf %62, %66 : vector<16x128xf32>
    %68 = vector.extract_strided_slice %3 {offsets = [2, 0], sizes = [16, 4], strides = [1, 1]} : vector<18x4xbf16> to vector<16x4xbf16>
    %c0_71 = arith.constant 0 : index
    %c2_72 = arith.constant 2 : index
    %c0_73 = arith.constant 0 : index
    %c0_74 = arith.constant 0 : index
    %69 = vector.load %arg6[%c0_71, %c2_72, %c0_73, %c0_74] : memref<3x3x4x128xbf16, #tpu.memory_space<vmem>>, vector<1x1x4x128xbf16>
    %70 = vector.shape_cast %69 : vector<1x1x4x128xbf16> to vector<4x128xbf16>
    %cst_75 = arith.constant dense<0.000000e+00> : vector<16x128xf32>
    %71 = tpu.matmul %68, %70, %cst_75 {dimension_numbers = #tpu.dot_dimension_numbers<[1], [0], [0], [1], [0, 0, 1, 1], [], []>} : vector<16x4xbf16>, vector<4x128xbf16>, vector<16x128xf32> -> vector<16x128xf32>
    %72 = arith.addf %67, %71 : vector<16x128xf32>
    %73 = vector.extract_strided_slice %5 {offsets = [0, 0], sizes = [16, 4], strides = [1, 1]} : vector<18x4xbf16> to vector<16x4xbf16>
    %c1_76 = arith.constant 1 : index
    %c0_77 = arith.constant 0 : index
    %c0_78 = arith.constant 0 : index
    %c0_79 = arith.constant 0 : index
    %74 = vector.load %arg6[%c1_76, %c0_77, %c0_78, %c0_79] : memref<3x3x4x128xbf16, #tpu.memory_space<vmem>>, vector<1x1x4x128xbf16>
    %75 = vector.shape_cast %74 : vector<1x1x4x128xbf16> to vector<4x128xbf16>
    %cst_80 = arith.constant dense<0.000000e+00> : vector<16x128xf32>
    %76 = tpu.matmul %73, %75, %cst_80 {dimension_numbers = #tpu.dot_dimension_numbers<[1], [0], [0], [1], [0, 0, 1, 1], [], []>} : vector<16x4xbf16>, vector<4x128xbf16>, vector<16x128xf32> -> vector<16x128xf32>
    %77 = arith.addf %72, %76 : vector<16x128xf32>
    %78 = vector.extract_strided_slice %5 {offsets = [1, 0], sizes = [16, 4], strides = [1, 1]} : vector<18x4xbf16> to vector<16x4xbf16>
    %c1_81 = arith.constant 1 : index
    %c1_82 = arith.constant 1 : index
    %c0_83 = arith.constant 0 : index
    %c0_84 = arith.constant 0 : index
    %79 = vector.load %arg6[%c1_81, %c1_82, %c0_83, %c0_84] : memref<3x3x4x128xbf16, #tpu.memory_space<vmem>>, vector<1x1x4x128xbf16>
    %80 = vector.shape_cast %79 : vector<1x1x4x128xbf16> to vector<4x128xbf16>
    %cst_85 = arith.constant dense<0.000000e+00> : vector<16x128xf32>
    %81 = tpu.matmul %78, %80, %cst_85 {dimension_numbers = #tpu.dot_dimension_numbers<[1], [0], [0], [1], [0, 0, 1, 1], [], []>} : vector<16x4xbf16>, vector<4x128xbf16>, vector<16x128xf32> -> vector<16x128xf32>
    %82 = arith.addf %77, %81 : vector<16x128xf32>
    %83 = vector.extract_strided_slice %5 {offsets = [2, 0], sizes = [16, 4], strides = [1, 1]} : vector<18x4xbf16> to vector<16x4xbf16>
    %c1_86 = arith.constant 1 : index
    %c2_87 = arith.constant 2 : index
    %c0_88 = arith.constant 0 : index
    %c0_89 = arith.constant 0 : index
    %84 = vector.load %arg6[%c1_86, %c2_87, %c0_88, %c0_89] : memref<3x3x4x128xbf16, #tpu.memory_space<vmem>>, vector<1x1x4x128xbf16>
    %85 = vector.shape_cast %84 : vector<1x1x4x128xbf16> to vector<4x128xbf16>
    %cst_90 = arith.constant dense<0.000000e+00> : vector<16x128xf32>
    %86 = tpu.matmul %83, %85, %cst_90 {dimension_numbers = #tpu.dot_dimension_numbers<[1], [0], [0], [1], [0, 0, 1, 1], [], []>} : vector<16x4xbf16>, vector<4x128xbf16>, vector<16x128xf32> -> vector<16x128xf32>
    %87 = arith.addf %82, %86 : vector<16x128xf32>
    %88 = vector.extract_strided_slice %7 {offsets = [0, 0], sizes = [16, 4], strides = [1, 1]} : vector<18x4xbf16> to vector<16x4xbf16>
    %c2_91 = arith.constant 2 : index
    %c0_92 = arith.constant 0 : index
    %c0_93 = arith.constant 0 : index
    %c0_94 = arith.constant 0 : index
    %89 = vector.load %arg6[%c2_91, %c0_92, %c0_93, %c0_94] : memref<3x3x4x128xbf16, #tpu.memory_space<vmem>>, vector<1x1x4x128xbf16>
    %90 = vector.shape_cast %89 : vector<1x1x4x128xbf16> to vector<4x128xbf16>
    %cst_95 = arith.constant dense<0.000000e+00> : vector<16x128xf32>
    %91 = tpu.matmul %88, %90, %cst_95 {dimension_numbers = #tpu.dot_dimension_numbers<[1], [0], [0], [1], [0, 0, 1, 1], [], []>} : vector<16x4xbf16>, vector<4x128xbf16>, vector<16x128xf32> -> vector<16x128xf32>
    %92 = arith.addf %87, %91 : vector<16x128xf32>
    %93 = vector.extract_strided_slice %7 {offsets = [1, 0], sizes = [16, 4], strides = [1, 1]} : vector<18x4xbf16> to vector<16x4xbf16>
    %c2_96 = arith.constant 2 : index
    %c1_97 = arith.constant 1 : index
    %c0_98 = arith.constant 0 : index
    %c0_99 = arith.constant 0 : index
    %94 = vector.load %arg6[%c2_96, %c1_97, %c0_98, %c0_99] : memref<3x3x4x128xbf16, #tpu.memory_space<vmem>>, vector<1x1x4x128xbf16>
    %95 = vector.shape_cast %94 : vector<1x1x4x128xbf16> to vector<4x128xbf16>
    %cst_100 = arith.constant dense<0.000000e+00> : vector<16x128xf32>
    %96 = tpu.matmul %93, %95, %cst_100 {dimension_numbers = #tpu.dot_dimension_numbers<[1], [0], [0], [1], [0, 0, 1, 1], [], []>} : vector<16x4xbf16>, vector<4x128xbf16>, vector<16x128xf32> -> vector<16x128xf32>
    %97 = arith.addf %92, %96 : vector<16x128xf32>
    %98 = vector.extract_strided_slice %7 {offsets = [2, 0], sizes = [16, 4], strides = [1, 1]} : vector<18x4xbf16> to vector<16x4xbf16>
    %c2_101 = arith.constant 2 : index
    %c2_102 = arith.constant 2 : index
    %c0_103 = arith.constant 0 : index
    %c0_104 = arith.constant 0 : index
    %99 = vector.load %arg6[%c2_101, %c2_102, %c0_103, %c0_104] : memref<3x3x4x128xbf16, #tpu.memory_space<vmem>>, vector<1x1x4x128xbf16>
    %100 = vector.shape_cast %99 : vector<1x1x4x128xbf16> to vector<4x128xbf16>
    %cst_105 = arith.constant dense<0.000000e+00> : vector<16x128xf32>
    %101 = tpu.matmul %98, %100, %cst_105 {dimension_numbers = #tpu.dot_dimension_numbers<[1], [0], [0], [1], [0, 0, 1, 1], [], []>} : vector<16x4xbf16>, vector<4x128xbf16>, vector<16x128xf32> -> vector<16x128xf32>
    %102 = arith.addf %97, %101 : vector<16x128xf32>
    %c0_106 = arith.constant 0 : index
    %c0_107 = arith.constant 0 : index
    %103 = vector.load %arg7[%c0_106, %c0_107] : memref<1x128xf32, #tpu.memory_space<vmem>>, vector<1x128xf32>
    %104 = vector.broadcast %103 : vector<1x128xf32> to vector<16x128xf32>
    %105 = arith.addf %102, %104 : vector<16x128xf32>
    %cst_108 = arith.constant 0.000000e+00 : f32
    %106 = vector.broadcast %cst_108 : f32 to vector<16x128xf32>
    %107 = arith.maximumf %56, %106 : vector<16x128xf32>
    %cst_109 = arith.constant 0.000000e+00 : f32
    %108 = vector.broadcast %cst_109 : f32 to vector<16x128xf32>
    %109 = arith.maximumf %105, %108 : vector<16x128xf32>
    %110 = arith.maximumf %107, %109 : vector<16x128xf32>
    %111 = tpu.iota {dimensions = array<i32: 0>} : vector<8x16xi32>
    %112 = tpu.iota {dimensions = array<i32: 1>} : vector<8x16xi32>
    %c2_i32 = arith.constant 2 : i32
    %113 = vector.broadcast %c2_i32 : i32 to vector<8x16xi32>
    %114 = arith.muli %113, %111 : vector<8x16xi32>
    %115 = arith.cmpi eq, %112, %114 : vector<8x16xi32>
    %116 = arith.extui %115 : vector<8x16xi1> to vector<8x16xi32>
    %117 = arith.sitofp %116 : vector<8x16xi32> to vector<8x16xf32>
    %c2_i32_110 = arith.constant 2 : i32
    %118 = vector.broadcast %c2_i32_110 : i32 to vector<8x16xi32>
    %119 = arith.muli %118, %111 : vector<8x16xi32>
    %c1_i32 = arith.constant 1 : i32
    %120 = vector.broadcast %c1_i32 : i32 to vector<8x16xi32>
    %121 = arith.addi %119, %120 : vector<8x16xi32>
    %122 = arith.cmpi eq, %112, %121 : vector<8x16xi32>
    %123 = arith.extui %122 : vector<8x16xi1> to vector<8x16xi32>
    %124 = arith.sitofp %123 : vector<8x16xi32> to vector<8x16xf32>
    %cst_111 = arith.constant dense<0.000000e+00> : vector<8x128xf32>
    %125 = tpu.matmul %117, %110, %cst_111 {dimension_numbers = #tpu.dot_dimension_numbers<[1], [0], [0], [1], [0, 0, 1, 1], [], []>} : vector<8x16xf32>, vector<16x128xf32>, vector<8x128xf32> -> vector<8x128xf32>
    %cst_112 = arith.constant dense<0.000000e+00> : vector<8x128xf32>
    %126 = tpu.matmul %124, %110, %cst_112 {dimension_numbers = #tpu.dot_dimension_numbers<[1], [0], [0], [1], [0, 0, 1, 1], [], []>} : vector<8x16xf32>, vector<16x128xf32>, vector<8x128xf32> -> vector<8x128xf32>
    %127 = arith.maximumf %125, %126 : vector<8x128xf32>
    %128 = arith.truncf %127 : vector<8x128xf32> to vector<8x128xbf16>
    %c0_113 = arith.constant 0 : index
    %c0_114 = arith.constant 0 : index
    %c0_115 = arith.constant 0 : index
    %c0_116 = arith.constant 0 : index
    %129 = vector.load %arg8[%c0_113, %c0_114, %c0_115, %c0_116] : memref<1x1x8x128xbf16, #tpu.memory_space<vmem>>, vector<1x1x8x128xbf16>
    %130 = vector.shape_cast %129 : vector<1x1x8x128xbf16> to vector<8x128xbf16>
    %131 = vector.shape_cast %128 : vector<8x128xbf16> to vector<1x1x8x128xbf16>
    tpu.vector_store %arg8[%c0_113, %c0_114, %c0_115, %c0_116], %131 {strides = array<i32>} : memref<1x1x8x128xbf16, #tpu.memory_space<vmem>>, vector<1x1x8x128xbf16>,
    return
  }
  func.func @transform_0(%arg0: i32, %arg1: i32) -> (i32, i32, i32, i32) {
    %c2_i32 = arith.constant 2 : i32
    %0 = arith.muli %c2_i32, %arg1 : i32
    %c0_i32 = arith.constant 0 : i32
    %1 = arith.addi %0, %c0_i32 : i32
    %c0_i32_0 = arith.constant 0 : i32
    %c0_i32_1 = arith.constant 0 : i32
    %c0_i32_2 = arith.constant 0 : i32
    return %arg0, %1, %c0_i32_0, %c0_i32_1 : i32, i32, i32, i32
  }
  func.func @transform_1(%arg0: i32, %arg1: i32) -> (i32, i32, i32, i32) {
    %c2_i32 = arith.constant 2 : i32
    %0 = arith.muli %c2_i32, %arg1 : i32
    %c1_i32 = arith.constant 1 : i32
    %1 = arith.addi %0, %c1_i32 : i32
    %c0_i32 = arith.constant 0 : i32
    %c0_i32_0 = arith.constant 0 : i32
    %c0_i32_1 = arith.constant 0 : i32
    return %arg0, %1, %c0_i32, %c0_i32_0 : i32, i32, i32, i32
  }
  func.func @transform_2(%arg0: i32, %arg1: i32) -> (i32, i32, i32, i32) {
    %c2_i32 = arith.constant 2 : i32
    %0 = arith.muli %c2_i32, %arg1 : i32
    %c2_i32_0 = arith.constant 2 : i32
    %1 = arith.addi %0, %c2_i32_0 : i32
    %c0_i32 = arith.constant 0 : i32
    %c0_i32_1 = arith.constant 0 : i32
    %c0_i32_2 = arith.constant 0 : i32
    return %arg0, %1, %c0_i32, %c0_i32_1 : i32, i32, i32, i32
  }
  func.func @transform_3(%arg0: i32, %arg1: i32) -> (i32, i32, i32, i32) {
    %c2_i32 = arith.constant 2 : i32
    %0 = arith.muli %c2_i32, %arg1 : i32
    %c3_i32 = arith.constant 3 : i32
    %1 = arith.addi %0, %c3_i32 : i32
    %c0_i32 = arith.constant 0 : i32
    %c0_i32_0 = arith.constant 0 : i32
    %c0_i32_1 = arith.constant 0 : i32
    return %arg0, %1, %c0_i32, %c0_i32_0 : i32, i32, i32, i32
  }
  func.func @transform_4(%arg0: i32, %arg1: i32) -> (i32, i32, i32, i32) {
    %c0_i32 = arith.constant 0 : i32
    %c0_i32_0 = arith.constant 0 : i32
    %c0_i32_1 = arith.constant 0 : i32
    %c0_i32_2 = arith.constant 0 : i32
    %c0_i32_3 = arith.constant 0 : i32
    return %c0_i32, %c0_i32_0, %c0_i32_1, %c0_i32_2 : i32, i32, i32, i32
  }
  func.func @transform_5(%arg0: i32, %arg1: i32) -> (i32, i32) {
    %c0_i32 = arith.constant 0 : i32
    %c0_i32_0 = arith.constant 0 : i32
    %c0_i32_1 = arith.constant 0 : i32
    return %c0_i32, %c0_i32_0 : i32, i32
  }
  func.func @transform_6(%arg0: i32, %arg1: i32) -> (i32, i32, i32, i32) {
    %c0_i32 = arith.constant 0 : i32
    %c0_i32_0 = arith.constant 0 : i32
    %c0_i32_1 = arith.constant 0 : i32
    return %arg0, %arg1, %c0_i32, %c0_i32_0 : i32, i32, i32, i32
  }
}

module attributes {stable_mosaic.version = 11 : i64} {
  func.func @_conv3x3_kernel(%arg0: i32, %arg1: i32, %arg2: memref<1x1x10x128xbf16, #tpu.memory_space<vmem>>, %arg3: memref<1x1x10x128xbf16, #tpu.memory_space<vmem>>, %arg4: memref<1x1x10x128xbf16, #tpu.memory_space<vmem>>, %arg5: memref<1x1x10x128xbf16, #tpu.memory_space<vmem>>, %arg6: memref<3x3x128x128xbf16, #tpu.memory_space<vmem>>, %arg7: memref<1x128xf32, #tpu.memory_space<vmem>>, %arg8: memref<1x1x4x128xbf16, #tpu.memory_space<vmem>>) attributes {dimension_semantics = [#tpu.dimension_semantics<parallel>, #tpu.dimension_semantics<parallel>], iteration_bounds = array<i64: 2, 4>, scalar_prefetch = 0 : i64, scratch_operands = 0 : i64, tpu.core_type = #tpu.core_type<tc>, window_params = [{transform_indices = @transform_0, window_bounds = array<i64: 1, 1, 10, 128>}, {transform_indices = @transform_1, window_bounds = array<i64: 1, 1, 10, 128>}, {transform_indices = @transform_2, window_bounds = array<i64: 1, 1, 10, 128>}, {transform_indices = @transform_3, window_bounds = array<i64: 1, 1, 10, 128>}, {pipeline_mode = #tpu.pipeline_mode<synchronous>, transform_indices = @transform_4, window_bounds = array<i64: 3, 3, 128, 128>}, {pipeline_mode = #tpu.pipeline_mode<synchronous>, transform_indices = @transform_5, window_bounds = array<i64: 1, 128>}, {transform_indices = @transform_6, window_bounds = array<i64: 1, 1, 4, 128>}]} {
    %c0 = arith.constant 0 : index
    %c0_0 = arith.constant 0 : index
    %c0_1 = arith.constant 0 : index
    %c0_2 = arith.constant 0 : index
    %0 = vector.load %arg2[%c0, %c0_0, %c0_1, %c0_2] : memref<1x1x10x128xbf16, #tpu.memory_space<vmem>>, vector<1x1x10x128xbf16>
    %1 = vector.shape_cast %0 : vector<1x1x10x128xbf16> to vector<10x128xbf16>
    %c0_3 = arith.constant 0 : index
    %c0_4 = arith.constant 0 : index
    %c0_5 = arith.constant 0 : index
    %c0_6 = arith.constant 0 : index
    %2 = vector.load %arg3[%c0_3, %c0_4, %c0_5, %c0_6] : memref<1x1x10x128xbf16, #tpu.memory_space<vmem>>, vector<1x1x10x128xbf16>
    %3 = vector.shape_cast %2 : vector<1x1x10x128xbf16> to vector<10x128xbf16>
    %c0_7 = arith.constant 0 : index
    %c0_8 = arith.constant 0 : index
    %c0_9 = arith.constant 0 : index
    %c0_10 = arith.constant 0 : index
    %4 = vector.load %arg4[%c0_7, %c0_8, %c0_9, %c0_10] : memref<1x1x10x128xbf16, #tpu.memory_space<vmem>>, vector<1x1x10x128xbf16>
    %5 = vector.shape_cast %4 : vector<1x1x10x128xbf16> to vector<10x128xbf16>
    %c0_11 = arith.constant 0 : index
    %c0_12 = arith.constant 0 : index
    %c0_13 = arith.constant 0 : index
    %c0_14 = arith.constant 0 : index
    %6 = vector.load %arg5[%c0_11, %c0_12, %c0_13, %c0_14] : memref<1x1x10x128xbf16, #tpu.memory_space<vmem>>, vector<1x1x10x128xbf16>
    %7 = vector.shape_cast %6 : vector<1x1x10x128xbf16> to vector<10x128xbf16>
    %cst = arith.constant 0.000000e+00 : f32
    %8 = vector.broadcast %cst : f32 to vector<8x128xf32>
    %9 = vector.extract_strided_slice %1 {offsets = [0, 0], sizes = [8, 128], strides = [1, 1]} : vector<10x128xbf16> to vector<8x128xbf16>
    %c0_15 = arith.constant 0 : index
    %c0_16 = arith.constant 0 : index
    %c0_17 = arith.constant 0 : index
    %c0_18 = arith.constant 0 : index
    %10 = vector.load %arg6[%c0_15, %c0_16, %c0_17, %c0_18] : memref<3x3x128x128xbf16, #tpu.memory_space<vmem>>, vector<1x1x128x128xbf16>
    %11 = vector.shape_cast %10 : vector<1x1x128x128xbf16> to vector<128x128xbf16>
    %cst_19 = arith.constant dense<0.000000e+00> : vector<8x128xf32>
    %12 = tpu.matmul %9, %11, %cst_19 {dimension_numbers = #tpu.dot_dimension_numbers<[1], [0], [0], [1], [0, 0, 1, 1], [], []>} : vector<8x128xbf16>, vector<128x128xbf16>, vector<8x128xf32> -> vector<8x128xf32>
    %13 = arith.addf %8, %12 : vector<8x128xf32>
    %14 = vector.extract_strided_slice %1 {offsets = [1, 0], sizes = [8, 128], strides = [1, 1]} : vector<10x128xbf16> to vector<8x128xbf16>
    %c0_20 = arith.constant 0 : index
    %c1 = arith.constant 1 : index
    %c0_21 = arith.constant 0 : index
    %c0_22 = arith.constant 0 : index
    %15 = vector.load %arg6[%c0_20, %c1, %c0_21, %c0_22] : memref<3x3x128x128xbf16, #tpu.memory_space<vmem>>, vector<1x1x128x128xbf16>
    %16 = vector.shape_cast %15 : vector<1x1x128x128xbf16> to vector<128x128xbf16>
    %cst_23 = arith.constant dense<0.000000e+00> : vector<8x128xf32>
    %17 = tpu.matmul %14, %16, %cst_23 {dimension_numbers = #tpu.dot_dimension_numbers<[1], [0], [0], [1], [0, 0, 1, 1], [], []>} : vector<8x128xbf16>, vector<128x128xbf16>, vector<8x128xf32> -> vector<8x128xf32>
    %18 = arith.addf %13, %17 : vector<8x128xf32>
    %19 = vector.extract_strided_slice %1 {offsets = [2, 0], sizes = [8, 128], strides = [1, 1]} : vector<10x128xbf16> to vector<8x128xbf16>
    %c0_24 = arith.constant 0 : index
    %c2 = arith.constant 2 : index
    %c0_25 = arith.constant 0 : index
    %c0_26 = arith.constant 0 : index
    %20 = vector.load %arg6[%c0_24, %c2, %c0_25, %c0_26] : memref<3x3x128x128xbf16, #tpu.memory_space<vmem>>, vector<1x1x128x128xbf16>
    %21 = vector.shape_cast %20 : vector<1x1x128x128xbf16> to vector<128x128xbf16>
    %cst_27 = arith.constant dense<0.000000e+00> : vector<8x128xf32>
    %22 = tpu.matmul %19, %21, %cst_27 {dimension_numbers = #tpu.dot_dimension_numbers<[1], [0], [0], [1], [0, 0, 1, 1], [], []>} : vector<8x128xbf16>, vector<128x128xbf16>, vector<8x128xf32> -> vector<8x128xf32>
    %23 = arith.addf %18, %22 : vector<8x128xf32>
    %24 = vector.extract_strided_slice %3 {offsets = [0, 0], sizes = [8, 128], strides = [1, 1]} : vector<10x128xbf16> to vector<8x128xbf16>
    %c1_28 = arith.constant 1 : index
    %c0_29 = arith.constant 0 : index
    %c0_30 = arith.constant 0 : index
    %c0_31 = arith.constant 0 : index
    %25 = vector.load %arg6[%c1_28, %c0_29, %c0_30, %c0_31] : memref<3x3x128x128xbf16, #tpu.memory_space<vmem>>, vector<1x1x128x128xbf16>
    %26 = vector.shape_cast %25 : vector<1x1x128x128xbf16> to vector<128x128xbf16>
    %cst_32 = arith.constant dense<0.000000e+00> : vector<8x128xf32>
    %27 = tpu.matmul %24, %26, %cst_32 {dimension_numbers = #tpu.dot_dimension_numbers<[1], [0], [0], [1], [0, 0, 1, 1], [], []>} : vector<8x128xbf16>, vector<128x128xbf16>, vector<8x128xf32> -> vector<8x128xf32>
    %28 = arith.addf %23, %27 : vector<8x128xf32>
    %29 = vector.extract_strided_slice %3 {offsets = [1, 0], sizes = [8, 128], strides = [1, 1]} : vector<10x128xbf16> to vector<8x128xbf16>
    %c1_33 = arith.constant 1 : index
    %c1_34 = arith.constant 1 : index
    %c0_35 = arith.constant 0 : index
    %c0_36 = arith.constant 0 : index
    %30 = vector.load %arg6[%c1_33, %c1_34, %c0_35, %c0_36] : memref<3x3x128x128xbf16, #tpu.memory_space<vmem>>, vector<1x1x128x128xbf16>
    %31 = vector.shape_cast %30 : vector<1x1x128x128xbf16> to vector<128x128xbf16>
    %cst_37 = arith.constant dense<0.000000e+00> : vector<8x128xf32>
    %32 = tpu.matmul %29, %31, %cst_37 {dimension_numbers = #tpu.dot_dimension_numbers<[1], [0], [0], [1], [0, 0, 1, 1], [], []>} : vector<8x128xbf16>, vector<128x128xbf16>, vector<8x128xf32> -> vector<8x128xf32>
    %33 = arith.addf %28, %32 : vector<8x128xf32>
    %34 = vector.extract_strided_slice %3 {offsets = [2, 0], sizes = [8, 128], strides = [1, 1]} : vector<10x128xbf16> to vector<8x128xbf16>
    %c1_38 = arith.constant 1 : index
    %c2_39 = arith.constant 2 : index
    %c0_40 = arith.constant 0 : index
    %c0_41 = arith.constant 0 : index
    %35 = vector.load %arg6[%c1_38, %c2_39, %c0_40, %c0_41] : memref<3x3x128x128xbf16, #tpu.memory_space<vmem>>, vector<1x1x128x128xbf16>
    %36 = vector.shape_cast %35 : vector<1x1x128x128xbf16> to vector<128x128xbf16>
    %cst_42 = arith.constant dense<0.000000e+00> : vector<8x128xf32>
    %37 = tpu.matmul %34, %36, %cst_42 {dimension_numbers = #tpu.dot_dimension_numbers<[1], [0], [0], [1], [0, 0, 1, 1], [], []>} : vector<8x128xbf16>, vector<128x128xbf16>, vector<8x128xf32> -> vector<8x128xf32>
    %38 = arith.addf %33, %37 : vector<8x128xf32>
    %39 = vector.extract_strided_slice %5 {offsets = [0, 0], sizes = [8, 128], strides = [1, 1]} : vector<10x128xbf16> to vector<8x128xbf16>
    %c2_43 = arith.constant 2 : index
    %c0_44 = arith.constant 0 : index
    %c0_45 = arith.constant 0 : index
    %c0_46 = arith.constant 0 : index
    %40 = vector.load %arg6[%c2_43, %c0_44, %c0_45, %c0_46] : memref<3x3x128x128xbf16, #tpu.memory_space<vmem>>, vector<1x1x128x128xbf16>
    %41 = vector.shape_cast %40 : vector<1x1x128x128xbf16> to vector<128x128xbf16>
    %cst_47 = arith.constant dense<0.000000e+00> : vector<8x128xf32>
    %42 = tpu.matmul %39, %41, %cst_47 {dimension_numbers = #tpu.dot_dimension_numbers<[1], [0], [0], [1], [0, 0, 1, 1], [], []>} : vector<8x128xbf16>, vector<128x128xbf16>, vector<8x128xf32> -> vector<8x128xf32>
    %43 = arith.addf %38, %42 : vector<8x128xf32>
    %44 = vector.extract_strided_slice %5 {offsets = [1, 0], sizes = [8, 128], strides = [1, 1]} : vector<10x128xbf16> to vector<8x128xbf16>
    %c2_48 = arith.constant 2 : index
    %c1_49 = arith.constant 1 : index
    %c0_50 = arith.constant 0 : index
    %c0_51 = arith.constant 0 : index
    %45 = vector.load %arg6[%c2_48, %c1_49, %c0_50, %c0_51] : memref<3x3x128x128xbf16, #tpu.memory_space<vmem>>, vector<1x1x128x128xbf16>
    %46 = vector.shape_cast %45 : vector<1x1x128x128xbf16> to vector<128x128xbf16>
    %cst_52 = arith.constant dense<0.000000e+00> : vector<8x128xf32>
    %47 = tpu.matmul %44, %46, %cst_52 {dimension_numbers = #tpu.dot_dimension_numbers<[1], [0], [0], [1], [0, 0, 1, 1], [], []>} : vector<8x128xbf16>, vector<128x128xbf16>, vector<8x128xf32> -> vector<8x128xf32>
    %48 = arith.addf %43, %47 : vector<8x128xf32>
    %49 = vector.extract_strided_slice %5 {offsets = [2, 0], sizes = [8, 128], strides = [1, 1]} : vector<10x128xbf16> to vector<8x128xbf16>
    %c2_53 = arith.constant 2 : index
    %c2_54 = arith.constant 2 : index
    %c0_55 = arith.constant 0 : index
    %c0_56 = arith.constant 0 : index
    %50 = vector.load %arg6[%c2_53, %c2_54, %c0_55, %c0_56] : memref<3x3x128x128xbf16, #tpu.memory_space<vmem>>, vector<1x1x128x128xbf16>
    %51 = vector.shape_cast %50 : vector<1x1x128x128xbf16> to vector<128x128xbf16>
    %cst_57 = arith.constant dense<0.000000e+00> : vector<8x128xf32>
    %52 = tpu.matmul %49, %51, %cst_57 {dimension_numbers = #tpu.dot_dimension_numbers<[1], [0], [0], [1], [0, 0, 1, 1], [], []>} : vector<8x128xbf16>, vector<128x128xbf16>, vector<8x128xf32> -> vector<8x128xf32>
    %53 = arith.addf %48, %52 : vector<8x128xf32>
    %c0_58 = arith.constant 0 : index
    %c0_59 = arith.constant 0 : index
    %54 = vector.load %arg7[%c0_58, %c0_59] : memref<1x128xf32, #tpu.memory_space<vmem>>, vector<1x128xf32>
    %55 = vector.broadcast %54 : vector<1x128xf32> to vector<8x128xf32>
    %56 = arith.addf %53, %55 : vector<8x128xf32>
    %cst_60 = arith.constant 0.000000e+00 : f32
    %57 = vector.broadcast %cst_60 : f32 to vector<8x128xf32>
    %58 = vector.extract_strided_slice %3 {offsets = [0, 0], sizes = [8, 128], strides = [1, 1]} : vector<10x128xbf16> to vector<8x128xbf16>
    %c0_61 = arith.constant 0 : index
    %c0_62 = arith.constant 0 : index
    %c0_63 = arith.constant 0 : index
    %c0_64 = arith.constant 0 : index
    %59 = vector.load %arg6[%c0_61, %c0_62, %c0_63, %c0_64] : memref<3x3x128x128xbf16, #tpu.memory_space<vmem>>, vector<1x1x128x128xbf16>
    %60 = vector.shape_cast %59 : vector<1x1x128x128xbf16> to vector<128x128xbf16>
    %cst_65 = arith.constant dense<0.000000e+00> : vector<8x128xf32>
    %61 = tpu.matmul %58, %60, %cst_65 {dimension_numbers = #tpu.dot_dimension_numbers<[1], [0], [0], [1], [0, 0, 1, 1], [], []>} : vector<8x128xbf16>, vector<128x128xbf16>, vector<8x128xf32> -> vector<8x128xf32>
    %62 = arith.addf %57, %61 : vector<8x128xf32>
    %63 = vector.extract_strided_slice %3 {offsets = [1, 0], sizes = [8, 128], strides = [1, 1]} : vector<10x128xbf16> to vector<8x128xbf16>
    %c0_66 = arith.constant 0 : index
    %c1_67 = arith.constant 1 : index
    %c0_68 = arith.constant 0 : index
    %c0_69 = arith.constant 0 : index
    %64 = vector.load %arg6[%c0_66, %c1_67, %c0_68, %c0_69] : memref<3x3x128x128xbf16, #tpu.memory_space<vmem>>, vector<1x1x128x128xbf16>
    %65 = vector.shape_cast %64 : vector<1x1x128x128xbf16> to vector<128x128xbf16>
    %cst_70 = arith.constant dense<0.000000e+00> : vector<8x128xf32>
    %66 = tpu.matmul %63, %65, %cst_70 {dimension_numbers = #tpu.dot_dimension_numbers<[1], [0], [0], [1], [0, 0, 1, 1], [], []>} : vector<8x128xbf16>, vector<128x128xbf16>, vector<8x128xf32> -> vector<8x128xf32>
    %67 = arith.addf %62, %66 : vector<8x128xf32>
    %68 = vector.extract_strided_slice %3 {offsets = [2, 0], sizes = [8, 128], strides = [1, 1]} : vector<10x128xbf16> to vector<8x128xbf16>
    %c0_71 = arith.constant 0 : index
    %c2_72 = arith.constant 2 : index
    %c0_73 = arith.constant 0 : index
    %c0_74 = arith.constant 0 : index
    %69 = vector.load %arg6[%c0_71, %c2_72, %c0_73, %c0_74] : memref<3x3x128x128xbf16, #tpu.memory_space<vmem>>, vector<1x1x128x128xbf16>
    %70 = vector.shape_cast %69 : vector<1x1x128x128xbf16> to vector<128x128xbf16>
    %cst_75 = arith.constant dense<0.000000e+00> : vector<8x128xf32>
    %71 = tpu.matmul %68, %70, %cst_75 {dimension_numbers = #tpu.dot_dimension_numbers<[1], [0], [0], [1], [0, 0, 1, 1], [], []>} : vector<8x128xbf16>, vector<128x128xbf16>, vector<8x128xf32> -> vector<8x128xf32>
    %72 = arith.addf %67, %71 : vector<8x128xf32>
    %73 = vector.extract_strided_slice %5 {offsets = [0, 0], sizes = [8, 128], strides = [1, 1]} : vector<10x128xbf16> to vector<8x128xbf16>
    %c1_76 = arith.constant 1 : index
    %c0_77 = arith.constant 0 : index
    %c0_78 = arith.constant 0 : index
    %c0_79 = arith.constant 0 : index
    %74 = vector.load %arg6[%c1_76, %c0_77, %c0_78, %c0_79] : memref<3x3x128x128xbf16, #tpu.memory_space<vmem>>, vector<1x1x128x128xbf16>
    %75 = vector.shape_cast %74 : vector<1x1x128x128xbf16> to vector<128x128xbf16>
    %cst_80 = arith.constant dense<0.000000e+00> : vector<8x128xf32>
    %76 = tpu.matmul %73, %75, %cst_80 {dimension_numbers = #tpu.dot_dimension_numbers<[1], [0], [0], [1], [0, 0, 1, 1], [], []>} : vector<8x128xbf16>, vector<128x128xbf16>, vector<8x128xf32> -> vector<8x128xf32>
    %77 = arith.addf %72, %76 : vector<8x128xf32>
    %78 = vector.extract_strided_slice %5 {offsets = [1, 0], sizes = [8, 128], strides = [1, 1]} : vector<10x128xbf16> to vector<8x128xbf16>
    %c1_81 = arith.constant 1 : index
    %c1_82 = arith.constant 1 : index
    %c0_83 = arith.constant 0 : index
    %c0_84 = arith.constant 0 : index
    %79 = vector.load %arg6[%c1_81, %c1_82, %c0_83, %c0_84] : memref<3x3x128x128xbf16, #tpu.memory_space<vmem>>, vector<1x1x128x128xbf16>
    %80 = vector.shape_cast %79 : vector<1x1x128x128xbf16> to vector<128x128xbf16>
    %cst_85 = arith.constant dense<0.000000e+00> : vector<8x128xf32>
    %81 = tpu.matmul %78, %80, %cst_85 {dimension_numbers = #tpu.dot_dimension_numbers<[1], [0], [0], [1], [0, 0, 1, 1], [], []>} : vector<8x128xbf16>, vector<128x128xbf16>, vector<8x128xf32> -> vector<8x128xf32>
    %82 = arith.addf %77, %81 : vector<8x128xf32>
    %83 = vector.extract_strided_slice %5 {offsets = [2, 0], sizes = [8, 128], strides = [1, 1]} : vector<10x128xbf16> to vector<8x128xbf16>
    %c1_86 = arith.constant 1 : index
    %c2_87 = arith.constant 2 : index
    %c0_88 = arith.constant 0 : index
    %c0_89 = arith.constant 0 : index
    %84 = vector.load %arg6[%c1_86, %c2_87, %c0_88, %c0_89] : memref<3x3x128x128xbf16, #tpu.memory_space<vmem>>, vector<1x1x128x128xbf16>
    %85 = vector.shape_cast %84 : vector<1x1x128x128xbf16> to vector<128x128xbf16>
    %cst_90 = arith.constant dense<0.000000e+00> : vector<8x128xf32>
    %86 = tpu.matmul %83, %85, %cst_90 {dimension_numbers = #tpu.dot_dimension_numbers<[1], [0], [0], [1], [0, 0, 1, 1], [], []>} : vector<8x128xbf16>, vector<128x128xbf16>, vector<8x128xf32> -> vector<8x128xf32>
    %87 = arith.addf %82, %86 : vector<8x128xf32>
    %88 = vector.extract_strided_slice %7 {offsets = [0, 0], sizes = [8, 128], strides = [1, 1]} : vector<10x128xbf16> to vector<8x128xbf16>
    %c2_91 = arith.constant 2 : index
    %c0_92 = arith.constant 0 : index
    %c0_93 = arith.constant 0 : index
    %c0_94 = arith.constant 0 : index
    %89 = vector.load %arg6[%c2_91, %c0_92, %c0_93, %c0_94] : memref<3x3x128x128xbf16, #tpu.memory_space<vmem>>, vector<1x1x128x128xbf16>
    %90 = vector.shape_cast %89 : vector<1x1x128x128xbf16> to vector<128x128xbf16>
    %cst_95 = arith.constant dense<0.000000e+00> : vector<8x128xf32>
    %91 = tpu.matmul %88, %90, %cst_95 {dimension_numbers = #tpu.dot_dimension_numbers<[1], [0], [0], [1], [0, 0, 1, 1], [], []>} : vector<8x128xbf16>, vector<128x128xbf16>, vector<8x128xf32> -> vector<8x128xf32>
    %92 = arith.addf %87, %91 : vector<8x128xf32>
    %93 = vector.extract_strided_slice %7 {offsets = [1, 0], sizes = [8, 128], strides = [1, 1]} : vector<10x128xbf16> to vector<8x128xbf16>
    %c2_96 = arith.constant 2 : index
    %c1_97 = arith.constant 1 : index
    %c0_98 = arith.constant 0 : index
    %c0_99 = arith.constant 0 : index
    %94 = vector.load %arg6[%c2_96, %c1_97, %c0_98, %c0_99] : memref<3x3x128x128xbf16, #tpu.memory_space<vmem>>, vector<1x1x128x128xbf16>
    %95 = vector.shape_cast %94 : vector<1x1x128x128xbf16> to vector<128x128xbf16>
    %cst_100 = arith.constant dense<0.000000e+00> : vector<8x128xf32>
    %96 = tpu.matmul %93, %95, %cst_100 {dimension_numbers = #tpu.dot_dimension_numbers<[1], [0], [0], [1], [0, 0, 1, 1], [], []>} : vector<8x128xbf16>, vector<128x128xbf16>, vector<8x128xf32> -> vector<8x128xf32>
    %97 = arith.addf %92, %96 : vector<8x128xf32>
    %98 = vector.extract_strided_slice %7 {offsets = [2, 0], sizes = [8, 128], strides = [1, 1]} : vector<10x128xbf16> to vector<8x128xbf16>
    %c2_101 = arith.constant 2 : index
    %c2_102 = arith.constant 2 : index
    %c0_103 = arith.constant 0 : index
    %c0_104 = arith.constant 0 : index
    %99 = vector.load %arg6[%c2_101, %c2_102, %c0_103, %c0_104] : memref<3x3x128x128xbf16, #tpu.memory_space<vmem>>, vector<1x1x128x128xbf16>
    %100 = vector.shape_cast %99 : vector<1x1x128x128xbf16> to vector<128x128xbf16>
    %cst_105 = arith.constant dense<0.000000e+00> : vector<8x128xf32>
    %101 = tpu.matmul %98, %100, %cst_105 {dimension_numbers = #tpu.dot_dimension_numbers<[1], [0], [0], [1], [0, 0, 1, 1], [], []>} : vector<8x128xbf16>, vector<128x128xbf16>, vector<8x128xf32> -> vector<8x128xf32>
    %102 = arith.addf %97, %101 : vector<8x128xf32>
    %c0_106 = arith.constant 0 : index
    %c0_107 = arith.constant 0 : index
    %103 = vector.load %arg7[%c0_106, %c0_107] : memref<1x128xf32, #tpu.memory_space<vmem>>, vector<1x128xf32>
    %104 = vector.broadcast %103 : vector<1x128xf32> to vector<8x128xf32>
    %105 = arith.addf %102, %104 : vector<8x128xf32>
    %cst_108 = arith.constant 0.000000e+00 : f32
    %106 = vector.broadcast %cst_108 : f32 to vector<8x128xf32>
    %107 = arith.maximumf %56, %106 : vector<8x128xf32>
    %cst_109 = arith.constant 0.000000e+00 : f32
    %108 = vector.broadcast %cst_109 : f32 to vector<8x128xf32>
    %109 = arith.maximumf %105, %108 : vector<8x128xf32>
    %110 = arith.maximumf %107, %109 : vector<8x128xf32>
    %111 = tpu.iota {dimensions = array<i32: 0>} : vector<4x8xi32>
    %112 = tpu.iota {dimensions = array<i32: 1>} : vector<4x8xi32>
    %c2_i32 = arith.constant 2 : i32
    %113 = vector.broadcast %c2_i32 : i32 to vector<4x8xi32>
    %114 = arith.muli %113, %111 : vector<4x8xi32>
    %115 = arith.cmpi eq, %112, %114 : vector<4x8xi32>
    %116 = arith.extui %115 : vector<4x8xi1> to vector<4x8xi32>
    %117 = arith.sitofp %116 : vector<4x8xi32> to vector<4x8xf32>
    %c2_i32_110 = arith.constant 2 : i32
    %118 = vector.broadcast %c2_i32_110 : i32 to vector<4x8xi32>
    %119 = arith.muli %118, %111 : vector<4x8xi32>
    %c1_i32 = arith.constant 1 : i32
    %120 = vector.broadcast %c1_i32 : i32 to vector<4x8xi32>
    %121 = arith.addi %119, %120 : vector<4x8xi32>
    %122 = arith.cmpi eq, %112, %121 : vector<4x8xi32>
    %123 = arith.extui %122 : vector<4x8xi1> to vector<4x8xi32>
    %124 = arith.sitofp %123 : vector<4x8xi32> to vector<4x8xf32>
    %cst_111 = arith.constant dense<0.000000e+00> : vector<4x128xf32>
    %125 = tpu.matmul %117, %110, %cst_111 {dimension_numbers = #tpu.dot_dimension_numbers<[1], [0], [0], [1], [0, 0, 1, 1], [], []>} : vector<4x8xf32>, vector<8x128xf32>, vector<4x128xf32> -> vector<4x128xf32>
    %cst_112 = arith.constant dense<0.000000e+00> : vector<4x128xf32>
    %126 = tpu.matmul %124, %110, %cst_112 {dimension_numbers = #tpu.dot_dimension_numbers<[1], [0], [0], [1], [0, 0, 1, 1], [], []>} : vector<4x8xf32>, vector<8x128xf32>, vector<4x128xf32> -> vector<4x128xf32>
    %127 = arith.maximumf %125, %126 : vector<4x128xf32>
    %128 = arith.truncf %127 : vector<4x128xf32> to vector<4x128xbf16>
    %c0_113 = arith.constant 0 : index
    %c0_114 = arith.constant 0 : index
    %c0_115 = arith.constant 0 : index
    %c0_116 = arith.constant 0 : index
    %129 = vector.load %arg8[%c0_113, %c0_114, %c0_115, %c0_116] : memref<1x1x4x128xbf16, #tpu.memory_space<vmem>>, vector<1x1x4x128xbf16>
    %130 = vector.shape_cast %129 : vector<1x1x4x128xbf16> to vector<4x128xbf16>
    %131 = vector.shape_cast %128 : vector<4x128xbf16> to vector<1x1x4x128xbf16>
    tpu.vector_store %arg8[%c0_113, %c0_114, %c0_115, %c0_116], %131 {strides = array<i32>} : memref<1x1x4x128xbf16, #tpu.memory_space<vmem>>, vector<1x1x4x128xbf16>,
    return
  }
  func.func @transform_0(%arg0: i32, %arg1: i32) -> (i32, i32, i32, i32) {
    %c2_i32 = arith.constant 2 : i32
    %0 = arith.muli %c2_i32, %arg1 : i32
    %c0_i32 = arith.constant 0 : i32
    %1 = arith.addi %0, %c0_i32 : i32
    %c0_i32_0 = arith.constant 0 : i32
    %c0_i32_1 = arith.constant 0 : i32
    %c0_i32_2 = arith.constant 0 : i32
    return %arg0, %1, %c0_i32_0, %c0_i32_1 : i32, i32, i32, i32
  }
  func.func @transform_1(%arg0: i32, %arg1: i32) -> (i32, i32, i32, i32) {
    %c2_i32 = arith.constant 2 : i32
    %0 = arith.muli %c2_i32, %arg1 : i32
    %c1_i32 = arith.constant 1 : i32
    %1 = arith.addi %0, %c1_i32 : i32
    %c0_i32 = arith.constant 0 : i32
    %c0_i32_0 = arith.constant 0 : i32
    %c0_i32_1 = arith.constant 0 : i32
    return %arg0, %1, %c0_i32, %c0_i32_0 : i32, i32, i32, i32
  }
  func.func @transform_2(%arg0: i32, %arg1: i32) -> (i32, i32, i32, i32) {
    %c2_i32 = arith.constant 2 : i32
    %0 = arith.muli %c2_i32, %arg1 : i32
    %c2_i32_0 = arith.constant 2 : i32
    %1 = arith.addi %0, %c2_i32_0 : i32
    %c0_i32 = arith.constant 0 : i32
    %c0_i32_1 = arith.constant 0 : i32
    %c0_i32_2 = arith.constant 0 : i32
    return %arg0, %1, %c0_i32, %c0_i32_1 : i32, i32, i32, i32
  }
  func.func @transform_3(%arg0: i32, %arg1: i32) -> (i32, i32, i32, i32) {
    %c2_i32 = arith.constant 2 : i32
    %0 = arith.muli %c2_i32, %arg1 : i32
    %c3_i32 = arith.constant 3 : i32
    %1 = arith.addi %0, %c3_i32 : i32
    %c0_i32 = arith.constant 0 : i32
    %c0_i32_0 = arith.constant 0 : i32
    %c0_i32_1 = arith.constant 0 : i32
    return %arg0, %1, %c0_i32, %c0_i32_0 : i32, i32, i32, i32
  }
  func.func @transform_4(%arg0: i32, %arg1: i32) -> (i32, i32, i32, i32) {
    %c0_i32 = arith.constant 0 : i32
    %c0_i32_0 = arith.constant 0 : i32
    %c0_i32_1 = arith.constant 0 : i32
    %c0_i32_2 = arith.constant 0 : i32
    %c0_i32_3 = arith.constant 0 : i32
    return %c0_i32, %c0_i32_0, %c0_i32_1, %c0_i32_2 : i32, i32, i32, i32
  }
  func.func @transform_5(%arg0: i32, %arg1: i32) -> (i32, i32) {
    %c0_i32 = arith.constant 0 : i32
    %c0_i32_0 = arith.constant 0 : i32
    %c0_i32_1 = arith.constant 0 : i32
    return %c0_i32, %c0_i32_0 : i32, i32
  }
  func.func @transform_6(%arg0: i32, %arg1: i32) -> (i32, i32, i32, i32) {
    %c0_i32 = arith.constant 0 : i32
    %c0_i32_0 = arith.constant 0 : i32
    %c0_i32_1 = arith.constant 0 : i32
    return %arg0, %arg1, %c0_i32, %c0_i32_0 : i32, i32, i32, i32
  }
}

module attributes {stable_mosaic.version = 11 : i64} {
  func.func @_conv3x3_kernel(%arg0: i32, %arg1: i32, %arg2: memref<1x1x6x128xbf16, #tpu.memory_space<vmem>>, %arg3: memref<1x1x6x128xbf16, #tpu.memory_space<vmem>>, %arg4: memref<1x1x6x128xbf16, #tpu.memory_space<vmem>>, %arg5: memref<3x3x128x128xbf16, #tpu.memory_space<vmem>>, %arg6: memref<1x128xf32, #tpu.memory_space<vmem>>, %arg7: memref<1x1x4x128xf32, #tpu.memory_space<vmem>>) attributes {dimension_semantics = [#tpu.dimension_semantics<parallel>, #tpu.dimension_semantics<parallel>], iteration_bounds = array<i64: 2, 4>, scalar_prefetch = 0 : i64, scratch_operands = 0 : i64, tpu.core_type = #tpu.core_type<tc>, window_params = [{transform_indices = @transform_0, window_bounds = array<i64: 1, 1, 6, 128>}, {transform_indices = @transform_1, window_bounds = array<i64: 1, 1, 6, 128>}, {transform_indices = @transform_2, window_bounds = array<i64: 1, 1, 6, 128>}, {pipeline_mode = #tpu.pipeline_mode<synchronous>, transform_indices = @transform_3, window_bounds = array<i64: 3, 3, 128, 128>}, {pipeline_mode = #tpu.pipeline_mode<synchronous>, transform_indices = @transform_4, window_bounds = array<i64: 1, 128>}, {transform_indices = @transform_5, window_bounds = array<i64: 1, 1, 4, 128>}]} {
    %c0 = arith.constant 0 : index
    %c0_0 = arith.constant 0 : index
    %c0_1 = arith.constant 0 : index
    %c0_2 = arith.constant 0 : index
    %0 = vector.load %arg2[%c0, %c0_0, %c0_1, %c0_2] : memref<1x1x6x128xbf16, #tpu.memory_space<vmem>>, vector<1x1x6x128xbf16>
    %1 = vector.shape_cast %0 : vector<1x1x6x128xbf16> to vector<6x128xbf16>
    %c0_3 = arith.constant 0 : index
    %c0_4 = arith.constant 0 : index
    %c0_5 = arith.constant 0 : index
    %c0_6 = arith.constant 0 : index
    %2 = vector.load %arg3[%c0_3, %c0_4, %c0_5, %c0_6] : memref<1x1x6x128xbf16, #tpu.memory_space<vmem>>, vector<1x1x6x128xbf16>
    %3 = vector.shape_cast %2 : vector<1x1x6x128xbf16> to vector<6x128xbf16>
    %c0_7 = arith.constant 0 : index
    %c0_8 = arith.constant 0 : index
    %c0_9 = arith.constant 0 : index
    %c0_10 = arith.constant 0 : index
    %4 = vector.load %arg4[%c0_7, %c0_8, %c0_9, %c0_10] : memref<1x1x6x128xbf16, #tpu.memory_space<vmem>>, vector<1x1x6x128xbf16>
    %5 = vector.shape_cast %4 : vector<1x1x6x128xbf16> to vector<6x128xbf16>
    %cst = arith.constant 0.000000e+00 : f32
    %6 = vector.broadcast %cst : f32 to vector<4x128xf32>
    %7 = vector.extract_strided_slice %1 {offsets = [0, 0], sizes = [4, 128], strides = [1, 1]} : vector<6x128xbf16> to vector<4x128xbf16>
    %c0_11 = arith.constant 0 : index
    %c0_12 = arith.constant 0 : index
    %c0_13 = arith.constant 0 : index
    %c0_14 = arith.constant 0 : index
    %8 = vector.load %arg5[%c0_11, %c0_12, %c0_13, %c0_14] : memref<3x3x128x128xbf16, #tpu.memory_space<vmem>>, vector<1x1x128x128xbf16>
    %9 = vector.shape_cast %8 : vector<1x1x128x128xbf16> to vector<128x128xbf16>
    %cst_15 = arith.constant dense<0.000000e+00> : vector<4x128xf32>
    %10 = tpu.matmul %7, %9, %cst_15 {dimension_numbers = #tpu.dot_dimension_numbers<[1], [0], [0], [1], [0, 0, 1, 1], [], []>} : vector<4x128xbf16>, vector<128x128xbf16>, vector<4x128xf32> -> vector<4x128xf32>
    %11 = arith.addf %6, %10 : vector<4x128xf32>
    %12 = vector.extract_strided_slice %1 {offsets = [1, 0], sizes = [4, 128], strides = [1, 1]} : vector<6x128xbf16> to vector<4x128xbf16>
    %c0_16 = arith.constant 0 : index
    %c1 = arith.constant 1 : index
    %c0_17 = arith.constant 0 : index
    %c0_18 = arith.constant 0 : index
    %13 = vector.load %arg5[%c0_16, %c1, %c0_17, %c0_18] : memref<3x3x128x128xbf16, #tpu.memory_space<vmem>>, vector<1x1x128x128xbf16>
    %14 = vector.shape_cast %13 : vector<1x1x128x128xbf16> to vector<128x128xbf16>
    %cst_19 = arith.constant dense<0.000000e+00> : vector<4x128xf32>
    %15 = tpu.matmul %12, %14, %cst_19 {dimension_numbers = #tpu.dot_dimension_numbers<[1], [0], [0], [1], [0, 0, 1, 1], [], []>} : vector<4x128xbf16>, vector<128x128xbf16>, vector<4x128xf32> -> vector<4x128xf32>
    %16 = arith.addf %11, %15 : vector<4x128xf32>
    %17 = vector.extract_strided_slice %1 {offsets = [2, 0], sizes = [4, 128], strides = [1, 1]} : vector<6x128xbf16> to vector<4x128xbf16>
    %c0_20 = arith.constant 0 : index
    %c2 = arith.constant 2 : index
    %c0_21 = arith.constant 0 : index
    %c0_22 = arith.constant 0 : index
    %18 = vector.load %arg5[%c0_20, %c2, %c0_21, %c0_22] : memref<3x3x128x128xbf16, #tpu.memory_space<vmem>>, vector<1x1x128x128xbf16>
    %19 = vector.shape_cast %18 : vector<1x1x128x128xbf16> to vector<128x128xbf16>
    %cst_23 = arith.constant dense<0.000000e+00> : vector<4x128xf32>
    %20 = tpu.matmul %17, %19, %cst_23 {dimension_numbers = #tpu.dot_dimension_numbers<[1], [0], [0], [1], [0, 0, 1, 1], [], []>} : vector<4x128xbf16>, vector<128x128xbf16>, vector<4x128xf32> -> vector<4x128xf32>
    %21 = arith.addf %16, %20 : vector<4x128xf32>
    %22 = vector.extract_strided_slice %3 {offsets = [0, 0], sizes = [4, 128], strides = [1, 1]} : vector<6x128xbf16> to vector<4x128xbf16>
    %c1_24 = arith.constant 1 : index
    %c0_25 = arith.constant 0 : index
    %c0_26 = arith.constant 0 : index
    %c0_27 = arith.constant 0 : index
    %23 = vector.load %arg5[%c1_24, %c0_25, %c0_26, %c0_27] : memref<3x3x128x128xbf16, #tpu.memory_space<vmem>>, vector<1x1x128x128xbf16>
    %24 = vector.shape_cast %23 : vector<1x1x128x128xbf16> to vector<128x128xbf16>
    %cst_28 = arith.constant dense<0.000000e+00> : vector<4x128xf32>
    %25 = tpu.matmul %22, %24, %cst_28 {dimension_numbers = #tpu.dot_dimension_numbers<[1], [0], [0], [1], [0, 0, 1, 1], [], []>} : vector<4x128xbf16>, vector<128x128xbf16>, vector<4x128xf32> -> vector<4x128xf32>
    %26 = arith.addf %21, %25 : vector<4x128xf32>
    %27 = vector.extract_strided_slice %3 {offsets = [1, 0], sizes = [4, 128], strides = [1, 1]} : vector<6x128xbf16> to vector<4x128xbf16>
    %c1_29 = arith.constant 1 : index
    %c1_30 = arith.constant 1 : index
    %c0_31 = arith.constant 0 : index
    %c0_32 = arith.constant 0 : index
    %28 = vector.load %arg5[%c1_29, %c1_30, %c0_31, %c0_32] : memref<3x3x128x128xbf16, #tpu.memory_space<vmem>>, vector<1x1x128x128xbf16>
    %29 = vector.shape_cast %28 : vector<1x1x128x128xbf16> to vector<128x128xbf16>
    %cst_33 = arith.constant dense<0.000000e+00> : vector<4x128xf32>
    %30 = tpu.matmul %27, %29, %cst_33 {dimension_numbers = #tpu.dot_dimension_numbers<[1], [0], [0], [1], [0, 0, 1, 1], [], []>} : vector<4x128xbf16>, vector<128x128xbf16>, vector<4x128xf32> -> vector<4x128xf32>
    %31 = arith.addf %26, %30 : vector<4x128xf32>
    %32 = vector.extract_strided_slice %3 {offsets = [2, 0], sizes = [4, 128], strides = [1, 1]} : vector<6x128xbf16> to vector<4x128xbf16>
    %c1_34 = arith.constant 1 : index
    %c2_35 = arith.constant 2 : index
    %c0_36 = arith.constant 0 : index
    %c0_37 = arith.constant 0 : index
    %33 = vector.load %arg5[%c1_34, %c2_35, %c0_36, %c0_37] : memref<3x3x128x128xbf16, #tpu.memory_space<vmem>>, vector<1x1x128x128xbf16>
    %34 = vector.shape_cast %33 : vector<1x1x128x128xbf16> to vector<128x128xbf16>
    %cst_38 = arith.constant dense<0.000000e+00> : vector<4x128xf32>
    %35 = tpu.matmul %32, %34, %cst_38 {dimension_numbers = #tpu.dot_dimension_numbers<[1], [0], [0], [1], [0, 0, 1, 1], [], []>} : vector<4x128xbf16>, vector<128x128xbf16>, vector<4x128xf32> -> vector<4x128xf32>
    %36 = arith.addf %31, %35 : vector<4x128xf32>
    %37 = vector.extract_strided_slice %5 {offsets = [0, 0], sizes = [4, 128], strides = [1, 1]} : vector<6x128xbf16> to vector<4x128xbf16>
    %c2_39 = arith.constant 2 : index
    %c0_40 = arith.constant 0 : index
    %c0_41 = arith.constant 0 : index
    %c0_42 = arith.constant 0 : index
    %38 = vector.load %arg5[%c2_39, %c0_40, %c0_41, %c0_42] : memref<3x3x128x128xbf16, #tpu.memory_space<vmem>>, vector<1x1x128x128xbf16>
    %39 = vector.shape_cast %38 : vector<1x1x128x128xbf16> to vector<128x128xbf16>
    %cst_43 = arith.constant dense<0.000000e+00> : vector<4x128xf32>
    %40 = tpu.matmul %37, %39, %cst_43 {dimension_numbers = #tpu.dot_dimension_numbers<[1], [0], [0], [1], [0, 0, 1, 1], [], []>} : vector<4x128xbf16>, vector<128x128xbf16>, vector<4x128xf32> -> vector<4x128xf32>
    %41 = arith.addf %36, %40 : vector<4x128xf32>
    %42 = vector.extract_strided_slice %5 {offsets = [1, 0], sizes = [4, 128], strides = [1, 1]} : vector<6x128xbf16> to vector<4x128xbf16>
    %c2_44 = arith.constant 2 : index
    %c1_45 = arith.constant 1 : index
    %c0_46 = arith.constant 0 : index
    %c0_47 = arith.constant 0 : index
    %43 = vector.load %arg5[%c2_44, %c1_45, %c0_46, %c0_47] : memref<3x3x128x128xbf16, #tpu.memory_space<vmem>>, vector<1x1x128x128xbf16>
    %44 = vector.shape_cast %43 : vector<1x1x128x128xbf16> to vector<128x128xbf16>
    %cst_48 = arith.constant dense<0.000000e+00> : vector<4x128xf32>
    %45 = tpu.matmul %42, %44, %cst_48 {dimension_numbers = #tpu.dot_dimension_numbers<[1], [0], [0], [1], [0, 0, 1, 1], [], []>} : vector<4x128xbf16>, vector<128x128xbf16>, vector<4x128xf32> -> vector<4x128xf32>
    %46 = arith.addf %41, %45 : vector<4x128xf32>
    %47 = vector.extract_strided_slice %5 {offsets = [2, 0], sizes = [4, 128], strides = [1, 1]} : vector<6x128xbf16> to vector<4x128xbf16>
    %c2_49 = arith.constant 2 : index
    %c2_50 = arith.constant 2 : index
    %c0_51 = arith.constant 0 : index
    %c0_52 = arith.constant 0 : index
    %48 = vector.load %arg5[%c2_49, %c2_50, %c0_51, %c0_52] : memref<3x3x128x128xbf16, #tpu.memory_space<vmem>>, vector<1x1x128x128xbf16>
    %49 = vector.shape_cast %48 : vector<1x1x128x128xbf16> to vector<128x128xbf16>
    %cst_53 = arith.constant dense<0.000000e+00> : vector<4x128xf32>
    %50 = tpu.matmul %47, %49, %cst_53 {dimension_numbers = #tpu.dot_dimension_numbers<[1], [0], [0], [1], [0, 0, 1, 1], [], []>} : vector<4x128xbf16>, vector<128x128xbf16>, vector<4x128xf32> -> vector<4x128xf32>
    %51 = arith.addf %46, %50 : vector<4x128xf32>
    %c0_54 = arith.constant 0 : index
    %c0_55 = arith.constant 0 : index
    %52 = vector.load %arg6[%c0_54, %c0_55] : memref<1x128xf32, #tpu.memory_space<vmem>>, vector<1x128xf32>
    %53 = vector.broadcast %52 : vector<1x128xf32> to vector<4x128xf32>
    %54 = arith.addf %51, %53 : vector<4x128xf32>
    %c0_56 = arith.constant 0 : index
    %c0_57 = arith.constant 0 : index
    %c0_58 = arith.constant 0 : index
    %c0_59 = arith.constant 0 : index
    %55 = vector.load %arg7[%c0_56, %c0_57, %c0_58, %c0_59] : memref<1x1x4x128xf32, #tpu.memory_space<vmem>>, vector<1x1x4x128xf32>
    %56 = vector.shape_cast %55 : vector<1x1x4x128xf32> to vector<4x128xf32>
    %57 = vector.shape_cast %54 : vector<4x128xf32> to vector<1x1x4x128xf32>
    tpu.vector_store %arg7[%c0_56, %c0_57, %c0_58, %c0_59], %57 {strides = array<i32>} : memref<1x1x4x128xf32, #tpu.memory_space<vmem>>, vector<1x1x4x128xf32>,
    return
  }
  func.func @transform_0(%arg0: i32, %arg1: i32) -> (i32, i32, i32, i32) {
    %c1_i32 = arith.constant 1 : i32
    %0 = arith.muli %c1_i32, %arg1 : i32
    %c0_i32 = arith.constant 0 : i32
    %1 = arith.addi %0, %c0_i32 : i32
    %c0_i32_0 = arith.constant 0 : i32
    %c0_i32_1 = arith.constant 0 : i32
    %c0_i32_2 = arith.constant 0 : i32
    return %arg0, %1, %c0_i32_0, %c0_i32_1 : i32, i32, i32, i32
  }
  func.func @transform_1(%arg0: i32, %arg1: i32) -> (i32, i32, i32, i32) {
    %c1_i32 = arith.constant 1 : i32
    %0 = arith.muli %c1_i32, %arg1 : i32
    %c1_i32_0 = arith.constant 1 : i32
    %1 = arith.addi %0, %c1_i32_0 : i32
    %c0_i32 = arith.constant 0 : i32
    %c0_i32_1 = arith.constant 0 : i32
    %c0_i32_2 = arith.constant 0 : i32
    return %arg0, %1, %c0_i32, %c0_i32_1 : i32, i32, i32, i32
  }
  func.func @transform_2(%arg0: i32, %arg1: i32) -> (i32, i32, i32, i32) {
    %c1_i32 = arith.constant 1 : i32
    %0 = arith.muli %c1_i32, %arg1 : i32
    %c2_i32 = arith.constant 2 : i32
    %1 = arith.addi %0, %c2_i32 : i32
    %c0_i32 = arith.constant 0 : i32
    %c0_i32_0 = arith.constant 0 : i32
    %c0_i32_1 = arith.constant 0 : i32
    return %arg0, %1, %c0_i32, %c0_i32_0 : i32, i32, i32, i32
  }
  func.func @transform_3(%arg0: i32, %arg1: i32) -> (i32, i32, i32, i32) {
    %c0_i32 = arith.constant 0 : i32
    %c0_i32_0 = arith.constant 0 : i32
    %c0_i32_1 = arith.constant 0 : i32
    %c0_i32_2 = arith.constant 0 : i32
    %c0_i32_3 = arith.constant 0 : i32
    return %c0_i32, %c0_i32_0, %c0_i32_1, %c0_i32_2 : i32, i32, i32, i32
  }
  func.func @transform_4(%arg0: i32, %arg1: i32) -> (i32, i32) {
    %c0_i32 = arith.constant 0 : i32
    %c0_i32_0 = arith.constant 0 : i32
    %c0_i32_1 = arith.constant 0 : i32
    return %c0_i32, %c0_i32_0 : i32, i32
  }
  func.func @transform_5(%arg0: i32, %arg1: i32) -> (i32, i32, i32, i32) {
    %c0_i32 = arith.constant 0 : i32
    %c0_i32_0 = arith.constant 0 : i32
    %c0_i32_1 = arith.constant 0 : i32
    return %arg0, %arg1, %c0_i32, %c0_i32_0 : i32, i32, i32, i32
  }
}

module attributes {stable_mosaic.version = 11 : i64} {
  func.func @kernel(%arg0: i32, %arg1: memref<2x16x128xf32, #tpu.memory_space<vmem>>, %arg2: memref<2x16x4xf32, #tpu.memory_space<vmem>>, %arg3: memref<2x16x1xi32, #tpu.memory_space<vmem>>, %arg4: memref<2x16x1xf32, #tpu.memory_space<vmem>>, %arg5: memref<2x8x128xf32, #tpu.memory_space<vmem>>) attributes {dimension_semantics = [#tpu.dimension_semantics<arbitrary>], iteration_bounds = array<i64: 1>, scalar_prefetch = 0 : i64, scratch_operands = 0 : i64, tpu.core_type = #tpu.core_type<tc>, window_params = [{pipeline_mode = #tpu.pipeline_mode<synchronous>, transform_indices = @transform_0, window_bounds = array<i64: 2, 16, 128>}, {pipeline_mode = #tpu.pipeline_mode<synchronous>, transform_indices = @transform_1, window_bounds = array<i64: 2, 16, 4>}, {pipeline_mode = #tpu.pipeline_mode<synchronous>, transform_indices = @transform_2, window_bounds = array<i64: 2, 16, 1>}, {pipeline_mode = #tpu.pipeline_mode<synchronous>, transform_indices = @transform_3, window_bounds = array<i64: 2, 16, 1>}, {pipeline_mode = #tpu.pipeline_mode<synchronous>, transform_indices = @transform_4, window_bounds = array<i64: 2, 8, 128>}]} {
    %c0 = arith.constant 0 : index
    %c0_0 = arith.constant 0 : index
    %c0_1 = arith.constant 0 : index
    %0 = vector.load %arg1[%c0, %c0_0, %c0_1] : memref<2x16x128xf32, #tpu.memory_space<vmem>>, vector<2x16x128xf32>
    %c0_2 = arith.constant 0 : index
    %c0_3 = arith.constant 0 : index
    %c0_4 = arith.constant 0 : index
    %1 = vector.load %arg2[%c0_2, %c0_3, %c0_4] : memref<2x16x4xf32, #tpu.memory_space<vmem>>, vector<2x16x4xf32>
    %c0_5 = arith.constant 0 : index
    %c0_6 = arith.constant 0 : index
    %c0_7 = arith.constant 0 : index
    %2 = vector.load %arg3[%c0_5, %c0_6, %c0_7] : memref<2x16x1xi32, #tpu.memory_space<vmem>>, vector<2x16x1xi32>
    %c0_8 = arith.constant 0 : index
    %c0_9 = arith.constant 0 : index
    %c0_10 = arith.constant 0 : index
    %3 = vector.load %arg4[%c0_8, %c0_9, %c0_10] : memref<2x16x1xf32, #tpu.memory_space<vmem>>, vector<2x16x1xf32>
    %c5_i32 = arith.constant 5 : i32
    %4 = vector.broadcast %c5_i32 : i32 to vector<2x16x1xi32>
    %5 = arith.cmpi ne, %2, %4 : vector<2x16x1xi32>
    %6 = arith.extui %5 : vector<2x16x1xi1> to vector<2x16x1xi32>
    %7 = arith.sitofp %6 : vector<2x16x1xi32> to vector<2x16x1xf32>
    %8 = vector.extract_strided_slice %0 {offsets = [0, 0, 4], sizes = [2, 16, 1], strides = [1, 1, 1]} : vector<2x16x128xf32> to vector<2x16x1xf32>
    %cst = arith.constant 0.000000e+00 : f32
    %9 = vector.broadcast %cst : f32 to vector<2x16x1xf32>
    %10 = vector.extract_strided_slice %0 {offsets = [0, 0, 9], sizes = [2, 16, 1], strides = [1, 1, 1]} : vector<2x16x128xf32> to vector<2x16x1xf32>
    %11 = arith.cmpf ogt, %10, %8 : vector<2x16x1xf32>
    %cst_11 = arith.constant 1.000000e+00 : f32
    %12 = vector.broadcast %cst_11 : f32 to vector<2x16x1xf32>
    %13 = arith.select %11, %12, %9 : vector<2x16x1xi1>, vector<2x16x1xf32>
    %14 = arith.maximumf %8, %10 : vector<2x16x1xf32>
    %15 = arith.negf %14 : vector<2x16x1xf32>
    %16 = math.exp %15 : vector<2x16x1xf32>
    %cst_12 = arith.constant 1.000000e+00 : f32
    %17 = vector.broadcast %cst_12 : f32 to vector<2x16x1xf32>
    %18 = arith.addf %17, %16 : vector<2x16x1xf32>
    %19 = arith.divf %17, %18 : vector<2x16x1xf32>
    %20 = arith.subf %19, %3 : vector<2x16x1xf32>
    %21 = arith.mulf %20, %20 : vector<2x16x1xf32>
    %22 = arith.mulf %21, %7 : vector<2x16x1xf32>
    %cst_13 = arith.constant dense<0.000000e+00> : vector<2x1xf32>
    %23 = vector.multi_reduction <add>, %22, %cst_13 [1] : vector<2x16x1xf32> to vector<2x1xf32>
    %24 = vector.shape_cast %23 : vector<2x1xf32> to vector<2x1x1xf32>
    %cst_14 = arith.constant dense<0.000000e+00> : vector<2x1xf32>
    %25 = vector.multi_reduction <add>, %7, %cst_14 [1] : vector<2x16x1xf32> to vector<2x1xf32>
    %26 = vector.shape_cast %25 : vector<2x1xf32> to vector<2x1x1xf32>
    %cst_15 = arith.constant 1.000000e+00 : f32
    %27 = vector.broadcast %cst_15 : f32 to vector<2x16x1xf32>
    %28 = arith.subf %27, %7 : vector<2x16x1xf32>
    %29 = arith.mulf %21, %28 : vector<2x16x1xf32>
    %cst_16 = arith.constant dense<0.000000e+00> : vector<2x1xf32>
    %30 = vector.multi_reduction <add>, %29, %cst_16 [1] : vector<2x16x1xf32> to vector<2x1xf32>
    %31 = vector.shape_cast %30 : vector<2x1xf32> to vector<2x1x1xf32>
    %cst_17 = arith.constant 1.600000e+01 : f32
    %32 = vector.broadcast %cst_17 : f32 to vector<2x1x1xf32>
    %33 = arith.subf %32, %26 : vector<2x1x1xf32>
    %cst_18 = arith.constant 0.000000e+00 : f32
    %34 = vector.broadcast %cst_18 : f32 to vector<2x16x4xf32>
    %cst_19 = arith.constant 0.000000e+00 : f32
    %35 = vector.broadcast %cst_19 : f32 to vector<2x16x1xf32>
    %36 = arith.cmpf oeq, %13, %35 : vector<2x16x1xf32>
    %37 = vector.extract_strided_slice %0 {offsets = [0, 0, 0], sizes = [2, 16, 4], strides = [1, 1, 1]} : vector<2x16x128xf32> to vector<2x16x4xf32>
    %38 = vector.shape_cast %36 : vector<2x16x1xi1> to vector<2x16x1xi1>
    %39 = vector.broadcast %38 : vector<2x16x1xi1> to vector<2x16x4xi1>
    %40 = arith.select %39, %37, %34 : vector<2x16x4xi1>, vector<2x16x4xf32>
    %cst_20 = arith.constant 1.000000e+00 : f32
    %41 = vector.broadcast %cst_20 : f32 to vector<2x16x1xf32>
    %42 = arith.cmpf oeq, %13, %41 : vector<2x16x1xf32>
    %43 = vector.extract_strided_slice %0 {offsets = [0, 0, 5], sizes = [2, 16, 4], strides = [1, 1, 1]} : vector<2x16x128xf32> to vector<2x16x4xf32>
    %44 = vector.shape_cast %42 : vector<2x16x1xi1> to vector<2x16x1xi1>
    %45 = vector.broadcast %44 : vector<2x16x1xi1> to vector<2x16x4xi1>
    %46 = arith.select %45, %43, %40 : vector<2x16x4xi1>, vector<2x16x4xf32>
    %47 = arith.negf %46 : vector<2x16x4xf32>
    %48 = math.exp %47 : vector<2x16x4xf32>
    %cst_21 = arith.constant 1.000000e+00 : f32
    %49 = vector.broadcast %cst_21 : f32 to vector<2x16x4xf32>
    %50 = arith.addf %49, %48 : vector<2x16x4xf32>
    %51 = arith.divf %49, %50 : vector<2x16x4xf32>
    %52 = vector.extract_strided_slice %1 {offsets = [0, 0, 0], sizes = [2, 16, 1], strides = [1, 1, 1]} : vector<2x16x4xf32> to vector<2x16x1xf32>
    %53 = vector.extract_strided_slice %1 {offsets = [0, 0, 1], sizes = [2, 16, 1], strides = [1, 1, 1]} : vector<2x16x4xf32> to vector<2x16x1xf32>
    %54 = vector.extract_strided_slice %1 {offsets = [0, 0, 2], sizes = [2, 16, 1], strides = [1, 1, 1]} : vector<2x16x4xf32> to vector<2x16x1xf32>
    %cst_22 = arith.constant 1.000000e+00 : f32
    %55 = vector.broadcast %cst_22 : f32 to vector<2x16x1xf32>
    %56 = arith.select %5, %54, %55 : vector<2x16x1xi1>, vector<2x16x1xf32>
    %57 = vector.extract_strided_slice %1 {offsets = [0, 0, 3], sizes = [2, 16, 1], strides = [1, 1, 1]} : vector<2x16x4xf32> to vector<2x16x1xf32>
    %cst_23 = arith.constant 1.000000e+00 : f32
    %58 = vector.broadcast %cst_23 : f32 to vector<2x16x1xf32>
    %59 = arith.select %5, %57, %58 : vector<2x16x1xi1>, vector<2x16x1xf32>
    %60 = vector.extract_strided_slice %51 {offsets = [0, 0, 0], sizes = [2, 16, 1], strides = [1, 1, 1]} : vector<2x16x4xf32> to vector<2x16x1xf32>
    %61 = arith.subf %60, %52 : vector<2x16x1xf32>
    %62 = arith.mulf %61, %61 : vector<2x16x1xf32>
    %63 = vector.extract_strided_slice %51 {offsets = [0, 0, 1], sizes = [2, 16, 1], strides = [1, 1, 1]} : vector<2x16x4xf32> to vector<2x16x1xf32>
    %64 = arith.subf %63, %53 : vector<2x16x1xf32>
    %65 = arith.mulf %64, %64 : vector<2x16x1xf32>
    %66 = arith.addf %62, %65 : vector<2x16x1xf32>
    %67 = vector.extract_strided_slice %51 {offsets = [0, 0, 2], sizes = [2, 16, 1], strides = [1, 1, 1]} : vector<2x16x4xf32> to vector<2x16x1xf32>
    %68 = math.sqrt %67 : vector<2x16x1xf32>
    %69 = math.sqrt %56 : vector<2x16x1xf32>
    %70 = arith.subf %68, %69 : vector<2x16x1xf32>
    %71 = arith.mulf %70, %70 : vector<2x16x1xf32>
    %72 = arith.addf %66, %71 : vector<2x16x1xf32>
    %73 = vector.extract_strided_slice %51 {offsets = [0, 0, 3], sizes = [2, 16, 1], strides = [1, 1, 1]} : vector<2x16x4xf32> to vector<2x16x1xf32>
    %74 = math.sqrt %73 : vector<2x16x1xf32>
    %75 = math.sqrt %59 : vector<2x16x1xf32>
    %76 = arith.subf %74, %75 : vector<2x16x1xf32>
    %77 = arith.mulf %76, %76 : vector<2x16x1xf32>
    %78 = arith.addf %72, %77 : vector<2x16x1xf32>
    %79 = arith.mulf %78, %7 : vector<2x16x1xf32>
    %cst_24 = arith.constant dense<0.000000e+00> : vector<2x1xf32>
    %80 = vector.multi_reduction <add>, %79, %cst_24 [1] : vector<2x16x1xf32> to vector<2x1xf32>
    %81 = vector.shape_cast %80 : vector<2x1xf32> to vector<2x1x1xf32>
    %82 = vector.extract_strided_slice %0 {offsets = [0, 0, 10], sizes = [2, 16, 6], strides = [1, 1, 1]} : vector<2x16x128xf32> to vector<2x16x6xf32>
    %cst_25 = arith.constant dense<0xFF800000> : vector<2x16xf32>
    %83 = vector.multi_reduction <maximumf>, %82, %cst_25 [2] : vector<2x16x6xf32> to vector<2x16xf32>
    %84 = vector.shape_cast %83 : vector<2x16xf32> to vector<2x16x1xf32>
    %85 = vector.broadcast %84 : vector<2x16x1xf32> to vector<2x16x6xf32>
    %86 = arith.subf %82, %85 : vector<2x16x6xf32>
    %87 = math.exp %86 : vector<2x16x6xf32>
    %cst_26 = arith.constant dense<0.000000e+00> : vector<2x16xf32>
    %88 = vector.multi_reduction <add>, %87, %cst_26 [2] : vector<2x16x6xf32> to vector<2x16xf32>
    %89 = vector.shape_cast %88 : vector<2x16xf32> to vector<2x16x1xf32>
    %90 = math.log %89 : vector<2x16x1xf32>
    %91 = arith.addf %84, %90 : vector<2x16x1xf32>
    %92 = tpu.iota {dimensions = array<i32: 2>} : vector<2x16x6xi32>
    %93 = vector.broadcast %2 : vector<2x16x1xi32> to vector<2x16x6xi32>
    %94 = arith.cmpi eq, %92, %93 : vector<2x16x6xi32>
    %cst_27 = arith.constant 0.000000e+00 : f32
    %95 = vector.broadcast %cst_27 : f32 to vector<2x16x6xf32>
    %96 = arith.select %94, %82, %95 : vector<2x16x6xi1>, vector<2x16x6xf32>
    %cst_28 = arith.constant dense<0.000000e+00> : vector<2x16xf32>
    %97 = vector.multi_reduction <add>, %96, %cst_28 [2] : vector<2x16x6xf32> to vector<2x16xf32>
    %98 = vector.shape_cast %97 : vector<2x16xf32> to vector<2x16x1xf32>
    %99 = arith.subf %91, %98 : vector<2x16x1xf32>
    %100 = arith.mulf %99, %7 : vector<2x16x1xf32>
    %cst_29 = arith.constant dense<0.000000e+00> : vector<2x1xf32>
    %101 = vector.multi_reduction <add>, %100, %cst_29 [1] : vector<2x16x1xf32> to vector<2x1xf32>
    %102 = vector.shape_cast %101 : vector<2x1xf32> to vector<2x1x1xf32>
    %cst_30 = arith.constant 1.000000e+00 : f32
    %103 = vector.broadcast %cst_30 : f32 to vector<1x1x128xf32>
    %cst_31 = arith.constant 0.000000e+00 : f32
    %104 = vector.broadcast %cst_31 : f32 to vector<2x1x1xf32>
    %105 = vector.broadcast %24 : vector<2x1x1xf32> to vector<2x1x128xf32>
    %106 = vector.broadcast %103 : vector<1x1x128xf32> to vector<2x1x128xf32>
    %107 = arith.mulf %105, %106 : vector<2x1x128xf32>
    %108 = vector.broadcast %26 : vector<2x1x1xf32> to vector<2x1x128xf32>
    %109 = vector.broadcast %103 : vector<1x1x128xf32> to vector<2x1x128xf32>
    %110 = arith.mulf %108, %109 : vector<2x1x128xf32>
    %111 = vector.broadcast %31 : vector<2x1x1xf32> to vector<2x1x128xf32>
    %112 = vector.broadcast %103 : vector<1x1x128xf32> to vector<2x1x128xf32>
    %113 = arith.mulf %111, %112 : vector<2x1x128xf32>
    %114 = vector.broadcast %33 : vector<2x1x1xf32> to vector<2x1x128xf32>
    %115 = vector.broadcast %103 : vector<1x1x128xf32> to vector<2x1x128xf32>
    %116 = arith.mulf %114, %115 : vector<2x1x128xf32>
    %117 = vector.broadcast %81 : vector<2x1x1xf32> to vector<2x1x128xf32>
    %118 = vector.broadcast %103 : vector<1x1x128xf32> to vector<2x1x128xf32>
    %119 = arith.mulf %117, %118 : vector<2x1x128xf32>
    %120 = vector.broadcast %102 : vector<2x1x1xf32> to vector<2x1x128xf32>
    %121 = vector.broadcast %103 : vector<1x1x128xf32> to vector<2x1x128xf32>
    %122 = arith.mulf %120, %121 : vector<2x1x128xf32>
    %123 = vector.broadcast %104 : vector<2x1x1xf32> to vector<2x1x128xf32>
    %124 = vector.broadcast %103 : vector<1x1x128xf32> to vector<2x1x128xf32>
    %125 = arith.mulf %123, %124 : vector<2x1x128xf32>
    %126 = vector.broadcast %104 : vector<2x1x1xf32> to vector<2x1x128xf32>
    %127 = vector.broadcast %103 : vector<1x1x128xf32> to vector<2x1x128xf32>
    %128 = arith.mulf %126, %127 : vector<2x1x128xf32>
    %129 = tpu.concatenate %107, %110, %113, %116, %119, %122, %125, %128 in 1 : vector<2x1x128xf32>, vector<2x1x128xf32>, vector<2x1x128xf32>, vector<2x1x128xf32>, vector<2x1x128xf32>, vector<2x1x128xf32>, vector<2x1x128xf32>, vector<2x1x128xf32> -> vector<2x8x128xf32>
    %c0_32 = arith.constant 0 : index
    %c0_33 = arith.constant 0 : index
    %c0_34 = arith.constant 0 : index
    %130 = vector.load %arg5[%c0_32, %c0_33, %c0_34] : memref<2x8x128xf32, #tpu.memory_space<vmem>>, vector<2x8x128xf32>
    tpu.vector_store %arg5[%c0_32, %c0_33, %c0_34], %129 {strides = array<i32>} : memref<2x8x128xf32, #tpu.memory_space<vmem>>, vector<2x8x128xf32>,
    return
  }
  func.func @transform_0(%arg0: i32) -> (i32, i32, i32) {
    %c0_i32 = arith.constant 0 : i32
    %c0_i32_0 = arith.constant 0 : i32
    %c0_i32_1 = arith.constant 0 : i32
    %c0_i32_2 = arith.constant 0 : i32
    return %c0_i32, %c0_i32_0, %c0_i32_1 : i32, i32, i32
  }
  func.func @transform_1(%arg0: i32) -> (i32, i32, i32) {
    %c0_i32 = arith.constant 0 : i32
    %c0_i32_0 = arith.constant 0 : i32
    %c0_i32_1 = arith.constant 0 : i32
    %c0_i32_2 = arith.constant 0 : i32
    return %c0_i32, %c0_i32_0, %c0_i32_1 : i32, i32, i32
  }
  func.func @transform_2(%arg0: i32) -> (i32, i32, i32) {
    %c0_i32 = arith.constant 0 : i32
    %c0_i32_0 = arith.constant 0 : i32
    %c0_i32_1 = arith.constant 0 : i32
    %c0_i32_2 = arith.constant 0 : i32
    return %c0_i32, %c0_i32_0, %c0_i32_1 : i32, i32, i32
  }
  func.func @transform_3(%arg0: i32) -> (i32, i32, i32) {
    %c0_i32 = arith.constant 0 : i32
    %c0_i32_0 = arith.constant 0 : i32
    %c0_i32_1 = arith.constant 0 : i32
    %c0_i32_2 = arith.constant 0 : i32
    return %c0_i32, %c0_i32_0, %c0_i32_1 : i32, i32, i32
  }
  func.func @transform_4(%arg0: i32) -> (i32, i32, i32) {
    %c0_i32 = arith.constant 0 : i32
    %c0_i32_0 = arith.constant 0 : i32
    %c0_i32_1 = arith.constant 0 : i32
    %c0_i32_2 = arith.constant 0 : i32
    return %c0_i32, %c0_i32_0, %c0_i32_1 : i32, i32, i32
  }
}

</mosaic_0001>

<llo_original>
// kernel: _yolo1_device.4
$region0: #{_yolo1_device.4}
  #allocation0 [shape = 'u32[]', space=smem, size = 0x4, offset = 0x4, fixed_abs, tag = 'smem constant byte address 0x4 - core index']
  #allocation1 [shape = 'u32[144,128]{1,0:T(1,128)}', space=vmem, size = 0x12000, scoped, tag = 'internal scratch']
  %s0 = inlined_call_operand.vmem [shape: bf16[2,18,18,4], index: 0, kind: input, shape index: {}, may-alias: {0,1,2,3}]
  %s1 = inlined_call_operand.vmem [shape: bf16[2,18,18,4], index: 1, kind: input, shape index: {}, may-alias: {0,1,2,3}]
  %s2 = inlined_call_operand.vmem [shape: bf16[2,18,18,4], index: 2, kind: input, shape index: {}, may-alias: {0,1,2,3}]
  %s3 = inlined_call_operand.vmem [shape: bf16[2,18,18,4], index: 3, kind: input, shape index: {}, may-alias: {0,1,2,3}]
  %s4 = inlined_call_operand.vmem [shape: bf16[3,3,4,128], index: 4, kind: input, shape index: {}]
  %s5 = inlined_call_operand.vmem [shape: f32[1,128], index: 5, kind: input, shape index: {}]
  %s6 = inlined_call_operand.vmem [shape: bf16[2,8,8,128], index: 6, kind: output, shape index: {}]
  %s7 = sld [smem:[#allocation0]]
  $region57: #{_yolo1_device.4} parent=0
    _
  %s9 = ssub.s32 1, %s7
  %s10 = scalar_select 0, %s9, %s7
  loop: start=0, step=1, limit=18
  $region2: #{_yolo1_device.4} parent=0 // loop_pre_header
    _
  $region3: #{_yolo1_device.4} parent=0 // loop_header
    %s12 = sphi 0, %s16
    %p13 = scmp.ge.s32.totalorder %s12, 18
    %s19 = sphi 0, %s31
    %s20 = sphi 0, %s27
    %s21 = sphi 0, %s19
    %s22 = sphi 0, %s20
    %s23 = sphi 0, %s21
    %s24 = sphi 0, %s22
    %s38 = sphi 0, %s40
    %s41 = sphi 0, %s38
    %s42 = sphi 0, %s41
    %s58 = sphi 0, %s42
    %s70 = sphi 0, %s72
    %s73 = sphi 0, %s70
    %s74 = sphi 0, %s73
    %s90 = sphi 0, %s74
    %s102 = sphi 0, %s104
    %s105 = sphi 0, %s102
    %s106 = sphi 0, %s105
    %s122 = sphi 0, %s106
    %s134 = sphi 0, %s136
    %s137 = sphi 0, %s134
    %s138 = sphi 0, %s137
    %s154 = sphi 0, %s138
    %s158 = sphi 0, %s158
    %s160 = sphi 0, %s158
    %s161 = sphi 0, %s160
    %s175 = sphi 0, %s161
    %s179 = sphi 0, %s179
    %s181 = sphi 0, %s179
    %s182 = sphi 0, %s181
    %s196 = sphi 0, %s182
    %s204 = sphi 0, %s206
    %s207 = sphi 0, %s204
    %s208 = sphi 0, %s207
    %s224 = sphi 0, %s208
  $region4: #{_yolo1_device.4} parent=0 // loop_header_branch
    %15 = sbr.rel (%p13) target = $region8
  $region5: #{_yolo1_device.4} parent=0 // loop_body
    %s17 = ssub.s32 %s12, 1
    %s18 = ssub.s32 %s12, 2
    %s25 = sadd.s32 1, %s20
    %p26 = scmp.ge.s32.totalorder %s25, 8
    %s27 = scalar_select %p26, 0, %s25
    %s28 = sadd.s32 1, %s19
    %s29 = scalar_select %p26, %s28, %s19
    %p30 = scmp.ge.s32.totalorder %s29, 2
    %s31 = scalar_select %p30, 0, %s29
    %s32 = smul.u32 %s20, 2
    %s33 = smul.u32 %s27, 2
    %s34 = ssub.s32 %s19, %s31
    %s35 = ssub.s32 %s32, %s33
    %s36 = sor.u32 %s34, %s35
    %p37 = scmp.eq.s32.totalorder %s36, 0
    %s39 = sadd.s32 %s38, 1
    %s40 = scalar_select %p37, %s38, %s39
    %p43 = pneg %p37
    %p44 = scmp.eq.s32.totalorder %s12, 15
    %p45 = por %p43, %p44
    %p46 = scmp.ne.s32.totalorder %s38, %s41
    %p47 = scmp.eq.s32.totalorder %s12, 0
    %p48 = por %p46, %p47
    %p49 = scmp.ne.s32.totalorder %s38, %s41
    %p50 = scmp.eq.s32.totalorder %s17, 15
    %p51 = por %p49, %p50
    %p52 = scmp.ne.s32.totalorder %s41, %s42
    %p53 = scmp.eq.s32.totalorder %s17, 0
    %p54 = por %p52, %p53
    %p55 = scmp.ne.s32.totalorder %s41, %s42
    %p56 = scmp.eq.s32.totalorder %s18, 15
    %p57 = por %p55, %p56
    %p59 = scmp.ne.s32.totalorder %s42, %s58
    %p60 = scmp.eq.s32.totalorder %s18, 0
    %p61 = por %p59, %p60
    %s62 = smul.u32 %s20, 2
    %s63 = sadd.s32 %s62, 1
    %s64 = smul.u32 %s27, 2
    %s65 = sadd.s32 %s64, 1
    %s66 = ssub.s32 %s19, %s31
    %s67 = ssub.s32 %s63, %s65
    %s68 = sor.u32 %s66, %s67
    %p69 = scmp.eq.s32.totalorder %s68, 0
    %s71 = sadd.s32 %s70, 1
    %s72 = scalar_select %p69, %s70, %s71
    %p75 = pneg %p69
    %p76 = scmp.eq.s32.totalorder %s12, 15
    %p77 = por %p75, %p76
    %p78 = scmp.ne.s32.totalorder %s70, %s73
    %p79 = scmp.eq.s32.totalorder %s12, 0
    %p80 = por %p78, %p79
    %p81 = scmp.ne.s32.totalorder %s70, %s73
    %p82 = scmp.eq.s32.totalorder %s17, 15
    %p83 = por %p81, %p82
    %p84 = scmp.ne.s32.totalorder %s73, %s74
    %p85 = scmp.eq.s32.totalorder %s17, 0
    %p86 = por %p84, %p85
    %p87 = scmp.ne.s32.totalorder %s73, %s74
    %p88 = scmp.eq.s32.totalorder %s18, 15
    %p89 = por %p87, %p88
    %p91 = scmp.ne.s32.totalorder %s74, %s90
    %p92 = scmp.eq.s32.totalorder %s18, 0
    %p93 = por %p91, %p92
    %s94 = smul.u32 %s20, 2
    %s95 = sadd.s32 %s94, 2
    %s96 = smul.u32 %s27, 2
    %s97 = sadd.s32 %s96, 2
    %s98 = ssub.s32 %s19, %s31
    %s99 = ssub.s32 %s95, %s97
    %s100 = sor.u32 %s98, %s99
    %p101 = scmp.eq.s32.totalorder %s100, 0
    %s103 = sadd.s32 %s102, 1
    %s104 = scalar_select %p101, %s102, %s103
    %p107 = pneg %p101
    %p108 = scmp.eq.s32.totalorder %s12, 15
    %p109 = por %p107, %p108
    %p110 = scmp.ne.s32.totalorder %s102, %s105
    %p111 = scmp.eq.s32.totalorder %s12, 0
    %p112 = por %p110, %p111
    %p113 = scmp.ne.s32.totalorder %s102, %s105
    %p114 = scmp.eq.s32.totalorder %s17, 15
    %p115 = por %p113, %p114
    %p116 = scmp.ne.s32.totalorder %s105, %s106
    %p117 = scmp.eq.s32.totalorder %s17, 0
    %p118 = por %p116, %p117
    %p119 = scmp.ne.s32.totalorder %s105, %s106
    %p120 = scmp.eq.s32.totalorder %s18, 15
    %p121 = por %p119, %p120
    %p123 = scmp.ne.s32.totalorder %s106, %s122
    %p124 = scmp.eq.s32.totalorder %s18, 0
    %p125 = por %p123, %p124
    %s126 = smul.u32 %s20, 2
    %s127 = sadd.s32 %s126, 3
    %s128 = smul.u32 %s27, 2
    %s129 = sadd.s32 %s128, 3
    %s130 = ssub.s32 %s19, %s31
    %s131 = ssub.s32 %s127, %s129
    %s132 = sor.u32 %s130, %s131
    %p133 = scmp.eq.s32.totalorder %s132, 0
    %s135 = sadd.s32 %s134, 1
    %s136 = scalar_select %p133, %s134, %s135
    %p139 = pneg %p133
    %p140 = scmp.eq.s32.totalorder %s12, 15
    %p141 = por %p139, %p140
    %p142 = scmp.ne.s32.totalorder %s134, %s137
    %p143 = scmp.eq.s32.totalorder %s12, 0
    %p144 = por %p142, %p143
    %p145 = scmp.ne.s32.totalorder %s134, %s137
    %p146 = scmp.eq.s32.totalorder %s17, 15
    %p147 = por %p145, %p146
    %p148 = scmp.ne.s32.totalorder %s137, %s138
    %p149 = scmp.eq.s32.totalorder %s17, 0
    %p150 = por %p148, %p149
    %p151 = scmp.ne.s32.totalorder %s137, %s138
    %p152 = scmp.eq.s32.totalorder %s18, 15
    %p153 = por %p151, %p152
    %p155 = scmp.ne.s32.totalorder %s138, %s154
    %p156 = scmp.eq.s32.totalorder %s18, 0
    %p157 = por %p155, %p156
    %s159 = sadd.s32 %s158, 1
    %p162 = scmp.eq.s32.totalorder %s12, 15
    %p163 = scmp.ne.s32.totalorder %s158, %s160
    %p164 = scmp.eq.s32.totalorder %s12, 0
    %p165 = por %p163, %p164
    %p166 = scmp.ne.s32.totalorder %s158, %s160
    %p167 = scmp.eq.s32.totalorder %s17, 15
    %p168 = por %p166, %p167
    %p169 = scmp.ne.s32.totalorder %s160, %s161
    %p170 = scmp.eq.s32.totalorder %s17, 0
    %p171 = por %p169, %p170
    %p172 = scmp.ne.s32.totalorder %s160, %s161
    %p173 = scmp.eq.s32.totalorder %s18, 15
    %p174 = por %p172, %p173
    %p176 = scmp.ne.s32.totalorder %s161, %s175
    %p177 = scmp.eq.s32.totalorder %s18, 0
    %p178 = por %p176, %p177
    %s180 = sadd.s32 %s179, 1
    %p183 = scmp.eq.s32.totalorder %s12, 15
    %p184 = scmp.ne.s32.totalorder %s179, %s181
    %p185 = scmp.eq.s32.totalorder %s12, 0
    %p186 = por %p184, %p185
    %p187 = scmp.ne.s32.totalorder %s179, %s181
    %p188 = scmp.eq.s32.totalorder %s17, 15
    %p189 = por %p187, %p188
    %p190 = scmp.ne.s32.totalorder %s181, %s182
    %p191 = scmp.eq.s32.totalorder %s17, 0
    %p192 = por %p190, %p191
    %p193 = scmp.ne.s32.totalorder %s181, %s182
    %p194 = scmp.eq.s32.totalorder %s18, 15
    %p195 = por %p193, %p194
    %p197 = scmp.ne.s32.totalorder %s182, %s196
    %p198 = scmp.eq.s32.totalorder %s18, 0
    %p199 = por %p197, %p198
    %s200 = ssub.s32 %s19, %s31
    %s201 = ssub.s32 %s20, %s27
    %s202 = sor.u32 %s200, %s201
    %p203 = scmp.eq.s32.totalorder %s202, 0
    %s205 = sadd.s32 %s204, 1
    %s206 = scalar_select %p203, %s204, %s205
    %p209 = pneg %p203
    %p210 = scmp.eq.s32.totalorder %s12, 15
    %p211 = por %p209, %p210
    %p212 = scmp.ne.s32.totalorder %s204, %s207
    %p213 = scmp.eq.s32.totalorder %s12, 0
    %p214 = por %p212, %p213
    %p215 = scmp.ne.s32.totalorder %s204, %s207
    %p216 = scmp.eq.s32.totalorder %s17, 15
    %p217 = por %p215, %p216
    %p218 = scmp.ne.s32.totalorder %s207, %s208
    %p219 = scmp.eq.s32.totalorder %s17, 0
    %p220 = por %p218, %p219
    %p221 = scmp.ne.s32.totalorder %s207, %s208
    %p222 = scmp.eq.s32.totalorder %s18, 15
    %p223 = por %p221, %p222
    %p225 = scmp.ne.s32.totalorder %s208, %s224
    %p226 = scmp.eq.s32.totalorder %s18, 0
    %p227 = por %p225, %p226
    %p228 = scmp.le.s32.totalorder 1, %s12
    %p229 = scmp.lt.s32.totalorder %s12, 17
    %p230 = pnand %p228, %p229
    %p231 = pneg %p230
    // Predicated region
    $region9: #{_yolo1_device.4} parent=5 // pred_check
      _
    $region10: #{_yolo1_device.4} parent=5 // pred_check_branch
      %233 = sbr.rel (%p230) target = $region12
    $region11: #{_yolo1_device.4} parent=5 // pred_region
      %s234 = ssub.s32 %s12, 1
      // Predicated region
      $region13: #{_yolo1_device.4} parent=11 // pred_check
        %p235 = pneg %p171
      $region14: #{_yolo1_device.4} parent=11 // pred_check_branch
        %237 = sbr.rel (%p235) target = $region16
      $region15: #{_yolo1_device.4} parent=11 // pred_region
        _
      $region16: #{_yolo1_device.4} parent=11 // pred_fallthru
        _
      // Predicated region
      $region17: #{_yolo1_device.4} parent=11 // pred_check
        %p238 = pneg %p192
      $region18: #{_yolo1_device.4} parent=11 // pred_check_branch
        %240 = sbr.rel (%p238) target = $region20
      $region19: #{_yolo1_device.4} parent=11 // pred_region
        _
      $region20: #{_yolo1_device.4} parent=11 // pred_fallthru
        _
    $region12: #{_yolo1_device.4} parent=5 // pred_fallthru
      _
    %p241 = scmp.lt.s32.totalorder %s12, 16
    // Predicated region
    $region21: #{_yolo1_device.4} parent=5 // pred_check
      %p242 = pneg %p241
    $region22: #{_yolo1_device.4} parent=5 // pred_check_branch
      %244 = sbr.rel (%p242) target = $region24
    $region23: #{_yolo1_device.4} parent=5 // pred_region
      // Predicated region
      $region25: #{_yolo1_device.4} parent=23 // pred_check
        %p245 = pneg %p48
      $region26: #{_yolo1_device.4} parent=23 // pred_check_branch
        %247 = sbr.rel (%p245) target = $region28
      $region27: #{_yolo1_device.4} parent=23 // pred_region
        %s248 = smul.u32 %s20, 2
        %p249 = scmp.lt.s32.totalorder %s19, 1
        %s250 = scalar_select %p249, %s19, 1
        %p251 = scmp.lt.s32.totalorder %s248, 17
        %s252 = scalar_select %p251, %s248, 17
        %s253 = smul.addr %s252, 3
        %s254 = smul.addr %s250, 54
        %s255 = sadd.s32 %s253, %s254
        %s256 = smul.addr %s255, 4
        %s257 = scalar_lea.vmem %s0, %s256
        %s258 = smul.u32 %s20, 2
      $region28: #{_yolo1_device.4} parent=23 // pred_fallthru
        _
      // Predicated region
      $region29: #{_yolo1_device.4} parent=23 // pred_check
        %p259 = pneg %p80
      $region30: #{_yolo1_device.4} parent=23 // pred_check_branch
        %261 = sbr.rel (%p259) target = $region32
      $region31: #{_yolo1_device.4} parent=23 // pred_region
        %s262 = smul.u32 %s20, 2
        %s263 = sadd.s32 %s262, 1
        %p264 = scmp.lt.s32.totalorder %s19, 1
        %s265 = scalar_select %p264, %s19, 1
        %p266 = scmp.lt.s32.totalorder %s263, 17
        %s267 = scalar_select %p266, %s263, 17
        %s268 = smul.addr %s267, 3
        %s269 = smul.addr %s265, 54
        %s270 = sadd.s32 %s268, %s269
        %s271 = smul.addr %s270, 4
        %s272 = scalar_lea.vmem %s1, %s271
        %s273 = smul.u32 %s20, 2
        %s274 = sadd.s32 %s273, 1
      $region32: #{_yolo1_device.4} parent=23 // pred_fallthru
        _
      // Predicated region
      $region33: #{_yolo1_device.4} parent=23 // pred_check
        %p275 = pneg %p112
      $region34: #{_yolo1_device.4} parent=23 // pred_check_branch
        %277 = sbr.rel (%p275) target = $region36
      $region35: #{_yolo1_device.4} parent=23 // pred_region
        %s278 = smul.u32 %s20, 2
        %s279 = sadd.s32 %s278, 2
        %p280 = scmp.lt.s32.totalorder %s19, 1
        %s281 = scalar_select %p280, %s19, 1
        %p282 = scmp.lt.s32.totalorder %s279, 17
        %s283 = scalar_select %p282, %s279, 17
        %s284 = smul.addr %s283, 3
        %s285 = smul.addr %s281, 54
        %s286 = sadd.s32 %s284, %s285
        %s287 = smul.addr %s286, 4
        %s288 = scalar_lea.vmem %s2, %s287
        %s289 = smul.u32 %s20, 2
        %s290 = sadd.s32 %s289, 2
      $region36: #{_yolo1_device.4} parent=23 // pred_fallthru
        _
      // Predicated region
      $region37: #{_yolo1_device.4} parent=23 // pred_check
        %p291 = pneg %p144
      $region38: #{_yolo1_device.4} parent=23 // pred_check_branch
        %293 = sbr.rel (%p291) target = $region40
      $region39: #{_yolo1_device.4} parent=23 // pred_region
        %s294 = smul.u32 %s20, 2
        %s295 = sadd.s32 %s294, 3
        %p296 = scmp.lt.s32.totalorder %s19, 1
        %s297 = scalar_select %p296, %s19, 1
        %p298 = scmp.lt.s32.totalorder %s295, 17
        %s299 = scalar_select %p298, %s295, 17
        %s300 = smul.addr %s299, 3
        %s301 = smul.addr %s297, 54
        %s302 = sadd.s32 %s300, %s301
        %s303 = smul.addr %s302, 4
        %s304 = scalar_lea.vmem %s3, %s303
        %s305 = smul.u32 %s20, 2
        %s306 = sadd.s32 %s305, 3
      $region40: #{_yolo1_device.4} parent=23 // pred_fallthru
        _
    $region24: #{_yolo1_device.4} parent=5 // pred_fallthru
      _
    %p307 = scmp.le.s32.totalorder 1, %s12
    %p308 = scmp.lt.s32.totalorder %s12, 17
    %p309 = pnand %p307, %p308
    %p310 = pneg %p309
    // Predicated region
    $region41: #{_yolo1_device.4} parent=5 // pred_check
      _
    $region42: #{_yolo1_device.4} parent=5 // pred_check_branch
      %312 = sbr.rel (%p309) target = $region44
    $region43: #{_yolo1_device.4} parent=5 // pred_region
      %s313 = ssub.s32 %s12, 1
      %s314 = smul.u32 %s22, 2
      %p315 = scmp.lt.s32.totalorder %s21, 1
      %s316 = scalar_select %p315, %s21, 1
      %p317 = scmp.lt.s32.totalorder %s314, 17
      %s318 = scalar_select %p317, %s314, 17
      %s319 = smul.addr %s318, 3
      %s320 = smul.addr %s316, 54
      %s321 = sadd.s32 %s319, %s320
      %s322 = smul.addr %s321, 4
      %s323 = scalar_lea.vmem %s0, %s322
      %p324 = pneg %p54
      %p325 = pneg %p51
      %s326 = smul.u32 %s22, 2
      %s327 = sadd.s32 %s326, 1
      %p328 = scmp.lt.s32.totalorder %s21, 1
      %s329 = scalar_select %p328, %s21, 1
      %p330 = scmp.lt.s32.totalorder %s327, 17
      %s331 = scalar_select %p330, %s327, 17
      %s332 = smul.addr %s331, 3
      %s333 = smul.addr %s329, 54
      %s334 = sadd.s32 %s332, %s333
      %s335 = smul.addr %s334, 4
      %s336 = scalar_lea.vmem %s1, %s335
      %p337 = pneg %p86
      %p338 = pneg %p83
      %s339 = smul.u32 %s22, 2
      %s340 = sadd.s32 %s339, 2
      %p341 = scmp.lt.s32.totalorder %s21, 1
      %s342 = scalar_select %p341, %s21, 1
      %p343 = scmp.lt.s32.totalorder %s340, 17
      %s344 = scalar_select %p343, %s340, 17
      %s345 = smul.addr %s344, 3
      %s346 = smul.addr %s342, 54
      %s347 = sadd.s32 %s345, %s346
      %s348 = smul.addr %s347, 4
      %s349 = scalar_lea.vmem %s2, %s348
      %p350 = pneg %p118
      %p351 = pneg %p115
      %s352 = smul.u32 %s22, 2
      %s353 = sadd.s32 %s352, 3
      %p354 = scmp.lt.s32.totalorder %s21, 1
      %s355 = scalar_select %p354, %s21, 1
      %p356 = scmp.lt.s32.totalorder %s353, 17
      %s357 = scalar_select %p356, %s353, 17
      %s358 = smul.addr %s357, 3
      %s359 = smul.addr %s355, 54
      %s360 = sadd.s32 %s358, %s359
      %s361 = smul.addr %s360, 4
      %s362 = scalar_lea.vmem %s3, %s361
      %p363 = pneg %p150
      %p364 = pneg %p147
      %p365 = pneg %p171
      %p366 = pneg %p168
      %p367 = pneg %p192
      %p368 = pneg %p189
      %p369 = pneg %p220
      %p370 = pneg %p217
      %p371 = scmp.lt.s32.totalorder %s21, 1
      %s372 = scalar_select %p371, %s21, 1
      %p373 = scmp.lt.s32.totalorder %s22, 7
      %s374 = scalar_select %p373, %s22, 7
      %s375 = smul.addr %s372, 8
      %s376 = sadd.s32 %s374, %s375
      %s377 = smul.addr %s376, 4
      %s378 = scalar_lea.vmem %s6, %s377
      %s379 = smul.u32 %s22, 2
      %p380 = scmp.lt.s32.totalorder %s21, 1
      %s381 = scalar_select %p380, %s21, 1
      %p382 = scmp.lt.s32.totalorder %s379, 17
      %s383 = scalar_select %p382, %s379, 17
      %s384 = smul.addr %s383, 3
      %s385 = smul.addr %s381, 54
      %s386 = sadd.s32 %s384, %s385
      %s387 = smul.addr %s386, 4
      %s388 = scalar_lea.vmem %s0, %s387
      %s389 = smul.u32 %s22, 2
      %s390 = smul.u32 %s22, 2
      %s391 = sadd.s32 %s390, 1
      %p392 = scmp.lt.s32.totalorder %s21, 1
      %s393 = scalar_select %p392, %s21, 1
      %p394 = scmp.lt.s32.totalorder %s391, 17
      %s395 = scalar_select %p394, %s391, 17
      %s396 = smul.addr %s395, 3
      %s397 = smul.addr %s393, 54
      %s398 = sadd.s32 %s396, %s397
      %s399 = smul.addr %s398, 4
      %s400 = scalar_lea.vmem %s1, %s399
      %s401 = smul.u32 %s22, 2
      %s402 = sadd.s32 %s401, 1
      %s403 = smul.u32 %s22, 2
      %s404 = sadd.s32 %s403, 2
      %p405 = scmp.lt.s32.totalorder %s21, 1
      %s406 = scalar_select %p405, %s21, 1
      %p407 = scmp.lt.s32.totalorder %s404, 17
      %s408 = scalar_select %p407, %s404, 17
      %s409 = smul.addr %s408, 3
      %s410 = smul.addr %s406, 54
      %s411 = sadd.s32 %s409, %s410
      %s412 = smul.addr %s411, 4
      %s413 = scalar_lea.vmem %s2, %s412
      %s414 = smul.u32 %s22, 2
      %s415 = sadd.s32 %s414, 2
      %s416 = smul.u32 %s22, 2
      %s417 = sadd.s32 %s416, 3
      %p418 = scmp.lt.s32.totalorder %s21, 1
      %s419 = scalar_select %p418, %s21, 1
      %p420 = scmp.lt.s32.totalorder %s417, 17
      %s421 = scalar_select %p420, %s417, 17
      %s422 = smul.addr %s421, 3
      %s423 = smul.addr %s419, 54
      %s424 = sadd.s32 %s422, %s423
      %s425 = smul.addr %s424, 4
      %s426 = scalar_lea.vmem %s3, %s425
      %s427 = smul.u32 %s22, 2
      %s428 = sadd.s32 %s427, 3
      %p429 = scmp.lt.s32.totalorder %s21, 1
      %s430 = scalar_select %p429, %s21, 1
      %p431 = scmp.lt.s32.totalorder %s22, 7
      %s432 = scalar_select %p431, %s22, 7
      %s433 = smul.addr %s430, 8
      %s434 = sadd.s32 %s432, %s433
      %s435 = smul.addr %s434, 4
      %s436 = scalar_lea.vmem %s6, %s435
      %v438 = vld [vmem:[%s388] sm:$0xf]
      %v439 = vld [vmem:[%s388 + $0x4] sm:$0xf]
      %v440 = vld [vmem:[%s388 + $0x8] sm:$0x1]
      %v441 = vld [vmem:[%s400] sm:$0xf]
      %v442 = vld [vmem:[%s400 + $0x4] sm:$0xf]
      %v443 = vld [vmem:[%s400 + $0x8] sm:$0x1]
      %v444 = vld [vmem:[%s413] sm:$0xf]
      %v445 = vld [vmem:[%s413 + $0x4] sm:$0xf]
      %v446 = vld [vmem:[%s413 + $0x8] sm:$0x1]
      %v447 = vld [vmem:[%s426] sm:$0xf]
      %v448 = vld [vmem:[%s426 + $0x4] sm:$0xf]
      %v449 = vld [vmem:[%s426 + $0x8] sm:$0x1]
      %v450 = vld [vmem:[%s4] sm:$0x3]
      %s451 = scalar_lea.vmem %s4, 2
      %v452 = vld [vmem:[%s451] sm:$0x3]
      %v456 = vunpack.c.l.b16 %v438
      %v457 = vunpack.c.l.b16 %v439
      %v458 = vunpack.c.l.b16 %v440
      %v459 = vpack.c.b16 %v457, %v456
      %v460 = vpack.c.b16 %v458, %v458
      %vm461 = vsmask.f32 7424
      %v463 = vshrl.u32 %v459, 16
      %v465 = vshll.u32 %v459, 16
      %v467 = vrot.slane %v465, 1
      %v468 = vor.u32 %v463, %v467
      %v470 = vshll.u32 %v460, 16
      %v472 = vrot.slane %v470, 1
      %v473 = vsel %vm461, %v468, %v472
      %vm474 = vcmask 31744
      %v476 = vsel %vm474, %v473, 0
      %vm478 = vcmask 1041408
      %v480 = vsel %vm478, %v452, 0
      %482 = vmatprep.subr.bf16.mxu0 0
      %483 = vmatpush1.bf16.msra.mxu0 0
      %484 = vmatprep.subr.bf16.mxu0 0
      %485 = vmatpush1.bf16.msra.mxu0 0
      %486 = vmatprep.subr.bf16.mxu0 0
      %487 = vmatpush1.bf16.msra.mxu0 0
      %488 = vmatprep.subr.bf16.mxu0 0
      %489 = vmatpush1.bf16.msra.mxu0 0
      %490 = vmatprep.subr.bf16.mxu0 0
      %491 = vmatpush1.bf16.msra.mxu0 0
      %492 = vmatprep.subr.bf16.mxu0 0
      %493 = vmatpush1.bf16.msra.mxu0 0
      %494 = vmatprep.subr.bf16.mxu0 0
      %495 = vmatpush1.bf16.msra.mxu0 0
      %496 = vmatprep.subr.bf16.mxu0 0
      %497 = vmatpush1.bf16.msra.mxu0 %v480
      %498 = vmatprep.subr.bf16.mxu0 0
      %499 = vmatpush2.bf16.msra.mxu0 0
      %500 = vmatprep.subr.bf16.mxu0 0
      %501 = vmatpush2.bf16.msra.mxu0 0
      %502 = vmatprep.subr.bf16.mxu0 0
      %503 = vmatpush2.bf16.msra.mxu0 0
      %504 = vmatprep.subr.bf16.mxu0 0
      %505 = vmatpush2.bf16.msra.mxu0 0
      %506 = vmatprep.subr.bf16.mxu0 0
      %507 = vmatpush2.bf16.msra.mxu0 0
      %508 = vmatprep.subr.bf16.mxu0 0
      %509 = vmatpush2.bf16.msra.mxu0 0
      %510 = vmatprep.subr.bf16.mxu0 0
      %511 = vmatpush2.bf16.msra.mxu0 0
      %512 = vmatprep.subr.bf16.mxu0 0
      %513 = vmatpush2.bf16.msra.mxu0 0
      %514 = vmatprep.mubr.bf16.mxu0 0
      %515 = vmatmul.mubr.bf16.gmra.mxu0 %v476
      %v516 = vpop.f32.mrf.mxu0
      %v517 = vadd.f32 0.0, %v516
      %v518 = vpop.f32.mrf.mxu0
      %v519 = vpop.f32.mrf.mxu0
      %v520 = vadd.f32 0.0, %v519
      %v521 = vpop.f32.mrf.mxu0
      %522 = vdwg.mxu0
      %v523 = vsel %vm474, %v459, 0
      %v526 = vsel %vm478, %v450, 0
      %528 = vmatprep.subr.bf16.mxu0 0
      %529 = vmatpush1.bf16.msra.mxu0 0
      %530 = vmatprep.subr.bf16.mxu0 0
      %531 = vmatpush1.bf16.msra.mxu0 0
      %532 = vmatprep.subr.bf16.mxu0 0
      %533 = vmatpush1.bf16.msra.mxu0 0
      %534 = vmatprep.subr.bf16.mxu0 0
      %535 = vmatpush1.bf16.msra.mxu0 0
      %536 = vmatprep.subr.bf16.mxu0 0
      %537 = vmatpush1.bf16.msra.mxu0 0
      %538 = vmatprep.subr.bf16.mxu0 0
      %539 = vmatpush1.bf16.msra.mxu0 0
      %540 = vmatprep.subr.bf16.mxu0 0
      %541 = vmatpush1.bf16.msra.mxu0 0
      %542 = vmatprep.subr.bf16.mxu0 0
      %543 = vmatpush1.bf16.msra.mxu0 %v526
      %544 = vmatprep.subr.bf16.mxu0 0
      %545 = vmatpush2.bf16.msra.mxu0 0
      %546 = vmatprep.subr.bf16.mxu0 0
      %547 = vmatpush2.bf16.msra.mxu0 0
      %548 = vmatprep.subr.bf16.mxu0 0
      %549 = vmatpush2.bf16.msra.mxu0 0
      %550 = vmatprep.subr.bf16.mxu0 0
      %551 = vmatpush2.bf16.msra.mxu0 0
      %552 = vmatprep.subr.bf16.mxu0 0
      %553 = vmatpush2.bf16.msra.mxu0 0
      %554 = vmatprep.subr.bf16.mxu0 0
      %555 = vmatpush2.bf16.msra.mxu0 0
      %556 = vmatprep.subr.bf16.mxu0 0
      %557 = vmatpush2.bf16.msra.mxu0 0
      %558 = vmatprep.subr.bf16.mxu0 0
      %559 = vmatpush2.bf16.msra.mxu0 0
      %560 = vmatprep.mubr.bf16.mxu0 0
      %561 = vmatmul.mubr.bf16.gmra.mxu0 %v523
      %v562 = vpop.f32.mrf.mxu0
      %v563 = vadd.f32 %v517, %v562
      %v564 = vpop.f32.mrf.mxu0
      %v565 = vpop.f32.mrf.mxu0
      %v566 = vadd.f32 %v520, %v565
      %v567 = vpop.f32.mrf.mxu0
      %568 = vdwg.mxu0
      %s569 = scalar_lea.vmem %s4, 4
      %v570 = vld [vmem:[%s569] sm:$0x3]
      %vm571 = vcmask 1046528
      %v572 = vrot.slane %v459, 1
      %v573 = vrot.slane %v460, 1
      %v574 = vsel %vm571, %v572, %v573
      %v576 = vsel %vm474, %v574, 0
      %v579 = vsel %vm478, %v570, 0
      %581 = vmatprep.subr.bf16.mxu0 0
      %582 = vmatpush1.bf16.msra.mxu0 0
      %583 = vmatprep.subr.bf16.mxu0 0
      %584 = vmatpush1.bf16.msra.mxu0 0
      %585 = vmatprep.subr.bf16.mxu0 0
      %586 = vmatpush1.bf16.msra.mxu0 0
      %587 = vmatprep.subr.bf16.mxu0 0
      %588 = vmatpush1.bf16.msra.mxu0 0
      %589 = vmatprep.subr.bf16.mxu0 0
      %590 = vmatpush1.bf16.msra.mxu0 0
      %591 = vmatprep.subr.bf16.mxu0 0
      %592 = vmatpush1.bf16.msra.mxu0 0
      %593 = vmatprep.subr.bf16.mxu0 0
      %594 = vmatpush1.bf16.msra.mxu0 0
      %595 = vmatprep.subr.bf16.mxu0 0
      %596 = vmatpush1.bf16.msra.mxu0 %v579
      %597 = vmatprep.subr.bf16.mxu0 0
      %598 = vmatpush2.bf16.msra.mxu0 0
      %599 = vmatprep.subr.bf16.mxu0 0
      %600 = vmatpush2.bf16.msra.mxu0 0
      %601 = vmatprep.subr.bf16.mxu0 0
      %602 = vmatpush2.bf16.msra.mxu0 0
      %603 = vmatprep.subr.bf16.mxu0 0
      %604 = vmatpush2.bf16.msra.mxu0 0
      %605 = vmatprep.subr.bf16.mxu0 0
      %606 = vmatpush2.bf16.msra.mxu0 0
      %607 = vmatprep.subr.bf16.mxu0 0
      %608 = vmatpush2.bf16.msra.mxu0 0
      %609 = vmatprep.subr.bf16.mxu0 0
      %610 = vmatpush2.bf16.msra.mxu0 0
      %611 = vmatprep.subr.bf16.mxu0 0
      %612 = vmatpush2.bf16.msra.mxu0 0
      %613 = vmatprep.mubr.bf16.mxu0 0
      %614 = vmatmul.mubr.bf16.gmra.mxu0 %v576
      %v615 = vpop.f32.mrf.mxu0
      %v616 = vadd.f32 0.0, %v615
      %v617 = vpop.f32.mrf.mxu0
      %v618 = vpop.f32.mrf.mxu0
      %v619 = vadd.f32 0.0, %v618
      %v620 = vpop.f32.mrf.mxu0
      %621 = vdwg.mxu0
      %v622 = vadd.f32 %v563, %v616
      %v623 = vadd.f32 %v566, %v619
      %s624 = scalar_lea.vmem %s4, 6
      %v625 = vld [vmem:[%s624] sm:$0x3]
      %v628 = vunpack.c.l.b16 %v441
      %v629 = vunpack.c.l.b16 %v442
      %v630 = vpack.c.b16 %v629, %v628
      %v632 = vsel %vm474, %v630, 0
      %v635 = vsel %vm478, %v625, 0
      %637 = vmatprep.subr.bf16.mxu0 0
      %638 = vmatpush1.bf16.msra.mxu0 0
      %639 = vmatprep.subr.bf16.mxu0 0
      %640 = vmatpush1.bf16.msra.mxu0 0
      %641 = vmatprep.subr.bf16.mxu0 0
      %642 = vmatpush1.bf16.msra.mxu0 0
      %643 = vmatprep.subr.bf16.mxu0 0
      %644 = vmatpush1.bf16.msra.mxu0 0
      %645 = vmatprep.subr.bf16.mxu0 0
      %646 = vmatpush1.bf16.msra.mxu0 0
      %647 = vmatprep.subr.bf16.mxu0 0
      %648 = vmatpush1.bf16.msra.mxu0 0
      %649 = vmatprep.subr.bf16.mxu0 0
      %650 = vmatpush1.bf16.msra.mxu0 0
      %651 = vmatprep.subr.bf16.mxu0 0
      %652 = vmatpush1.bf16.msra.mxu0 %v635
      %653 = vmatprep.subr.bf16.mxu0 0
      %654 = vmatpush2.bf16.msra.mxu0 0
      %655 = vmatprep.subr.bf16.mxu0 0
      %656 = vmatpush2.bf16.msra.mxu0 0
      %657 = vmatprep.subr.bf16.mxu0 0
      %658 = vmatpush2.bf16.msra.mxu0 0
      %659 = vmatprep.subr.bf16.mxu0 0
      %660 = vmatpush2.bf16.msra.mxu0 0
      %661 = vmatprep.subr.bf16.mxu0 0
      %662 = vmatpush2.bf16.msra.mxu0 0
      %663 = vmatprep.subr.bf16.mxu0 0
      %664 = vmatpush2.bf16.msra.mxu0 0
      %665 = vmatprep.subr.bf16.mxu0 0
      %666 = vmatpush2.bf16.msra.mxu0 0
      %667 = vmatprep.subr.bf16.mxu0 0
      %668 = vmatpush2.bf16.msra.mxu0 0
      %669 = vmatprep.mubr.bf16.mxu0 0
      %670 = vmatmul.mubr.bf16.gmra.mxu0 %v632
      %v671 = vpop.f32.mrf.mxu0
      %v672 = vadd.f32 0.0, %v671
      %v673 = vpop.f32.mrf.mxu0
      %v674 = vpop.f32.mrf.mxu0
      %v675 = vadd.f32 0.0, %v674
      %v676 = vpop.f32.mrf.mxu0
      %677 = vdwg.mxu0
      %v678 = vadd.f32 %v622, %v672
      %v679 = vadd.f32 %v623, %v675
      %s680 = scalar_lea.vmem %s4, 8
      %v681 = vld [vmem:[%s680] sm:$0x3]
      %v683 = vunpack.c.l.b16 %v443
      %v684 = vpack.c.b16 %v683, %v683
      %v685 = vshrl.u32 %v630, 16
      %v687 = vshll.u32 %v630, 16
      %v689 = vrot.slane %v687, 1
      %v690 = vor.u32 %v685, %v689
      %v692 = vshll.u32 %v684, 16
      %v694 = vrot.slane %v692, 1
      %v695 = vsel %vm461, %v690, %v694
      %v697 = vsel %vm474, %v695, 0
      %v700 = vsel %vm478, %v681, 0
      %702 = vmatprep.subr.bf16.mxu0 0
      %703 = vmatpush1.bf16.msra.mxu0 0
      %704 = vmatprep.subr.bf16.mxu0 0
      %705 = vmatpush1.bf16.msra.mxu0 0
      %706 = vmatprep.subr.bf16.mxu0 0
      %707 = vmatpush1.bf16.msra.mxu0 0
      %708 = vmatprep.subr.bf16.mxu0 0
      %709 = vmatpush1.bf16.msra.mxu0 0
      %710 = vmatprep.subr.bf16.mxu0 0
      %711 = vmatpush1.bf16.msra.mxu0 0
      %712 = vmatprep.subr.bf16.mxu0 0
      %713 = vmatpush1.bf16.msra.mxu0 0
      %714 = vmatprep.subr.bf16.mxu0 0
      %715 = vmatpush1.bf16.msra.mxu0 0
      %716 = vmatprep.subr.bf16.mxu0 0
      %717 = vmatpush1.bf16.msra.mxu0 %v700
      %718 = vmatprep.subr.bf16.mxu0 0
      %719 = vmatpush2.bf16.msra.mxu0 0
      %720 = vmatprep.subr.bf16.mxu0 0
      %721 = vmatpush2.bf16.msra.mxu0 0
      %722 = vmatprep.subr.bf16.mxu0 0
      %723 = vmatpush2.bf16.msra.mxu0 0
      %724 = vmatprep.subr.bf16.mxu0 0
      %725 = vmatpush2.bf16.msra.mxu0 0
      %726 = vmatprep.subr.bf16.mxu0 0
      %727 = vmatpush2.bf16.msra.mxu0 0
      %728 = vmatprep.subr.bf16.mxu0 0
      %729 = vmatpush2.bf16.msra.mxu0 0
      %730 = vmatprep.subr.bf16.mxu0 0
      %731 = vmatpush2.bf16.msra.mxu0 0
      %732 = vmatprep.subr.bf16.mxu0 0
      %733 = vmatpush2.bf16.msra.mxu0 0
      %734 = vmatprep.mubr.bf16.mxu0 0
      %735 = vmatmul.mubr.bf16.gmra.mxu0 %v697
      %v736 = vpop.f32.mrf.mxu0
      %v737 = vadd.f32 0.0, %v736
      %v738 = vpop.f32.mrf.mxu0
      %v739 = vpop.f32.mrf.mxu0
      %v740 = vadd.f32 0.0, %v739
      %v741 = vpop.f32.mrf.mxu0
      %742 = vdwg.mxu0
      %v743 = vadd.f32 %v678, %v737
      %v744 = vadd.f32 %v679, %v740
      %s745 = scalar_lea.vmem %s4, 10
      %v746 = vld [vmem:[%s745] sm:$0x3]
      %v747 = vrot.slane %v630, 1
      %v748 = vrot.slane %v684, 1
      %v749 = vsel %vm571, %v747, %v748
      %v751 = vsel %vm474, %v749, 0
      %v754 = vsel %vm478, %v746, 0
      %756 = vmatprep.subr.bf16.mxu0 0
      %757 = vmatpush1.bf16.msra.mxu0 0
      %758 = vmatprep.subr.bf16.mxu0 0
      %759 = vmatpush1.bf16.msra.mxu0 0
      %760 = vmatprep.subr.bf16.mxu0 0
      %761 = vmatpush1.bf16.msra.mxu0 0
      %762 = vmatprep.subr.bf16.mxu0 0
      %763 = vmatpush1.bf16.msra.mxu0 0
      %764 = vmatprep.subr.bf16.mxu0 0
      %765 = vmatpush1.bf16.msra.mxu0 0
      %766 = vmatprep.subr.bf16.mxu0 0
      %767 = vmatpush1.bf16.msra.mxu0 0
      %768 = vmatprep.subr.bf16.mxu0 0
      %769 = vmatpush1.bf16.msra.mxu0 0
      %770 = vmatprep.subr.bf16.mxu0 0
      %771 = vmatpush1.bf16.msra.mxu0 %v754
      %772 = vmatprep.subr.bf16.mxu0 0
      %773 = vmatpush2.bf16.msra.mxu0 0
      %774 = vmatprep.subr.bf16.mxu0 0
      %775 = vmatpush2.bf16.msra.mxu0 0
      %776 = vmatprep.subr.bf16.mxu0 0
      %777 = vmatpush2.bf16.msra.mxu0 0
      %778 = vmatprep.subr.bf16.mxu0 0
      %779 = vmatpush2.bf16.msra.mxu0 0
      %780 = vmatprep.subr.bf16.mxu0 0
      %781 = vmatpush2.bf16.msra.mxu0 0
      %782 = vmatprep.subr.bf16.mxu0 0
      %783 = vmatpush2.bf16.msra.mxu0 0
      %784 = vmatprep.subr.bf16.mxu0 0
      %785 = vmatpush2.bf16.msra.mxu0 0
      %786 = vmatprep.subr.bf16.mxu0 0
      %787 = vmatpush2.bf16.msra.mxu0 0
      %788 = vmatprep.mubr.bf16.mxu0 0
      %789 = vmatmul.mubr.bf16.gmra.mxu0 %v751
      %v790 = vpop.f32.mrf.mxu0
      %v791 = vadd.f32 0.0, %v790
      %v792 = vpop.f32.mrf.mxu0
      %v793 = vpop.f32.mrf.mxu0
      %v794 = vadd.f32 0.0, %v793
      %v795 = vpop.f32.mrf.mxu0
      %796 = vdwg.mxu0
      %v797 = vadd.f32 %v743, %v791
      %v798 = vadd.f32 %v744, %v794
      %s799 = scalar_lea.vmem %s4, 12
      %v800 = vld [vmem:[%s799] sm:$0x3]
      %v803 = vunpack.c.l.b16 %v444
      %v804 = vunpack.c.l.b16 %v445
      %v805 = vpack.c.b16 %v804, %v803
      %v807 = vsel %vm474, %v805, 0
      %v810 = vsel %vm478, %v800, 0
      %812 = vmatprep.subr.bf16.mxu0 0
      %813 = vmatpush1.bf16.msra.mxu0 0
      %814 = vmatprep.subr.bf16.mxu0 0
      %815 = vmatpush1.bf16.msra.mxu0 0
      %816 = vmatprep.subr.bf16.mxu0 0
      %817 = vmatpush1.bf16.msra.mxu0 0
      %818 = vmatprep.subr.bf16.mxu0 0
      %819 = vmatpush1.bf16.msra.mxu0 0
      %820 = vmatprep.subr.bf16.mxu0 0
      %821 = vmatpush1.bf16.msra.mxu0 0
      %822 = vmatprep.subr.bf16.mxu0 0
      %823 = vmatpush1.bf16.msra.mxu0 0
      %824 = vmatprep.subr.bf16.mxu0 0
      %825 = vmatpush1.bf16.msra.mxu0 0
      %826 = vmatprep.subr.bf16.mxu0 0
      %827 = vmatpush1.bf16.msra.mxu0 %v810
      %828 = vmatprep.subr.bf16.mxu0 0
      %829 = vmatpush2.bf16.msra.mxu0 0
      %830 = vmatprep.subr.bf16.mxu0 0
      %831 = vmatpush2.bf16.msra.mxu0 0
      %832 = vmatprep.subr.bf16.mxu0 0
      %833 = vmatpush2.bf16.msra.mxu0 0
      %834 = vmatprep.subr.bf16.mxu0 0
      %835 = vmatpush2.bf16.msra.mxu0 0
      %836 = vmatprep.subr.bf16.mxu0 0
      %837 = vmatpush2.bf16.msra.mxu0 0
      %838 = vmatprep.subr.bf16.mxu0 0
      %839 = vmatpush2.bf16.msra.mxu0 0
      %840 = vmatprep.subr.bf16.mxu0 0
      %841 = vmatpush2.bf16.msra.mxu0 0
      %842 = vmatprep.subr.bf16.mxu0 0
      %843 = vmatpush2.bf16.msra.mxu0 0
      %844 = vmatprep.mubr.bf16.mxu0 0
      %845 = vmatmul.mubr.bf16.gmra.mxu0 %v807
      %v846 = vpop.f32.mrf.mxu0
      %v847 = vadd.f32 0.0, %v846
      %v848 = vpop.f32.mrf.mxu0
      %v849 = vpop.f32.mrf.mxu0
      %v850 = vadd.f32 0.0, %v849
      %v851 = vpop.f32.mrf.mxu0
      %852 = vdwg.mxu0
      %v853 = vadd.f32 %v797, %v847
      %v854 = vadd.f32 %v798, %v850
      %s855 = scalar_lea.vmem %s4, 14
      %v856 = vld [vmem:[%s855] sm:$0x3]
      %v858 = vunpack.c.l.b16 %v446
      %v859 = vpack.c.b16 %v858, %v858
      %v860 = vshrl.u32 %v805, 16
      %v862 = vshll.u32 %v805, 16
      %v864 = vrot.slane %v862, 1
      %v865 = vor.u32 %v860, %v864
      %v867 = vshll.u32 %v859, 16
      %v869 = vrot.slane %v867, 1
      %v870 = vsel %vm461, %v865, %v869
      %v872 = vsel %vm474, %v870, 0
      %v875 = vsel %vm478, %v856, 0
      %877 = vmatprep.subr.bf16.mxu0 0
      %878 = vmatpush1.bf16.msra.mxu0 0
      %879 = vmatprep.subr.bf16.mxu0 0
      %880 = vmatpush1.bf16.msra.mxu0 0
      %881 = vmatprep.subr.bf16.mxu0 0
      %882 = vmatpush1.bf16.msra.mxu0 0
      %883 = vmatprep.subr.bf16.mxu0 0
      %884 = vmatpush1.bf16.msra.mxu0 0
      %885 = vmatprep.subr.bf16.mxu0 0
      %886 = vmatpush1.bf16.msra.mxu0 0
      %887 = vmatprep.subr.bf16.mxu0 0
      %888 = vmatpush1.bf16.msra.mxu0 0
      %889 = vmatprep.subr.bf16.mxu0 0
      %890 = vmatpush1.bf16.msra.mxu0 0
      %891 = vmatprep.subr.bf16.mxu0 0
      %892 = vmatpush1.bf16.msra.mxu0 %v875
      %893 = vmatprep.subr.bf16.mxu0 0
      %894 = vmatpush2.bf16.msra.mxu0 0
      %895 = vmatprep.subr.bf16.mxu0 0
      %896 = vmatpush2.bf16.msra.mxu0 0
      %897 = vmatprep.subr.bf16.mxu0 0
      %898 = vmatpush2.bf16.msra.mxu0 0
      %899 = vmatprep.subr.bf16.mxu0 0
      %900 = vmatpush2.bf16.msra.mxu0 0
      %901 = vmatprep.subr.bf16.mxu0 0
      %902 = vmatpush2.bf16.msra.mxu0 0
      %903 = vmatprep.subr.bf16.mxu0 0
      %904 = vmatpush2.bf16.msra.mxu0 0
      %905 = vmatprep.subr.bf16.mxu0 0
      %906 = vmatpush2.bf16.msra.mxu0 0
      %907 = vmatprep.subr.bf16.mxu0 0
      %908 = vmatpush2.bf16.msra.mxu0 0
      %909 = vmatprep.mubr.bf16.mxu0 0
      %910 = vmatmul.mubr.bf16.gmra.mxu0 %v872
      %v911 = vpop.f32.mrf.mxu0
      %v912 = vadd.f32 0.0, %v911
      %v913 = vpop.f32.mrf.mxu0
      %v914 = vpop.f32.mrf.mxu0
      %v915 = vadd.f32 0.0, %v914
      %v916 = vpop.f32.mrf.mxu0
      %917 = vdwg.mxu0
      %v918 = vadd.f32 %v853, %v912
      %v919 = vadd.f32 %v854, %v915
      %s920 = scalar_lea.vmem %s4, 16
      %v921 = vld [vmem:[%s920] sm:$0x3]
      %v922 = vrot.slane %v805, 1
      %v923 = vrot.slane %v859, 1
      %v924 = vsel %vm571, %v922, %v923
      %v926 = vsel %vm474, %v924, 0
      %v929 = vsel %vm478, %v921, 0
      %931 = vmatprep.subr.bf16.mxu0 0
      %932 = vmatpush1.bf16.msra.mxu0 0
      %933 = vmatprep.subr.bf16.mxu0 0
      %934 = vmatpush1.bf16.msra.mxu0 0
      %935 = vmatprep.subr.bf16.mxu0 0
      %936 = vmatpush1.bf16.msra.mxu0 0
      %937 = vmatprep.subr.bf16.mxu0 0
      %938 = vmatpush1.bf16.msra.mxu0 0
      %939 = vmatprep.subr.bf16.mxu0 0
      %940 = vmatpush1.bf16.msra.mxu0 0
      %941 = vmatprep.subr.bf16.mxu0 0
      %942 = vmatpush1.bf16.msra.mxu0 0
      %943 = vmatprep.subr.bf16.mxu0 0
      %944 = vmatpush1.bf16.msra.mxu0 0
      %945 = vmatprep.subr.bf16.mxu0 0
      %946 = vmatpush1.bf16.msra.mxu0 %v929
      %947 = vmatprep.subr.bf16.mxu0 0
      %948 = vmatpush2.bf16.msra.mxu0 0
      %949 = vmatprep.subr.bf16.mxu0 0
      %950 = vmatpush2.bf16.msra.mxu0 0
      %951 = vmatprep.subr.bf16.mxu0 0
      %952 = vmatpush2.bf16.msra.mxu0 0
      %953 = vmatprep.subr.bf16.mxu0 0
      %954 = vmatpush2.bf16.msra.mxu0 0
      %955 = vmatprep.subr.bf16.mxu0 0
      %956 = vmatpush2.bf16.msra.mxu0 0
      %957 = vmatprep.subr.bf16.mxu0 0
      %958 = vmatpush2.bf16.msra.mxu0 0
      %959 = vmatprep.subr.bf16.mxu0 0
      %960 = vmatpush2.bf16.msra.mxu0 0
      %961 = vmatprep.subr.bf16.mxu0 0
      %962 = vmatpush2.bf16.msra.mxu0 0
      %963 = vmatprep.mubr.bf16.mxu0 0
      %964 = vmatmul.mubr.bf16.gmra.mxu0 %v926
      %v965 = vpop.f32.mrf.mxu0
      %v966 = vadd.f32 0.0, %v965
      %v967 = vpop.f32.mrf.mxu0
      %v968 = vpop.f32.mrf.mxu0
      %v969 = vadd.f32 0.0, %v968
      %v970 = vpop.f32.mrf.mxu0
      %971 = vdwg.mxu0
      %v972 = vadd.f32 %v918, %v966
      %v973 = vadd.f32 %v919, %v969
      %v974 = vld [vmem:[%s5] sm:$0x1]
      %v976 = vlaneseq
      %v977 = vshrl.u32 %v976, 7
      %v978 = vsub.s32 0, %v977
      %v979 = vrot.slane %v974, %v978
      %v981 = vadd.f32 %v972, %v979
      %v982 = vadd.f32 %v973, %v979
      %983 = vmatprep.subr.bf16.mxu0 0
      %984 = vmatpush1.bf16.msra.mxu0 0
      %985 = vmatprep.subr.bf16.mxu0 0
      %986 = vmatpush1.bf16.msra.mxu0 0
      %987 = vmatprep.subr.bf16.mxu0 0
      %988 = vmatpush1.bf16.msra.mxu0 0
      %989 = vmatprep.subr.bf16.mxu0 0
      %990 = vmatpush1.bf16.msra.mxu0 0
      %991 = vmatprep.subr.bf16.mxu0 0
      %992 = vmatpush1.bf16.msra.mxu0 0
      %993 = vmatprep.subr.bf16.mxu0 0
      %994 = vmatpush1.bf16.msra.mxu0 0
      %995 = vmatprep.subr.bf16.mxu0 0
      %996 = vmatpush1.bf16.msra.mxu0 0
      %997 = vmatprep.subr.bf16.mxu0 0
      %998 = vmatpush1.bf16.msra.mxu0 %v480
      %999 = vmatprep.subr.bf16.mxu0 0
      %1000 = vmatpush2.bf16.msra.mxu0 0
      %1001 = vmatprep.subr.bf16.mxu0 0
      %1002 = vmatpush2.bf16.msra.mxu0 0
      %1003 = vmatprep.subr.bf16.mxu0 0
      %1004 = vmatpush2.bf16.msra.mxu0 0
      %1005 = vmatprep.subr.bf16.mxu0 0
      %1006 = vmatpush2.bf16.msra.mxu0 0
      %1007 = vmatprep.subr.bf16.mxu0 0
      %1008 = vmatpush2.bf16.msra.mxu0 0
      %1009 = vmatprep.subr.bf16.mxu0 0
      %1010 = vmatpush2.bf16.msra.mxu0 0
      %1011 = vmatprep.subr.bf16.mxu0 0
      %1012 = vmatpush2.bf16.msra.mxu0 0
      %1013 = vmatprep.subr.bf16.mxu0 0
      %1014 = vmatpush2.bf16.msra.mxu0 0
      %1015 = vmatprep.mubr.bf16.mxu0 0
      %1016 = vmatmul.mubr.bf16.gmra.mxu0 %v697
      %v1017 = vpop.f32.mrf.mxu0
      %v1018 = vadd.f32 0.0, %v1017
      %v1019 = vpop.f32.mrf.mxu0
      %v1020 = vpop.f32.mrf.mxu0
      %v1021 = vadd.f32 0.0, %v1020
      %v1022 = vpop.f32.mrf.mxu0
      %1023 = vdwg.mxu0
      %1024 = vmatprep.subr.bf16.mxu0 0
      %1025 = vmatpush1.bf16.msra.mxu0 0
      %1026 = vmatprep.subr.bf16.mxu0 0
      %1027 = vmatpush1.bf16.msra.mxu0 0
      %1028 = vmatprep.subr.bf16.mxu0 0
      %1029 = vmatpush1.bf16.msra.mxu0 0
      %1030 = vmatprep.subr.bf16.mxu0 0
      %1031 = vmatpush1.bf16.msra.mxu0 0
      %1032 = vmatprep.subr.bf16.mxu0 0
      %1033 = vmatpush1.bf16.msra.mxu0 0
      %1034 = vmatprep.subr.bf16.mxu0 0
      %1035 = vmatpush1.bf16.msra.mxu0 0
      %1036 = vmatprep.subr.bf16.mxu0 0
      %1037 = vmatpush1.bf16.msra.mxu0 0
      %1038 = vmatprep.subr.bf16.mxu0 0
      %1039 = vmatpush1.bf16.msra.mxu0 %v526
      %1040 = vmatprep.subr.bf16.mxu0 0
      %1041 = vmatpush2.bf16.msra.mxu0 0
      %1042 = vmatprep.subr.bf16.mxu0 0
      %1043 = vmatpush2.bf16.msra.mxu0 0
      %1044 = vmatprep.subr.bf16.mxu0 0
      %1045 = vmatpush2.bf16.msra.mxu0 0
      %1046 = vmatprep.subr.bf16.mxu0 0
      %1047 = vmatpush2.bf16.msra.mxu0 0
      %1048 = vmatprep.subr.bf16.mxu0 0
      %1049 = vmatpush2.bf16.msra.mxu0 0
      %1050 = vmatprep.subr.bf16.mxu0 0
      %1051 = vmatpush2.bf16.msra.mxu0 0
      %1052 = vmatprep.subr.bf16.mxu0 0
      %1053 = vmatpush2.bf16.msra.mxu0 0
      %1054 = vmatprep.subr.bf16.mxu0 0
      %1055 = vmatpush2.bf16.msra.mxu0 0
      %1056 = vmatprep.mubr.bf16.mxu0 0
      %1057 = vmatmul.mubr.bf16.gmra.mxu0 %v632
      %v1058 = vpop.f32.mrf.mxu0
      %v1059 = vadd.f32 %v1018, %v1058
      %v1060 = vpop.f32.mrf.mxu0
      %v1061 = vpop.f32.mrf.mxu0
      %v1062 = vadd.f32 %v1021, %v1061
      %v1063 = vpop.f32.mrf.mxu0
      %1064 = vdwg.mxu0
      %1065 = vmatprep.subr.bf16.mxu0 0
      %1066 = vmatpush1.bf16.msra.mxu0 0
      %1067 = vmatprep.subr.bf16.mxu0 0
      %1068 = vmatpush1.bf16.msra.mxu0 0
      %1069 = vmatprep.subr.bf16.mxu0 0
      %1070 = vmatpush1.bf16.msra.mxu0 0
      %1071 = vmatprep.subr.bf16.mxu0 0
      %1072 = vmatpush1.bf16.msra.mxu0 0
      %1073 = vmatprep.subr.bf16.mxu0 0
      %1074 = vmatpush1.bf16.msra.mxu0 0
      %1075 = vmatprep.subr.bf16.mxu0 0
      %1076 = vmatpush1.bf16.msra.mxu0 0
      %1077 = vmatprep.subr.bf16.mxu0 0
      %1078 = vmatpush1.bf16.msra.mxu0 0
      %1079 = vmatprep.subr.bf16.mxu0 0
      %1080 = vmatpush1.bf16.msra.mxu0 %v579
      %1081 = vmatprep.subr.bf16.mxu0 0
      %1082 = vmatpush2.bf16.msra.mxu0 0
      %1083 = vmatprep.subr.bf16.mxu0 0
      %1084 = vmatpush2.bf16.msra.mxu0 0
      %1085 = vmatprep.subr.bf16.mxu0 0
      %1086 = vmatpush2.bf16.msra.mxu0 0
      %1087 = vmatprep.subr.bf16.mxu0 0
      %1088 = vmatpush2.bf16.msra.mxu0 0
      %1089 = vmatprep.subr.bf16.mxu0 0
      %1090 = vmatpush2.bf16.msra.mxu0 0
      %1091 = vmatprep.subr.bf16.mxu0 0
      %1092 = vmatpush2.bf16.msra.mxu0 0
      %1093 = vmatprep.subr.bf16.mxu0 0
      %1094 = vmatpush2.bf16.msra.mxu0 0
      %1095 = vmatprep.subr.bf16.mxu0 0
      %1096 = vmatpush2.bf16.msra.mxu0 0
      %1097 = vmatprep.mubr.bf16.mxu0 0
      %1098 = vmatmul.mubr.bf16.gmra.mxu0 %v751
      %v1099 = vpop.f32.mrf.mxu0
      %v1100 = vadd.f32 0.0, %v1099
      %v1101 = vpop.f32.mrf.mxu0
      %v1102 = vpop.f32.mrf.mxu0
      %v1103 = vadd.f32 0.0, %v1102
      %v1104 = vpop.f32.mrf.mxu0
      %1105 = vdwg.mxu0
      %v1106 = vadd.f32 %v1059, %v1100
      %v1107 = vadd.f32 %v1062, %v1103
      %1108 = vmatprep.subr.bf16.mxu0 0
      %1109 = vmatpush1.bf16.msra.mxu0 0
      %1110 = vmatprep.subr.bf16.mxu0 0
      %1111 = vmatpush1.bf16.msra.mxu0 0
      %1112 = vmatprep.subr.bf16.mxu0 0
      %1113 = vmatpush1.bf16.msra.mxu0 0
      %1114 = vmatprep.subr.bf16.mxu0 0
      %1115 = vmatpush1.bf16.msra.mxu0 0
      %1116 = vmatprep.subr.bf16.mxu0 0
      %1117 = vmatpush1.bf16.msra.mxu0 0
      %1118 = vmatprep.subr.bf16.mxu0 0
      %1119 = vmatpush1.bf16.msra.mxu0 0
      %1120 = vmatprep.subr.bf16.mxu0 0
      %1121 = vmatpush1.bf16.msra.mxu0 0
      %1122 = vmatprep.subr.bf16.mxu0 0
      %1123 = vmatpush1.bf16.msra.mxu0 %v635
      %1124 = vmatprep.subr.bf16.mxu0 0
      %1125 = vmatpush2.bf16.msra.mxu0 0
      %1126 = vmatprep.subr.bf16.mxu0 0
      %1127 = vmatpush2.bf16.msra.mxu0 0
      %1128 = vmatprep.subr.bf16.mxu0 0
      %1129 = vmatpush2.bf16.msra.mxu0 0
      %1130 = vmatprep.subr.bf16.mxu0 0
      %1131 = vmatpush2.bf16.msra.mxu0 0
      %1132 = vmatprep.subr.bf16.mxu0 0
      %1133 = vmatpush2.bf16.msra.mxu0 0
      %1134 = vmatprep.subr.bf16.mxu0 0
      %1135 = vmatpush2.bf16.msra.mxu0 0
      %1136 = vmatprep.subr.bf16.mxu0 0
      %1137 = vmatpush2.bf16.msra.mxu0 0
      %1138 = vmatprep.subr.bf16.mxu0 0
      %1139 = vmatpush2.bf16.msra.mxu0 0
      %1140 = vmatprep.mubr.bf16.mxu0 0
      %1141 = vmatmul.mubr.bf16.gmra.mxu0 %v807
      %v1142 = vpop.f32.mrf.mxu0
      %v1143 = vadd.f32 0.0, %v1142
      %v1144 = vpop.f32.mrf.mxu0
      %v1145 = vpop.f32.mrf.mxu0
      %v1146 = vadd.f32 0.0, %v1145
      %v1147 = vpop.f32.mrf.mxu0
      %1148 = vdwg.mxu0
      %v1149 = vadd.f32 %v1106, %v1143
      %v1150 = vadd.f32 %v1107, %v1146
      %1151 = vmatprep.subr.bf16.mxu0 0
      %1152 = vmatpush1.bf16.msra.mxu0 0
      %1153 = vmatprep.subr.bf16.mxu0 0
      %1154 = vmatpush1.bf16.msra.mxu0 0
      %1155 = vmatprep.subr.bf16.mxu0 0
      %1156 = vmatpush1.bf16.msra.mxu0 0
      %1157 = vmatprep.subr.bf16.mxu0 0
      %1158 = vmatpush1.bf16.msra.mxu0 0
      %1159 = vmatprep.subr.bf16.mxu0 0
      %1160 = vmatpush1.bf16.msra.mxu0 0
      %1161 = vmatprep.subr.bf16.mxu0 0
      %1162 = vmatpush1.bf16.msra.mxu0 0
      %1163 = vmatprep.subr.bf16.mxu0 0
      %1164 = vmatpush1.bf16.msra.mxu0 0
      %1165 = vmatprep.subr.bf16.mxu0 0
      %1166 = vmatpush1.bf16.msra.mxu0 %v700
      %1167 = vmatprep.subr.bf16.mxu0 0
      %1168 = vmatpush2.bf16.msra.mxu0 0
      %1169 = vmatprep.subr.bf16.mxu0 0
      %1170 = vmatpush2.bf16.msra.mxu0 0
      %1171 = vmatprep.subr.bf16.mxu0 0
      %1172 = vmatpush2.bf16.msra.mxu0 0
      %1173 = vmatprep.subr.bf16.mxu0 0
      %1174 = vmatpush2.bf16.msra.mxu0 0
      %1175 = vmatprep.subr.bf16.mxu0 0
      %1176 = vmatpush2.bf16.msra.mxu0 0
      %1177 = vmatprep.subr.bf16.mxu0 0
      %1178 = vmatpush2.bf16.msra.mxu0 0
      %1179 = vmatprep.subr.bf16.mxu0 0
      %1180 = vmatpush2.bf16.msra.mxu0 0
      %1181 = vmatprep.subr.bf16.mxu0 0
      %1182 = vmatpush2.bf16.msra.mxu0 0
      %1183 = vmatprep.mubr.bf16.mxu0 0
      %1184 = vmatmul.mubr.bf16.gmra.mxu0 %v872
      %v1185 = vpop.f32.mrf.mxu0
      %v1186 = vadd.f32 0.0, %v1185
      %v1187 = vpop.f32.mrf.mxu0
      %v1188 = vpop.f32.mrf.mxu0
      %v1189 = vadd.f32 0.0, %v1188
      %v1190 = vpop.f32.mrf.mxu0
      %1191 = vdwg.mxu0
      %v1192 = vadd.f32 %v1149, %v1186
      %v1193 = vadd.f32 %v1150, %v1189
      %1194 = vmatprep.subr.bf16.mxu0 0
      %1195 = vmatpush1.bf16.msra.mxu0 0
      %1196 = vmatprep.subr.bf16.mxu0 0
      %1197 = vmatpush1.bf16.msra.mxu0 0
      %1198 = vmatprep.subr.bf16.mxu0 0
      %1199 = vmatpush1.bf16.msra.mxu0 0
      %1200 = vmatprep.subr.bf16.mxu0 0
      %1201 = vmatpush1.bf16.msra.mxu0 0
      %1202 = vmatprep.subr.bf16.mxu0 0
      %1203 = vmatpush1.bf16.msra.mxu0 0
      %1204 = vmatprep.subr.bf16.mxu0 0
      %1205 = vmatpush1.bf16.msra.mxu0 0
      %1206 = vmatprep.subr.bf16.mxu0 0
      %1207 = vmatpush1.bf16.msra.mxu0 0
      %1208 = vmatprep.subr.bf16.mxu0 0
      %1209 = vmatpush1.bf16.msra.mxu0 %v754
      %1210 = vmatprep.subr.bf16.mxu0 0
      %1211 = vmatpush2.bf16.msra.mxu0 0
      %1212 = vmatprep.subr.bf16.mxu0 0
      %1213 = vmatpush2.bf16.msra.mxu0 0
      %1214 = vmatprep.subr.bf16.mxu0 0
      %1215 = vmatpush2.bf16.msra.mxu0 0
      %1216 = vmatprep.subr.bf16.mxu0 0
      %1217 = vmatpush2.bf16.msra.mxu0 0
      %1218 = vmatprep.subr.bf16.mxu0 0
      %1219 = vmatpush2.bf16.msra.mxu0 0
      %1220 = vmatprep.subr.bf16.mxu0 0
      %1221 = vmatpush2.bf16.msra.mxu0 0
      %1222 = vmatprep.subr.bf16.mxu0 0
      %1223 = vmatpush2.bf16.msra.mxu0 0
      %1224 = vmatprep.subr.bf16.mxu0 0
      %1225 = vmatpush2.bf16.msra.mxu0 0
      %1226 = vmatprep.mubr.bf16.mxu0 0
      %1227 = vmatmul.mubr.bf16.gmra.mxu0 %v926
      %v1228 = vpop.f32.mrf.mxu0
      %v1229 = vadd.f32 0.0, %v1228
      %v1230 = vpop.f32.mrf.mxu0
      %v1231 = vpop.f32.mrf.mxu0
      %v1232 = vadd.f32 0.0, %v1231
      %v1233 = vpop.f32.mrf.mxu0
      %1234 = vdwg.mxu0
      %v1235 = vadd.f32 %v1192, %v1229
      %v1236 = vadd.f32 %v1193, %v1232
      %v1239 = vunpack.c.l.b16 %v447
      %v1240 = vunpack.c.l.b16 %v448
      %v1241 = vpack.c.b16 %v1240, %v1239
      %v1243 = vsel %vm474, %v1241, 0
      %1245 = vmatprep.subr.bf16.mxu0 0
      %1246 = vmatpush1.bf16.msra.mxu0 0
      %1247 = vmatprep.subr.bf16.mxu0 0
      %1248 = vmatpush1.bf16.msra.mxu0 0
      %1249 = vmatprep.subr.bf16.mxu0 0
      %1250 = vmatpush1.bf16.msra.mxu0 0
      %1251 = vmatprep.subr.bf16.mxu0 0
      %1252 = vmatpush1.bf16.msra.mxu0 0
      %1253 = vmatprep.subr.bf16.mxu0 0
      %1254 = vmatpush1.bf16.msra.mxu0 0
      %1255 = vmatprep.subr.bf16.mxu0 0
      %1256 = vmatpush1.bf16.msra.mxu0 0
      %1257 = vmatprep.subr.bf16.mxu0 0
      %1258 = vmatpush1.bf16.msra.mxu0 0
      %1259 = vmatprep.subr.bf16.mxu0 0
      %1260 = vmatpush1.bf16.msra.mxu0 %v810
      %1261 = vmatprep.subr.bf16.mxu0 0
      %1262 = vmatpush2.bf16.msra.mxu0 0
      %1263 = vmatprep.subr.bf16.mxu0 0
      %1264 = vmatpush2.bf16.msra.mxu0 0
      %1265 = vmatprep.subr.bf16.mxu0 0
      %1266 = vmatpush2.bf16.msra.mxu0 0
      %1267 = vmatprep.subr.bf16.mxu0 0
      %1268 = vmatpush2.bf16.msra.mxu0 0
      %1269 = vmatprep.subr.bf16.mxu0 0
      %1270 = vmatpush2.bf16.msra.mxu0 0
      %1271 = vmatprep.subr.bf16.mxu0 0
      %1272 = vmatpush2.bf16.msra.mxu0 0
      %1273 = vmatprep.subr.bf16.mxu0 0
      %1274 = vmatpush2.bf16.msra.mxu0 0
      %1275 = vmatprep.subr.bf16.mxu0 0
      %1276 = vmatpush2.bf16.msra.mxu0 0
      %1277 = vmatprep.mubr.bf16.mxu0 0
      %1278 = vmatmul.mubr.bf16.gmra.mxu0 %v1243
      %v1279 = vpop.f32.mrf.mxu0
      %v1280 = vadd.f32 0.0, %v1279
      %v1281 = vpop.f32.mrf.mxu0
      %v1282 = vpop.f32.mrf.mxu0
      %v1283 = vadd.f32 0.0, %v1282
      %v1284 = vpop.f32.mrf.mxu0
      %1285 = vdwg.mxu0
      %v1286 = vadd.f32 %v1235, %v1280
      %v1287 = vadd.f32 %v1236, %v1283
      %v1289 = vunpack.c.l.b16 %v449
      %v1290 = vpack.c.b16 %v1289, %v1289
      %v1291 = vshrl.u32 %v1241, 16
      %v1293 = vshll.u32 %v1241, 16
      %v1295 = vrot.slane %v1293, 1
      %v1296 = vor.u32 %v1291, %v1295
      %v1298 = vshll.u32 %v1290, 16
      %v1300 = vrot.slane %v1298, 1
      %v1301 = vsel %vm461, %v1296, %v1300
      %v1303 = vsel %vm474, %v1301, 0
      %1305 = vmatprep.subr.bf16.mxu0 0
      %1306 = vmatpush1.bf16.msra.mxu0 0
      %1307 = vmatprep.subr.bf16.mxu0 0
      %1308 = vmatpush1.bf16.msra.mxu0 0
      %1309 = vmatprep.subr.bf16.mxu0 0
      %1310 = vmatpush1.bf16.msra.mxu0 0
      %1311 = vmatprep.subr.bf16.mxu0 0
      %1312 = vmatpush1.bf16.msra.mxu0 0
      %1313 = vmatprep.subr.bf16.mxu0 0
      %1314 = vmatpush1.bf16.msra.mxu0 0
      %1315 = vmatprep.subr.bf16.mxu0 0
      %1316 = vmatpush1.bf16.msra.mxu0 0
      %1317 = vmatprep.subr.bf16.mxu0 0
      %1318 = vmatpush1.bf16.msra.mxu0 0
      %1319 = vmatprep.subr.bf16.mxu0 0
      %1320 = vmatpush1.bf16.msra.mxu0 %v875
      %1321 = vmatprep.subr.bf16.mxu0 0
      %1322 = vmatpush2.bf16.msra.mxu0 0
      %1323 = vmatprep.subr.bf16.mxu0 0
      %1324 = vmatpush2.bf16.msra.mxu0 0
      %1325 = vmatprep.subr.bf16.mxu0 0
      %1326 = vmatpush2.bf16.msra.mxu0 0
      %1327 = vmatprep.subr.bf16.mxu0 0
      %1328 = vmatpush2.bf16.msra.mxu0 0
      %1329 = vmatprep.subr.bf16.mxu0 0
      %1330 = vmatpush2.bf16.msra.mxu0 0
      %1331 = vmatprep.subr.bf16.mxu0 0
      %1332 = vmatpush2.bf16.msra.mxu0 0
      %1333 = vmatprep.subr.bf16.mxu0 0
      %1334 = vmatpush2.bf16.msra.mxu0 0
      %1335 = vmatprep.subr.bf16.mxu0 0
      %1336 = vmatpush2.bf16.msra.mxu0 0
      %1337 = vmatprep.mubr.bf16.mxu0 0
      %1338 = vmatmul.mubr.bf16.gmra.mxu0 %v1303
      %v1339 = vpop.f32.mrf.mxu0
      %v1340 = vadd.f32 0.0, %v1339
      %v1341 = vpop.f32.mrf.mxu0
      %v1342 = vpop.f32.mrf.mxu0
      %v1343 = vadd.f32 0.0, %v1342
      %v1344 = vpop.f32.mrf.mxu0
      %1345 = vdwg.mxu0
      %v1346 = vadd.f32 %v1286, %v1340
      %v1347 = vadd.f32 %v1287, %v1343
      %v1348 = vrot.slane %v1241, 1
      %v1349 = vrot.slane %v1290, 1
      %v1350 = vsel %vm571, %v1348, %v1349
      %v1352 = vsel %vm474, %v1350, 0
      %1354 = vmatprep.subr.bf16.mxu0 0
      %1355 = vmatpush1.bf16.msra.mxu0 0
      %1356 = vmatprep.subr.bf16.mxu0 0
      %1357 = vmatpush1.bf16.msra.mxu0 0
      %1358 = vmatprep.subr.bf16.mxu0 0
      %1359 = vmatpush1.bf16.msra.mxu0 0
      %1360 = vmatprep.subr.bf16.mxu0 0
      %1361 = vmatpush1.bf16.msra.mxu0 0
      %1362 = vmatprep.subr.bf16.mxu0 0
      %1363 = vmatpush1.bf16.msra.mxu0 0
      %1364 = vmatprep.subr.bf16.mxu0 0
      %1365 = vmatpush1.bf16.msra.mxu0 0
      %1366 = vmatprep.subr.bf16.mxu0 0
      %1367 = vmatpush1.bf16.msra.mxu0 0
      %1368 = vmatprep.subr.bf16.mxu0 0
      %1369 = vmatpush1.bf16.msra.mxu0 %v929
      %1370 = vmatprep.subr.bf16.mxu0 0
      %1371 = vmatpush2.bf16.msra.mxu0 0
      %1372 = vmatprep.subr.bf16.mxu0 0
      %1373 = vmatpush2.bf16.msra.mxu0 0
      %1374 = vmatprep.subr.bf16.mxu0 0
      %1375 = vmatpush2.bf16.msra.mxu0 0
      %1376 = vmatprep.subr.bf16.mxu0 0
      %1377 = vmatpush2.bf16.msra.mxu0 0
      %1378 = vmatprep.subr.bf16.mxu0 0
      %1379 = vmatpush2.bf16.msra.mxu0 0
      %1380 = vmatprep.subr.bf16.mxu0 0
      %1381 = vmatpush2.bf16.msra.mxu0 0
      %1382 = vmatprep.subr.bf16.mxu0 0
      %1383 = vmatpush2.bf16.msra.mxu0 0
      %1384 = vmatprep.subr.bf16.mxu0 0
      %1385 = vmatpush2.bf16.msra.mxu0 0
      %1386 = vmatprep.mubr.bf16.mxu0 0
      %1387 = vmatmul.mubr.bf16.gmra.mxu0 %v1352
      %v1388 = vpop.f32.mrf.mxu0
      %v1389 = vadd.f32 0.0, %v1388
      %v1390 = vpop.f32.mrf.mxu0
      %v1391 = vpop.f32.mrf.mxu0
      %v1392 = vadd.f32 0.0, %v1391
      %v1393 = vpop.f32.mrf.mxu0
      %1394 = vdwg.mxu0
      %v1395 = vadd.f32 %v1346, %v1389
      %v1396 = vadd.f32 %v1347, %v1392
      %v1397 = vadd.f32 %v1395, %v979
      %v1398 = vadd.f32 %v1396, %v979
      %v1399 = vmax.f32 %v981, 0.0
      %v1400 = vmax.f32 %v982, 0.0
      %v1401 = vmax.f32 %v1397, 0.0
      %v1402 = vmax.f32 %v1398, 0.0
      %v1403 = vmax.f32 %v1399, %v1401
      %v1404 = vmax.f32 %v1400, %v1402
      %v1405 = vlaneseq
      %v1406 = vshrl.u32 %v1405, 7
      %v1407 = vlaneseq
      %v1408 = vand.u32 %v1407, 127
      %v1409 = vmul.u32 %v1406, 2
      %vm1410 = vcmp.eq.s32.totalorder %v1408, %v1409
      %v1411 = vsel %vm1410, 1, 0
      %v1412 = vcvt.s32.f32 %v1411
      %v1413 = vadd.s32 %v1409, 1
      %vm1414 = vcmp.eq.s32.totalorder %v1408, %v1413
      %v1415 = vsel %vm1414, 1, 0
      %v1416 = vcvt.s32.f32 %v1415
      %vm1417 = vcmask 130048
      %v1419 = vsel %vm1417, %v1412, 0
      %1421 = vmatprep.subr.mxu0 0.0
      %1422 = vmatpush1.msra.mxu0 0.0
      %1423 = vmatprep.subr.mxu0 0.0
      %1424 = vmatpush1.msra.mxu0 0.0
      %1425 = vmatprep.subr.mxu0 0.0
      %1426 = vmatpush1.msra.mxu0 0.0
      %1427 = vmatprep.subr.mxu0 0.0
      %1428 = vmatpush1.msra.mxu0 0.0
      %1429 = vmatprep.subr.mxu0 0.0
      %1430 = vmatpush1.msra.mxu0 0.0
      %1431 = vmatprep.subr.mxu0 0.0
      %1432 = vmatpush1.msra.mxu0 0.0
      %1433 = vmatprep.subr.mxu0 0.0
      %1434 = vmatpush1.msra.mxu0 0.0
      %1435 = vmatprep.subr.mxu0 0.0
      %1436 = vmatpush1.msra.mxu0 0.0
      %1437 = vmatprep.subr.mxu0 0.0
      %1438 = vmatpush1.msra.mxu0 0.0
      %1439 = vmatprep.subr.mxu0 0.0
      %1440 = vmatpush1.msra.mxu0 0.0
      %1441 = vmatprep.subr.mxu0 0.0
      %1442 = vmatpush1.msra.mxu0 0.0
      %1443 = vmatprep.subr.mxu0 0.0
      %1444 = vmatpush1.msra.mxu0 0.0
      %1445 = vmatprep.subr.mxu0 0.0
      %1446 = vmatpush1.msra.mxu0 0.0
      %1447 = vmatprep.subr.mxu0 0.0
      %1448 = vmatpush1.msra.mxu0 0.0
      %1449 = vmatprep.subr.mxu0 0.0
      %1450 = vmatpush1.msra.mxu0 %v1404
      %1451 = vmatprep.subr.mxu0 0.0
      %1452 = vmatpush1.msra.mxu0 %v1403
      %1453 = vmatprep.subr.mxu0 0.0
      %1454 = vmatpush2.msra.mxu0 0.0
      %1455 = vmatprep.subr.mxu0 0.0
      %1456 = vmatpush2.msra.mxu0 0.0
      %1457 = vmatprep.subr.mxu0 0.0
      %1458 = vmatpush2.msra.mxu0 0.0
      %1459 = vmatprep.subr.mxu0 0.0
      %1460 = vmatpush2.msra.mxu0 0.0
      %1461 = vmatprep.subr.mxu0 0.0
      %1462 = vmatpush2.msra.mxu0 0.0
      %1463 = vmatprep.subr.mxu0 0.0
      %1464 = vmatpush2.msra.mxu0 0.0
      %1465 = vmatprep.subr.mxu0 0.0
      %1466 = vmatpush2.msra.mxu0 0.0
      %1467 = vmatprep.subr.mxu0 0.0
      %1468 = vmatpush2.msra.mxu0 0.0
      %1469 = vmatprep.subr.mxu0 0.0
      %1470 = vmatpush2.msra.mxu0 0.0
      %1471 = vmatprep.subr.mxu0 0.0
      %1472 = vmatpush2.msra.mxu0 0.0
      %1473 = vmatprep.subr.mxu0 0.0
      %1474 = vmatpush2.msra.mxu0 0.0
      %1475 = vmatprep.subr.mxu0 0.0
      %1476 = vmatpush2.msra.mxu0 0.0
      %1477 = vmatprep.subr.mxu0 0.0
      %1478 = vmatpush2.msra.mxu0 0.0
      %1479 = vmatprep.subr.mxu0 0.0
      %1480 = vmatpush2.msra.mxu0 0.0
      %1481 = vmatprep.subr.mxu0 0.0
      %1482 = vmatpush2.msra.mxu0 0.0
      %1483 = vmatprep.subr.mxu0 0.0
      %1484 = vmatpush2.msra.mxu0 0.0
      %1485 = vmatprep.mubr.f32.mxu0 0.0
      %1486 = vmatmul.mubr.f32.gmra.mxu0 %v1419
      %v1487 = vpop.f32.mrf.mxu0
      %v1488 = vadd.f32 0.0, %v1487
      %v1489 = vpop.f32.mrf.mxu0
      %1490 = vdwg.mxu0
      %v1492 = vsel %vm1417, %v1416, 0
      %1494 = vmatprep.subr.mxu0 0.0
      %1495 = vmatpush1.msra.mxu0 0.0
      %1496 = vmatprep.subr.mxu0 0.0
      %1497 = vmatpush1.msra.mxu0 0.0
      %1498 = vmatprep.subr.mxu0 0.0
      %1499 = vmatpush1.msra.mxu0 0.0
      %1500 = vmatprep.subr.mxu0 0.0
      %1501 = vmatpush1.msra.mxu0 0.0
      %1502 = vmatprep.subr.mxu0 0.0
      %1503 = vmatpush1.msra.mxu0 0.0
      %1504 = vmatprep.subr.mxu0 0.0
      %1505 = vmatpush1.msra.mxu0 0.0
      %1506 = vmatprep.subr.mxu0 0.0
      %1507 = vmatpush1.msra.mxu0 0.0
      %1508 = vmatprep.subr.mxu0 0.0
      %1509 = vmatpush1.msra.mxu0 0.0
      %1510 = vmatprep.subr.mxu0 0.0
      %1511 = vmatpush1.msra.mxu0 0.0
      %1512 = vmatprep.subr.mxu0 0.0
      %1513 = vmatpush1.msra.mxu0 0.0
      %1514 = vmatprep.subr.mxu0 0.0
      %1515 = vmatpush1.msra.mxu0 0.0
      %1516 = vmatprep.subr.mxu0 0.0
      %1517 = vmatpush1.msra.mxu0 0.0
      %1518 = vmatprep.subr.mxu0 0.0
      %1519 = vmatpush1.msra.mxu0 0.0
      %1520 = vmatprep.subr.mxu0 0.0
      %1521 = vmatpush1.msra.mxu0 0.0
      %1522 = vmatprep.subr.mxu0 0.0
      %1523 = vmatpush1.msra.mxu0 %v1404
      %1524 = vmatprep.subr.mxu0 0.0
      %1525 = vmatpush1.msra.mxu0 %v1403
      %1526 = vmatprep.subr.mxu0 0.0
      %1527 = vmatpush2.msra.mxu0 0.0
      %1528 = vmatprep.subr.mxu0 0.0
      %1529 = vmatpush2.msra.mxu0 0.0
      %1530 = vmatprep.subr.mxu0 0.0
      %1531 = vmatpush2.msra.mxu0 0.0
      %1532 = vmatprep.subr.mxu0 0.0
      %1533 = vmatpush2.msra.mxu0 0.0
      %1534 = vmatprep.subr.mxu0 0.0
      %1535 = vmatpush2.msra.mxu0 0.0
      %1536 = vmatprep.subr.mxu0 0.0
      %1537 = vmatpush2.msra.mxu0 0.0
      %1538 = vmatprep.subr.mxu0 0.0
      %1539 = vmatpush2.msra.mxu0 0.0
      %1540 = vmatprep.subr.mxu0 0.0
      %1541 = vmatpush2.msra.mxu0 0.0
      %1542 = vmatprep.subr.mxu0 0.0
      %1543 = vmatpush2.msra.mxu0 0.0
      %1544 = vmatprep.subr.mxu0 0.0
      %1545 = vmatpush2.msra.mxu0 0.0
      %1546 = vmatprep.subr.mxu0 0.0
      %1547 = vmatpush2.msra.mxu0 0.0
      %1548 = vmatprep.subr.mxu0 0.0
      %1549 = vmatpush2.msra.mxu0 0.0
      %1550 = vmatprep.subr.mxu0 0.0
      %1551 = vmatpush2.msra.mxu0 0.0
      %1552 = vmatprep.subr.mxu0 0.0
      %1553 = vmatpush2.msra.mxu0 0.0
      %1554 = vmatprep.subr.mxu0 0.0
      %1555 = vmatpush2.msra.mxu0 0.0
      %1556 = vmatprep.subr.mxu0 0.0
      %1557 = vmatpush2.msra.mxu0 0.0
      %1558 = vmatprep.mubr.f32.mxu0 0.0
      %1559 = vmatmul.mubr.f32.gmra.mxu0 %v1492
      %v1560 = vpop.f32.mrf.mxu0
      %v1561 = vadd.f32 0.0, %v1560
      %v1562 = vpop.f32.mrf.mxu0
      %1563 = vdwg.mxu0
      %v1564 = vmax.f32 %v1488, %v1561
      %v1565 = vpack.c.bf16 %v1564, %v1564
      %1566 = vst [vmem:[%s436] sm:$0xf] %v1565
      %p1567 = scmp.lt.s32.totalorder %s21, 1
      %s1568 = scalar_select %p1567, %s21, 1
      %p1569 = scmp.lt.s32.totalorder %s22, 7
      %s1570 = scalar_select %p1569, %s22, 7
      %s1571 = smul.addr %s1568, 8
      %s1572 = sadd.s32 %s1570, %s1571
      %s1573 = smul.addr %s1572, 4
      %s1574 = scalar_lea.vmem %s6, %s1573
      // Predicated region
      $region45: #{_yolo1_device.4} parent=43 // pred_check
        %p1575 = pneg %p217
      $region46: #{_yolo1_device.4} parent=43 // pred_check_branch
        %1577 = sbr.rel (%p1575) target = $region48
      $region47: #{_yolo1_device.4} parent=43 // pred_region
        _
      $region48: #{_yolo1_device.4} parent=43 // pred_fallthru
        _
    $region44: #{_yolo1_device.4} parent=5 // pred_fallthru
      _
    %p1578 = scmp.le.s32.totalorder 2, %s12
    // Predicated region
    $region49: #{_yolo1_device.4} parent=5 // pred_check
      %p1579 = pneg %p1578
    $region50: #{_yolo1_device.4} parent=5 // pred_check_branch
      %1581 = sbr.rel (%p1579) target = $region52
    $region51: #{_yolo1_device.4} parent=5 // pred_region
      %s1582 = ssub.s32 %s12, 2
      // Predicated region
      $region53: #{_yolo1_device.4} parent=51 // pred_check
        %p1583 = pneg %p223
      $region54: #{_yolo1_device.4} parent=51 // pred_check_branch
        %1585 = sbr.rel (%p1583) target = $region56
      $region55: #{_yolo1_device.4} parent=51 // pred_region
        %p1586 = scmp.lt.s32.totalorder %s23, 1
        %s1587 = scalar_select %p1586, %s23, 1
        %p1588 = scmp.lt.s32.totalorder %s24, 7
        %s1589 = scalar_select %p1588, %s24, 7
        %s1590 = smul.addr %s1587, 8
        %s1591 = sadd.s32 %s1589, %s1590
        %s1592 = smul.addr %s1591, 4
        %s1593 = scalar_lea.vmem %s6, %s1592
      $region56: #{_yolo1_device.4} parent=51 // pred_fallthru
        _
    $region52: #{_yolo1_device.4} parent=5 // pred_fallthru
      _
  $region6: #{_yolo1_device.4} parent=0 // loop_footer
    %s16 = sadd.s32 1, %s12
  $region7: #{_yolo1_device.4} parent=0 // loop_footer_branch
    %11 = sbr.rel target = $region3
  $region8: #{_yolo1_device.4} parent=0 // loop_exit
    _

// kernel: _yolo1_device.6
$region0: #{_yolo1_device.6}
  #allocation0 [shape = 'u32[]', space=smem, size = 0x4, offset = 0x4, fixed_abs, tag = 'smem constant byte address 0x4 - core index']
  #allocation1 [shape = 'u32[144,128]{1,0:T(1,128)}', space=vmem, size = 0x12000, scoped, tag = 'internal scratch']
  %s0 = inlined_call_operand.vmem [shape: bf16[2,6,6,128], index: 0, kind: input, shape index: {}, may-alias: {0,1,2}]
  %s1 = inlined_call_operand.vmem [shape: bf16[2,6,6,128], index: 1, kind: input, shape index: {}, may-alias: {0,1,2}]
  %s2 = inlined_call_operand.vmem [shape: bf16[2,6,6,128], index: 2, kind: input, shape index: {}, may-alias: {0,1,2}]
  %s3 = inlined_call_operand.vmem [shape: bf16[3,3,128,128], index: 3, kind: input, shape index: {}]
  %s4 = inlined_call_operand.vmem [shape: f32[1,128], index: 4, kind: input, shape index: {}]
  %s5 = inlined_call_operand.vmem [shape: f32[2,4,4,128], index: 5, kind: output, shape index: {}]
  %s6 = sld [smem:[#allocation0]]
  $region53: #{_yolo1_device.6} parent=0
    _
  %s8 = ssub.s32 1, %s6
  %s9 = scalar_select 0, %s8, %s6
  loop: start=0, step=1, limit=10
  $region2: #{_yolo1_device.6} parent=0 // loop_pre_header
    _
  $region3: #{_yolo1_device.6} parent=0 // loop_header
    %s11 = sphi 0, %s15
    %p12 = scmp.ge.s32.totalorder %s11, 10
    %s18 = sphi 0, %s30
    %s19 = sphi 0, %s26
    %s20 = sphi 0, %s18
    %s21 = sphi 0, %s19
    %s22 = sphi 0, %s20
    %s23 = sphi 0, %s21
    %s35 = sphi 0, %s37
    %s38 = sphi 0, %s35
    %s39 = sphi 0, %s38
    %s55 = sphi 0, %s39
    %s65 = sphi 0, %s67
    %s68 = sphi 0, %s65
    %s69 = sphi 0, %s68
    %s85 = sphi 0, %s69
    %s95 = sphi 0, %s97
    %s98 = sphi 0, %s95
    %s99 = sphi 0, %s98
    %s115 = sphi 0, %s99
    %s119 = sphi 0, %s119
    %s121 = sphi 0, %s119
    %s122 = sphi 0, %s121
    %s136 = sphi 0, %s122
    %s140 = sphi 0, %s140
    %s142 = sphi 0, %s140
    %s143 = sphi 0, %s142
    %s157 = sphi 0, %s143
    %s165 = sphi 0, %s167
    %s168 = sphi 0, %s165
    %s169 = sphi 0, %s168
    %s185 = sphi 0, %s169
  $region4: #{_yolo1_device.6} parent=0 // loop_header_branch
    %14 = sbr.rel (%p12) target = $region8
  $region5: #{_yolo1_device.6} parent=0 // loop_body
    %s16 = ssub.s32 %s11, 1
    %s17 = ssub.s32 %s11, 2
    %s24 = sadd.s32 1, %s19
    %p25 = scmp.ge.s32.totalorder %s24, 4
    %s26 = scalar_select %p25, 0, %s24
    %s27 = sadd.s32 1, %s18
    %s28 = scalar_select %p25, %s27, %s18
    %p29 = scmp.ge.s32.totalorder %s28, 2
    %s30 = scalar_select %p29, 0, %s28
    %s31 = ssub.s32 %s18, %s30
    %s32 = ssub.s32 %s19, %s26
    %s33 = sor.u32 %s31, %s32
    %p34 = scmp.eq.s32.totalorder %s33, 0
    %s36 = sadd.s32 %s35, 1
    %s37 = scalar_select %p34, %s35, %s36
    %p40 = pneg %p34
    %p41 = scmp.eq.s32.totalorder %s11, 7
    %p42 = por %p40, %p41
    %p43 = scmp.ne.s32.totalorder %s35, %s38
    %p44 = scmp.eq.s32.totalorder %s11, 0
    %p45 = por %p43, %p44
    %p46 = scmp.ne.s32.totalorder %s35, %s38
    %p47 = scmp.eq.s32.totalorder %s16, 7
    %p48 = por %p46, %p47
    %p49 = scmp.ne.s32.totalorder %s38, %s39
    %p50 = scmp.eq.s32.totalorder %s16, 0
    %p51 = por %p49, %p50
    %p52 = scmp.ne.s32.totalorder %s38, %s39
    %p53 = scmp.eq.s32.totalorder %s17, 7
    %p54 = por %p52, %p53
    %p56 = scmp.ne.s32.totalorder %s39, %s55
    %p57 = scmp.eq.s32.totalorder %s17, 0
    %p58 = por %p56, %p57
    %s59 = sadd.s32 %s19, 1
    %s60 = sadd.s32 %s26, 1
    %s61 = ssub.s32 %s18, %s30
    %s62 = ssub.s32 %s59, %s60
    %s63 = sor.u32 %s61, %s62
    %p64 = scmp.eq.s32.totalorder %s63, 0
    %s66 = sadd.s32 %s65, 1
    %s67 = scalar_select %p64, %s65, %s66
    %p70 = pneg %p64
    %p71 = scmp.eq.s32.totalorder %s11, 7
    %p72 = por %p70, %p71
    %p73 = scmp.ne.s32.totalorder %s65, %s68
    %p74 = scmp.eq.s32.totalorder %s11, 0
    %p75 = por %p73, %p74
    %p76 = scmp.ne.s32.totalorder %s65, %s68
    %p77 = scmp.eq.s32.totalorder %s16, 7
    %p78 = por %p76, %p77
    %p79 = scmp.ne.s32.totalorder %s68, %s69
    %p80 = scmp.eq.s32.totalorder %s16, 0
    %p81 = por %p79, %p80
    %p82 = scmp.ne.s32.totalorder %s68, %s69
    %p83 = scmp.eq.s32.totalorder %s17, 7
    %p84 = por %p82, %p83
    %p86 = scmp.ne.s32.totalorder %s69, %s85
    %p87 = scmp.eq.s32.totalorder %s17, 0
    %p88 = por %p86, %p87
    %s89 = sadd.s32 %s19, 2
    %s90 = sadd.s32 %s26, 2
    %s91 = ssub.s32 %s18, %s30
    %s92 = ssub.s32 %s89, %s90
    %s93 = sor.u32 %s91, %s92
    %p94 = scmp.eq.s32.totalorder %s93, 0
    %s96 = sadd.s32 %s95, 1
    %s97 = scalar_select %p94, %s95, %s96
    %p100 = pneg %p94
    %p101 = scmp.eq.s32.totalorder %s11, 7
    %p102 = por %p100, %p101
    %p103 = scmp.ne.s32.totalorder %s95, %s98
    %p104 = scmp.eq.s32.totalorder %s11, 0
    %p105 = por %p103, %p104
    %p106 = scmp.ne.s32.totalorder %s95, %s98
    %p107 = scmp.eq.s32.totalorder %s16, 7
    %p108 = por %p106, %p107
    %p109 = scmp.ne.s32.totalorder %s98, %s99
    %p110 = scmp.eq.s32.totalorder %s16, 0
    %p111 = por %p109, %p110
    %p112 = scmp.ne.s32.totalorder %s98, %s99
    %p113 = scmp.eq.s32.totalorder %s17, 7
    %p114 = por %p112, %p113
    %p116 = scmp.ne.s32.totalorder %s99, %s115
    %p117 = scmp.eq.s32.totalorder %s17, 0
    %p118 = por %p116, %p117
    %s120 = sadd.s32 %s119, 1
    %p123 = scmp.eq.s32.totalorder %s11, 7
    %p124 = scmp.ne.s32.totalorder %s119, %s121
    %p125 = scmp.eq.s32.totalorder %s11, 0
    %p126 = por %p124, %p125
    %p127 = scmp.ne.s32.totalorder %s119, %s121
    %p128 = scmp.eq.s32.totalorder %s16, 7
    %p129 = por %p127, %p128
    %p130 = scmp.ne.s32.totalorder %s121, %s122
    %p131 = scmp.eq.s32.totalorder %s16, 0
    %p132 = por %p130, %p131
    %p133 = scmp.ne.s32.totalorder %s121, %s122
    %p134 = scmp.eq.s32.totalorder %s17, 7
    %p135 = por %p133, %p134
    %p137 = scmp.ne.s32.totalorder %s122, %s136
    %p138 = scmp.eq.s32.totalorder %s17, 0
    %p139 = por %p137, %p138
    %s141 = sadd.s32 %s140, 1
    %p144 = scmp.eq.s32.totalorder %s11, 7
    %p145 = scmp.ne.s32.totalorder %s140, %s142
    %p146 = scmp.eq.s32.totalorder %s11, 0
    %p147 = por %p145, %p146
    %p148 = scmp.ne.s32.totalorder %s140, %s142
    %p149 = scmp.eq.s32.totalorder %s16, 7
    %p150 = por %p148, %p149
    %p151 = scmp.ne.s32.totalorder %s142, %s143
    %p152 = scmp.eq.s32.totalorder %s16, 0
    %p153 = por %p151, %p152
    %p154 = scmp.ne.s32.totalorder %s142, %s143
    %p155 = scmp.eq.s32.totalorder %s17, 7
    %p156 = por %p154, %p155
    %p158 = scmp.ne.s32.totalorder %s143, %s157
    %p159 = scmp.eq.s32.totalorder %s17, 0
    %p160 = por %p158, %p159
    %s161 = ssub.s32 %s18, %s30
    %s162 = ssub.s32 %s19, %s26
    %s163 = sor.u32 %s161, %s162
    %p164 = scmp.eq.s32.totalorder %s163, 0
    %s166 = sadd.s32 %s165, 1
    %s167 = scalar_select %p164, %s165, %s166
    %p170 = pneg %p164
    %p171 = scmp.eq.s32.totalorder %s11, 7
    %p172 = por %p170, %p171
    %p173 = scmp.ne.s32.totalorder %s165, %s168
    %p174 = scmp.eq.s32.totalorder %s11, 0
    %p175 = por %p173, %p174
    %p176 = scmp.ne.s32.totalorder %s165, %s168
    %p177 = scmp.eq.s32.totalorder %s16, 7
    %p178 = por %p176, %p177
    %p179 = scmp.ne.s32.totalorder %s168, %s169
    %p180 = scmp.eq.s32.totalorder %s16, 0
    %p181 = por %p179, %p180
    %p182 = scmp.ne.s32.totalorder %s168, %s169
    %p183 = scmp.eq.s32.totalorder %s17, 7
    %p184 = por %p182, %p183
    %p186 = scmp.ne.s32.totalorder %s169, %s185
    %p187 = scmp.eq.s32.totalorder %s17, 0
    %p188 = por %p186, %p187
    %p189 = scmp.le.s32.totalorder 1, %s11
    %p190 = scmp.lt.s32.totalorder %s11, 9
    %p191 = pnand %p189, %p190
    %p192 = pneg %p191
    // Predicated region
    $region9: #{_yolo1_device.6} parent=5 // pred_check
      _
    $region10: #{_yolo1_device.6} parent=5 // pred_check_branch
      %194 = sbr.rel (%p191) target = $region12
    $region11: #{_yolo1_device.6} parent=5 // pred_region
      %s195 = ssub.s32 %s11, 1
      // Predicated region
      $region13: #{_yolo1_device.6} parent=11 // pred_check
        %p196 = pneg %p132
      $region14: #{_yolo1_device.6} parent=11 // pred_check_branch
        %198 = sbr.rel (%p196) target = $region16
      $region15: #{_yolo1_device.6} parent=11 // pred_region
        _
      $region16: #{_yolo1_device.6} parent=11 // pred_fallthru
        _
      // Predicated region
      $region17: #{_yolo1_device.6} parent=11 // pred_check
        %p199 = pneg %p153
      $region18: #{_yolo1_device.6} parent=11 // pred_check_branch
        %201 = sbr.rel (%p199) target = $region20
      $region19: #{_yolo1_device.6} parent=11 // pred_region
        _
      $region20: #{_yolo1_device.6} parent=11 // pred_fallthru
        _
    $region12: #{_yolo1_device.6} parent=5 // pred_fallthru
      _
    %p202 = scmp.lt.s32.totalorder %s11, 8
    // Predicated region
    $region21: #{_yolo1_device.6} parent=5 // pred_check
      %p203 = pneg %p202
    $region22: #{_yolo1_device.6} parent=5 // pred_check_branch
      %205 = sbr.rel (%p203) target = $region24
    $region23: #{_yolo1_device.6} parent=5 // pred_region
      // Predicated region
      $region25: #{_yolo1_device.6} parent=23 // pred_check
        %p206 = pneg %p45
      $region26: #{_yolo1_device.6} parent=23 // pred_check_branch
        %208 = sbr.rel (%p206) target = $region28
      $region27: #{_yolo1_device.6} parent=23 // pred_region
        %p209 = scmp.lt.s32.totalorder %s18, 1
        %s210 = scalar_select %p209, %s18, 1
        %p211 = scmp.lt.s32.totalorder %s19, 5
        %s212 = scalar_select %p211, %s19, 5
        %s213 = smul.addr %s210, 6
        %s214 = sadd.s32 %s212, %s213
        %s215 = smul.addr %s214, 4
        %s216 = scalar_lea.vmem %s0, %s215
      $region28: #{_yolo1_device.6} parent=23 // pred_fallthru
        _
      // Predicated region
      $region29: #{_yolo1_device.6} parent=23 // pred_check
        %p217 = pneg %p75
      $region30: #{_yolo1_device.6} parent=23 // pred_check_branch
        %219 = sbr.rel (%p217) target = $region32
      $region31: #{_yolo1_device.6} parent=23 // pred_region
        %s220 = sadd.s32 %s19, 1
        %p221 = scmp.lt.s32.totalorder %s18, 1
        %s222 = scalar_select %p221, %s18, 1
        %p223 = scmp.lt.s32.totalorder %s220, 5
        %s224 = scalar_select %p223, %s220, 5
        %s225 = smul.addr %s222, 6
        %s226 = sadd.s32 %s224, %s225
        %s227 = smul.addr %s226, 4
        %s228 = scalar_lea.vmem %s1, %s227
        %s229 = sadd.s32 %s19, 1
      $region32: #{_yolo1_device.6} parent=23 // pred_fallthru
        _
      // Predicated region
      $region33: #{_yolo1_device.6} parent=23 // pred_check
        %p230 = pneg %p105
      $region34: #{_yolo1_device.6} parent=23 // pred_check_branch
        %232 = sbr.rel (%p230) target = $region36
      $region35: #{_yolo1_device.6} parent=23 // pred_region
        %s233 = sadd.s32 %s19, 2
        %p234 = scmp.lt.s32.totalorder %s18, 1
        %s235 = scalar_select %p234, %s18, 1
        %p236 = scmp.lt.s32.totalorder %s233, 5
        %s237 = scalar_select %p236, %s233, 5
        %s238 = smul.addr %s235, 6
        %s239 = sadd.s32 %s237, %s238
        %s240 = smul.addr %s239, 4
        %s241 = scalar_lea.vmem %s2, %s240
        %s242 = sadd.s32 %s19, 2
      $region36: #{_yolo1_device.6} parent=23 // pred_fallthru
        _
    $region24: #{_yolo1_device.6} parent=5 // pred_fallthru
      _
    %p243 = scmp.le.s32.totalorder 1, %s11
    %p244 = scmp.lt.s32.totalorder %s11, 9
    %p245 = pnand %p243, %p244
    %p246 = pneg %p245
    // Predicated region
    $region37: #{_yolo1_device.6} parent=5 // pred_check
      _
    $region38: #{_yolo1_device.6} parent=5 // pred_check_branch
      %248 = sbr.rel (%p245) target = $region40
    $region39: #{_yolo1_device.6} parent=5 // pred_region
      %s249 = ssub.s32 %s11, 1
      %p250 = scmp.lt.s32.totalorder %s20, 1
      %s251 = scalar_select %p250, %s20, 1
      %p252 = scmp.lt.s32.totalorder %s21, 5
      %s253 = scalar_select %p252, %s21, 5
      %s254 = smul.addr %s251, 6
      %s255 = sadd.s32 %s253, %s254
      %s256 = smul.addr %s255, 4
      %s257 = scalar_lea.vmem %s0, %s256
      %p258 = pneg %p51
      %p259 = pneg %p48
      %s260 = sadd.s32 %s21, 1
      %p261 = scmp.lt.s32.totalorder %s20, 1
      %s262 = scalar_select %p261, %s20, 1
      %p263 = scmp.lt.s32.totalorder %s260, 5
      %s264 = scalar_select %p263, %s260, 5
      %s265 = smul.addr %s262, 6
      %s266 = sadd.s32 %s264, %s265
      %s267 = smul.addr %s266, 4
      %s268 = scalar_lea.vmem %s1, %s267
      %p269 = pneg %p81
      %p270 = pneg %p78
      %s271 = sadd.s32 %s21, 2
      %p272 = scmp.lt.s32.totalorder %s20, 1
      %s273 = scalar_select %p272, %s20, 1
      %p274 = scmp.lt.s32.totalorder %s271, 5
      %s275 = scalar_select %p274, %s271, 5
      %s276 = smul.addr %s273, 6
      %s277 = sadd.s32 %s275, %s276
      %s278 = smul.addr %s277, 4
      %s279 = scalar_lea.vmem %s2, %s278
      %p280 = pneg %p111
      %p281 = pneg %p108
      %p282 = pneg %p132
      %p283 = pneg %p129
      %p284 = pneg %p153
      %p285 = pneg %p150
      %p286 = pneg %p181
      %p287 = pneg %p178
      %p288 = scmp.lt.s32.totalorder %s20, 1
      %s289 = scalar_select %p288, %s20, 1
      %p290 = scmp.lt.s32.totalorder %s21, 3
      %s291 = scalar_select %p290, %s21, 3
      %s292 = smul.addr %s289, 4
      %s293 = sadd.s32 %s291, %s292
      %s294 = smul.addr %s293, 4
      %s295 = scalar_lea.vmem %s5, %s294
      %p296 = scmp.lt.s32.totalorder %s20, 1
      %s297 = scalar_select %p296, %s20, 1
      %p298 = scmp.lt.s32.totalorder %s21, 5
      %s299 = scalar_select %p298, %s21, 5
      %s300 = smul.addr %s297, 6
      %s301 = sadd.s32 %s299, %s300
      %s302 = smul.addr %s301, 4
      %s303 = scalar_lea.vmem %s0, %s302
      %s304 = sadd.s32 %s21, 1
      %p305 = scmp.lt.s32.totalorder %s20, 1
      %s306 = scalar_select %p305, %s20, 1
      %p307 = scmp.lt.s32.totalorder %s304, 5
      %s308 = scalar_select %p307, %s304, 5
      %s309 = smul.addr %s306, 6
      %s310 = sadd.s32 %s308, %s309
      %s311 = smul.addr %s310, 4
      %s312 = scalar_lea.vmem %s1, %s311
      %s313 = sadd.s32 %s21, 1
      %s314 = sadd.s32 %s21, 2
      %p315 = scmp.lt.s32.totalorder %s20, 1
      %s316 = scalar_select %p315, %s20, 1
      %p317 = scmp.lt.s32.totalorder %s314, 5
      %s318 = scalar_select %p317, %s314, 5
      %s319 = smul.addr %s316, 6
      %s320 = sadd.s32 %s318, %s319
      %s321 = smul.addr %s320, 4
      %s322 = scalar_lea.vmem %s2, %s321
      %s323 = sadd.s32 %s21, 2
      %p324 = scmp.lt.s32.totalorder %s20, 1
      %s325 = scalar_select %p324, %s20, 1
      %p326 = scmp.lt.s32.totalorder %s21, 3
      %s327 = scalar_select %p326, %s21, 3
      %s328 = smul.addr %s325, 4
      %s329 = sadd.s32 %s327, %s328
      %s330 = smul.addr %s329, 4
      %s331 = scalar_lea.vmem %s5, %s330
      %v333 = vld [vmem:[%s303] sm:$0x7]
      %v334 = vld [vmem:[%s312] sm:$0x7]
      %v335 = vld [vmem:[%s322] sm:$0x7]
      %v336 = vld [vmem:[%s3] sm:$0xf]
      %v337 = vld [vmem:[%s3 + $0x4] sm:$0xf]
      %v338 = vld [vmem:[%s3 + $0x8] sm:$0xf]
      %v339 = vld [vmem:[%s3 + $0xc] sm:$0xf]
      %v340 = vld [vmem:[%s3 + $0x10] sm:$0xf]
      %v341 = vld [vmem:[%s3 + $0x14] sm:$0xf]
      %v342 = vld [vmem:[%s3 + $0x18] sm:$0xf]
      %v343 = vld [vmem:[%s3 + $0x1c] sm:$0xf]
      %v344 = vld [vmem:[%s3 + $0x20] sm:$0xf]
      %v345 = vld [vmem:[%s3 + $0x24] sm:$0xf]
      %v346 = vld [vmem:[%s3 + $0x28] sm:$0xf]
      %v347 = vld [vmem:[%s3 + $0x2c] sm:$0xf]
      %v348 = vld [vmem:[%s3 + $0x30] sm:$0xf]
      %v349 = vld [vmem:[%s3 + $0x34] sm:$0xf]
      %v350 = vld [vmem:[%s3 + $0x38] sm:$0xf]
      %v351 = vld [vmem:[%s3 + $0x3c] sm:$0xf]
      %s352 = scalar_lea.vmem %s3, 64
      %v353 = vld [vmem:[%s352] sm:$0xf]
      %v354 = vld [vmem:[%s352 + $0x4] sm:$0xf]
      %v355 = vld [vmem:[%s352 + $0x8] sm:$0xf]
      %v356 = vld [vmem:[%s352 + $0xc] sm:$0xf]
      %v357 = vld [vmem:[%s352 + $0x10] sm:$0xf]
      %v358 = vld [vmem:[%s352 + $0x14] sm:$0xf]
      %v359 = vld [vmem:[%s352 + $0x18] sm:$0xf]
      %v360 = vld [vmem:[%s352 + $0x1c] sm:$0xf]
      %v361 = vld [vmem:[%s352 + $0x20] sm:$0xf]
      %v362 = vld [vmem:[%s352 + $0x24] sm:$0xf]
      %v363 = vld [vmem:[%s352 + $0x28] sm:$0xf]
      %v364 = vld [vmem:[%s352 + $0x2c] sm:$0xf]
      %v365 = vld [vmem:[%s352 + $0x30] sm:$0xf]
      %v366 = vld [vmem:[%s352 + $0x34] sm:$0xf]
      %v367 = vld [vmem:[%s352 + $0x38] sm:$0xf]
      %v368 = vld [vmem:[%s352 + $0x3c] sm:$0xf]
      %v370 = vunpack.c.l.b16 %v333
      %v371 = vpack.c.b16 %v370, %v370
      %v373 = vshrl.u32 %v371, 16
      %v375 = vshll.u32 %v371, 16
      %v377 = vrot.slane %v375, 1
      %v378 = vor.u32 %v373, %v377
      %v396 = vunpack.c.l.b16 %v353
      %v397 = vunpack.c.l.b16 %v354
      %v398 = vunpack.c.l.b16 %v355
      %v399 = vunpack.c.l.b16 %v356
      %v400 = vunpack.c.l.b16 %v357
      %v401 = vunpack.c.l.b16 %v358
      %v402 = vunpack.c.l.b16 %v359
      %v403 = vunpack.c.l.b16 %v360
      %v404 = vunpack.c.l.b16 %v361
      %v405 = vunpack.c.l.b16 %v362
      %v406 = vunpack.c.l.b16 %v363
      %v407 = vunpack.c.l.b16 %v364
      %v408 = vunpack.c.l.b16 %v365
      %v409 = vunpack.c.l.b16 %v366
      %v410 = vunpack.c.l.b16 %v367
      %v411 = vunpack.c.l.b16 %v368
      %v412 = vpack.c.b16 %v397, %v396
      %v413 = vpack.c.b16 %v399, %v398
      %v414 = vpack.c.b16 %v401, %v400
      %v415 = vpack.c.b16 %v403, %v402
      %v416 = vpack.c.b16 %v405, %v404
      %v417 = vpack.c.b16 %v407, %v406
      %v418 = vpack.c.b16 %v409, %v408
      %v419 = vpack.c.b16 %v411, %v410
      %428 = vmatprep.subr.bf16.mxu0 0
      %429 = vmatpush1.bf16.msra.mxu0 %v419
      %430 = vmatprep.subr.bf16.mxu0 0
      %431 = vmatpush1.bf16.msra.mxu0 %v418
      %432 = vmatprep.subr.bf16.mxu0 0
      %433 = vmatpush1.bf16.msra.mxu0 %v417
      %434 = vmatprep.subr.bf16.mxu0 0
      %435 = vmatpush1.bf16.msra.mxu0 %v416
      %436 = vmatprep.subr.bf16.mxu0 0
      %437 = vmatpush1.bf16.msra.mxu0 %v415
      %438 = vmatprep.subr.bf16.mxu0 0
      %439 = vmatpush1.bf16.msra.mxu0 %v414
      %440 = vmatprep.subr.bf16.mxu0 0
      %441 = vmatpush1.bf16.msra.mxu0 %v413
      %442 = vmatprep.subr.bf16.mxu0 0
      %443 = vmatpush1.bf16.msra.mxu0 %v412
      %444 = vmatprep.subr.bf16.mxu0 0
      %445 = vmatpush2.bf16.msra.mxu0 0
      %446 = vmatprep.subr.bf16.mxu0 0
      %447 = vmatpush2.bf16.msra.mxu0 0
      %448 = vmatprep.subr.bf16.mxu0 0
      %449 = vmatpush2.bf16.msra.mxu0 0
      %450 = vmatprep.subr.bf16.mxu0 0
      %451 = vmatpush2.bf16.msra.mxu0 0
      %452 = vmatprep.subr.bf16.mxu0 0
      %453 = vmatpush2.bf16.msra.mxu0 0
      %454 = vmatprep.subr.bf16.mxu0 0
      %455 = vmatpush2.bf16.msra.mxu0 0
      %456 = vmatprep.subr.bf16.mxu0 0
      %457 = vmatpush2.bf16.msra.mxu0 0
      %458 = vmatprep.subr.bf16.mxu0 0
      %459 = vmatpush2.bf16.msra.mxu0 0
      %460 = vmatprep.mubr.bf16.mxu0 0
      %461 = vmatmul.mubr.bf16.gmra.mxu0 %v378
      %v462 = vpop.f32.mrf.mxu0
      %v463 = vadd.f32 0.0, %v462
      %v464 = vpop.f32.mrf.mxu0
      %v465 = vpop.f32.mrf.mxu0
      %v466 = vpop.f32.mrf.mxu0
      %467 = vdwg.mxu0
      %v484 = vunpack.c.l.b16 %v336
      %v485 = vunpack.c.l.b16 %v337
      %v486 = vunpack.c.l.b16 %v338
      %v487 = vunpack.c.l.b16 %v339
      %v488 = vunpack.c.l.b16 %v340
      %v489 = vunpack.c.l.b16 %v341
      %v490 = vunpack.c.l.b16 %v342
      %v491 = vunpack.c.l.b16 %v343
      %v492 = vunpack.c.l.b16 %v344
      %v493 = vunpack.c.l.b16 %v345
      %v494 = vunpack.c.l.b16 %v346
      %v495 = vunpack.c.l.b16 %v347
      %v496 = vunpack.c.l.b16 %v348
      %v497 = vunpack.c.l.b16 %v349
      %v498 = vunpack.c.l.b16 %v350
      %v499 = vunpack.c.l.b16 %v351
      %v500 = vpack.c.b16 %v485, %v484
      %v501 = vpack.c.b16 %v487, %v486
      %v502 = vpack.c.b16 %v489, %v488
      %v503 = vpack.c.b16 %v491, %v490
      %v504 = vpack.c.b16 %v493, %v492
      %v505 = vpack.c.b16 %v495, %v494
      %v506 = vpack.c.b16 %v497, %v496
      %v507 = vpack.c.b16 %v499, %v498
      %516 = vmatprep.subr.bf16.mxu0 0
      %517 = vmatpush1.bf16.msra.mxu0 %v507
      %518 = vmatprep.subr.bf16.mxu0 0
      %519 = vmatpush1.bf16.msra.mxu0 %v506
      %520 = vmatprep.subr.bf16.mxu0 0
      %521 = vmatpush1.bf16.msra.mxu0 %v505
      %522 = vmatprep.subr.bf16.mxu0 0
      %523 = vmatpush1.bf16.msra.mxu0 %v504
      %524 = vmatprep.subr.bf16.mxu0 0
      %525 = vmatpush1.bf16.msra.mxu0 %v503
      %526 = vmatprep.subr.bf16.mxu0 0
      %527 = vmatpush1.bf16.msra.mxu0 %v502
      %528 = vmatprep.subr.bf16.mxu0 0
      %529 = vmatpush1.bf16.msra.mxu0 %v501
      %530 = vmatprep.subr.bf16.mxu0 0
      %531 = vmatpush1.bf16.msra.mxu0 %v500
      %532 = vmatprep.subr.bf16.mxu0 0
      %533 = vmatpush2.bf16.msra.mxu0 0
      %534 = vmatprep.subr.bf16.mxu0 0
      %535 = vmatpush2.bf16.msra.mxu0 0
      %536 = vmatprep.subr.bf16.mxu0 0
      %537 = vmatpush2.bf16.msra.mxu0 0
      %538 = vmatprep.subr.bf16.mxu0 0
      %539 = vmatpush2.bf16.msra.mxu0 0
      %540 = vmatprep.subr.bf16.mxu0 0
      %541 = vmatpush2.bf16.msra.mxu0 0
      %542 = vmatprep.subr.bf16.mxu0 0
      %543 = vmatpush2.bf16.msra.mxu0 0
      %544 = vmatprep.subr.bf16.mxu0 0
      %545 = vmatpush2.bf16.msra.mxu0 0
      %546 = vmatprep.subr.bf16.mxu0 0
      %547 = vmatpush2.bf16.msra.mxu0 0
      %548 = vmatprep.mubr.bf16.mxu0 0
      %549 = vmatmul.mubr.bf16.gmra.mxu0 %v333
      %v550 = vpop.f32.mrf.mxu0
      %v551 = vadd.f32 %v463, %v550
      %v552 = vpop.f32.mrf.mxu0
      %v553 = vpop.f32.mrf.mxu0
      %v554 = vpop.f32.mrf.mxu0
      %555 = vdwg.mxu0
      %s556 = scalar_lea.vmem %s3, 128
      %v557 = vld [vmem:[%s556] sm:$0xf]
      %v558 = vld [vmem:[%s556 + $0x4] sm:$0xf]
      %v559 = vld [vmem:[%s556 + $0x8] sm:$0xf]
      %v560 = vld [vmem:[%s556 + $0xc] sm:$0xf]
      %v561 = vld [vmem:[%s556 + $0x10] sm:$0xf]
      %v562 = vld [vmem:[%s556 + $0x14] sm:$0xf]
      %v563 = vld [vmem:[%s556 + $0x18] sm:$0xf]
      %v564 = vld [vmem:[%s556 + $0x1c] sm:$0xf]
      %v565 = vld [vmem:[%s556 + $0x20] sm:$0xf]
      %v566 = vld [vmem:[%s556 + $0x24] sm:$0xf]
      %v567 = vld [vmem:[%s556 + $0x28] sm:$0xf]
      %v568 = vld [vmem:[%s556 + $0x2c] sm:$0xf]
      %v569 = vld [vmem:[%s556 + $0x30] sm:$0xf]
      %v570 = vld [vmem:[%s556 + $0x34] sm:$0xf]
      %v571 = vld [vmem:[%s556 + $0x38] sm:$0xf]
      %v572 = vld [vmem:[%s556 + $0x3c] sm:$0xf]
      %v573 = vrot.slane %v371, 1
      %v591 = vunpack.c.l.b16 %v557
      %v592 = vunpack.c.l.b16 %v558
      %v593 = vunpack.c.l.b16 %v559
      %v594 = vunpack.c.l.b16 %v560
      %v595 = vunpack.c.l.b16 %v561
      %v596 = vunpack.c.l.b16 %v562
      %v597 = vunpack.c.l.b16 %v563
      %v598 = vunpack.c.l.b16 %v564
      %v599 = vunpack.c.l.b16 %v565
      %v600 = vunpack.c.l.b16 %v566
      %v601 = vunpack.c.l.b16 %v567
      %v602 = vunpack.c.l.b16 %v568
      %v603 = vunpack.c.l.b16 %v569
      %v604 = vunpack.c.l.b16 %v570
      %v605 = vunpack.c.l.b16 %v571
      %v606 = vunpack.c.l.b16 %v572
      %v607 = vpack.c.b16 %v592, %v591
      %v608 = vpack.c.b16 %v594, %v593
      %v609 = vpack.c.b16 %v596, %v595
      %v610 = vpack.c.b16 %v598, %v597
      %v611 = vpack.c.b16 %v600, %v599
      %v612 = vpack.c.b16 %v602, %v601
      %v613 = vpack.c.b16 %v604, %v603
      %v614 = vpack.c.b16 %v606, %v605
      %623 = vmatprep.subr.bf16.mxu0 0
      %624 = vmatpush1.bf16.msra.mxu0 %v614
      %625 = vmatprep.subr.bf16.mxu0 0
      %626 = vmatpush1.bf16.msra.mxu0 %v613
      %627 = vmatprep.subr.bf16.mxu0 0
      %628 = vmatpush1.bf16.msra.mxu0 %v612
      %629 = vmatprep.subr.bf16.mxu0 0
      %630 = vmatpush1.bf16.msra.mxu0 %v611
      %631 = vmatprep.subr.bf16.mxu0 0
      %632 = vmatpush1.bf16.msra.mxu0 %v610
      %633 = vmatprep.subr.bf16.mxu0 0
      %634 = vmatpush1.bf16.msra.mxu0 %v609
      %635 = vmatprep.subr.bf16.mxu0 0
      %636 = vmatpush1.bf16.msra.mxu0 %v608
      %637 = vmatprep.subr.bf16.mxu0 0
      %638 = vmatpush1.bf16.msra.mxu0 %v607
      %639 = vmatprep.subr.bf16.mxu0 0
      %640 = vmatpush2.bf16.msra.mxu0 0
      %641 = vmatprep.subr.bf16.mxu0 0
      %642 = vmatpush2.bf16.msra.mxu0 0
      %643 = vmatprep.subr.bf16.mxu0 0
      %644 = vmatpush2.bf16.msra.mxu0 0
      %645 = vmatprep.subr.bf16.mxu0 0
      %646 = vmatpush2.bf16.msra.mxu0 0
      %647 = vmatprep.subr.bf16.mxu0 0
      %648 = vmatpush2.bf16.msra.mxu0 0
      %649 = vmatprep.subr.bf16.mxu0 0
      %650 = vmatpush2.bf16.msra.mxu0 0
      %651 = vmatprep.subr.bf16.mxu0 0
      %652 = vmatpush2.bf16.msra.mxu0 0
      %653 = vmatprep.subr.bf16.mxu0 0
      %654 = vmatpush2.bf16.msra.mxu0 0
      %655 = vmatprep.mubr.bf16.mxu0 0
      %656 = vmatmul.mubr.bf16.gmra.mxu0 %v573
      %v657 = vpop.f32.mrf.mxu0
      %v658 = vadd.f32 0.0, %v657
      %v659 = vpop.f32.mrf.mxu0
      %v660 = vpop.f32.mrf.mxu0
      %v661 = vpop.f32.mrf.mxu0
      %662 = vdwg.mxu0
      %v663 = vadd.f32 %v551, %v658
      %s664 = scalar_lea.vmem %s3, 192
      %v665 = vld [vmem:[%s664] sm:$0xf]
      %v666 = vld [vmem:[%s664 + $0x4] sm:$0xf]
      %v667 = vld [vmem:[%s664 + $0x8] sm:$0xf]
      %v668 = vld [vmem:[%s664 + $0xc] sm:$0xf]
      %v669 = vld [vmem:[%s664 + $0x10] sm:$0xf]
      %v670 = vld [vmem:[%s664 + $0x14] sm:$0xf]
      %v671 = vld [vmem:[%s664 + $0x18] sm:$0xf]
      %v672 = vld [vmem:[%s664 + $0x1c] sm:$0xf]
      %v673 = vld [vmem:[%s664 + $0x20] sm:$0xf]
      %v674 = vld [vmem:[%s664 + $0x24] sm:$0xf]
      %v675 = vld [vmem:[%s664 + $0x28] sm:$0xf]
      %v676 = vld [vmem:[%s664 + $0x2c] sm:$0xf]
      %v677 = vld [vmem:[%s664 + $0x30] sm:$0xf]
      %v678 = vld [vmem:[%s664 + $0x34] sm:$0xf]
      %v679 = vld [vmem:[%s664 + $0x38] sm:$0xf]
      %v680 = vld [vmem:[%s664 + $0x3c] sm:$0xf]
      %v697 = vunpack.c.l.b16 %v665
      %v698 = vunpack.c.l.b16 %v666
      %v699 = vunpack.c.l.b16 %v667
      %v700 = vunpack.c.l.b16 %v668
      %v701 = vunpack.c.l.b16 %v669
      %v702 = vunpack.c.l.b16 %v670
      %v703 = vunpack.c.l.b16 %v671
      %v704 = vunpack.c.l.b16 %v672
      %v705 = vunpack.c.l.b16 %v673
      %v706 = vunpack.c.l.b16 %v674
      %v707 = vunpack.c.l.b16 %v675
      %v708 = vunpack.c.l.b16 %v676
      %v709 = vunpack.c.l.b16 %v677
      %v710 = vunpack.c.l.b16 %v678
      %v711 = vunpack.c.l.b16 %v679
      %v712 = vunpack.c.l.b16 %v680
      %v713 = vpack.c.b16 %v698, %v697
      %v714 = vpack.c.b16 %v700, %v699
      %v715 = vpack.c.b16 %v702, %v701
      %v716 = vpack.c.b16 %v704, %v703
      %v717 = vpack.c.b16 %v706, %v705
      %v718 = vpack.c.b16 %v708, %v707
      %v719 = vpack.c.b16 %v710, %v709
      %v720 = vpack.c.b16 %v712, %v711
      %729 = vmatprep.subr.bf16.mxu0 0
      %730 = vmatpush1.bf16.msra.mxu0 %v720
      %731 = vmatprep.subr.bf16.mxu0 0
      %732 = vmatpush1.bf16.msra.mxu0 %v719
      %733 = vmatprep.subr.bf16.mxu0 0
      %734 = vmatpush1.bf16.msra.mxu0 %v718
      %735 = vmatprep.subr.bf16.mxu0 0
      %736 = vmatpush1.bf16.msra.mxu0 %v717
      %737 = vmatprep.subr.bf16.mxu0 0
      %738 = vmatpush1.bf16.msra.mxu0 %v716
      %739 = vmatprep.subr.bf16.mxu0 0
      %740 = vmatpush1.bf16.msra.mxu0 %v715
      %741 = vmatprep.subr.bf16.mxu0 0
      %742 = vmatpush1.bf16.msra.mxu0 %v714
      %743 = vmatprep.subr.bf16.mxu0 0
      %744 = vmatpush1.bf16.msra.mxu0 %v713
      %745 = vmatprep.subr.bf16.mxu0 0
      %746 = vmatpush2.bf16.msra.mxu0 0
      %747 = vmatprep.subr.bf16.mxu0 0
      %748 = vmatpush2.bf16.msra.mxu0 0
      %749 = vmatprep.subr.bf16.mxu0 0
      %750 = vmatpush2.bf16.msra.mxu0 0
      %751 = vmatprep.subr.bf16.mxu0 0
      %752 = vmatpush2.bf16.msra.mxu0 0
      %753 = vmatprep.subr.bf16.mxu0 0
      %754 = vmatpush2.bf16.msra.mxu0 0
      %755 = vmatprep.subr.bf16.mxu0 0
      %756 = vmatpush2.bf16.msra.mxu0 0
      %757 = vmatprep.subr.bf16.mxu0 0
      %758 = vmatpush2.bf16.msra.mxu0 0
      %759 = vmatprep.subr.bf16.mxu0 0
      %760 = vmatpush2.bf16.msra.mxu0 0
      %761 = vmatprep.mubr.bf16.mxu0 0
      %762 = vmatmul.mubr.bf16.gmra.mxu0 %v334
      %v763 = vpop.f32.mrf.mxu0
      %v764 = vadd.f32 0.0, %v763
      %v765 = vpop.f32.mrf.mxu0
      %v766 = vpop.f32.mrf.mxu0
      %v767 = vpop.f32.mrf.mxu0
      %768 = vdwg.mxu0
      %v769 = vadd.f32 %v663, %v764
      %s770 = scalar_lea.vmem %s3, 256
      %v771 = vld [vmem:[%s770] sm:$0xf]
      %v772 = vld [vmem:[%s770 + $0x4] sm:$0xf]
      %v773 = vld [vmem:[%s770 + $0x8] sm:$0xf]
      %v774 = vld [vmem:[%s770 + $0xc] sm:$0xf]
      %v775 = vld [vmem:[%s770 + $0x10] sm:$0xf]
      %v776 = vld [vmem:[%s770 + $0x14] sm:$0xf]
      %v777 = vld [vmem:[%s770 + $0x18] sm:$0xf]
      %v778 = vld [vmem:[%s770 + $0x1c] sm:$0xf]
      %v779 = vld [vmem:[%s770 + $0x20] sm:$0xf]
      %v780 = vld [vmem:[%s770 + $0x24] sm:$0xf]
      %v781 = vld [vmem:[%s770 + $0x28] sm:$0xf]
      %v782 = vld [vmem:[%s770 + $0x2c] sm:$0xf]
      %v783 = vld [vmem:[%s770 + $0x30] sm:$0xf]
      %v784 = vld [vmem:[%s770 + $0x34] sm:$0xf]
      %v785 = vld [vmem:[%s770 + $0x38] sm:$0xf]
      %v786 = vld [vmem:[%s770 + $0x3c] sm:$0xf]
      %v788 = vunpack.c.l.b16 %v334
      %v789 = vpack.c.b16 %v788, %v788
      %v791 = vshrl.u32 %v789, 16
      %v793 = vshll.u32 %v789, 16
      %v795 = vrot.slane %v793, 1
      %v796 = vor.u32 %v791, %v795
      %v814 = vunpack.c.l.b16 %v771
      %v815 = vunpack.c.l.b16 %v772
      %v816 = vunpack.c.l.b16 %v773
      %v817 = vunpack.c.l.b16 %v774
      %v818 = vunpack.c.l.b16 %v775
      %v819 = vunpack.c.l.b16 %v776
      %v820 = vunpack.c.l.b16 %v777
      %v821 = vunpack.c.l.b16 %v778
      %v822 = vunpack.c.l.b16 %v779
      %v823 = vunpack.c.l.b16 %v780
      %v824 = vunpack.c.l.b16 %v781
      %v825 = vunpack.c.l.b16 %v782
      %v826 = vunpack.c.l.b16 %v783
      %v827 = vunpack.c.l.b16 %v784
      %v828 = vunpack.c.l.b16 %v785
      %v829 = vunpack.c.l.b16 %v786
      %v830 = vpack.c.b16 %v815, %v814
      %v831 = vpack.c.b16 %v817, %v816
      %v832 = vpack.c.b16 %v819, %v818
      %v833 = vpack.c.b16 %v821, %v820
      %v834 = vpack.c.b16 %v823, %v822
      %v835 = vpack.c.b16 %v825, %v824
      %v836 = vpack.c.b16 %v827, %v826
      %v837 = vpack.c.b16 %v829, %v828
      %846 = vmatprep.subr.bf16.mxu0 0
      %847 = vmatpush1.bf16.msra.mxu0 %v837
      %848 = vmatprep.subr.bf16.mxu0 0
      %849 = vmatpush1.bf16.msra.mxu0 %v836
      %850 = vmatprep.subr.bf16.mxu0 0
      %851 = vmatpush1.bf16.msra.mxu0 %v835
      %852 = vmatprep.subr.bf16.mxu0 0
      %853 = vmatpush1.bf16.msra.mxu0 %v834
      %854 = vmatprep.subr.bf16.mxu0 0
      %855 = vmatpush1.bf16.msra.mxu0 %v833
      %856 = vmatprep.subr.bf16.mxu0 0
      %857 = vmatpush1.bf16.msra.mxu0 %v832
      %858 = vmatprep.subr.bf16.mxu0 0
      %859 = vmatpush1.bf16.msra.mxu0 %v831
      %860 = vmatprep.subr.bf16.mxu0 0
      %861 = vmatpush1.bf16.msra.mxu0 %v830
      %862 = vmatprep.subr.bf16.mxu0 0
      %863 = vmatpush2.bf16.msra.mxu0 0
      %864 = vmatprep.subr.bf16.mxu0 0
      %865 = vmatpush2.bf16.msra.mxu0 0
      %866 = vmatprep.subr.bf16.mxu0 0
      %867 = vmatpush2.bf16.msra.mxu0 0
      %868 = vmatprep.subr.bf16.mxu0 0
      %869 = vmatpush2.bf16.msra.mxu0 0
      %870 = vmatprep.subr.bf16.mxu0 0
      %871 = vmatpush2.bf16.msra.mxu0 0
      %872 = vmatprep.subr.bf16.mxu0 0
      %873 = vmatpush2.bf16.msra.mxu0 0
      %874 = vmatprep.subr.bf16.mxu0 0
      %875 = vmatpush2.bf16.msra.mxu0 0
      %876 = vmatprep.subr.bf16.mxu0 0
      %877 = vmatpush2.bf16.msra.mxu0 0
      %878 = vmatprep.mubr.bf16.mxu0 0
      %879 = vmatmul.mubr.bf16.gmra.mxu0 %v796
      %v880 = vpop.f32.mrf.mxu0
      %v881 = vadd.f32 0.0, %v880
      %v882 = vpop.f32.mrf.mxu0
      %v883 = vpop.f32.mrf.mxu0
      %v884 = vpop.f32.mrf.mxu0
      %885 = vdwg.mxu0
      %v886 = vadd.f32 %v769, %v881
      %s887 = scalar_lea.vmem %s3, 320
      %v888 = vld [vmem:[%s887] sm:$0xf]
      %v889 = vld [vmem:[%s887 + $0x4] sm:$0xf]
      %v890 = vld [vmem:[%s887 + $0x8] sm:$0xf]
      %v891 = vld [vmem:[%s887 + $0xc] sm:$0xf]
      %v892 = vld [vmem:[%s887 + $0x10] sm:$0xf]
      %v893 = vld [vmem:[%s887 + $0x14] sm:$0xf]
      %v894 = vld [vmem:[%s887 + $0x18] sm:$0xf]
      %v895 = vld [vmem:[%s887 + $0x1c] sm:$0xf]
      %v896 = vld [vmem:[%s887 + $0x20] sm:$0xf]
      %v897 = vld [vmem:[%s887 + $0x24] sm:$0xf]
      %v898 = vld [vmem:[%s887 + $0x28] sm:$0xf]
      %v899 = vld [vmem:[%s887 + $0x2c] sm:$0xf]
      %v900 = vld [vmem:[%s887 + $0x30] sm:$0xf]
      %v901 = vld [vmem:[%s887 + $0x34] sm:$0xf]
      %v902 = vld [vmem:[%s887 + $0x38] sm:$0xf]
      %v903 = vld [vmem:[%s887 + $0x3c] sm:$0xf]
      %v904 = vrot.slane %v789, 1
      %v922 = vunpack.c.l.b16 %v888
      %v923 = vunpack.c.l.b16 %v889
      %v924 = vunpack.c.l.b16 %v890
      %v925 = vunpack.c.l.b16 %v891
      %v926 = vunpack.c.l.b16 %v892
      %v927 = vunpack.c.l.b16 %v893
      %v928 = vunpack.c.l.b16 %v894
      %v929 = vunpack.c.l.b16 %v895
      %v930 = vunpack.c.l.b16 %v896
      %v931 = vunpack.c.l.b16 %v897
      %v932 = vunpack.c.l.b16 %v898
      %v933 = vunpack.c.l.b16 %v899
      %v934 = vunpack.c.l.b16 %v900
      %v935 = vunpack.c.l.b16 %v901
      %v936 = vunpack.c.l.b16 %v902
      %v937 = vunpack.c.l.b16 %v903
      %v938 = vpack.c.b16 %v923, %v922
      %v939 = vpack.c.b16 %v925, %v924
      %v940 = vpack.c.b16 %v927, %v926
      %v941 = vpack.c.b16 %v929, %v928
      %v942 = vpack.c.b16 %v931, %v930
      %v943 = vpack.c.b16 %v933, %v932
      %v944 = vpack.c.b16 %v935, %v934
      %v945 = vpack.c.b16 %v937, %v936
      %954 = vmatprep.subr.bf16.mxu0 0
      %955 = vmatpush1.bf16.msra.mxu0 %v945
      %956 = vmatprep.subr.bf16.mxu0 0
      %957 = vmatpush1.bf16.msra.mxu0 %v944
      %958 = vmatprep.subr.bf16.mxu0 0
      %959 = vmatpush1.bf16.msra.mxu0 %v943
      %960 = vmatprep.subr.bf16.mxu0 0
      %961 = vmatpush1.bf16.msra.mxu0 %v942
      %962 = vmatprep.subr.bf16.mxu0 0
      %963 = vmatpush1.bf16.msra.mxu0 %v941
      %964 = vmatprep.subr.bf16.mxu0 0
      %965 = vmatpush1.bf16.msra.mxu0 %v940
      %966 = vmatprep.subr.bf16.mxu0 0
      %967 = vmatpush1.bf16.msra.mxu0 %v939
      %968 = vmatprep.subr.bf16.mxu0 0
      %969 = vmatpush1.bf16.msra.mxu0 %v938
      %970 = vmatprep.subr.bf16.mxu0 0
      %971 = vmatpush2.bf16.msra.mxu0 0
      %972 = vmatprep.subr.bf16.mxu0 0
      %973 = vmatpush2.bf16.msra.mxu0 0
      %974 = vmatprep.subr.bf16.mxu0 0
      %975 = vmatpush2.bf16.msra.mxu0 0
      %976 = vmatprep.subr.bf16.mxu0 0
      %977 = vmatpush2.bf16.msra.mxu0 0
      %978 = vmatprep.subr.bf16.mxu0 0
      %979 = vmatpush2.bf16.msra.mxu0 0
      %980 = vmatprep.subr.bf16.mxu0 0
      %981 = vmatpush2.bf16.msra.mxu0 0
      %982 = vmatprep.subr.bf16.mxu0 0
      %983 = vmatpush2.bf16.msra.mxu0 0
      %984 = vmatprep.subr.bf16.mxu0 0
      %985 = vmatpush2.bf16.msra.mxu0 0
      %986 = vmatprep.mubr.bf16.mxu0 0
      %987 = vmatmul.mubr.bf16.gmra.mxu0 %v904
      %v988 = vpop.f32.mrf.mxu0
      %v989 = vadd.f32 0.0, %v988
      %v990 = vpop.f32.mrf.mxu0
      %v991 = vpop.f32.mrf.mxu0
      %v992 = vpop.f32.mrf.mxu0
      %993 = vdwg.mxu0
      %v994 = vadd.f32 %v886, %v989
      %s995 = scalar_lea.vmem %s3, 384
      %v996 = vld [vmem:[%s995] sm:$0xf]
      %v997 = vld [vmem:[%s995 + $0x4] sm:$0xf]
      %v998 = vld [vmem:[%s995 + $0x8] sm:$0xf]
      %v999 = vld [vmem:[%s995 + $0xc] sm:$0xf]
      %v1000 = vld [vmem:[%s995 + $0x10] sm:$0xf]
      %v1001 = vld [vmem:[%s995 + $0x14] sm:$0xf]
      %v1002 = vld [vmem:[%s995 + $0x18] sm:$0xf]
      %v1003 = vld [vmem:[%s995 + $0x1c] sm:$0xf]
      %v1004 = vld [vmem:[%s995 + $0x20] sm:$0xf]
      %v1005 = vld [vmem:[%s995 + $0x24] sm:$0xf]
      %v1006 = vld [vmem:[%s995 + $0x28] sm:$0xf]
      %v1007 = vld [vmem:[%s995 + $0x2c] sm:$0xf]
      %v1008 = vld [vmem:[%s995 + $0x30] sm:$0xf]
      %v1009 = vld [vmem:[%s995 + $0x34] sm:$0xf]
      %v1010 = vld [vmem:[%s995 + $0x38] sm:$0xf]
      %v1011 = vld [vmem:[%s995 + $0x3c] sm:$0xf]
      %v1028 = vunpack.c.l.b16 %v996
      %v1029 = vunpack.c.l.b16 %v997
      %v1030 = vunpack.c.l.b16 %v998
      %v1031 = vunpack.c.l.b16 %v999
      %v1032 = vunpack.c.l.b16 %v1000
      %v1033 = vunpack.c.l.b16 %v1001
      %v1034 = vunpack.c.l.b16 %v1002
      %v1035 = vunpack.c.l.b16 %v1003
      %v1036 = vunpack.c.l.b16 %v1004
      %v1037 = vunpack.c.l.b16 %v1005
      %v1038 = vunpack.c.l.b16 %v1006
      %v1039 = vunpack.c.l.b16 %v1007
      %v1040 = vunpack.c.l.b16 %v1008
      %v1041 = vunpack.c.l.b16 %v1009
      %v1042 = vunpack.c.l.b16 %v1010
      %v1043 = vunpack.c.l.b16 %v1011
      %v1044 = vpack.c.b16 %v1029, %v1028
      %v1045 = vpack.c.b16 %v1031, %v1030
      %v1046 = vpack.c.b16 %v1033, %v1032
      %v1047 = vpack.c.b16 %v1035, %v1034
      %v1048 = vpack.c.b16 %v1037, %v1036
      %v1049 = vpack.c.b16 %v1039, %v1038
      %v1050 = vpack.c.b16 %v1041, %v1040
      %v1051 = vpack.c.b16 %v1043, %v1042
      %1060 = vmatprep.subr.bf16.mxu0 0
      %1061 = vmatpush1.bf16.msra.mxu0 %v1051
      %1062 = vmatprep.subr.bf16.mxu0 0
      %1063 = vmatpush1.bf16.msra.mxu0 %v1050
      %1064 = vmatprep.subr.bf16.mxu0 0
      %1065 = vmatpush1.bf16.msra.mxu0 %v1049
      %1066 = vmatprep.subr.bf16.mxu0 0
      %1067 = vmatpush1.bf16.msra.mxu0 %v1048
      %1068 = vmatprep.subr.bf16.mxu0 0
      %1069 = vmatpush1.bf16.msra.mxu0 %v1047
      %1070 = vmatprep.subr.bf16.mxu0 0
      %1071 = vmatpush1.bf16.msra.mxu0 %v1046
      %1072 = vmatprep.subr.bf16.mxu0 0
      %1073 = vmatpush1.bf16.msra.mxu0 %v1045
      %1074 = vmatprep.subr.bf16.mxu0 0
      %1075 = vmatpush1.bf16.msra.mxu0 %v1044
      %1076 = vmatprep.subr.bf16.mxu0 0
      %1077 = vmatpush2.bf16.msra.mxu0 0
      %1078 = vmatprep.subr.bf16.mxu0 0
      %1079 = vmatpush2.bf16.msra.mxu0 0
      %1080 = vmatprep.subr.bf16.mxu0 0
      %1081 = vmatpush2.bf16.msra.mxu0 0
      %1082 = vmatprep.subr.bf16.mxu0 0
      %1083 = vmatpush2.bf16.msra.mxu0 0
      %1084 = vmatprep.subr.bf16.mxu0 0
      %1085 = vmatpush2.bf16.msra.mxu0 0
      %1086 = vmatprep.subr.bf16.mxu0 0
      %1087 = vmatpush2.bf16.msra.mxu0 0
      %1088 = vmatprep.subr.bf16.mxu0 0
      %1089 = vmatpush2.bf16.msra.mxu0 0
      %1090 = vmatprep.subr.bf16.mxu0 0
      %1091 = vmatpush2.bf16.msra.mxu0 0
      %1092 = vmatprep.mubr.bf16.mxu0 0
      %1093 = vmatmul.mubr.bf16.gmra.mxu0 %v335
      %v1094 = vpop.f32.mrf.mxu0
      %v1095 = vadd.f32 0.0, %v1094
      %v1096 = vpop.f32.mrf.mxu0
      %v1097 = vpop.f32.mrf.mxu0
      %v1098 = vpop.f32.mrf.mxu0
      %1099 = vdwg.mxu0
      %v1100 = vadd.f32 %v994, %v1095
      %s1101 = scalar_lea.vmem %s3, 448
      %v1102 = vld [vmem:[%s1101] sm:$0xf]
      %v1103 = vld [vmem:[%s1101 + $0x4] sm:$0xf]
      %v1104 = vld [vmem:[%s1101 + $0x8] sm:$0xf]
      %v1105 = vld [vmem:[%s1101 + $0xc] sm:$0xf]
      %v1106 = vld [vmem:[%s1101 + $0x10] sm:$0xf]
      %v1107 = vld [vmem:[%s1101 + $0x14] sm:$0xf]
      %v1108 = vld [vmem:[%s1101 + $0x18] sm:$0xf]
      %v1109 = vld [vmem:[%s1101 + $0x1c] sm:$0xf]
      %v1110 = vld [vmem:[%s1101 + $0x20] sm:$0xf]
      %v1111 = vld [vmem:[%s1101 + $0x24] sm:$0xf]
      %v1112 = vld [vmem:[%s1101 + $0x28] sm:$0xf]
      %v1113 = vld [vmem:[%s1101 + $0x2c] sm:$0xf]
      %v1114 = vld [vmem:[%s1101 + $0x30] sm:$0xf]
      %v1115 = vld [vmem:[%s1101 + $0x34] sm:$0xf]
      %v1116 = vld [vmem:[%s1101 + $0x38] sm:$0xf]
      %v1117 = vld [vmem:[%s1101 + $0x3c] sm:$0xf]
      %v1119 = vunpack.c.l.b16 %v335
      %v1120 = vpack.c.b16 %v1119, %v1119
      %v1122 = vshrl.u32 %v1120, 16
      %v1124 = vshll.u32 %v1120, 16
      %v1126 = vrot.slane %v1124, 1
      %v1127 = vor.u32 %v1122, %v1126
      %v1145 = vunpack.c.l.b16 %v1102
      %v1146 = vunpack.c.l.b16 %v1103
      %v1147 = vunpack.c.l.b16 %v1104
      %v1148 = vunpack.c.l.b16 %v1105
      %v1149 = vunpack.c.l.b16 %v1106
      %v1150 = vunpack.c.l.b16 %v1107
      %v1151 = vunpack.c.l.b16 %v1108
      %v1152 = vunpack.c.l.b16 %v1109
      %v1153 = vunpack.c.l.b16 %v1110
      %v1154 = vunpack.c.l.b16 %v1111
      %v1155 = vunpack.c.l.b16 %v1112
      %v1156 = vunpack.c.l.b16 %v1113
      %v1157 = vunpack.c.l.b16 %v1114
      %v1158 = vunpack.c.l.b16 %v1115
      %v1159 = vunpack.c.l.b16 %v1116
      %v1160 = vunpack.c.l.b16 %v1117
      %v1161 = vpack.c.b16 %v1146, %v1145
      %v1162 = vpack.c.b16 %v1148, %v1147
      %v1163 = vpack.c.b16 %v1150, %v1149
      %v1164 = vpack.c.b16 %v1152, %v1151
      %v1165 = vpack.c.b16 %v1154, %v1153
      %v1166 = vpack.c.b16 %v1156, %v1155
      %v1167 = vpack.c.b16 %v1158, %v1157
      %v1168 = vpack.c.b16 %v1160, %v1159
      %1177 = vmatprep.subr.bf16.mxu0 0
      %1178 = vmatpush1.bf16.msra.mxu0 %v1168
      %1179 = vmatprep.subr.bf16.mxu0 0
      %1180 = vmatpush1.bf16.msra.mxu0 %v1167
      %1181 = vmatprep.subr.bf16.mxu0 0
      %1182 = vmatpush1.bf16.msra.mxu0 %v1166
      %1183 = vmatprep.subr.bf16.mxu0 0
      %1184 = vmatpush1.bf16.msra.mxu0 %v1165
      %1185 = vmatprep.subr.bf16.mxu0 0
      %1186 = vmatpush1.bf16.msra.mxu0 %v1164
      %1187 = vmatprep.subr.bf16.mxu0 0
      %1188 = vmatpush1.bf16.msra.mxu0 %v1163
      %1189 = vmatprep.subr.bf16.mxu0 0
      %1190 = vmatpush1.bf16.msra.mxu0 %v1162
      %1191 = vmatprep.subr.bf16.mxu0 0
      %1192 = vmatpush1.bf16.msra.mxu0 %v1161
      %1193 = vmatprep.subr.bf16.mxu0 0
      %1194 = vmatpush2.bf16.msra.mxu0 0
      %1195 = vmatprep.subr.bf16.mxu0 0
      %1196 = vmatpush2.bf16.msra.mxu0 0
      %1197 = vmatprep.subr.bf16.mxu0 0
      %1198 = vmatpush2.bf16.msra.mxu0 0
      %1199 = vmatprep.subr.bf16.mxu0 0
      %1200 = vmatpush2.bf16.msra.mxu0 0
      %1201 = vmatprep.subr.bf16.mxu0 0
      %1202 = vmatpush2.bf16.msra.mxu0 0
      %1203 = vmatprep.subr.bf16.mxu0 0
      %1204 = vmatpush2.bf16.msra.mxu0 0
      %1205 = vmatprep.subr.bf16.mxu0 0
      %1206 = vmatpush2.bf16.msra.mxu0 0
      %1207 = vmatprep.subr.bf16.mxu0 0
      %1208 = vmatpush2.bf16.msra.mxu0 0
      %1209 = vmatprep.mubr.bf16.mxu0 0
      %1210 = vmatmul.mubr.bf16.gmra.mxu0 %v1127
      %v1211 = vpop.f32.mrf.mxu0
      %v1212 = vadd.f32 0.0, %v1211
      %v1213 = vpop.f32.mrf.mxu0
      %v1214 = vpop.f32.mrf.mxu0
      %v1215 = vpop.f32.mrf.mxu0
      %1216 = vdwg.mxu0
      %v1217 = vadd.f32 %v1100, %v1212
      %s1218 = scalar_lea.vmem %s3, 512
      %v1219 = vld [vmem:[%s1218] sm:$0xf]
      %v1220 = vld [vmem:[%s1218 + $0x4] sm:$0xf]
      %v1221 = vld [vmem:[%s1218 + $0x8] sm:$0xf]
      %v1222 = vld [vmem:[%s1218 + $0xc] sm:$0xf]
      %v1223 = vld [vmem:[%s1218 + $0x10] sm:$0xf]
      %v1224 = vld [vmem:[%s1218 + $0x14] sm:$0xf]
      %v1225 = vld [vmem:[%s1218 + $0x18] sm:$0xf]
      %v1226 = vld [vmem:[%s1218 + $0x1c] sm:$0xf]
      %v1227 = vld [vmem:[%s1218 + $0x20] sm:$0xf]
      %v1228 = vld [vmem:[%s1218 + $0x24] sm:$0xf]
      %v1229 = vld [vmem:[%s1218 + $0x28] sm:$0xf]
      %v1230 = vld [vmem:[%s1218 + $0x2c] sm:$0xf]
      %v1231 = vld [vmem:[%s1218 + $0x30] sm:$0xf]
      %v1232 = vld [vmem:[%s1218 + $0x34] sm:$0xf]
      %v1233 = vld [vmem:[%s1218 + $0x38] sm:$0xf]
      %v1234 = vld [vmem:[%s1218 + $0x3c] sm:$0xf]
      %v1235 = vrot.slane %v1120, 1
      %v1253 = vunpack.c.l.b16 %v1219
      %v1254 = vunpack.c.l.b16 %v1220
      %v1255 = vunpack.c.l.b16 %v1221
      %v1256 = vunpack.c.l.b16 %v1222
      %v1257 = vunpack.c.l.b16 %v1223
      %v1258 = vunpack.c.l.b16 %v1224
      %v1259 = vunpack.c.l.b16 %v1225
      %v1260 = vunpack.c.l.b16 %v1226
      %v1261 = vunpack.c.l.b16 %v1227
      %v1262 = vunpack.c.l.b16 %v1228
      %v1263 = vunpack.c.l.b16 %v1229
      %v1264 = vunpack.c.l.b16 %v1230
      %v1265 = vunpack.c.l.b16 %v1231
      %v1266 = vunpack.c.l.b16 %v1232
      %v1267 = vunpack.c.l.b16 %v1233
      %v1268 = vunpack.c.l.b16 %v1234
      %v1269 = vpack.c.b16 %v1254, %v1253
      %v1270 = vpack.c.b16 %v1256, %v1255
      %v1271 = vpack.c.b16 %v1258, %v1257
      %v1272 = vpack.c.b16 %v1260, %v1259
      %v1273 = vpack.c.b16 %v1262, %v1261
      %v1274 = vpack.c.b16 %v1264, %v1263
      %v1275 = vpack.c.b16 %v1266, %v1265
      %v1276 = vpack.c.b16 %v1268, %v1267
      %1285 = vmatprep.subr.bf16.mxu0 0
      %1286 = vmatpush1.bf16.msra.mxu0 %v1276
      %1287 = vmatprep.subr.bf16.mxu0 0
      %1288 = vmatpush1.bf16.msra.mxu0 %v1275
      %1289 = vmatprep.subr.bf16.mxu0 0
      %1290 = vmatpush1.bf16.msra.mxu0 %v1274
      %1291 = vmatprep.subr.bf16.mxu0 0
      %1292 = vmatpush1.bf16.msra.mxu0 %v1273
      %1293 = vmatprep.subr.bf16.mxu0 0
      %1294 = vmatpush1.bf16.msra.mxu0 %v1272
      %1295 = vmatprep.subr.bf16.mxu0 0
      %1296 = vmatpush1.bf16.msra.mxu0 %v1271
      %1297 = vmatprep.subr.bf16.mxu0 0
      %1298 = vmatpush1.bf16.msra.mxu0 %v1270
      %1299 = vmatprep.subr.bf16.mxu0 0
      %1300 = vmatpush1.bf16.msra.mxu0 %v1269
      %1301 = vmatprep.subr.bf16.mxu0 0
      %1302 = vmatpush2.bf16.msra.mxu0 0
      %1303 = vmatprep.subr.bf16.mxu0 0
      %1304 = vmatpush2.bf16.msra.mxu0 0
      %1305 = vmatprep.subr.bf16.mxu0 0
      %1306 = vmatpush2.bf16.msra.mxu0 0
      %1307 = vmatprep.subr.bf16.mxu0 0
      %1308 = vmatpush2.bf16.msra.mxu0 0
      %1309 = vmatprep.subr.bf16.mxu0 0
      %1310 = vmatpush2.bf16.msra.mxu0 0
      %1311 = vmatprep.subr.bf16.mxu0 0
      %1312 = vmatpush2.bf16.msra.mxu0 0
      %1313 = vmatprep.subr.bf16.mxu0 0
      %1314 = vmatpush2.bf16.msra.mxu0 0
      %1315 = vmatprep.subr.bf16.mxu0 0
      %1316 = vmatpush2.bf16.msra.mxu0 0
      %1317 = vmatprep.mubr.bf16.mxu0 0
      %1318 = vmatmul.mubr.bf16.gmra.mxu0 %v1235
      %v1319 = vpop.f32.mrf.mxu0
      %v1320 = vadd.f32 0.0, %v1319
      %v1321 = vpop.f32.mrf.mxu0
      %v1322 = vpop.f32.mrf.mxu0
      %v1323 = vpop.f32.mrf.mxu0
      %1324 = vdwg.mxu0
      %v1325 = vadd.f32 %v1217, %v1320
      %v1326 = vld [vmem:[%s4] sm:$0x1]
      %v1328 = vlaneseq
      %v1329 = vshrl.u32 %v1328, 7
      %v1330 = vsub.s32 0, %v1329
      %v1331 = vrot.slane %v1326, %v1330
      %v1333 = vadd.f32 %v1325, %v1331
      %1334 = vst [vmem:[%s331] sm:$0xf] %v1333
      %p1335 = scmp.lt.s32.totalorder %s20, 1
      %s1336 = scalar_select %p1335, %s20, 1
      %p1337 = scmp.lt.s32.totalorder %s21, 3
      %s1338 = scalar_select %p1337, %s21, 3
      %s1339 = smul.addr %s1336, 4
      %s1340 = sadd.s32 %s1338, %s1339
      %s1341 = smul.addr %s1340, 4
      %s1342 = scalar_lea.vmem %s5, %s1341
      // Predicated region
      $region41: #{_yolo1_device.6} parent=39 // pred_check
        %p1343 = pneg %p178
      $region42: #{_yolo1_device.6} parent=39 // pred_check_branch
        %1345 = sbr.rel (%p1343) target = $region44
      $region43: #{_yolo1_device.6} parent=39 // pred_region
        _
      $region44: #{_yolo1_device.6} parent=39 // pred_fallthru
        _
    $region40: #{_yolo1_device.6} parent=5 // pred_fallthru
      _
    %p1346 = scmp.le.s32.totalorder 2, %s11
    // Predicated region
    $region45: #{_yolo1_device.6} parent=5 // pred_check
      %p1347 = pneg %p1346
    $region46: #{_yolo1_device.6} parent=5 // pred_check_branch
      %1349 = sbr.rel (%p1347) target = $region48
    $region47: #{_yolo1_device.6} parent=5 // pred_region
      %s1350 = ssub.s32 %s11, 2
      // Predicated region
      $region49: #{_yolo1_device.6} parent=47 // pred_check
        %p1351 = pneg %p184
      $region50: #{_yolo1_device.6} parent=47 // pred_check_branch
        %1353 = sbr.rel (%p1351) target = $region52
      $region51: #{_yolo1_device.6} parent=47 // pred_region
        %p1354 = scmp.lt.s32.totalorder %s22, 1
        %s1355 = scalar_select %p1354, %s22, 1
        %p1356 = scmp.lt.s32.totalorder %s23, 3
        %s1357 = scalar_select %p1356, %s23, 3
        %s1358 = smul.addr %s1355, 4
        %s1359 = sadd.s32 %s1357, %s1358
        %s1360 = smul.addr %s1359, 4
        %s1361 = scalar_lea.vmem %s5, %s1360
      $region52: #{_yolo1_device.6} parent=47 // pred_fallthru
        _
    $region48: #{_yolo1_device.6} parent=5 // pred_fallthru
      _
  $region6: #{_yolo1_device.6} parent=0 // loop_footer
    %s15 = sadd.s32 1, %s11
  $region7: #{_yolo1_device.6} parent=0 // loop_footer_branch
    %10 = sbr.rel target = $region3
  $region8: #{_yolo1_device.6} parent=0 // loop_exit
    _

// kernel: _yolo1_device.5
$region0: #{_yolo1_device.5}
  #allocation0 [shape = 'u32[]', space=smem, size = 0x4, offset = 0x4, fixed_abs, tag = 'smem constant byte address 0x4 - core index']
  #allocation1 [shape = 'u32[144,128]{1,0:T(1,128)}', space=vmem, size = 0x12000, scoped, tag = 'internal scratch']
  %s0 = inlined_call_operand.vmem [shape: bf16[2,10,10,128], index: 0, kind: input, shape index: {}, may-alias: {0,1,2,3}]
  %s1 = inlined_call_operand.vmem [shape: bf16[2,10,10,128], index: 1, kind: input, shape index: {}, may-alias: {0,1,2,3}]
  %s2 = inlined_call_operand.vmem [shape: bf16[2,10,10,128], index: 2, kind: input, shape index: {}, may-alias: {0,1,2,3}]
  %s3 = inlined_call_operand.vmem [shape: bf16[2,10,10,128], index: 3, kind: input, shape index: {}, may-alias: {0,1,2,3}]
  %s4 = inlined_call_operand.vmem [shape: bf16[3,3,128,128], index: 4, kind: input, shape index: {}]
  %s5 = inlined_call_operand.vmem [shape: f32[1,128], index: 5, kind: input, shape index: {}]
  %s6 = inlined_call_operand.vmem [shape: bf16[2,4,4,128], index: 6, kind: output, shape index: {}]
  %s7 = sld [smem:[#allocation0]]
  $region57: #{_yolo1_device.5} parent=0
    _
  %s9 = ssub.s32 1, %s7
  %s10 = scalar_select 0, %s9, %s7
  loop: start=0, step=1, limit=10
  $region2: #{_yolo1_device.5} parent=0 // loop_pre_header
    _
  $region3: #{_yolo1_device.5} parent=0 // loop_header
    %s12 = sphi 0, %s16
    %p13 = scmp.ge.s32.totalorder %s12, 10
    %s19 = sphi 0, %s31
    %s20 = sphi 0, %s27
    %s21 = sphi 0, %s19
    %s22 = sphi 0, %s20
    %s23 = sphi 0, %s21
    %s24 = sphi 0, %s22
    %s38 = sphi 0, %s40
    %s41 = sphi 0, %s38
    %s42 = sphi 0, %s41
    %s58 = sphi 0, %s42
    %s70 = sphi 0, %s72
    %s73 = sphi 0, %s70
    %s74 = sphi 0, %s73
    %s90 = sphi 0, %s74
    %s102 = sphi 0, %s104
    %s105 = sphi 0, %s102
    %s106 = sphi 0, %s105
    %s122 = sphi 0, %s106
    %s134 = sphi 0, %s136
    %s137 = sphi 0, %s134
    %s138 = sphi 0, %s137
    %s154 = sphi 0, %s138
    %s158 = sphi 0, %s158
    %s160 = sphi 0, %s158
    %s161 = sphi 0, %s160
    %s175 = sphi 0, %s161
    %s179 = sphi 0, %s179
    %s181 = sphi 0, %s179
    %s182 = sphi 0, %s181
    %s196 = sphi 0, %s182
    %s204 = sphi 0, %s206
    %s207 = sphi 0, %s204
    %s208 = sphi 0, %s207
    %s224 = sphi 0, %s208
  $region4: #{_yolo1_device.5} parent=0 // loop_header_branch
    %15 = sbr.rel (%p13) target = $region8
  $region5: #{_yolo1_device.5} parent=0 // loop_body
    %s17 = ssub.s32 %s12, 1
    %s18 = ssub.s32 %s12, 2
    %s25 = sadd.s32 1, %s20
    %p26 = scmp.ge.s32.totalorder %s25, 4
    %s27 = scalar_select %p26, 0, %s25
    %s28 = sadd.s32 1, %s19
    %s29 = scalar_select %p26, %s28, %s19
    %p30 = scmp.ge.s32.totalorder %s29, 2
    %s31 = scalar_select %p30, 0, %s29
    %s32 = smul.u32 %s20, 2
    %s33 = smul.u32 %s27, 2
    %s34 = ssub.s32 %s19, %s31
    %s35 = ssub.s32 %s32, %s33
    %s36 = sor.u32 %s34, %s35
    %p37 = scmp.eq.s32.totalorder %s36, 0
    %s39 = sadd.s32 %s38, 1
    %s40 = scalar_select %p37, %s38, %s39
    %p43 = pneg %p37
    %p44 = scmp.eq.s32.totalorder %s12, 7
    %p45 = por %p43, %p44
    %p46 = scmp.ne.s32.totalorder %s38, %s41
    %p47 = scmp.eq.s32.totalorder %s12, 0
    %p48 = por %p46, %p47
    %p49 = scmp.ne.s32.totalorder %s38, %s41
    %p50 = scmp.eq.s32.totalorder %s17, 7
    %p51 = por %p49, %p50
    %p52 = scmp.ne.s32.totalorder %s41, %s42
    %p53 = scmp.eq.s32.totalorder %s17, 0
    %p54 = por %p52, %p53
    %p55 = scmp.ne.s32.totalorder %s41, %s42
    %p56 = scmp.eq.s32.totalorder %s18, 7
    %p57 = por %p55, %p56
    %p59 = scmp.ne.s32.totalorder %s42, %s58
    %p60 = scmp.eq.s32.totalorder %s18, 0
    %p61 = por %p59, %p60
    %s62 = smul.u32 %s20, 2
    %s63 = sadd.s32 %s62, 1
    %s64 = smul.u32 %s27, 2
    %s65 = sadd.s32 %s64, 1
    %s66 = ssub.s32 %s19, %s31
    %s67 = ssub.s32 %s63, %s65
    %s68 = sor.u32 %s66, %s67
    %p69 = scmp.eq.s32.totalorder %s68, 0
    %s71 = sadd.s32 %s70, 1
    %s72 = scalar_select %p69, %s70, %s71
    %p75 = pneg %p69
    %p76 = scmp.eq.s32.totalorder %s12, 7
    %p77 = por %p75, %p76
    %p78 = scmp.ne.s32.totalorder %s70, %s73
    %p79 = scmp.eq.s32.totalorder %s12, 0
    %p80 = por %p78, %p79
    %p81 = scmp.ne.s32.totalorder %s70, %s73
    %p82 = scmp.eq.s32.totalorder %s17, 7
    %p83 = por %p81, %p82
    %p84 = scmp.ne.s32.totalorder %s73, %s74
    %p85 = scmp.eq.s32.totalorder %s17, 0
    %p86 = por %p84, %p85
    %p87 = scmp.ne.s32.totalorder %s73, %s74
    %p88 = scmp.eq.s32.totalorder %s18, 7
    %p89 = por %p87, %p88
    %p91 = scmp.ne.s32.totalorder %s74, %s90
    %p92 = scmp.eq.s32.totalorder %s18, 0
    %p93 = por %p91, %p92
    %s94 = smul.u32 %s20, 2
    %s95 = sadd.s32 %s94, 2
    %s96 = smul.u32 %s27, 2
    %s97 = sadd.s32 %s96, 2
    %s98 = ssub.s32 %s19, %s31
    %s99 = ssub.s32 %s95, %s97
    %s100 = sor.u32 %s98, %s99
    %p101 = scmp.eq.s32.totalorder %s100, 0
    %s103 = sadd.s32 %s102, 1
    %s104 = scalar_select %p101, %s102, %s103
    %p107 = pneg %p101
    %p108 = scmp.eq.s32.totalorder %s12, 7
    %p109 = por %p107, %p108
    %p110 = scmp.ne.s32.totalorder %s102, %s105
    %p111 = scmp.eq.s32.totalorder %s12, 0
    %p112 = por %p110, %p111
    %p113 = scmp.ne.s32.totalorder %s102, %s105
    %p114 = scmp.eq.s32.totalorder %s17, 7
    %p115 = por %p113, %p114
    %p116 = scmp.ne.s32.totalorder %s105, %s106
    %p117 = scmp.eq.s32.totalorder %s17, 0
    %p118 = por %p116, %p117
    %p119 = scmp.ne.s32.totalorder %s105, %s106
    %p120 = scmp.eq.s32.totalorder %s18, 7
    %p121 = por %p119, %p120
    %p123 = scmp.ne.s32.totalorder %s106, %s122
    %p124 = scmp.eq.s32.totalorder %s18, 0
    %p125 = por %p123, %p124
    %s126 = smul.u32 %s20, 2
    %s127 = sadd.s32 %s126, 3
    %s128 = smul.u32 %s27, 2
    %s129 = sadd.s32 %s128, 3
    %s130 = ssub.s32 %s19, %s31
    %s131 = ssub.s32 %s127, %s129
    %s132 = sor.u32 %s130, %s131
    %p133 = scmp.eq.s32.totalorder %s132, 0
    %s135 = sadd.s32 %s134, 1
    %s136 = scalar_select %p133, %s134, %s135
    %p139 = pneg %p133
    %p140 = scmp.eq.s32.totalorder %s12, 7
    %p141 = por %p139, %p140
    %p142 = scmp.ne.s32.totalorder %s134, %s137
    %p143 = scmp.eq.s32.totalorder %s12, 0
    %p144 = por %p142, %p143
    %p145 = scmp.ne.s32.totalorder %s134, %s137
    %p146 = scmp.eq.s32.totalorder %s17, 7
    %p147 = por %p145, %p146
    %p148 = scmp.ne.s32.totalorder %s137, %s138
    %p149 = scmp.eq.s32.totalorder %s17, 0
    %p150 = por %p148, %p149
    %p151 = scmp.ne.s32.totalorder %s137, %s138
    %p152 = scmp.eq.s32.totalorder %s18, 7
    %p153 = por %p151, %p152
    %p155 = scmp.ne.s32.totalorder %s138, %s154
    %p156 = scmp.eq.s32.totalorder %s18, 0
    %p157 = por %p155, %p156
    %s159 = sadd.s32 %s158, 1
    %p162 = scmp.eq.s32.totalorder %s12, 7
    %p163 = scmp.ne.s32.totalorder %s158, %s160
    %p164 = scmp.eq.s32.totalorder %s12, 0
    %p165 = por %p163, %p164
    %p166 = scmp.ne.s32.totalorder %s158, %s160
    %p167 = scmp.eq.s32.totalorder %s17, 7
    %p168 = por %p166, %p167
    %p169 = scmp.ne.s32.totalorder %s160, %s161
    %p170 = scmp.eq.s32.totalorder %s17, 0
    %p171 = por %p169, %p170
    %p172 = scmp.ne.s32.totalorder %s160, %s161
    %p173 = scmp.eq.s32.totalorder %s18, 7
    %p174 = por %p172, %p173
    %p176 = scmp.ne.s32.totalorder %s161, %s175
    %p177 = scmp.eq.s32.totalorder %s18, 0
    %p178 = por %p176, %p177
    %s180 = sadd.s32 %s179, 1
    %p183 = scmp.eq.s32.totalorder %s12, 7
    %p184 = scmp.ne.s32.totalorder %s179, %s181
    %p185 = scmp.eq.s32.totalorder %s12, 0
    %p186 = por %p184, %p185
    %p187 = scmp.ne.s32.totalorder %s179, %s181
    %p188 = scmp.eq.s32.totalorder %s17, 7
    %p189 = por %p187, %p188
    %p190 = scmp.ne.s32.totalorder %s181, %s182
    %p191 = scmp.eq.s32.totalorder %s17, 0
    %p192 = por %p190, %p191
    %p193 = scmp.ne.s32.totalorder %s181, %s182
    %p194 = scmp.eq.s32.totalorder %s18, 7
    %p195 = por %p193, %p194
    %p197 = scmp.ne.s32.totalorder %s182, %s196
    %p198 = scmp.eq.s32.totalorder %s18, 0
    %p199 = por %p197, %p198
    %s200 = ssub.s32 %s19, %s31
    %s201 = ssub.s32 %s20, %s27
    %s202 = sor.u32 %s200, %s201
    %p203 = scmp.eq.s32.totalorder %s202, 0
    %s205 = sadd.s32 %s204, 1
    %s206 = scalar_select %p203, %s204, %s205
    %p209 = pneg %p203
    %p210 = scmp.eq.s32.totalorder %s12, 7
    %p211 = por %p209, %p210
    %p212 = scmp.ne.s32.totalorder %s204, %s207
    %p213 = scmp.eq.s32.totalorder %s12, 0
    %p214 = por %p212, %p213
    %p215 = scmp.ne.s32.totalorder %s204, %s207
    %p216 = scmp.eq.s32.totalorder %s17, 7
    %p217 = por %p215, %p216
    %p218 = scmp.ne.s32.totalorder %s207, %s208
    %p219 = scmp.eq.s32.totalorder %s17, 0
    %p220 = por %p218, %p219
    %p221 = scmp.ne.s32.totalorder %s207, %s208
    %p222 = scmp.eq.s32.totalorder %s18, 7
    %p223 = por %p221, %p222
    %p225 = scmp.ne.s32.totalorder %s208, %s224
    %p226 = scmp.eq.s32.totalorder %s18, 0
    %p227 = por %p225, %p226
    %p228 = scmp.le.s32.totalorder 1, %s12
    %p229 = scmp.lt.s32.totalorder %s12, 9
    %p230 = pnand %p228, %p229
    %p231 = pneg %p230
    // Predicated region
    $region9: #{_yolo1_device.5} parent=5 // pred_check
      _
    $region10: #{_yolo1_device.5} parent=5 // pred_check_branch
      %233 = sbr.rel (%p230) target = $region12
    $region11: #{_yolo1_device.5} parent=5 // pred_region
      %s234 = ssub.s32 %s12, 1
      // Predicated region
      $region13: #{_yolo1_device.5} parent=11 // pred_check
        %p235 = pneg %p171
      $region14: #{_yolo1_device.5} parent=11 // pred_check_branch
        %237 = sbr.rel (%p235) target = $region16
      $region15: #{_yolo1_device.5} parent=11 // pred_region
        _
      $region16: #{_yolo1_device.5} parent=11 // pred_fallthru
        _
      // Predicated region
      $region17: #{_yolo1_device.5} parent=11 // pred_check
        %p238 = pneg %p192
      $region18: #{_yolo1_device.5} parent=11 // pred_check_branch
        %240 = sbr.rel (%p238) target = $region20
      $region19: #{_yolo1_device.5} parent=11 // pred_region
        _
      $region20: #{_yolo1_device.5} parent=11 // pred_fallthru
        _
    $region12: #{_yolo1_device.5} parent=5 // pred_fallthru
      _
    %p241 = scmp.lt.s32.totalorder %s12, 8
    // Predicated region
    $region21: #{_yolo1_device.5} parent=5 // pred_check
      %p242 = pneg %p241
    $region22: #{_yolo1_device.5} parent=5 // pred_check_branch
      %244 = sbr.rel (%p242) target = $region24
    $region23: #{_yolo1_device.5} parent=5 // pred_region
      // Predicated region
      $region25: #{_yolo1_device.5} parent=23 // pred_check
        %p245 = pneg %p48
      $region26: #{_yolo1_device.5} parent=23 // pred_check_branch
        %247 = sbr.rel (%p245) target = $region28
      $region27: #{_yolo1_device.5} parent=23 // pred_region
        %s248 = smul.u32 %s20, 2
        %p249 = scmp.lt.s32.totalorder %s19, 1
        %s250 = scalar_select %p249, %s19, 1
        %p251 = scmp.lt.s32.totalorder %s248, 9
        %s252 = scalar_select %p251, %s248, 9
        %s253 = smul.addr %s252, 2
        %s254 = smul.addr %s250, 20
        %s255 = sadd.s32 %s253, %s254
        %s256 = smul.addr %s255, 4
        %s257 = scalar_lea.vmem %s0, %s256
        %s258 = smul.u32 %s20, 2
      $region28: #{_yolo1_device.5} parent=23 // pred_fallthru
        _
      // Predicated region
      $region29: #{_yolo1_device.5} parent=23 // pred_check
        %p259 = pneg %p80
      $region30: #{_yolo1_device.5} parent=23 // pred_check_branch
        %261 = sbr.rel (%p259) target = $region32
      $region31: #{_yolo1_device.5} parent=23 // pred_region
        %s262 = smul.u32 %s20, 2
        %s263 = sadd.s32 %s262, 1
        %p264 = scmp.lt.s32.totalorder %s19, 1
        %s265 = scalar_select %p264, %s19, 1
        %p266 = scmp.lt.s32.totalorder %s263, 9
        %s267 = scalar_select %p266, %s263, 9
        %s268 = smul.addr %s267, 2
        %s269 = smul.addr %s265, 20
        %s270 = sadd.s32 %s268, %s269
        %s271 = smul.addr %s270, 4
        %s272 = scalar_lea.vmem %s1, %s271
        %s273 = smul.u32 %s20, 2
        %s274 = sadd.s32 %s273, 1
      $region32: #{_yolo1_device.5} parent=23 // pred_fallthru
        _
      // Predicated region
      $region33: #{_yolo1_device.5} parent=23 // pred_check
        %p275 = pneg %p112
      $region34: #{_yolo1_device.5} parent=23 // pred_check_branch
        %277 = sbr.rel (%p275) target = $region36
      $region35: #{_yolo1_device.5} parent=23 // pred_region
        %s278 = smul.u32 %s20, 2
        %s279 = sadd.s32 %s278, 2
        %p280 = scmp.lt.s32.totalorder %s19, 1
        %s281 = scalar_select %p280, %s19, 1
        %p282 = scmp.lt.s32.totalorder %s279, 9
        %s283 = scalar_select %p282, %s279, 9
        %s284 = smul.addr %s283, 2
        %s285 = smul.addr %s281, 20
        %s286 = sadd.s32 %s284, %s285
        %s287 = smul.addr %s286, 4
        %s288 = scalar_lea.vmem %s2, %s287
        %s289 = smul.u32 %s20, 2
        %s290 = sadd.s32 %s289, 2
      $region36: #{_yolo1_device.5} parent=23 // pred_fallthru
        _
      // Predicated region
      $region37: #{_yolo1_device.5} parent=23 // pred_check
        %p291 = pneg %p144
      $region38: #{_yolo1_device.5} parent=23 // pred_check_branch
        %293 = sbr.rel (%p291) target = $region40
      $region39: #{_yolo1_device.5} parent=23 // pred_region
        %s294 = smul.u32 %s20, 2
        %s295 = sadd.s32 %s294, 3
        %p296 = scmp.lt.s32.totalorder %s19, 1
        %s297 = scalar_select %p296, %s19, 1
        %p298 = scmp.lt.s32.totalorder %s295, 9
        %s299 = scalar_select %p298, %s295, 9
        %s300 = smul.addr %s299, 2
        %s301 = smul.addr %s297, 20
        %s302 = sadd.s32 %s300, %s301
        %s303 = smul.addr %s302, 4
        %s304 = scalar_lea.vmem %s3, %s303
        %s305 = smul.u32 %s20, 2
        %s306 = sadd.s32 %s305, 3
      $region40: #{_yolo1_device.5} parent=23 // pred_fallthru
        _
    $region24: #{_yolo1_device.5} parent=5 // pred_fallthru
      _
    %p307 = scmp.le.s32.totalorder 1, %s12
    %p308 = scmp.lt.s32.totalorder %s12, 9
    %p309 = pnand %p307, %p308
    %p310 = pneg %p309
    // Predicated region
    $region41: #{_yolo1_device.5} parent=5 // pred_check
      _
    $region42: #{_yolo1_device.5} parent=5 // pred_check_branch
      %312 = sbr.rel (%p309) target = $region44
    $region43: #{_yolo1_device.5} parent=5 // pred_region
      %s313 = ssub.s32 %s12, 1
      %s314 = smul.u32 %s22, 2
      %p315 = scmp.lt.s32.totalorder %s21, 1
      %s316 = scalar_select %p315, %s21, 1
      %p317 = scmp.lt.s32.totalorder %s314, 9
      %s318 = scalar_select %p317, %s314, 9
      %s319 = smul.addr %s318, 2
      %s320 = smul.addr %s316, 20
      %s321 = sadd.s32 %s319, %s320
      %s322 = smul.addr %s321, 4
      %s323 = scalar_lea.vmem %s0, %s322
      %p324 = pneg %p54
      %p325 = pneg %p51
      %s326 = smul.u32 %s22, 2
      %s327 = sadd.s32 %s326, 1
      %p328 = scmp.lt.s32.totalorder %s21, 1
      %s329 = scalar_select %p328, %s21, 1
      %p330 = scmp.lt.s32.totalorder %s327, 9
      %s331 = scalar_select %p330, %s327, 9
      %s332 = smul.addr %s331, 2
      %s333 = smul.addr %s329, 20
      %s334 = sadd.s32 %s332, %s333
      %s335 = smul.addr %s334, 4
      %s336 = scalar_lea.vmem %s1, %s335
      %p337 = pneg %p86
      %p338 = pneg %p83
      %s339 = smul.u32 %s22, 2
      %s340 = sadd.s32 %s339, 2
      %p341 = scmp.lt.s32.totalorder %s21, 1
      %s342 = scalar_select %p341, %s21, 1
      %p343 = scmp.lt.s32.totalorder %s340, 9
      %s344 = scalar_select %p343, %s340, 9
      %s345 = smul.addr %s344, 2
      %s346 = smul.addr %s342, 20
      %s347 = sadd.s32 %s345, %s346
      %s348 = smul.addr %s347, 4
      %s349 = scalar_lea.vmem %s2, %s348
      %p350 = pneg %p118
      %p351 = pneg %p115
      %s352 = smul.u32 %s22, 2
      %s353 = sadd.s32 %s352, 3
      %p354 = scmp.lt.s32.totalorder %s21, 1
      %s355 = scalar_select %p354, %s21, 1
      %p356 = scmp.lt.s32.totalorder %s353, 9
      %s357 = scalar_select %p356, %s353, 9
      %s358 = smul.addr %s357, 2
      %s359 = smul.addr %s355, 20
      %s360 = sadd.s32 %s358, %s359
      %s361 = smul.addr %s360, 4
      %s362 = scalar_lea.vmem %s3, %s361
      %p363 = pneg %p150
      %p364 = pneg %p147
      %p365 = pneg %p171
      %p366 = pneg %p168
      %p367 = pneg %p192
      %p368 = pneg %p189
      %p369 = pneg %p220
      %p370 = pneg %p217
      %p371 = scmp.lt.s32.totalorder %s21, 1
      %s372 = scalar_select %p371, %s21, 1
      %p373 = scmp.lt.s32.totalorder %s22, 3
      %s374 = scalar_select %p373, %s22, 3
      %s375 = smul.addr %s372, 4
      %s376 = sadd.s32 %s374, %s375
      %s377 = smul.addr %s376, 2
      %s378 = scalar_lea.vmem %s6, %s377
      %s379 = smul.u32 %s22, 2
      %p380 = scmp.lt.s32.totalorder %s21, 1
      %s381 = scalar_select %p380, %s21, 1
      %p382 = scmp.lt.s32.totalorder %s379, 9
      %s383 = scalar_select %p382, %s379, 9
      %s384 = smul.addr %s383, 2
      %s385 = smul.addr %s381, 20
      %s386 = sadd.s32 %s384, %s385
      %s387 = smul.addr %s386, 4
      %s388 = scalar_lea.vmem %s0, %s387
      %s389 = smul.u32 %s22, 2
      %s390 = smul.u32 %s22, 2
      %s391 = sadd.s32 %s390, 1
      %p392 = scmp.lt.s32.totalorder %s21, 1
      %s393 = scalar_select %p392, %s21, 1
      %p394 = scmp.lt.s32.totalorder %s391, 9
      %s395 = scalar_select %p394, %s391, 9
      %s396 = smul.addr %s395, 2
      %s397 = smul.addr %s393, 20
      %s398 = sadd.s32 %s396, %s397
      %s399 = smul.addr %s398, 4
      %s400 = scalar_lea.vmem %s1, %s399
      %s401 = smul.u32 %s22, 2
      %s402 = sadd.s32 %s401, 1
      %s403 = smul.u32 %s22, 2
      %s404 = sadd.s32 %s403, 2
      %p405 = scmp.lt.s32.totalorder %s21, 1
      %s406 = scalar_select %p405, %s21, 1
      %p407 = scmp.lt.s32.totalorder %s404, 9
      %s408 = scalar_select %p407, %s404, 9
      %s409 = smul.addr %s408, 2
      %s410 = smul.addr %s406, 20
      %s411 = sadd.s32 %s409, %s410
      %s412 = smul.addr %s411, 4
      %s413 = scalar_lea.vmem %s2, %s412
      %s414 = smul.u32 %s22, 2
      %s415 = sadd.s32 %s414, 2
      %s416 = smul.u32 %s22, 2
      %s417 = sadd.s32 %s416, 3
      %p418 = scmp.lt.s32.totalorder %s21, 1
      %s419 = scalar_select %p418, %s21, 1
      %p420 = scmp.lt.s32.totalorder %s417, 9
      %s421 = scalar_select %p420, %s417, 9
      %s422 = smul.addr %s421, 2
      %s423 = smul.addr %s419, 20
      %s424 = sadd.s32 %s422, %s423
      %s425 = smul.addr %s424, 4
      %s426 = scalar_lea.vmem %s3, %s425
      %s427 = smul.u32 %s22, 2
      %s428 = sadd.s32 %s427, 3
      %p429 = scmp.lt.s32.totalorder %s21, 1
      %s430 = scalar_select %p429, %s21, 1
      %p431 = scmp.lt.s32.totalorder %s22, 3
      %s432 = scalar_select %p431, %s22, 3
      %s433 = smul.addr %s430, 4
      %s434 = sadd.s32 %s432, %s433
      %s435 = smul.addr %s434, 2
      %s436 = scalar_lea.vmem %s6, %s435
      %v438 = vld [vmem:[%s388] sm:$0xf]
      %v439 = vld [vmem:[%s388 + $0x4] sm:$0x1]
      %v440 = vld [vmem:[%s400] sm:$0xf]
      %v441 = vld [vmem:[%s400 + $0x4] sm:$0x1]
      %v442 = vld [vmem:[%s413] sm:$0xf]
      %v443 = vld [vmem:[%s413 + $0x4] sm:$0x1]
      %v444 = vld [vmem:[%s426] sm:$0xf]
      %v445 = vld [vmem:[%s426 + $0x4] sm:$0x1]
      %v446 = vld [vmem:[%s4] sm:$0xf]
      %v447 = vld [vmem:[%s4 + $0x4] sm:$0xf]
      %v448 = vld [vmem:[%s4 + $0x8] sm:$0xf]
      %v449 = vld [vmem:[%s4 + $0xc] sm:$0xf]
      %v450 = vld [vmem:[%s4 + $0x10] sm:$0xf]
      %v451 = vld [vmem:[%s4 + $0x14] sm:$0xf]
      %v452 = vld [vmem:[%s4 + $0x18] sm:$0xf]
      %v453 = vld [vmem:[%s4 + $0x1c] sm:$0xf]
      %v454 = vld [vmem:[%s4 + $0x20] sm:$0xf]
      %v455 = vld [vmem:[%s4 + $0x24] sm:$0xf]
      %v456 = vld [vmem:[%s4 + $0x28] sm:$0xf]
      %v457 = vld [vmem:[%s4 + $0x2c] sm:$0xf]
      %v458 = vld [vmem:[%s4 + $0x30] sm:$0xf]
      %v459 = vld [vmem:[%s4 + $0x34] sm:$0xf]
      %v460 = vld [vmem:[%s4 + $0x38] sm:$0xf]
      %v461 = vld [vmem:[%s4 + $0x3c] sm:$0xf]
      %s462 = scalar_lea.vmem %s4, 64
      %v463 = vld [vmem:[%s462] sm:$0xf]
      %v464 = vld [vmem:[%s462 + $0x4] sm:$0xf]
      %v465 = vld [vmem:[%s462 + $0x8] sm:$0xf]
      %v466 = vld [vmem:[%s462 + $0xc] sm:$0xf]
      %v467 = vld [vmem:[%s462 + $0x10] sm:$0xf]
      %v468 = vld [vmem:[%s462 + $0x14] sm:$0xf]
      %v469 = vld [vmem:[%s462 + $0x18] sm:$0xf]
      %v470 = vld [vmem:[%s462 + $0x1c] sm:$0xf]
      %v471 = vld [vmem:[%s462 + $0x20] sm:$0xf]
      %v472 = vld [vmem:[%s462 + $0x24] sm:$0xf]
      %v473 = vld [vmem:[%s462 + $0x28] sm:$0xf]
      %v474 = vld [vmem:[%s462 + $0x2c] sm:$0xf]
      %v475 = vld [vmem:[%s462 + $0x30] sm:$0xf]
      %v476 = vld [vmem:[%s462 + $0x34] sm:$0xf]
      %v477 = vld [vmem:[%s462 + $0x38] sm:$0xf]
      %v478 = vld [vmem:[%s462 + $0x3c] sm:$0xf]
      %v481 = vunpack.c.l.b16 %v438
      %v482 = vunpack.c.l.b16 %v439
      %v483 = vpack.c.b16 %v482, %v481
      %v485 = vshrl.u32 %v483, 16
      %v487 = vshll.u32 %v483, 16
      %v489 = vrot.slane %v487, 1
      %v490 = vor.u32 %v485, %v489
      %v508 = vunpack.c.l.b16 %v463
      %v509 = vunpack.c.l.b16 %v464
      %v510 = vunpack.c.l.b16 %v465
      %v511 = vunpack.c.l.b16 %v466
      %v512 = vunpack.c.l.b16 %v467
      %v513 = vunpack.c.l.b16 %v468
      %v514 = vunpack.c.l.b16 %v469
      %v515 = vunpack.c.l.b16 %v470
      %v516 = vunpack.c.l.b16 %v471
      %v517 = vunpack.c.l.b16 %v472
      %v518 = vunpack.c.l.b16 %v473
      %v519 = vunpack.c.l.b16 %v474
      %v520 = vunpack.c.l.b16 %v475
      %v521 = vunpack.c.l.b16 %v476
      %v522 = vunpack.c.l.b16 %v477
      %v523 = vunpack.c.l.b16 %v478
      %v524 = vpack.c.b16 %v509, %v508
      %v525 = vpack.c.b16 %v511, %v510
      %v526 = vpack.c.b16 %v513, %v512
      %v527 = vpack.c.b16 %v515, %v514
      %v528 = vpack.c.b16 %v517, %v516
      %v529 = vpack.c.b16 %v519, %v518
      %v530 = vpack.c.b16 %v521, %v520
      %v531 = vpack.c.b16 %v523, %v522
      %540 = vmatprep.subr.bf16.mxu0 0
      %541 = vmatpush1.bf16.msra.mxu0 %v531
      %542 = vmatprep.subr.bf16.mxu0 0
      %543 = vmatpush1.bf16.msra.mxu0 %v530
      %544 = vmatprep.subr.bf16.mxu0 0
      %545 = vmatpush1.bf16.msra.mxu0 %v529
      %546 = vmatprep.subr.bf16.mxu0 0
      %547 = vmatpush1.bf16.msra.mxu0 %v528
      %548 = vmatprep.subr.bf16.mxu0 0
      %549 = vmatpush1.bf16.msra.mxu0 %v527
      %550 = vmatprep.subr.bf16.mxu0 0
      %551 = vmatpush1.bf16.msra.mxu0 %v526
      %552 = vmatprep.subr.bf16.mxu0 0
      %553 = vmatpush1.bf16.msra.mxu0 %v525
      %554 = vmatprep.subr.bf16.mxu0 0
      %555 = vmatpush1.bf16.msra.mxu0 %v524
      %556 = vmatprep.subr.bf16.mxu0 0
      %557 = vmatpush2.bf16.msra.mxu0 0
      %558 = vmatprep.subr.bf16.mxu0 0
      %559 = vmatpush2.bf16.msra.mxu0 0
      %560 = vmatprep.subr.bf16.mxu0 0
      %561 = vmatpush2.bf16.msra.mxu0 0
      %562 = vmatprep.subr.bf16.mxu0 0
      %563 = vmatpush2.bf16.msra.mxu0 0
      %564 = vmatprep.subr.bf16.mxu0 0
      %565 = vmatpush2.bf16.msra.mxu0 0
      %566 = vmatprep.subr.bf16.mxu0 0
      %567 = vmatpush2.bf16.msra.mxu0 0
      %568 = vmatprep.subr.bf16.mxu0 0
      %569 = vmatpush2.bf16.msra.mxu0 0
      %570 = vmatprep.subr.bf16.mxu0 0
      %571 = vmatpush2.bf16.msra.mxu0 0
      %572 = vmatprep.mubr.bf16.mxu0 0
      %573 = vmatmul.mubr.bf16.gmra.mxu0 %v490
      %v574 = vpop.f32.mrf.mxu0
      %v575 = vadd.f32 0.0, %v574
      %v576 = vpop.f32.mrf.mxu0
      %v577 = vpop.f32.mrf.mxu0
      %v578 = vpop.f32.mrf.mxu0
      %579 = vdwg.mxu0
      %v596 = vunpack.c.l.b16 %v446
      %v597 = vunpack.c.l.b16 %v447
      %v598 = vunpack.c.l.b16 %v448
      %v599 = vunpack.c.l.b16 %v449
      %v600 = vunpack.c.l.b16 %v450
      %v601 = vunpack.c.l.b16 %v451
      %v602 = vunpack.c.l.b16 %v452
      %v603 = vunpack.c.l.b16 %v453
      %v604 = vunpack.c.l.b16 %v454
      %v605 = vunpack.c.l.b16 %v455
      %v606 = vunpack.c.l.b16 %v456
      %v607 = vunpack.c.l.b16 %v457
      %v608 = vunpack.c.l.b16 %v458
      %v609 = vunpack.c.l.b16 %v459
      %v610 = vunpack.c.l.b16 %v460
      %v611 = vunpack.c.l.b16 %v461
      %v612 = vpack.c.b16 %v597, %v596
      %v613 = vpack.c.b16 %v599, %v598
      %v614 = vpack.c.b16 %v601, %v600
      %v615 = vpack.c.b16 %v603, %v602
      %v616 = vpack.c.b16 %v605, %v604
      %v617 = vpack.c.b16 %v607, %v606
      %v618 = vpack.c.b16 %v609, %v608
      %v619 = vpack.c.b16 %v611, %v610
      %628 = vmatprep.subr.bf16.mxu0 0
      %629 = vmatpush1.bf16.msra.mxu0 %v619
      %630 = vmatprep.subr.bf16.mxu0 0
      %631 = vmatpush1.bf16.msra.mxu0 %v618
      %632 = vmatprep.subr.bf16.mxu0 0
      %633 = vmatpush1.bf16.msra.mxu0 %v617
      %634 = vmatprep.subr.bf16.mxu0 0
      %635 = vmatpush1.bf16.msra.mxu0 %v616
      %636 = vmatprep.subr.bf16.mxu0 0
      %637 = vmatpush1.bf16.msra.mxu0 %v615
      %638 = vmatprep.subr.bf16.mxu0 0
      %639 = vmatpush1.bf16.msra.mxu0 %v614
      %640 = vmatprep.subr.bf16.mxu0 0
      %641 = vmatpush1.bf16.msra.mxu0 %v613
      %642 = vmatprep.subr.bf16.mxu0 0
      %643 = vmatpush1.bf16.msra.mxu0 %v612
      %644 = vmatprep.subr.bf16.mxu0 0
      %645 = vmatpush2.bf16.msra.mxu0 0
      %646 = vmatprep.subr.bf16.mxu0 0
      %647 = vmatpush2.bf16.msra.mxu0 0
      %648 = vmatprep.subr.bf16.mxu0 0
      %649 = vmatpush2.bf16.msra.mxu0 0
      %650 = vmatprep.subr.bf16.mxu0 0
      %651 = vmatpush2.bf16.msra.mxu0 0
      %652 = vmatprep.subr.bf16.mxu0 0
      %653 = vmatpush2.bf16.msra.mxu0 0
      %654 = vmatprep.subr.bf16.mxu0 0
      %655 = vmatpush2.bf16.msra.mxu0 0
      %656 = vmatprep.subr.bf16.mxu0 0
      %657 = vmatpush2.bf16.msra.mxu0 0
      %658 = vmatprep.subr.bf16.mxu0 0
      %659 = vmatpush2.bf16.msra.mxu0 0
      %660 = vmatprep.mubr.bf16.mxu0 0
      %661 = vmatmul.mubr.bf16.gmra.mxu0 %v438
      %v662 = vpop.f32.mrf.mxu0
      %v663 = vadd.f32 %v575, %v662
      %v664 = vpop.f32.mrf.mxu0
      %v665 = vpop.f32.mrf.mxu0
      %v666 = vpop.f32.mrf.mxu0
      %667 = vdwg.mxu0
      %s668 = scalar_lea.vmem %s4, 128
      %v669 = vld [vmem:[%s668] sm:$0xf]
      %v670 = vld [vmem:[%s668 + $0x4] sm:$0xf]
      %v671 = vld [vmem:[%s668 + $0x8] sm:$0xf]
      %v672 = vld [vmem:[%s668 + $0xc] sm:$0xf]
      %v673 = vld [vmem:[%s668 + $0x10] sm:$0xf]
      %v674 = vld [vmem:[%s668 + $0x14] sm:$0xf]
      %v675 = vld [vmem:[%s668 + $0x18] sm:$0xf]
      %v676 = vld [vmem:[%s668 + $0x1c] sm:$0xf]
      %v677 = vld [vmem:[%s668 + $0x20] sm:$0xf]
      %v678 = vld [vmem:[%s668 + $0x24] sm:$0xf]
      %v679 = vld [vmem:[%s668 + $0x28] sm:$0xf]
      %v680 = vld [vmem:[%s668 + $0x2c] sm:$0xf]
      %v681 = vld [vmem:[%s668 + $0x30] sm:$0xf]
      %v682 = vld [vmem:[%s668 + $0x34] sm:$0xf]
      %v683 = vld [vmem:[%s668 + $0x38] sm:$0xf]
      %v684 = vld [vmem:[%s668 + $0x3c] sm:$0xf]
      %v685 = vrot.slane %v483, 1
      %v703 = vunpack.c.l.b16 %v669
      %v704 = vunpack.c.l.b16 %v670
      %v705 = vunpack.c.l.b16 %v671
      %v706 = vunpack.c.l.b16 %v672
      %v707 = vunpack.c.l.b16 %v673
      %v708 = vunpack.c.l.b16 %v674
      %v709 = vunpack.c.l.b16 %v675
      %v710 = vunpack.c.l.b16 %v676
      %v711 = vunpack.c.l.b16 %v677
      %v712 = vunpack.c.l.b16 %v678
      %v713 = vunpack.c.l.b16 %v679
      %v714 = vunpack.c.l.b16 %v680
      %v715 = vunpack.c.l.b16 %v681
      %v716 = vunpack.c.l.b16 %v682
      %v717 = vunpack.c.l.b16 %v683
      %v718 = vunpack.c.l.b16 %v684
      %v719 = vpack.c.b16 %v704, %v703
      %v720 = vpack.c.b16 %v706, %v705
      %v721 = vpack.c.b16 %v708, %v707
      %v722 = vpack.c.b16 %v710, %v709
      %v723 = vpack.c.b16 %v712, %v711
      %v724 = vpack.c.b16 %v714, %v713
      %v725 = vpack.c.b16 %v716, %v715
      %v726 = vpack.c.b16 %v718, %v717
      %735 = vmatprep.subr.bf16.mxu0 0
      %736 = vmatpush1.bf16.msra.mxu0 %v726
      %737 = vmatprep.subr.bf16.mxu0 0
      %738 = vmatpush1.bf16.msra.mxu0 %v725
      %739 = vmatprep.subr.bf16.mxu0 0
      %740 = vmatpush1.bf16.msra.mxu0 %v724
      %741 = vmatprep.subr.bf16.mxu0 0
      %742 = vmatpush1.bf16.msra.mxu0 %v723
      %743 = vmatprep.subr.bf16.mxu0 0
      %744 = vmatpush1.bf16.msra.mxu0 %v722
      %745 = vmatprep.subr.bf16.mxu0 0
      %746 = vmatpush1.bf16.msra.mxu0 %v721
      %747 = vmatprep.subr.bf16.mxu0 0
      %748 = vmatpush1.bf16.msra.mxu0 %v720
      %749 = vmatprep.subr.bf16.mxu0 0
      %750 = vmatpush1.bf16.msra.mxu0 %v719
      %751 = vmatprep.subr.bf16.mxu0 0
      %752 = vmatpush2.bf16.msra.mxu0 0
      %753 = vmatprep.subr.bf16.mxu0 0
      %754 = vmatpush2.bf16.msra.mxu0 0
      %755 = vmatprep.subr.bf16.mxu0 0
      %756 = vmatpush2.bf16.msra.mxu0 0
      %757 = vmatprep.subr.bf16.mxu0 0
      %758 = vmatpush2.bf16.msra.mxu0 0
      %759 = vmatprep.subr.bf16.mxu0 0
      %760 = vmatpush2.bf16.msra.mxu0 0
      %761 = vmatprep.subr.bf16.mxu0 0
      %762 = vmatpush2.bf16.msra.mxu0 0
      %763 = vmatprep.subr.bf16.mxu0 0
      %764 = vmatpush2.bf16.msra.mxu0 0
      %765 = vmatprep.subr.bf16.mxu0 0
      %766 = vmatpush2.bf16.msra.mxu0 0
      %767 = vmatprep.mubr.bf16.mxu0 0
      %768 = vmatmul.mubr.bf16.gmra.mxu0 %v685
      %v769 = vpop.f32.mrf.mxu0
      %v770 = vadd.f32 0.0, %v769
      %v771 = vpop.f32.mrf.mxu0
      %v772 = vpop.f32.mrf.mxu0
      %v773 = vpop.f32.mrf.mxu0
      %774 = vdwg.mxu0
      %v775 = vadd.f32 %v663, %v770
      %s776 = scalar_lea.vmem %s4, 192
      %v777 = vld [vmem:[%s776] sm:$0xf]
      %v778 = vld [vmem:[%s776 + $0x4] sm:$0xf]
      %v779 = vld [vmem:[%s776 + $0x8] sm:$0xf]
      %v780 = vld [vmem:[%s776 + $0xc] sm:$0xf]
      %v781 = vld [vmem:[%s776 + $0x10] sm:$0xf]
      %v782 = vld [vmem:[%s776 + $0x14] sm:$0xf]
      %v783 = vld [vmem:[%s776 + $0x18] sm:$0xf]
      %v784 = vld [vmem:[%s776 + $0x1c] sm:$0xf]
      %v785 = vld [vmem:[%s776 + $0x20] sm:$0xf]
      %v786 = vld [vmem:[%s776 + $0x24] sm:$0xf]
      %v787 = vld [vmem:[%s776 + $0x28] sm:$0xf]
      %v788 = vld [vmem:[%s776 + $0x2c] sm:$0xf]
      %v789 = vld [vmem:[%s776 + $0x30] sm:$0xf]
      %v790 = vld [vmem:[%s776 + $0x34] sm:$0xf]
      %v791 = vld [vmem:[%s776 + $0x38] sm:$0xf]
      %v792 = vld [vmem:[%s776 + $0x3c] sm:$0xf]
      %v809 = vunpack.c.l.b16 %v777
      %v810 = vunpack.c.l.b16 %v778
      %v811 = vunpack.c.l.b16 %v779
      %v812 = vunpack.c.l.b16 %v780
      %v813 = vunpack.c.l.b16 %v781
      %v814 = vunpack.c.l.b16 %v782
      %v815 = vunpack.c.l.b16 %v783
      %v816 = vunpack.c.l.b16 %v784
      %v817 = vunpack.c.l.b16 %v785
      %v818 = vunpack.c.l.b16 %v786
      %v819 = vunpack.c.l.b16 %v787
      %v820 = vunpack.c.l.b16 %v788
      %v821 = vunpack.c.l.b16 %v789
      %v822 = vunpack.c.l.b16 %v790
      %v823 = vunpack.c.l.b16 %v791
      %v824 = vunpack.c.l.b16 %v792
      %v825 = vpack.c.b16 %v810, %v809
      %v826 = vpack.c.b16 %v812, %v811
      %v827 = vpack.c.b16 %v814, %v813
      %v828 = vpack.c.b16 %v816, %v815
      %v829 = vpack.c.b16 %v818, %v817
      %v830 = vpack.c.b16 %v820, %v819
      %v831 = vpack.c.b16 %v822, %v821
      %v832 = vpack.c.b16 %v824, %v823
      %841 = vmatprep.subr.bf16.mxu0 0
      %842 = vmatpush1.bf16.msra.mxu0 %v832
      %843 = vmatprep.subr.bf16.mxu0 0
      %844 = vmatpush1.bf16.msra.mxu0 %v831
      %845 = vmatprep.subr.bf16.mxu0 0
      %846 = vmatpush1.bf16.msra.mxu0 %v830
      %847 = vmatprep.subr.bf16.mxu0 0
      %848 = vmatpush1.bf16.msra.mxu0 %v829
      %849 = vmatprep.subr.bf16.mxu0 0
      %850 = vmatpush1.bf16.msra.mxu0 %v828
      %851 = vmatprep.subr.bf16.mxu0 0
      %852 = vmatpush1.bf16.msra.mxu0 %v827
      %853 = vmatprep.subr.bf16.mxu0 0
      %854 = vmatpush1.bf16.msra.mxu0 %v826
      %855 = vmatprep.subr.bf16.mxu0 0
      %856 = vmatpush1.bf16.msra.mxu0 %v825
      %857 = vmatprep.subr.bf16.mxu0 0
      %858 = vmatpush2.bf16.msra.mxu0 0
      %859 = vmatprep.subr.bf16.mxu0 0
      %860 = vmatpush2.bf16.msra.mxu0 0
      %861 = vmatprep.subr.bf16.mxu0 0
      %862 = vmatpush2.bf16.msra.mxu0 0
      %863 = vmatprep.subr.bf16.mxu0 0
      %864 = vmatpush2.bf16.msra.mxu0 0
      %865 = vmatprep.subr.bf16.mxu0 0
      %866 = vmatpush2.bf16.msra.mxu0 0
      %867 = vmatprep.subr.bf16.mxu0 0
      %868 = vmatpush2.bf16.msra.mxu0 0
      %869 = vmatprep.subr.bf16.mxu0 0
      %870 = vmatpush2.bf16.msra.mxu0 0
      %871 = vmatprep.subr.bf16.mxu0 0
      %872 = vmatpush2.bf16.msra.mxu0 0
      %873 = vmatprep.mubr.bf16.mxu0 0
      %874 = vmatmul.mubr.bf16.gmra.mxu0 %v440
      %v875 = vpop.f32.mrf.mxu0
      %v876 = vadd.f32 0.0, %v875
      %v877 = vpop.f32.mrf.mxu0
      %v878 = vpop.f32.mrf.mxu0
      %v879 = vpop.f32.mrf.mxu0
      %880 = vdwg.mxu0
      %v881 = vadd.f32 %v775, %v876
      %s882 = scalar_lea.vmem %s4, 256
      %v883 = vld [vmem:[%s882] sm:$0xf]
      %v884 = vld [vmem:[%s882 + $0x4] sm:$0xf]
      %v885 = vld [vmem:[%s882 + $0x8] sm:$0xf]
      %v886 = vld [vmem:[%s882 + $0xc] sm:$0xf]
      %v887 = vld [vmem:[%s882 + $0x10] sm:$0xf]
      %v888 = vld [vmem:[%s882 + $0x14] sm:$0xf]
      %v889 = vld [vmem:[%s882 + $0x18] sm:$0xf]
      %v890 = vld [vmem:[%s882 + $0x1c] sm:$0xf]
      %v891 = vld [vmem:[%s882 + $0x20] sm:$0xf]
      %v892 = vld [vmem:[%s882 + $0x24] sm:$0xf]
      %v893 = vld [vmem:[%s882 + $0x28] sm:$0xf]
      %v894 = vld [vmem:[%s882 + $0x2c] sm:$0xf]
      %v895 = vld [vmem:[%s882 + $0x30] sm:$0xf]
      %v896 = vld [vmem:[%s882 + $0x34] sm:$0xf]
      %v897 = vld [vmem:[%s882 + $0x38] sm:$0xf]
      %v898 = vld [vmem:[%s882 + $0x3c] sm:$0xf]
      %v901 = vunpack.c.l.b16 %v440
      %v902 = vunpack.c.l.b16 %v441
      %v903 = vpack.c.b16 %v902, %v901
      %v905 = vshrl.u32 %v903, 16
      %v907 = vshll.u32 %v903, 16
      %v909 = vrot.slane %v907, 1
      %v910 = vor.u32 %v905, %v909
      %v928 = vunpack.c.l.b16 %v883
      %v929 = vunpack.c.l.b16 %v884
      %v930 = vunpack.c.l.b16 %v885
      %v931 = vunpack.c.l.b16 %v886
      %v932 = vunpack.c.l.b16 %v887
      %v933 = vunpack.c.l.b16 %v888
      %v934 = vunpack.c.l.b16 %v889
      %v935 = vunpack.c.l.b16 %v890
      %v936 = vunpack.c.l.b16 %v891
      %v937 = vunpack.c.l.b16 %v892
      %v938 = vunpack.c.l.b16 %v893
      %v939 = vunpack.c.l.b16 %v894
      %v940 = vunpack.c.l.b16 %v895
      %v941 = vunpack.c.l.b16 %v896
      %v942 = vunpack.c.l.b16 %v897
      %v943 = vunpack.c.l.b16 %v898
      %v944 = vpack.c.b16 %v929, %v928
      %v945 = vpack.c.b16 %v931, %v930
      %v946 = vpack.c.b16 %v933, %v932
      %v947 = vpack.c.b16 %v935, %v934
      %v948 = vpack.c.b16 %v937, %v936
      %v949 = vpack.c.b16 %v939, %v938
      %v950 = vpack.c.b16 %v941, %v940
      %v951 = vpack.c.b16 %v943, %v942
      %960 = vmatprep.subr.bf16.mxu0 0
      %961 = vmatpush1.bf16.msra.mxu0 %v951
      %962 = vmatprep.subr.bf16.mxu0 0
      %963 = vmatpush1.bf16.msra.mxu0 %v950
      %964 = vmatprep.subr.bf16.mxu0 0
      %965 = vmatpush1.bf16.msra.mxu0 %v949
      %966 = vmatprep.subr.bf16.mxu0 0
      %967 = vmatpush1.bf16.msra.mxu0 %v948
      %968 = vmatprep.subr.bf16.mxu0 0
      %969 = vmatpush1.bf16.msra.mxu0 %v947
      %970 = vmatprep.subr.bf16.mxu0 0
      %971 = vmatpush1.bf16.msra.mxu0 %v946
      %972 = vmatprep.subr.bf16.mxu0 0
      %973 = vmatpush1.bf16.msra.mxu0 %v945
      %974 = vmatprep.subr.bf16.mxu0 0
      %975 = vmatpush1.bf16.msra.mxu0 %v944
      %976 = vmatprep.subr.bf16.mxu0 0
      %977 = vmatpush2.bf16.msra.mxu0 0
      %978 = vmatprep.subr.bf16.mxu0 0
      %979 = vmatpush2.bf16.msra.mxu0 0
      %980 = vmatprep.subr.bf16.mxu0 0
      %981 = vmatpush2.bf16.msra.mxu0 0
      %982 = vmatprep.subr.bf16.mxu0 0
      %983 = vmatpush2.bf16.msra.mxu0 0
      %984 = vmatprep.subr.bf16.mxu0 0
      %985 = vmatpush2.bf16.msra.mxu0 0
      %986 = vmatprep.subr.bf16.mxu0 0
      %987 = vmatpush2.bf16.msra.mxu0 0
      %988 = vmatprep.subr.bf16.mxu0 0
      %989 = vmatpush2.bf16.msra.mxu0 0
      %990 = vmatprep.subr.bf16.mxu0 0
      %991 = vmatpush2.bf16.msra.mxu0 0
      %992 = vmatprep.mubr.bf16.mxu0 0
      %993 = vmatmul.mubr.bf16.gmra.mxu0 %v910
      %v994 = vpop.f32.mrf.mxu0
      %v995 = vadd.f32 0.0, %v994
      %v996 = vpop.f32.mrf.mxu0
      %v997 = vpop.f32.mrf.mxu0
      %v998 = vpop.f32.mrf.mxu0
      %999 = vdwg.mxu0
      %v1000 = vadd.f32 %v881, %v995
      %s1001 = scalar_lea.vmem %s4, 320
      %v1002 = vld [vmem:[%s1001] sm:$0xf]
      %v1003 = vld [vmem:[%s1001 + $0x4] sm:$0xf]
      %v1004 = vld [vmem:[%s1001 + $0x8] sm:$0xf]
      %v1005 = vld [vmem:[%s1001 + $0xc] sm:$0xf]
      %v1006 = vld [vmem:[%s1001 + $0x10] sm:$0xf]
      %v1007 = vld [vmem:[%s1001 + $0x14] sm:$0xf]
      %v1008 = vld [vmem:[%s1001 + $0x18] sm:$0xf]
      %v1009 = vld [vmem:[%s1001 + $0x1c] sm:$0xf]
      %v1010 = vld [vmem:[%s1001 + $0x20] sm:$0xf]
      %v1011 = vld [vmem:[%s1001 + $0x24] sm:$0xf]
      %v1012 = vld [vmem:[%s1001 + $0x28] sm:$0xf]
      %v1013 = vld [vmem:[%s1001 + $0x2c] sm:$0xf]
      %v1014 = vld [vmem:[%s1001 + $0x30] sm:$0xf]
      %v1015 = vld [vmem:[%s1001 + $0x34] sm:$0xf]
      %v1016 = vld [vmem:[%s1001 + $0x38] sm:$0xf]
      %v1017 = vld [vmem:[%s1001 + $0x3c] sm:$0xf]
      %v1018 = vrot.slane %v903, 1
      %v1036 = vunpack.c.l.b16 %v1002
      %v1037 = vunpack.c.l.b16 %v1003
      %v1038 = vunpack.c.l.b16 %v1004
      %v1039 = vunpack.c.l.b16 %v1005
      %v1040 = vunpack.c.l.b16 %v1006
      %v1041 = vunpack.c.l.b16 %v1007
      %v1042 = vunpack.c.l.b16 %v1008
      %v1043 = vunpack.c.l.b16 %v1009
      %v1044 = vunpack.c.l.b16 %v1010
      %v1045 = vunpack.c.l.b16 %v1011
      %v1046 = vunpack.c.l.b16 %v1012
      %v1047 = vunpack.c.l.b16 %v1013
      %v1048 = vunpack.c.l.b16 %v1014
      %v1049 = vunpack.c.l.b16 %v1015
      %v1050 = vunpack.c.l.b16 %v1016
      %v1051 = vunpack.c.l.b16 %v1017
      %v1052 = vpack.c.b16 %v1037, %v1036
      %v1053 = vpack.c.b16 %v1039, %v1038
      %v1054 = vpack.c.b16 %v1041, %v1040
      %v1055 = vpack.c.b16 %v1043, %v1042
      %v1056 = vpack.c.b16 %v1045, %v1044
      %v1057 = vpack.c.b16 %v1047, %v1046
      %v1058 = vpack.c.b16 %v1049, %v1048
      %v1059 = vpack.c.b16 %v1051, %v1050
      %1068 = vmatprep.subr.bf16.mxu0 0
      %1069 = vmatpush1.bf16.msra.mxu0 %v1059
      %1070 = vmatprep.subr.bf16.mxu0 0
      %1071 = vmatpush1.bf16.msra.mxu0 %v1058
      %1072 = vmatprep.subr.bf16.mxu0 0
      %1073 = vmatpush1.bf16.msra.mxu0 %v1057
      %1074 = vmatprep.subr.bf16.mxu0 0
      %1075 = vmatpush1.bf16.msra.mxu0 %v1056
      %1076 = vmatprep.subr.bf16.mxu0 0
      %1077 = vmatpush1.bf16.msra.mxu0 %v1055
      %1078 = vmatprep.subr.bf16.mxu0 0
      %1079 = vmatpush1.bf16.msra.mxu0 %v1054
      %1080 = vmatprep.subr.bf16.mxu0 0
      %1081 = vmatpush1.bf16.msra.mxu0 %v1053
      %1082 = vmatprep.subr.bf16.mxu0 0
      %1083 = vmatpush1.bf16.msra.mxu0 %v1052
      %1084 = vmatprep.subr.bf16.mxu0 0
      %1085 = vmatpush2.bf16.msra.mxu0 0
      %1086 = vmatprep.subr.bf16.mxu0 0
      %1087 = vmatpush2.bf16.msra.mxu0 0
      %1088 = vmatprep.subr.bf16.mxu0 0
      %1089 = vmatpush2.bf16.msra.mxu0 0
      %1090 = vmatprep.subr.bf16.mxu0 0
      %1091 = vmatpush2.bf16.msra.mxu0 0
      %1092 = vmatprep.subr.bf16.mxu0 0
      %1093 = vmatpush2.bf16.msra.mxu0 0
      %1094 = vmatprep.subr.bf16.mxu0 0
      %1095 = vmatpush2.bf16.msra.mxu0 0
      %1096 = vmatprep.subr.bf16.mxu0 0
      %1097 = vmatpush2.bf16.msra.mxu0 0
      %1098 = vmatprep.subr.bf16.mxu0 0
      %1099 = vmatpush2.bf16.msra.mxu0 0
      %1100 = vmatprep.mubr.bf16.mxu0 0
      %1101 = vmatmul.mubr.bf16.gmra.mxu0 %v1018
      %v1102 = vpop.f32.mrf.mxu0
      %v1103 = vadd.f32 0.0, %v1102
      %v1104 = vpop.f32.mrf.mxu0
      %v1105 = vpop.f32.mrf.mxu0
      %v1106 = vpop.f32.mrf.mxu0
      %1107 = vdwg.mxu0
      %v1108 = vadd.f32 %v1000, %v1103
      %s1109 = scalar_lea.vmem %s4, 384
      %v1110 = vld [vmem:[%s1109] sm:$0xf]
      %v1111 = vld [vmem:[%s1109 + $0x4] sm:$0xf]
      %v1112 = vld [vmem:[%s1109 + $0x8] sm:$0xf]
      %v1113 = vld [vmem:[%s1109 + $0xc] sm:$0xf]
      %v1114 = vld [vmem:[%s1109 + $0x10] sm:$0xf]
      %v1115 = vld [vmem:[%s1109 + $0x14] sm:$0xf]
      %v1116 = vld [vmem:[%s1109 + $0x18] sm:$0xf]
      %v1117 = vld [vmem:[%s1109 + $0x1c] sm:$0xf]
      %v1118 = vld [vmem:[%s1109 + $0x20] sm:$0xf]
      %v1119 = vld [vmem:[%s1109 + $0x24] sm:$0xf]
      %v1120 = vld [vmem:[%s1109 + $0x28] sm:$0xf]
      %v1121 = vld [vmem:[%s1109 + $0x2c] sm:$0xf]
      %v1122 = vld [vmem:[%s1109 + $0x30] sm:$0xf]
      %v1123 = vld [vmem:[%s1109 + $0x34] sm:$0xf]
      %v1124 = vld [vmem:[%s1109 + $0x38] sm:$0xf]
      %v1125 = vld [vmem:[%s1109 + $0x3c] sm:$0xf]
      %v1142 = vunpack.c.l.b16 %v1110
      %v1143 = vunpack.c.l.b16 %v1111
      %v1144 = vunpack.c.l.b16 %v1112
      %v1145 = vunpack.c.l.b16 %v1113
      %v1146 = vunpack.c.l.b16 %v1114
      %v1147 = vunpack.c.l.b16 %v1115
      %v1148 = vunpack.c.l.b16 %v1116
      %v1149 = vunpack.c.l.b16 %v1117
      %v1150 = vunpack.c.l.b16 %v1118
      %v1151 = vunpack.c.l.b16 %v1119
      %v1152 = vunpack.c.l.b16 %v1120
      %v1153 = vunpack.c.l.b16 %v1121
      %v1154 = vunpack.c.l.b16 %v1122
      %v1155 = vunpack.c.l.b16 %v1123
      %v1156 = vunpack.c.l.b16 %v1124
      %v1157 = vunpack.c.l.b16 %v1125
      %v1158 = vpack.c.b16 %v1143, %v1142
      %v1159 = vpack.c.b16 %v1145, %v1144
      %v1160 = vpack.c.b16 %v1147, %v1146
      %v1161 = vpack.c.b16 %v1149, %v1148
      %v1162 = vpack.c.b16 %v1151, %v1150
      %v1163 = vpack.c.b16 %v1153, %v1152
      %v1164 = vpack.c.b16 %v1155, %v1154
      %v1165 = vpack.c.b16 %v1157, %v1156
      %1174 = vmatprep.subr.bf16.mxu0 0
      %1175 = vmatpush1.bf16.msra.mxu0 %v1165
      %1176 = vmatprep.subr.bf16.mxu0 0
      %1177 = vmatpush1.bf16.msra.mxu0 %v1164
      %1178 = vmatprep.subr.bf16.mxu0 0
      %1179 = vmatpush1.bf16.msra.mxu0 %v1163
      %1180 = vmatprep.subr.bf16.mxu0 0
      %1181 = vmatpush1.bf16.msra.mxu0 %v1162
      %1182 = vmatprep.subr.bf16.mxu0 0
      %1183 = vmatpush1.bf16.msra.mxu0 %v1161
      %1184 = vmatprep.subr.bf16.mxu0 0
      %1185 = vmatpush1.bf16.msra.mxu0 %v1160
      %1186 = vmatprep.subr.bf16.mxu0 0
      %1187 = vmatpush1.bf16.msra.mxu0 %v1159
      %1188 = vmatprep.subr.bf16.mxu0 0
      %1189 = vmatpush1.bf16.msra.mxu0 %v1158
      %1190 = vmatprep.subr.bf16.mxu0 0
      %1191 = vmatpush2.bf16.msra.mxu0 0
      %1192 = vmatprep.subr.bf16.mxu0 0
      %1193 = vmatpush2.bf16.msra.mxu0 0
      %1194 = vmatprep.subr.bf16.mxu0 0
      %1195 = vmatpush2.bf16.msra.mxu0 0
      %1196 = vmatprep.subr.bf16.mxu0 0
      %1197 = vmatpush2.bf16.msra.mxu0 0
      %1198 = vmatprep.subr.bf16.mxu0 0
      %1199 = vmatpush2.bf16.msra.mxu0 0
      %1200 = vmatprep.subr.bf16.mxu0 0
      %1201 = vmatpush2.bf16.msra.mxu0 0
      %1202 = vmatprep.subr.bf16.mxu0 0
      %1203 = vmatpush2.bf16.msra.mxu0 0
      %1204 = vmatprep.subr.bf16.mxu0 0
      %1205 = vmatpush2.bf16.msra.mxu0 0
      %1206 = vmatprep.mubr.bf16.mxu0 0
      %1207 = vmatmul.mubr.bf16.gmra.mxu0 %v442
      %v1208 = vpop.f32.mrf.mxu0
      %v1209 = vadd.f32 0.0, %v1208
      %v1210 = vpop.f32.mrf.mxu0
      %v1211 = vpop.f32.mrf.mxu0
      %v1212 = vpop.f32.mrf.mxu0
      %1213 = vdwg.mxu0
      %v1214 = vadd.f32 %v1108, %v1209
      %s1215 = scalar_lea.vmem %s4, 448
      %v1216 = vld [vmem:[%s1215] sm:$0xf]
      %v1217 = vld [vmem:[%s1215 + $0x4] sm:$0xf]
      %v1218 = vld [vmem:[%s1215 + $0x8] sm:$0xf]
      %v1219 = vld [vmem:[%s1215 + $0xc] sm:$0xf]
      %v1220 = vld [vmem:[%s1215 + $0x10] sm:$0xf]
      %v1221 = vld [vmem:[%s1215 + $0x14] sm:$0xf]
      %v1222 = vld [vmem:[%s1215 + $0x18] sm:$0xf]
      %v1223 = vld [vmem:[%s1215 + $0x1c] sm:$0xf]
      %v1224 = vld [vmem:[%s1215 + $0x20] sm:$0xf]
      %v1225 = vld [vmem:[%s1215 + $0x24] sm:$0xf]
      %v1226 = vld [vmem:[%s1215 + $0x28] sm:$0xf]
      %v1227 = vld [vmem:[%s1215 + $0x2c] sm:$0xf]
      %v1228 = vld [vmem:[%s1215 + $0x30] sm:$0xf]
      %v1229 = vld [vmem:[%s1215 + $0x34] sm:$0xf]
      %v1230 = vld [vmem:[%s1215 + $0x38] sm:$0xf]
      %v1231 = vld [vmem:[%s1215 + $0x3c] sm:$0xf]
      %v1234 = vunpack.c.l.b16 %v442
      %v1235 = vunpack.c.l.b16 %v443
      %v1236 = vpack.c.b16 %v1235, %v1234
      %v1238 = vshrl.u32 %v1236, 16
      %v1240 = vshll.u32 %v1236, 16
      %v1242 = vrot.slane %v1240, 1
      %v1243 = vor.u32 %v1238, %v1242
      %v1261 = vunpack.c.l.b16 %v1216
      %v1262 = vunpack.c.l.b16 %v1217
      %v1263 = vunpack.c.l.b16 %v1218
      %v1264 = vunpack.c.l.b16 %v1219
      %v1265 = vunpack.c.l.b16 %v1220
      %v1266 = vunpack.c.l.b16 %v1221
      %v1267 = vunpack.c.l.b16 %v1222
      %v1268 = vunpack.c.l.b16 %v1223
      %v1269 = vunpack.c.l.b16 %v1224
      %v1270 = vunpack.c.l.b16 %v1225
      %v1271 = vunpack.c.l.b16 %v1226
      %v1272 = vunpack.c.l.b16 %v1227
      %v1273 = vunpack.c.l.b16 %v1228
      %v1274 = vunpack.c.l.b16 %v1229
      %v1275 = vunpack.c.l.b16 %v1230
      %v1276 = vunpack.c.l.b16 %v1231
      %v1277 = vpack.c.b16 %v1262, %v1261
      %v1278 = vpack.c.b16 %v1264, %v1263
      %v1279 = vpack.c.b16 %v1266, %v1265
      %v1280 = vpack.c.b16 %v1268, %v1267
      %v1281 = vpack.c.b16 %v1270, %v1269
      %v1282 = vpack.c.b16 %v1272, %v1271
      %v1283 = vpack.c.b16 %v1274, %v1273
      %v1284 = vpack.c.b16 %v1276, %v1275
      %1293 = vmatprep.subr.bf16.mxu0 0
      %1294 = vmatpush1.bf16.msra.mxu0 %v1284
      %1295 = vmatprep.subr.bf16.mxu0 0
      %1296 = vmatpush1.bf16.msra.mxu0 %v1283
      %1297 = vmatprep.subr.bf16.mxu0 0
      %1298 = vmatpush1.bf16.msra.mxu0 %v1282
      %1299 = vmatprep.subr.bf16.mxu0 0
      %1300 = vmatpush1.bf16.msra.mxu0 %v1281
      %1301 = vmatprep.subr.bf16.mxu0 0
      %1302 = vmatpush1.bf16.msra.mxu0 %v1280
      %1303 = vmatprep.subr.bf16.mxu0 0
      %1304 = vmatpush1.bf16.msra.mxu0 %v1279
      %1305 = vmatprep.subr.bf16.mxu0 0
      %1306 = vmatpush1.bf16.msra.mxu0 %v1278
      %1307 = vmatprep.subr.bf16.mxu0 0
      %1308 = vmatpush1.bf16.msra.mxu0 %v1277
      %1309 = vmatprep.subr.bf16.mxu0 0
      %1310 = vmatpush2.bf16.msra.mxu0 0
      %1311 = vmatprep.subr.bf16.mxu0 0
      %1312 = vmatpush2.bf16.msra.mxu0 0
      %1313 = vmatprep.subr.bf16.mxu0 0
      %1314 = vmatpush2.bf16.msra.mxu0 0
      %1315 = vmatprep.subr.bf16.mxu0 0
      %1316 = vmatpush2.bf16.msra.mxu0 0
      %1317 = vmatprep.subr.bf16.mxu0 0
      %1318 = vmatpush2.bf16.msra.mxu0 0
      %1319 = vmatprep.subr.bf16.mxu0 0
      %1320 = vmatpush2.bf16.msra.mxu0 0
      %1321 = vmatprep.subr.bf16.mxu0 0
      %1322 = vmatpush2.bf16.msra.mxu0 0
      %1323 = vmatprep.subr.bf16.mxu0 0
      %1324 = vmatpush2.bf16.msra.mxu0 0
      %1325 = vmatprep.mubr.bf16.mxu0 0
      %1326 = vmatmul.mubr.bf16.gmra.mxu0 %v1243
      %v1327 = vpop.f32.mrf.mxu0
      %v1328 = vadd.f32 0.0, %v1327
      %v1329 = vpop.f32.mrf.mxu0
      %v1330 = vpop.f32.mrf.mxu0
      %v1331 = vpop.f32.mrf.mxu0
      %1332 = vdwg.mxu0
      %v1333 = vadd.f32 %v1214, %v1328
      %s1334 = scalar_lea.vmem %s4, 512
      %v1335 = vld [vmem:[%s1334] sm:$0xf]
      %v1336 = vld [vmem:[%s1334 + $0x4] sm:$0xf]
      %v1337 = vld [vmem:[%s1334 + $0x8] sm:$0xf]
      %v1338 = vld [vmem:[%s1334 + $0xc] sm:$0xf]
      %v1339 = vld [vmem:[%s1334 + $0x10] sm:$0xf]
      %v1340 = vld [vmem:[%s1334 + $0x14] sm:$0xf]
      %v1341 = vld [vmem:[%s1334 + $0x18] sm:$0xf]
      %v1342 = vld [vmem:[%s1334 + $0x1c] sm:$0xf]
      %v1343 = vld [vmem:[%s1334 + $0x20] sm:$0xf]
      %v1344 = vld [vmem:[%s1334 + $0x24] sm:$0xf]
      %v1345 = vld [vmem:[%s1334 + $0x28] sm:$0xf]
      %v1346 = vld [vmem:[%s1334 + $0x2c] sm:$0xf]
      %v1347 = vld [vmem:[%s1334 + $0x30] sm:$0xf]
      %v1348 = vld [vmem:[%s1334 + $0x34] sm:$0xf]
      %v1349 = vld [vmem:[%s1334 + $0x38] sm:$0xf]
      %v1350 = vld [vmem:[%s1334 + $0x3c] sm:$0xf]
      %v1351 = vrot.slane %v1236, 1
      %v1369 = vunpack.c.l.b16 %v1335
      %v1370 = vunpack.c.l.b16 %v1336
      %v1371 = vunpack.c.l.b16 %v1337
      %v1372 = vunpack.c.l.b16 %v1338
      %v1373 = vunpack.c.l.b16 %v1339
      %v1374 = vunpack.c.l.b16 %v1340
      %v1375 = vunpack.c.l.b16 %v1341
      %v1376 = vunpack.c.l.b16 %v1342
      %v1377 = vunpack.c.l.b16 %v1343
      %v1378 = vunpack.c.l.b16 %v1344
      %v1379 = vunpack.c.l.b16 %v1345
      %v1380 = vunpack.c.l.b16 %v1346
      %v1381 = vunpack.c.l.b16 %v1347
      %v1382 = vunpack.c.l.b16 %v1348
      %v1383 = vunpack.c.l.b16 %v1349
      %v1384 = vunpack.c.l.b16 %v1350
      %v1385 = vpack.c.b16 %v1370, %v1369
      %v1386 = vpack.c.b16 %v1372, %v1371
      %v1387 = vpack.c.b16 %v1374, %v1373
      %v1388 = vpack.c.b16 %v1376, %v1375
      %v1389 = vpack.c.b16 %v1378, %v1377
      %v1390 = vpack.c.b16 %v1380, %v1379
      %v1391 = vpack.c.b16 %v1382, %v1381
      %v1392 = vpack.c.b16 %v1384, %v1383
      %1401 = vmatprep.subr.bf16.mxu0 0
      %1402 = vmatpush1.bf16.msra.mxu0 %v1392
      %1403 = vmatprep.subr.bf16.mxu0 0
      %1404 = vmatpush1.bf16.msra.mxu0 %v1391
      %1405 = vmatprep.subr.bf16.mxu0 0
      %1406 = vmatpush1.bf16.msra.mxu0 %v1390
      %1407 = vmatprep.subr.bf16.mxu0 0
      %1408 = vmatpush1.bf16.msra.mxu0 %v1389
      %1409 = vmatprep.subr.bf16.mxu0 0
      %1410 = vmatpush1.bf16.msra.mxu0 %v1388
      %1411 = vmatprep.subr.bf16.mxu0 0
      %1412 = vmatpush1.bf16.msra.mxu0 %v1387
      %1413 = vmatprep.subr.bf16.mxu0 0
      %1414 = vmatpush1.bf16.msra.mxu0 %v1386
      %1415 = vmatprep.subr.bf16.mxu0 0
      %1416 = vmatpush1.bf16.msra.mxu0 %v1385
      %1417 = vmatprep.subr.bf16.mxu0 0
      %1418 = vmatpush2.bf16.msra.mxu0 0
      %1419 = vmatprep.subr.bf16.mxu0 0
      %1420 = vmatpush2.bf16.msra.mxu0 0
      %1421 = vmatprep.subr.bf16.mxu0 0
      %1422 = vmatpush2.bf16.msra.mxu0 0
      %1423 = vmatprep.subr.bf16.mxu0 0
      %1424 = vmatpush2.bf16.msra.mxu0 0
      %1425 = vmatprep.subr.bf16.mxu0 0
      %1426 = vmatpush2.bf16.msra.mxu0 0
      %1427 = vmatprep.subr.bf16.mxu0 0
      %1428 = vmatpush2.bf16.msra.mxu0 0
      %1429 = vmatprep.subr.bf16.mxu0 0
      %1430 = vmatpush2.bf16.msra.mxu0 0
      %1431 = vmatprep.subr.bf16.mxu0 0
      %1432 = vmatpush2.bf16.msra.mxu0 0
      %1433 = vmatprep.mubr.bf16.mxu0 0
      %1434 = vmatmul.mubr.bf16.gmra.mxu0 %v1351
      %v1435 = vpop.f32.mrf.mxu0
      %v1436 = vadd.f32 0.0, %v1435
      %v1437 = vpop.f32.mrf.mxu0
      %v1438 = vpop.f32.mrf.mxu0
      %v1439 = vpop.f32.mrf.mxu0
      %1440 = vdwg.mxu0
      %v1441 = vadd.f32 %v1333, %v1436
      %v1442 = vld [vmem:[%s5] sm:$0x1]
      %v1444 = vlaneseq
      %v1445 = vshrl.u32 %v1444, 7
      %v1446 = vsub.s32 0, %v1445
      %v1447 = vrot.slane %v1442, %v1446
      %v1449 = vadd.f32 %v1441, %v1447
      %1450 = vmatprep.subr.bf16.mxu0 0
      %1451 = vmatpush1.bf16.msra.mxu0 %v531
      %1452 = vmatprep.subr.bf16.mxu0 0
      %1453 = vmatpush1.bf16.msra.mxu0 %v530
      %1454 = vmatprep.subr.bf16.mxu0 0
      %1455 = vmatpush1.bf16.msra.mxu0 %v529
      %1456 = vmatprep.subr.bf16.mxu0 0
      %1457 = vmatpush1.bf16.msra.mxu0 %v528
      %1458 = vmatprep.subr.bf16.mxu0 0
      %1459 = vmatpush1.bf16.msra.mxu0 %v527
      %1460 = vmatprep.subr.bf16.mxu0 0
      %1461 = vmatpush1.bf16.msra.mxu0 %v526
      %1462 = vmatprep.subr.bf16.mxu0 0
      %1463 = vmatpush1.bf16.msra.mxu0 %v525
      %1464 = vmatprep.subr.bf16.mxu0 0
      %1465 = vmatpush1.bf16.msra.mxu0 %v524
      %1466 = vmatprep.subr.bf16.mxu0 0
      %1467 = vmatpush2.bf16.msra.mxu0 0
      %1468 = vmatprep.subr.bf16.mxu0 0
      %1469 = vmatpush2.bf16.msra.mxu0 0
      %1470 = vmatprep.subr.bf16.mxu0 0
      %1471 = vmatpush2.bf16.msra.mxu0 0
      %1472 = vmatprep.subr.bf16.mxu0 0
      %1473 = vmatpush2.bf16.msra.mxu0 0
      %1474 = vmatprep.subr.bf16.mxu0 0
      %1475 = vmatpush2.bf16.msra.mxu0 0
      %1476 = vmatprep.subr.bf16.mxu0 0
      %1477 = vmatpush2.bf16.msra.mxu0 0
      %1478 = vmatprep.subr.bf16.mxu0 0
      %1479 = vmatpush2.bf16.msra.mxu0 0
      %1480 = vmatprep.subr.bf16.mxu0 0
      %1481 = vmatpush2.bf16.msra.mxu0 0
      %1482 = vmatprep.mubr.bf16.mxu0 0
      %1483 = vmatmul.mubr.bf16.gmra.mxu0 %v910
      %v1484 = vpop.f32.mrf.mxu0
      %v1485 = vadd.f32 0.0, %v1484
      %v1486 = vpop.f32.mrf.mxu0
      %v1487 = vpop.f32.mrf.mxu0
      %v1488 = vpop.f32.mrf.mxu0
      %1489 = vdwg.mxu0
      %1490 = vmatprep.subr.bf16.mxu0 0
      %1491 = vmatpush1.bf16.msra.mxu0 %v619
      %1492 = vmatprep.subr.bf16.mxu0 0
      %1493 = vmatpush1.bf16.msra.mxu0 %v618
      %1494 = vmatprep.subr.bf16.mxu0 0
      %1495 = vmatpush1.bf16.msra.mxu0 %v617
      %1496 = vmatprep.subr.bf16.mxu0 0
      %1497 = vmatpush1.bf16.msra.mxu0 %v616
      %1498 = vmatprep.subr.bf16.mxu0 0
      %1499 = vmatpush1.bf16.msra.mxu0 %v615
      %1500 = vmatprep.subr.bf16.mxu0 0
      %1501 = vmatpush1.bf16.msra.mxu0 %v614
      %1502 = vmatprep.subr.bf16.mxu0 0
      %1503 = vmatpush1.bf16.msra.mxu0 %v613
      %1504 = vmatprep.subr.bf16.mxu0 0
      %1505 = vmatpush1.bf16.msra.mxu0 %v612
      %1506 = vmatprep.subr.bf16.mxu0 0
      %1507 = vmatpush2.bf16.msra.mxu0 0
      %1508 = vmatprep.subr.bf16.mxu0 0
      %1509 = vmatpush2.bf16.msra.mxu0 0
      %1510 = vmatprep.subr.bf16.mxu0 0
      %1511 = vmatpush2.bf16.msra.mxu0 0
      %1512 = vmatprep.subr.bf16.mxu0 0
      %1513 = vmatpush2.bf16.msra.mxu0 0
      %1514 = vmatprep.subr.bf16.mxu0 0
      %1515 = vmatpush2.bf16.msra.mxu0 0
      %1516 = vmatprep.subr.bf16.mxu0 0
      %1517 = vmatpush2.bf16.msra.mxu0 0
      %1518 = vmatprep.subr.bf16.mxu0 0
      %1519 = vmatpush2.bf16.msra.mxu0 0
      %1520 = vmatprep.subr.bf16.mxu0 0
      %1521 = vmatpush2.bf16.msra.mxu0 0
      %1522 = vmatprep.mubr.bf16.mxu0 0
      %1523 = vmatmul.mubr.bf16.gmra.mxu0 %v440
      %v1524 = vpop.f32.mrf.mxu0
      %v1525 = vadd.f32 %v1485, %v1524
      %v1526 = vpop.f32.mrf.mxu0
      %v1527 = vpop.f32.mrf.mxu0
      %v1528 = vpop.f32.mrf.mxu0
      %1529 = vdwg.mxu0
      %1530 = vmatprep.subr.bf16.mxu0 0
      %1531 = vmatpush1.bf16.msra.mxu0 %v726
      %1532 = vmatprep.subr.bf16.mxu0 0
      %1533 = vmatpush1.bf16.msra.mxu0 %v725
      %1534 = vmatprep.subr.bf16.mxu0 0
      %1535 = vmatpush1.bf16.msra.mxu0 %v724
      %1536 = vmatprep.subr.bf16.mxu0 0
      %1537 = vmatpush1.bf16.msra.mxu0 %v723
      %1538 = vmatprep.subr.bf16.mxu0 0
      %1539 = vmatpush1.bf16.msra.mxu0 %v722
      %1540 = vmatprep.subr.bf16.mxu0 0
      %1541 = vmatpush1.bf16.msra.mxu0 %v721
      %1542 = vmatprep.subr.bf16.mxu0 0
      %1543 = vmatpush1.bf16.msra.mxu0 %v720
      %1544 = vmatprep.subr.bf16.mxu0 0
      %1545 = vmatpush1.bf16.msra.mxu0 %v719
      %1546 = vmatprep.subr.bf16.mxu0 0
      %1547 = vmatpush2.bf16.msra.mxu0 0
      %1548 = vmatprep.subr.bf16.mxu0 0
      %1549 = vmatpush2.bf16.msra.mxu0 0
      %1550 = vmatprep.subr.bf16.mxu0 0
      %1551 = vmatpush2.bf16.msra.mxu0 0
      %1552 = vmatprep.subr.bf16.mxu0 0
      %1553 = vmatpush2.bf16.msra.mxu0 0
      %1554 = vmatprep.subr.bf16.mxu0 0
      %1555 = vmatpush2.bf16.msra.mxu0 0
      %1556 = vmatprep.subr.bf16.mxu0 0
      %1557 = vmatpush2.bf16.msra.mxu0 0
      %1558 = vmatprep.subr.bf16.mxu0 0
      %1559 = vmatpush2.bf16.msra.mxu0 0
      %1560 = vmatprep.subr.bf16.mxu0 0
      %1561 = vmatpush2.bf16.msra.mxu0 0
      %1562 = vmatprep.mubr.bf16.mxu0 0
      %1563 = vmatmul.mubr.bf16.gmra.mxu0 %v1018
      %v1564 = vpop.f32.mrf.mxu0
      %v1565 = vadd.f32 0.0, %v1564
      %v1566 = vpop.f32.mrf.mxu0
      %v1567 = vpop.f32.mrf.mxu0
      %v1568 = vpop.f32.mrf.mxu0
      %1569 = vdwg.mxu0
      %v1570 = vadd.f32 %v1525, %v1565
      %1571 = vmatprep.subr.bf16.mxu0 0
      %1572 = vmatpush1.bf16.msra.mxu0 %v832
      %1573 = vmatprep.subr.bf16.mxu0 0
      %1574 = vmatpush1.bf16.msra.mxu0 %v831
      %1575 = vmatprep.subr.bf16.mxu0 0
      %1576 = vmatpush1.bf16.msra.mxu0 %v830
      %1577 = vmatprep.subr.bf16.mxu0 0
      %1578 = vmatpush1.bf16.msra.mxu0 %v829
      %1579 = vmatprep.subr.bf16.mxu0 0
      %1580 = vmatpush1.bf16.msra.mxu0 %v828
      %1581 = vmatprep.subr.bf16.mxu0 0
      %1582 = vmatpush1.bf16.msra.mxu0 %v827
      %1583 = vmatprep.subr.bf16.mxu0 0
      %1584 = vmatpush1.bf16.msra.mxu0 %v826
      %1585 = vmatprep.subr.bf16.mxu0 0
      %1586 = vmatpush1.bf16.msra.mxu0 %v825
      %1587 = vmatprep.subr.bf16.mxu0 0
      %1588 = vmatpush2.bf16.msra.mxu0 0
      %1589 = vmatprep.subr.bf16.mxu0 0
      %1590 = vmatpush2.bf16.msra.mxu0 0
      %1591 = vmatprep.subr.bf16.mxu0 0
      %1592 = vmatpush2.bf16.msra.mxu0 0
      %1593 = vmatprep.subr.bf16.mxu0 0
      %1594 = vmatpush2.bf16.msra.mxu0 0
      %1595 = vmatprep.subr.bf16.mxu0 0
      %1596 = vmatpush2.bf16.msra.mxu0 0
      %1597 = vmatprep.subr.bf16.mxu0 0
      %1598 = vmatpush2.bf16.msra.mxu0 0
      %1599 = vmatprep.subr.bf16.mxu0 0
      %1600 = vmatpush2.bf16.msra.mxu0 0
      %1601 = vmatprep.subr.bf16.mxu0 0
      %1602 = vmatpush2.bf16.msra.mxu0 0
      %1603 = vmatprep.mubr.bf16.mxu0 0
      %1604 = vmatmul.mubr.bf16.gmra.mxu0 %v442
      %v1605 = vpop.f32.mrf.mxu0
      %v1606 = vadd.f32 0.0, %v1605
      %v1607 = vpop.f32.mrf.mxu0
      %v1608 = vpop.f32.mrf.mxu0
      %v1609 = vpop.f32.mrf.mxu0
      %1610 = vdwg.mxu0
      %v1611 = vadd.f32 %v1570, %v1606
      %1612 = vmatprep.subr.bf16.mxu0 0
      %1613 = vmatpush1.bf16.msra.mxu0 %v951
      %1614 = vmatprep.subr.bf16.mxu0 0
      %1615 = vmatpush1.bf16.msra.mxu0 %v950
      %1616 = vmatprep.subr.bf16.mxu0 0
      %1617 = vmatpush1.bf16.msra.mxu0 %v949
      %1618 = vmatprep.subr.bf16.mxu0 0
      %1619 = vmatpush1.bf16.msra.mxu0 %v948
      %1620 = vmatprep.subr.bf16.mxu0 0
      %1621 = vmatpush1.bf16.msra.mxu0 %v947
      %1622 = vmatprep.subr.bf16.mxu0 0
      %1623 = vmatpush1.bf16.msra.mxu0 %v946
      %1624 = vmatprep.subr.bf16.mxu0 0
      %1625 = vmatpush1.bf16.msra.mxu0 %v945
      %1626 = vmatprep.subr.bf16.mxu0 0
      %1627 = vmatpush1.bf16.msra.mxu0 %v944
      %1628 = vmatprep.subr.bf16.mxu0 0
      %1629 = vmatpush2.bf16.msra.mxu0 0
      %1630 = vmatprep.subr.bf16.mxu0 0
      %1631 = vmatpush2.bf16.msra.mxu0 0
      %1632 = vmatprep.subr.bf16.mxu0 0
      %1633 = vmatpush2.bf16.msra.mxu0 0
      %1634 = vmatprep.subr.bf16.mxu0 0
      %1635 = vmatpush2.bf16.msra.mxu0 0
      %1636 = vmatprep.subr.bf16.mxu0 0
      %1637 = vmatpush2.bf16.msra.mxu0 0
      %1638 = vmatprep.subr.bf16.mxu0 0
      %1639 = vmatpush2.bf16.msra.mxu0 0
      %1640 = vmatprep.subr.bf16.mxu0 0
      %1641 = vmatpush2.bf16.msra.mxu0 0
      %1642 = vmatprep.subr.bf16.mxu0 0
      %1643 = vmatpush2.bf16.msra.mxu0 0
      %1644 = vmatprep.mubr.bf16.mxu0 0
      %1645 = vmatmul.mubr.bf16.gmra.mxu0 %v1243
      %v1646 = vpop.f32.mrf.mxu0
      %v1647 = vadd.f32 0.0, %v1646
      %v1648 = vpop.f32.mrf.mxu0
      %v1649 = vpop.f32.mrf.mxu0
      %v1650 = vpop.f32.mrf.mxu0
      %1651 = vdwg.mxu0
      %v1652 = vadd.f32 %v1611, %v1647
      %1653 = vmatprep.subr.bf16.mxu0 0
      %1654 = vmatpush1.bf16.msra.mxu0 %v1059
      %1655 = vmatprep.subr.bf16.mxu0 0
      %1656 = vmatpush1.bf16.msra.mxu0 %v1058
      %1657 = vmatprep.subr.bf16.mxu0 0
      %1658 = vmatpush1.bf16.msra.mxu0 %v1057
      %1659 = vmatprep.subr.bf16.mxu0 0
      %1660 = vmatpush1.bf16.msra.mxu0 %v1056
      %1661 = vmatprep.subr.bf16.mxu0 0
      %1662 = vmatpush1.bf16.msra.mxu0 %v1055
      %1663 = vmatprep.subr.bf16.mxu0 0
      %1664 = vmatpush1.bf16.msra.mxu0 %v1054
      %1665 = vmatprep.subr.bf16.mxu0 0
      %1666 = vmatpush1.bf16.msra.mxu0 %v1053
      %1667 = vmatprep.subr.bf16.mxu0 0
      %1668 = vmatpush1.bf16.msra.mxu0 %v1052
      %1669 = vmatprep.subr.bf16.mxu0 0
      %1670 = vmatpush2.bf16.msra.mxu0 0
      %1671 = vmatprep.subr.bf16.mxu0 0
      %1672 = vmatpush2.bf16.msra.mxu0 0
      %1673 = vmatprep.subr.bf16.mxu0 0
      %1674 = vmatpush2.bf16.msra.mxu0 0
      %1675 = vmatprep.subr.bf16.mxu0 0
      %1676 = vmatpush2.bf16.msra.mxu0 0
      %1677 = vmatprep.subr.bf16.mxu0 0
      %1678 = vmatpush2.bf16.msra.mxu0 0
      %1679 = vmatprep.subr.bf16.mxu0 0
      %1680 = vmatpush2.bf16.msra.mxu0 0
      %1681 = vmatprep.subr.bf16.mxu0 0
      %1682 = vmatpush2.bf16.msra.mxu0 0
      %1683 = vmatprep.subr.bf16.mxu0 0
      %1684 = vmatpush2.bf16.msra.mxu0 0
      %1685 = vmatprep.mubr.bf16.mxu0 0
      %1686 = vmatmul.mubr.bf16.gmra.mxu0 %v1351
      %v1687 = vpop.f32.mrf.mxu0
      %v1688 = vadd.f32 0.0, %v1687
      %v1689 = vpop.f32.mrf.mxu0
      %v1690 = vpop.f32.mrf.mxu0
      %v1691 = vpop.f32.mrf.mxu0
      %1692 = vdwg.mxu0
      %v1693 = vadd.f32 %v1652, %v1688
      %1694 = vmatprep.subr.bf16.mxu0 0
      %1695 = vmatpush1.bf16.msra.mxu0 %v1165
      %1696 = vmatprep.subr.bf16.mxu0 0
      %1697 = vmatpush1.bf16.msra.mxu0 %v1164
      %1698 = vmatprep.subr.bf16.mxu0 0
      %1699 = vmatpush1.bf16.msra.mxu0 %v1163
      %1700 = vmatprep.subr.bf16.mxu0 0
      %1701 = vmatpush1.bf16.msra.mxu0 %v1162
      %1702 = vmatprep.subr.bf16.mxu0 0
      %1703 = vmatpush1.bf16.msra.mxu0 %v1161
      %1704 = vmatprep.subr.bf16.mxu0 0
      %1705 = vmatpush1.bf16.msra.mxu0 %v1160
      %1706 = vmatprep.subr.bf16.mxu0 0
      %1707 = vmatpush1.bf16.msra.mxu0 %v1159
      %1708 = vmatprep.subr.bf16.mxu0 0
      %1709 = vmatpush1.bf16.msra.mxu0 %v1158
      %1710 = vmatprep.subr.bf16.mxu0 0
      %1711 = vmatpush2.bf16.msra.mxu0 0
      %1712 = vmatprep.subr.bf16.mxu0 0
      %1713 = vmatpush2.bf16.msra.mxu0 0
      %1714 = vmatprep.subr.bf16.mxu0 0
      %1715 = vmatpush2.bf16.msra.mxu0 0
      %1716 = vmatprep.subr.bf16.mxu0 0
      %1717 = vmatpush2.bf16.msra.mxu0 0
      %1718 = vmatprep.subr.bf16.mxu0 0
      %1719 = vmatpush2.bf16.msra.mxu0 0
      %1720 = vmatprep.subr.bf16.mxu0 0
      %1721 = vmatpush2.bf16.msra.mxu0 0
      %1722 = vmatprep.subr.bf16.mxu0 0
      %1723 = vmatpush2.bf16.msra.mxu0 0
      %1724 = vmatprep.subr.bf16.mxu0 0
      %1725 = vmatpush2.bf16.msra.mxu0 0
      %1726 = vmatprep.mubr.bf16.mxu0 0
      %1727 = vmatmul.mubr.bf16.gmra.mxu0 %v444
      %v1728 = vpop.f32.mrf.mxu0
      %v1729 = vadd.f32 0.0, %v1728
      %v1730 = vpop.f32.mrf.mxu0
      %v1731 = vpop.f32.mrf.mxu0
      %v1732 = vpop.f32.mrf.mxu0
      %1733 = vdwg.mxu0
      %v1734 = vadd.f32 %v1693, %v1729
      %v1737 = vunpack.c.l.b16 %v444
      %v1738 = vunpack.c.l.b16 %v445
      %v1739 = vpack.c.b16 %v1738, %v1737
      %v1741 = vshrl.u32 %v1739, 16
      %v1743 = vshll.u32 %v1739, 16
      %v1745 = vrot.slane %v1743, 1
      %v1746 = vor.u32 %v1741, %v1745
      %1748 = vmatprep.subr.bf16.mxu0 0
      %1749 = vmatpush1.bf16.msra.mxu0 %v1284
      %1750 = vmatprep.subr.bf16.mxu0 0
      %1751 = vmatpush1.bf16.msra.mxu0 %v1283
      %1752 = vmatprep.subr.bf16.mxu0 0
      %1753 = vmatpush1.bf16.msra.mxu0 %v1282
      %1754 = vmatprep.subr.bf16.mxu0 0
      %1755 = vmatpush1.bf16.msra.mxu0 %v1281
      %1756 = vmatprep.subr.bf16.mxu0 0
      %1757 = vmatpush1.bf16.msra.mxu0 %v1280
      %1758 = vmatprep.subr.bf16.mxu0 0
      %1759 = vmatpush1.bf16.msra.mxu0 %v1279
      %1760 = vmatprep.subr.bf16.mxu0 0
      %1761 = vmatpush1.bf16.msra.mxu0 %v1278
      %1762 = vmatprep.subr.bf16.mxu0 0
      %1763 = vmatpush1.bf16.msra.mxu0 %v1277
      %1764 = vmatprep.subr.bf16.mxu0 0
      %1765 = vmatpush2.bf16.msra.mxu0 0
      %1766 = vmatprep.subr.bf16.mxu0 0
      %1767 = vmatpush2.bf16.msra.mxu0 0
      %1768 = vmatprep.subr.bf16.mxu0 0
      %1769 = vmatpush2.bf16.msra.mxu0 0
      %1770 = vmatprep.subr.bf16.mxu0 0
      %1771 = vmatpush2.bf16.msra.mxu0 0
      %1772 = vmatprep.subr.bf16.mxu0 0
      %1773 = vmatpush2.bf16.msra.mxu0 0
      %1774 = vmatprep.subr.bf16.mxu0 0
      %1775 = vmatpush2.bf16.msra.mxu0 0
      %1776 = vmatprep.subr.bf16.mxu0 0
      %1777 = vmatpush2.bf16.msra.mxu0 0
      %1778 = vmatprep.subr.bf16.mxu0 0
      %1779 = vmatpush2.bf16.msra.mxu0 0
      %1780 = vmatprep.mubr.bf16.mxu0 0
      %1781 = vmatmul.mubr.bf16.gmra.mxu0 %v1746
      %v1782 = vpop.f32.mrf.mxu0
      %v1783 = vadd.f32 0.0, %v1782
      %v1784 = vpop.f32.mrf.mxu0
      %v1785 = vpop.f32.mrf.mxu0
      %v1786 = vpop.f32.mrf.mxu0
      %1787 = vdwg.mxu0
      %v1788 = vadd.f32 %v1734, %v1783
      %v1789 = vrot.slane %v1739, 1
      %1791 = vmatprep.subr.bf16.mxu0 0
      %1792 = vmatpush1.bf16.msra.mxu0 %v1392
      %1793 = vmatprep.subr.bf16.mxu0 0
      %1794 = vmatpush1.bf16.msra.mxu0 %v1391
      %1795 = vmatprep.subr.bf16.mxu0 0
      %1796 = vmatpush1.bf16.msra.mxu0 %v1390
      %1797 = vmatprep.subr.bf16.mxu0 0
      %1798 = vmatpush1.bf16.msra.mxu0 %v1389
      %1799 = vmatprep.subr.bf16.mxu0 0
      %1800 = vmatpush1.bf16.msra.mxu0 %v1388
      %1801 = vmatprep.subr.bf16.mxu0 0
      %1802 = vmatpush1.bf16.msra.mxu0 %v1387
      %1803 = vmatprep.subr.bf16.mxu0 0
      %1804 = vmatpush1.bf16.msra.mxu0 %v1386
      %1805 = vmatprep.subr.bf16.mxu0 0
      %1806 = vmatpush1.bf16.msra.mxu0 %v1385
      %1807 = vmatprep.subr.bf16.mxu0 0
      %1808 = vmatpush2.bf16.msra.mxu0 0
      %1809 = vmatprep.subr.bf16.mxu0 0
      %1810 = vmatpush2.bf16.msra.mxu0 0
      %1811 = vmatprep.subr.bf16.mxu0 0
      %1812 = vmatpush2.bf16.msra.mxu0 0
      %1813 = vmatprep.subr.bf16.mxu0 0
      %1814 = vmatpush2.bf16.msra.mxu0 0
      %1815 = vmatprep.subr.bf16.mxu0 0
      %1816 = vmatpush2.bf16.msra.mxu0 0
      %1817 = vmatprep.subr.bf16.mxu0 0
      %1818 = vmatpush2.bf16.msra.mxu0 0
      %1819 = vmatprep.subr.bf16.mxu0 0
      %1820 = vmatpush2.bf16.msra.mxu0 0
      %1821 = vmatprep.subr.bf16.mxu0 0
      %1822 = vmatpush2.bf16.msra.mxu0 0
      %1823 = vmatprep.mubr.bf16.mxu0 0
      %1824 = vmatmul.mubr.bf16.gmra.mxu0 %v1789
      %v1825 = vpop.f32.mrf.mxu0
      %v1826 = vadd.f32 0.0, %v1825
      %v1827 = vpop.f32.mrf.mxu0
      %v1828 = vpop.f32.mrf.mxu0
      %v1829 = vpop.f32.mrf.mxu0
      %1830 = vdwg.mxu0
      %v1831 = vadd.f32 %v1788, %v1826
      %v1832 = vadd.f32 %v1831, %v1447
      %v1833 = vmax.f32 %v1449, 0.0
      %v1834 = vmax.f32 %v1832, 0.0
      %v1835 = vmax.f32 %v1833, %v1834
      %v1836 = vlaneseq
      %v1837 = vshrl.u32 %v1836, 7
      %v1838 = vlaneseq
      %v1839 = vand.u32 %v1838, 127
      %v1840 = vmul.u32 %v1837, 2
      %vm1841 = vcmp.eq.s32.totalorder %v1839, %v1840
      %v1842 = vsel %vm1841, 1, 0
      %v1843 = vcvt.s32.f32 %v1842
      %v1844 = vadd.s32 %v1840, 1
      %vm1845 = vcmp.eq.s32.totalorder %v1839, %v1844
      %v1846 = vsel %vm1845, 1, 0
      %v1847 = vcvt.s32.f32 %v1846
      %vm1848 = vcmask 64512
      %v1850 = vsel %vm1848, %v1843, 0
      %1852 = vmatprep.subr.mxu0 0.0
      %1853 = vmatpush1.msra.mxu0 0.0
      %1854 = vmatprep.subr.mxu0 0.0
      %1855 = vmatpush1.msra.mxu0 0.0
      %1856 = vmatprep.subr.mxu0 0.0
      %1857 = vmatpush1.msra.mxu0 0.0
      %1858 = vmatprep.subr.mxu0 0.0
      %1859 = vmatpush1.msra.mxu0 0.0
      %1860 = vmatprep.subr.mxu0 0.0
      %1861 = vmatpush1.msra.mxu0 0.0
      %1862 = vmatprep.subr.mxu0 0.0
      %1863 = vmatpush1.msra.mxu0 0.0
      %1864 = vmatprep.subr.mxu0 0.0
      %1865 = vmatpush1.msra.mxu0 0.0
      %1866 = vmatprep.subr.mxu0 0.0
      %1867 = vmatpush1.msra.mxu0 0.0
      %1868 = vmatprep.subr.mxu0 0.0
      %1869 = vmatpush1.msra.mxu0 0.0
      %1870 = vmatprep.subr.mxu0 0.0
      %1871 = vmatpush1.msra.mxu0 0.0
      %1872 = vmatprep.subr.mxu0 0.0
      %1873 = vmatpush1.msra.mxu0 0.0
      %1874 = vmatprep.subr.mxu0 0.0
      %1875 = vmatpush1.msra.mxu0 0.0
      %1876 = vmatprep.subr.mxu0 0.0
      %1877 = vmatpush1.msra.mxu0 0.0
      %1878 = vmatprep.subr.mxu0 0.0
      %1879 = vmatpush1.msra.mxu0 0.0
      %1880 = vmatprep.subr.mxu0 0.0
      %1881 = vmatpush1.msra.mxu0 0.0
      %1882 = vmatprep.subr.mxu0 0.0
      %1883 = vmatpush1.msra.mxu0 %v1835
      %1884 = vmatprep.subr.mxu0 0.0
      %1885 = vmatpush2.msra.mxu0 0.0
      %1886 = vmatprep.subr.mxu0 0.0
      %1887 = vmatpush2.msra.mxu0 0.0
      %1888 = vmatprep.subr.mxu0 0.0
      %1889 = vmatpush2.msra.mxu0 0.0
      %1890 = vmatprep.subr.mxu0 0.0
      %1891 = vmatpush2.msra.mxu0 0.0
      %1892 = vmatprep.subr.mxu0 0.0
      %1893 = vmatpush2.msra.mxu0 0.0
      %1894 = vmatprep.subr.mxu0 0.0
      %1895 = vmatpush2.msra.mxu0 0.0
      %1896 = vmatprep.subr.mxu0 0.0
      %1897 = vmatpush2.msra.mxu0 0.0
      %1898 = vmatprep.subr.mxu0 0.0
      %1899 = vmatpush2.msra.mxu0 0.0
      %1900 = vmatprep.subr.mxu0 0.0
      %1901 = vmatpush2.msra.mxu0 0.0
      %1902 = vmatprep.subr.mxu0 0.0
      %1903 = vmatpush2.msra.mxu0 0.0
      %1904 = vmatprep.subr.mxu0 0.0
      %1905 = vmatpush2.msra.mxu0 0.0
      %1906 = vmatprep.subr.mxu0 0.0
      %1907 = vmatpush2.msra.mxu0 0.0
      %1908 = vmatprep.subr.mxu0 0.0
      %1909 = vmatpush2.msra.mxu0 0.0
      %1910 = vmatprep.subr.mxu0 0.0
      %1911 = vmatpush2.msra.mxu0 0.0
      %1912 = vmatprep.subr.mxu0 0.0
      %1913 = vmatpush2.msra.mxu0 0.0
      %1914 = vmatprep.subr.mxu0 0.0
      %1915 = vmatpush2.msra.mxu0 0.0
      %1916 = vmatprep.mubr.f32.mxu0 0.0
      %1917 = vmatmul.mubr.f32.gmra.mxu0 %v1850
      %v1918 = vpop.f32.mrf.mxu0
      %v1919 = vadd.f32 0.0, %v1918
      %v1920 = vpop.f32.mrf.mxu0
      %1921 = vdwg.mxu0
      %v1923 = vsel %vm1848, %v1847, 0
      %1925 = vmatprep.subr.mxu0 0.0
      %1926 = vmatpush1.msra.mxu0 0.0
      %1927 = vmatprep.subr.mxu0 0.0
      %1928 = vmatpush1.msra.mxu0 0.0
      %1929 = vmatprep.subr.mxu0 0.0
      %1930 = vmatpush1.msra.mxu0 0.0
      %1931 = vmatprep.subr.mxu0 0.0
      %1932 = vmatpush1.msra.mxu0 0.0
      %1933 = vmatprep.subr.mxu0 0.0
      %1934 = vmatpush1.msra.mxu0 0.0
      %1935 = vmatprep.subr.mxu0 0.0
      %1936 = vmatpush1.msra.mxu0 0.0
      %1937 = vmatprep.subr.mxu0 0.0
      %1938 = vmatpush1.msra.mxu0 0.0
      %1939 = vmatprep.subr.mxu0 0.0
      %1940 = vmatpush1.msra.mxu0 0.0
      %1941 = vmatprep.subr.mxu0 0.0
      %1942 = vmatpush1.msra.mxu0 0.0
      %1943 = vmatprep.subr.mxu0 0.0
      %1944 = vmatpush1.msra.mxu0 0.0
      %1945 = vmatprep.subr.mxu0 0.0
      %1946 = vmatpush1.msra.mxu0 0.0
      %1947 = vmatprep.subr.mxu0 0.0
      %1948 = vmatpush1.msra.mxu0 0.0
      %1949 = vmatprep.subr.mxu0 0.0
      %1950 = vmatpush1.msra.mxu0 0.0
      %1951 = vmatprep.subr.mxu0 0.0
      %1952 = vmatpush1.msra.mxu0 0.0
      %1953 = vmatprep.subr.mxu0 0.0
      %1954 = vmatpush1.msra.mxu0 0.0
      %1955 = vmatprep.subr.mxu0 0.0
      %1956 = vmatpush1.msra.mxu0 %v1835
      %1957 = vmatprep.subr.mxu0 0.0
      %1958 = vmatpush2.msra.mxu0 0.0
      %1959 = vmatprep.subr.mxu0 0.0
      %1960 = vmatpush2.msra.mxu0 0.0
      %1961 = vmatprep.subr.mxu0 0.0
      %1962 = vmatpush2.msra.mxu0 0.0
      %1963 = vmatprep.subr.mxu0 0.0
      %1964 = vmatpush2.msra.mxu0 0.0
      %1965 = vmatprep.subr.mxu0 0.0
      %1966 = vmatpush2.msra.mxu0 0.0
      %1967 = vmatprep.subr.mxu0 0.0
      %1968 = vmatpush2.msra.mxu0 0.0
      %1969 = vmatprep.subr.mxu0 0.0
      %1970 = vmatpush2.msra.mxu0 0.0
      %1971 = vmatprep.subr.mxu0 0.0
      %1972 = vmatpush2.msra.mxu0 0.0
      %1973 = vmatprep.subr.mxu0 0.0
      %1974 = vmatpush2.msra.mxu0 0.0
      %1975 = vmatprep.subr.mxu0 0.0
      %1976 = vmatpush2.msra.mxu0 0.0
      %1977 = vmatprep.subr.mxu0 0.0
      %1978 = vmatpush2.msra.mxu0 0.0
      %1979 = vmatprep.subr.mxu0 0.0
      %1980 = vmatpush2.msra.mxu0 0.0
      %1981 = vmatprep.subr.mxu0 0.0
      %1982 = vmatpush2.msra.mxu0 0.0
      %1983 = vmatprep.subr.mxu0 0.0
      %1984 = vmatpush2.msra.mxu0 0.0
      %1985 = vmatprep.subr.mxu0 0.0
      %1986 = vmatpush2.msra.mxu0 0.0
      %1987 = vmatprep.subr.mxu0 0.0
      %1988 = vmatpush2.msra.mxu0 0.0
      %1989 = vmatprep.mubr.f32.mxu0 0.0
      %1990 = vmatmul.mubr.f32.gmra.mxu0 %v1923
      %v1991 = vpop.f32.mrf.mxu0
      %v1992 = vadd.f32 0.0, %v1991
      %v1993 = vpop.f32.mrf.mxu0
      %1994 = vdwg.mxu0
      %v1995 = vmax.f32 %v1919, %v1992
      %v1996 = vpack.c.bf16 %v1995, %v1995
      %1997 = vst [vmem:[%s436] sm:$0x3] %v1996
      %p1998 = scmp.lt.s32.totalorder %s21, 1
      %s1999 = scalar_select %p1998, %s21, 1
      %p2000 = scmp.lt.s32.totalorder %s22, 3
      %s2001 = scalar_select %p2000, %s22, 3
      %s2002 = smul.addr %s1999, 4
      %s2003 = sadd.s32 %s2001, %s2002
      %s2004 = smul.addr %s2003, 2
      %s2005 = scalar_lea.vmem %s6, %s2004
      // Predicated region
      $region45: #{_yolo1_device.5} parent=43 // pred_check
        %p2006 = pneg %p217
      $region46: #{_yolo1_device.5} parent=43 // pred_check_branch
        %2008 = sbr.rel (%p2006) target = $region48
      $region47: #{_yolo1_device.5} parent=43 // pred_region
        _
      $region48: #{_yolo1_device.5} parent=43 // pred_fallthru
        _
    $region44: #{_yolo1_device.5} parent=5 // pred_fallthru
      _
    %p2009 = scmp.le.s32.totalorder 2, %s12
    // Predicated region
    $region49: #{_yolo1_device.5} parent=5 // pred_check
      %p2010 = pneg %p2009
    $region50: #{_yolo1_device.5} parent=5 // pred_check_branch
      %2012 = sbr.rel (%p2010) target = $region52
    $region51: #{_yolo1_device.5} parent=5 // pred_region
      %s2013 = ssub.s32 %s12, 2
      // Predicated region
      $region53: #{_yolo1_device.5} parent=51 // pred_check
        %p2014 = pneg %p223
      $region54: #{_yolo1_device.5} parent=51 // pred_check_branch
        %2016 = sbr.rel (%p2014) target = $region56
      $region55: #{_yolo1_device.5} parent=51 // pred_region
        %p2017 = scmp.lt.s32.totalorder %s23, 1
        %s2018 = scalar_select %p2017, %s23, 1
        %p2019 = scmp.lt.s32.totalorder %s24, 3
        %s2020 = scalar_select %p2019, %s24, 3
        %s2021 = smul.addr %s2018, 4
        %s2022 = sadd.s32 %s2020, %s2021
        %s2023 = smul.addr %s2022, 2
        %s2024 = scalar_lea.vmem %s6, %s2023
      $region56: #{_yolo1_device.5} parent=51 // pred_fallthru
        _
    $region52: #{_yolo1_device.5} parent=5 // pred_fallthru
      _
  $region6: #{_yolo1_device.5} parent=0 // loop_footer
    %s16 = sadd.s32 1, %s12
  $region7: #{_yolo1_device.5} parent=0 // loop_footer_branch
    %11 = sbr.rel target = $region3
  $region8: #{_yolo1_device.5} parent=0 // loop_exit
    _

// kernel: _yolo1_device.7
$region0: #{_yolo1_device.7}
  #allocation0 [shape = 'u32[]', space=smem, size = 0x4, offset = 0x4, fixed_abs, tag = 'smem constant byte address 0x4 - core index']
  #allocation1 [shape = 'u32[144,128]{1,0:T(1,128)}', space=vmem, size = 0x12000, scoped, tag = 'internal scratch']
  %s0 = inlined_call_operand.vmem [shape: f32[2,16,128], index: 0, kind: input, shape index: {}]
  %s1 = inlined_call_operand.vmem [shape: f32[2,16,4], index: 1, kind: input, shape index: {}]
  %s2 = inlined_call_operand.vmem [shape: s32[2,16,1], index: 2, kind: input, shape index: {}]
  %s3 = inlined_call_operand.vmem [shape: f32[2,16,1], index: 3, kind: input, shape index: {}]
  %s4 = inlined_call_operand.vmem [shape: f32[2,8,128], index: 4, kind: output, shape index: {}]
  %s5 = sld [smem:[#allocation0]]
  $region26: #{_yolo1_device.7} parent=0
    _
  %s7 = ssub.s32 1, %s5
  %s8 = scalar_select 0, %s7, %s5
  // Predicated region
  $region2: #{_yolo1_device.7} parent=0 // pred_check
    _
  $region3: #{_yolo1_device.7} parent=0 // pred_check_branch
    %10 = sbr.rel (0) target = $region5
  $region4: #{_yolo1_device.7} parent=0 // pred_region
    _
  $region5: #{_yolo1_device.7} parent=0 // pred_fallthru
    _
  // Predicated region
  $region6: #{_yolo1_device.7} parent=0 // pred_check
    _
  $region7: #{_yolo1_device.7} parent=0 // pred_check_branch
    %12 = sbr.rel (0) target = $region9
  $region8: #{_yolo1_device.7} parent=0 // pred_region
    _
  $region9: #{_yolo1_device.7} parent=0 // pred_fallthru
    _
  // Predicated region
  $region10: #{_yolo1_device.7} parent=0 // pred_check
    _
  $region11: #{_yolo1_device.7} parent=0 // pred_check_branch
    %14 = sbr.rel (0) target = $region13
  $region12: #{_yolo1_device.7} parent=0 // pred_region
    _
  $region13: #{_yolo1_device.7} parent=0 // pred_fallthru
    _
  // Predicated region
  $region14: #{_yolo1_device.7} parent=0 // pred_check
    _
  $region15: #{_yolo1_device.7} parent=0 // pred_check_branch
    %16 = sbr.rel (0) target = $region17
  $region16: #{_yolo1_device.7} parent=0 // pred_region
    _
  $region17: #{_yolo1_device.7} parent=0 // pred_fallthru
    _
  %v17 = vld [vmem:[%s0] sm:$0xff]
  %v18 = vld [vmem:[%s0 + $0x8] sm:$0xff]
  %v19 = vld [vmem:[%s0 + $0x10] sm:$0xff]
  %v20 = vld [vmem:[%s0 + $0x18] sm:$0xff]
  %v21 = vld [vmem:[%s1] sm:$0xff]
  %v22 = vld [vmem:[%s1 + $0x8] sm:$0xff]
  %v23 = vld [vmem:[%s1 + $0x10] sm:$0xff]
  %v24 = vld [vmem:[%s1 + $0x18] sm:$0xff]
  %v25 = vld [vmem:[%s2] sm:$0xff]
  %v26 = vld [vmem:[%s2 + $0x8] sm:$0xff]
  %v27 = vld [vmem:[%s2 + $0x10] sm:$0xff]
  %v28 = vld [vmem:[%s2 + $0x18] sm:$0xff]
  %v29 = vld [vmem:[%s3] sm:$0xff]
  %v30 = vld [vmem:[%s3 + $0x8] sm:$0xff]
  %v31 = vld [vmem:[%s3 + $0x10] sm:$0xff]
  %v32 = vld [vmem:[%s3 + $0x18] sm:$0xff]
  %vm33 = vcmp.ne.s32.totalorder %v25, 5
  %vm34 = vcmp.ne.s32.totalorder %v26, 5
  %vm35 = vcmp.ne.s32.totalorder %v27, 5
  %vm36 = vcmp.ne.s32.totalorder %v28, 5
  %v37 = vsel %vm33, 1, 0
  %v38 = vsel %vm34, 1, 0
  %v39 = vsel %vm35, 1, 0
  %v40 = vsel %vm36, 1, 0
  %v41 = vcvt.s32.f32 %v37
  %v42 = vcvt.s32.f32 %v38
  %v43 = vcvt.s32.f32 %v39
  %v44 = vcvt.s32.f32 %v40
  %49 = vrot.lane.b32.xlu0 %v17, 5
  %v50 = vpop.permute.xlu0 %49
  %51 = vrot.lane.b32.xlu0 %v18, 5
  %v52 = vpop.permute.xlu0 %51
  %53 = vrot.lane.b32.xlu0 %v19, 5
  %v54 = vpop.permute.xlu0 %53
  %55 = vrot.lane.b32.xlu0 %v20, 5
  %v56 = vpop.permute.xlu0 %55
  %vm61 = vcmp.gt.f32.partialorder %v17, %v50
  %vm62 = vcmp.gt.f32.partialorder %v18, %v52
  %vm63 = vcmp.gt.f32.partialorder %v19, %v54
  %vm64 = vcmp.gt.f32.partialorder %v20, %v56
  %v65 = vsel %vm61, 1.0, 0.0
  %v66 = vsel %vm62, 1.0, 0.0
  %v67 = vsel %vm63, 1.0, 0.0
  %v68 = vsel %vm64, 1.0, 0.0
  %69 = vrot.lane.b32.xlu0 %v17, 123
  %v70 = vpop.permute.xlu0 %69
  %71 = vrot.lane.b32.xlu0 %v18, 123
  %v72 = vpop.permute.xlu0 %71
  %73 = vrot.lane.b32.xlu0 %v19, 123
  %v74 = vpop.permute.xlu0 %73
  %75 = vrot.lane.b32.xlu0 %v20, 123
  %v76 = vpop.permute.xlu0 %75
  %v81 = vmax.f32 %v17, %v70
  %v82 = vmax.f32 %v18, %v72
  %v83 = vmax.f32 %v19, %v74
  %v84 = vmax.f32 %v20, %v76
  %v85 = vxor.u32 %v81, 2147483648
  %v86 = vxor.u32 %v82, 2147483648
  %v87 = vxor.u32 %v83, 2147483648
  %v88 = vxor.u32 %v84, 2147483648
  %v89 = vmul.f32 %v85, 1.442695
  %v90 = vpow.pop %v89
  %v91 = vmul.f32 %v86, 1.442695
  %v92 = vpow.pop %v91
  %v93 = vmul.f32 %v87, 1.442695
  %v94 = vpow.pop %v93
  %v95 = vmul.f32 %v88, 1.442695
  %v96 = vpow.pop %v95
  %v97 = vadd.f32 %v90, 1.0
  %v98 = vadd.f32 %v92, 1.0
  %v99 = vadd.f32 %v94, 1.0
  %v100 = vadd.f32 %v96, 1.0
  %v101 = vrcp.pop %v97
  %v102 = vmul.f32 1.0, %v101
  %v103 = vrcp.pop %v98
  %v104 = vmul.f32 1.0, %v103
  %v105 = vrcp.pop %v99
  %v106 = vmul.f32 1.0, %v105
  %v107 = vrcp.pop %v100
  %v108 = vmul.f32 1.0, %v107
  %113 = vrot.lane.b32.xlu0 %v29, 4
  %v114 = vpop.permute.xlu0 %113
  %115 = vrot.lane.b32.xlu0 %v30, 4
  %v116 = vpop.permute.xlu0 %115
  %117 = vrot.lane.b32.xlu0 %v31, 4
  %v118 = vpop.permute.xlu0 %117
  %119 = vrot.lane.b32.xlu0 %v32, 4
  %v120 = vpop.permute.xlu0 %119
  %v125 = vsub.f32 %v102, %v114
  %v126 = vsub.f32 %v104, %v116
  %v127 = vsub.f32 %v106, %v118
  %v128 = vsub.f32 %v108, %v120
  %v129 = vmul.f32 %v125, %v125
  %v130 = vmul.f32 %v126, %v126
  %v131 = vmul.f32 %v127, %v127
  %v132 = vmul.f32 %v128, %v128
  %137 = vrot.lane.b32.xlu0 %v41, 4
  %v138 = vpop.permute.xlu0 %137
  %139 = vrot.lane.b32.xlu0 %v42, 4
  %v140 = vpop.permute.xlu0 %139
  %141 = vrot.lane.b32.xlu0 %v43, 4
  %v142 = vpop.permute.xlu0 %141
  %143 = vrot.lane.b32.xlu0 %v44, 4
  %v144 = vpop.permute.xlu0 %143
  %v149 = vmul.f32 %v129, %v138
  %v150 = vmul.f32 %v130, %v140
  %v151 = vmul.f32 %v131, %v142
  %v152 = vmul.f32 %v132, %v144
  %vm153 = vcmask 39968
  %v154 = vsel %vm153, %v149, 0.0
  %v155 = vsel %vm153, %v150, 0.0
  %v156 = vadd.f32 %v154, %v155
  %v157 = vrot.slane %v156, 4
  %v158 = vadd.f32 %v156, %v157
  %v159 = vrot.slane %v158, 2
  %v160 = vadd.f32 %v158, %v159
  %v161 = vrot.slane %v160, 1
  %v162 = vadd.f32 %v160, %v161
  %v163 = vsel %vm153, %v151, 0.0
  %v164 = vsel %vm153, %v152, 0.0
  %v165 = vadd.f32 %v163, %v164
  %v166 = vrot.slane %v165, 4
  %v167 = vadd.f32 %v165, %v166
  %v168 = vrot.slane %v167, 2
  %v169 = vadd.f32 %v167, %v168
  %v170 = vrot.slane %v169, 1
  %v171 = vadd.f32 %v169, %v170
  %vm172 = vcmask 7168
  %v173 = vsel %vm172, %v41, 0.0
  %v174 = vsel %vm172, %v42, 0.0
  %v175 = vadd.f32 %v173, %v174
  %v176 = vrot.slane %v175, 4
  %v177 = vadd.f32 %v175, %v176
  %v178 = vrot.slane %v177, 2
  %v179 = vadd.f32 %v177, %v178
  %v180 = vrot.slane %v179, 1
  %v181 = vadd.f32 %v179, %v180
  %v182 = vsel %vm172, %v43, 0.0
  %v183 = vsel %vm172, %v44, 0.0
  %v184 = vadd.f32 %v182, %v183
  %v185 = vrot.slane %v184, 4
  %v186 = vadd.f32 %v184, %v185
  %v187 = vrot.slane %v186, 2
  %v188 = vadd.f32 %v186, %v187
  %v189 = vrot.slane %v188, 1
  %v190 = vadd.f32 %v188, %v189
  %v191 = vsub.f32 1.0, %v41
  %v192 = vsub.f32 1.0, %v42
  %v193 = vsub.f32 1.0, %v43
  %v194 = vsub.f32 1.0, %v44
  %199 = vrot.lane.b32.xlu0 %v191, 4
  %v200 = vpop.permute.xlu0 %199
  %201 = vrot.lane.b32.xlu0 %v192, 4
  %v202 = vpop.permute.xlu0 %201
  %203 = vrot.lane.b32.xlu0 %v193, 4
  %v204 = vpop.permute.xlu0 %203
  %205 = vrot.lane.b32.xlu0 %v194, 4
  %v206 = vpop.permute.xlu0 %205
  %v211 = vmul.f32 %v129, %v200
  %v212 = vmul.f32 %v130, %v202
  %v213 = vmul.f32 %v131, %v204
  %v214 = vmul.f32 %v132, %v206
  %v215 = vsel %vm153, %v211, 0.0
  %v216 = vsel %vm153, %v212, 0.0
  %v217 = vadd.f32 %v215, %v216
  %v218 = vrot.slane %v217, 4
  %v219 = vadd.f32 %v217, %v218
  %v220 = vrot.slane %v219, 2
  %v221 = vadd.f32 %v219, %v220
  %v222 = vrot.slane %v221, 1
  %v223 = vadd.f32 %v221, %v222
  %v224 = vsel %vm153, %v213, 0.0
  %v225 = vsel %vm153, %v214, 0.0
  %v226 = vadd.f32 %v224, %v225
  %v227 = vrot.slane %v226, 4
  %v228 = vadd.f32 %v226, %v227
  %v229 = vrot.slane %v228, 2
  %v230 = vadd.f32 %v228, %v229
  %v231 = vrot.slane %v230, 1
  %v232 = vadd.f32 %v230, %v231
  %v233 = vsub.f32 16.0, %v181
  %v234 = vsub.f32 16.0, %v190
  %vm235 = vcmp.eq.f32.partialorder %v65, 0.0
  %vm236 = vcmp.eq.f32.partialorder %v66, 0.0
  %vm237 = vcmp.eq.f32.partialorder %v67, 0.0
  %vm238 = vcmp.eq.f32.partialorder %v68, 0.0
  %v239 = vsel %vm235, 1, 0
  %v240 = vsel %vm236, 1, 0
  %v241 = vsel %vm237, 1, 0
  %v242 = vsel %vm238, 1, 0
  %243 = vset.pattern.permute.xlu0 9
  %244 = vperm.xlu0 %243, %v239
  %v245 = vpop.permute.xlu0 %244
  %246 = vset.pattern.permute.xlu0 9
  %247 = vperm.xlu0 %246, %v240
  %v248 = vpop.permute.xlu0 %247
  %249 = vset.pattern.permute.xlu0 9
  %250 = vperm.xlu0 %249, %v241
  %v251 = vpop.permute.xlu0 %250
  %252 = vset.pattern.permute.xlu0 9
  %253 = vperm.xlu0 %252, %v242
  %v254 = vpop.permute.xlu0 %253
  %vm255 = vcmp.eq.s32.totalorder %v245, 1
  %vm256 = vcmp.eq.s32.totalorder %v248, 1
  %vm257 = vcmp.eq.s32.totalorder %v251, 1
  %vm258 = vcmp.eq.s32.totalorder %v254, 1
  %v259 = vsel %vm255, %v17, 0.0
  %v260 = vsel %vm256, %v18, 0.0
  %v261 = vsel %vm257, %v19, 0.0
  %v262 = vsel %vm258, %v20, 0.0
  %vm263 = vcmp.eq.f32.partialorder %v65, 1.0
  %vm264 = vcmp.eq.f32.partialorder %v66, 1.0
  %vm265 = vcmp.eq.f32.partialorder %v67, 1.0
  %vm266 = vcmp.eq.f32.partialorder %v68, 1.0
  %v267 = vsel %vm263, 1, 0
  %v268 = vsel %vm264, 1, 0
  %v269 = vsel %vm265, 1, 0
  %v270 = vsel %vm266, 1, 0
  %271 = vset.pattern.permute.xlu0 9
  %272 = vperm.xlu0 %271, %v267
  %v273 = vpop.permute.xlu0 %272
  %274 = vset.pattern.permute.xlu0 9
  %275 = vperm.xlu0 %274, %v268
  %v276 = vpop.permute.xlu0 %275
  %277 = vset.pattern.permute.xlu0 9
  %278 = vperm.xlu0 %277, %v269
  %v279 = vpop.permute.xlu0 %278
  %280 = vset.pattern.permute.xlu0 9
  %281 = vperm.xlu0 %280, %v270
  %v282 = vpop.permute.xlu0 %281
  %vm283 = vcmp.eq.s32.totalorder %v273, 1
  %vm284 = vcmp.eq.s32.totalorder %v276, 1
  %vm285 = vcmp.eq.s32.totalorder %v279, 1
  %vm286 = vcmp.eq.s32.totalorder %v282, 1
  %291 = vrot.lane.b32.xlu0 %v259, 5
  %v292 = vpop.permute.xlu0 %291
  %293 = vrot.lane.b32.xlu0 %v260, 5
  %v294 = vpop.permute.xlu0 %293
  %295 = vrot.lane.b32.xlu0 %v261, 5
  %v296 = vpop.permute.xlu0 %295
  %297 = vrot.lane.b32.xlu0 %v262, 5
  %v298 = vpop.permute.xlu0 %297
  %v303 = vsel %vm283, %v17, %v292
  %v304 = vsel %vm284, %v18, %v294
  %v305 = vsel %vm285, %v19, %v296
  %v306 = vsel %vm286, %v20, %v298
  %v307 = vxor.u32 %v303, 2147483648
  %v308 = vxor.u32 %v304, 2147483648
  %v309 = vxor.u32 %v305, 2147483648
  %v310 = vxor.u32 %v306, 2147483648
  %v311 = vmul.f32 %v307, 1.442695
  %v312 = vpow.pop %v311
  %v313 = vmul.f32 %v308, 1.442695
  %v314 = vpow.pop %v313
  %v315 = vmul.f32 %v309, 1.442695
  %v316 = vpow.pop %v315
  %v317 = vmul.f32 %v310, 1.442695
  %v318 = vpow.pop %v317
  %v319 = vadd.f32 %v312, 1.0
  %v320 = vadd.f32 %v314, 1.0
  %v321 = vadd.f32 %v316, 1.0
  %v322 = vadd.f32 %v318, 1.0
  %v323 = vrcp.pop %v319
  %v324 = vmul.f32 1.0, %v323
  %v325 = vrcp.pop %v320
  %v326 = vmul.f32 1.0, %v325
  %v327 = vrcp.pop %v321
  %v328 = vmul.f32 1.0, %v327
  %v329 = vrcp.pop %v322
  %v330 = vmul.f32 1.0, %v329
  %335 = vrot.lane.b32.xlu0 %v21, 126
  %v336 = vpop.permute.xlu0 %335
  %337 = vrot.lane.b32.xlu0 %v22, 126
  %v338 = vpop.permute.xlu0 %337
  %339 = vrot.lane.b32.xlu0 %v23, 126
  %v340 = vpop.permute.xlu0 %339
  %341 = vrot.lane.b32.xlu0 %v24, 126
  %v342 = vpop.permute.xlu0 %341
  %v347 = vsel %vm33, %v336, 1.0
  %v348 = vsel %vm34, %v338, 1.0
  %v349 = vsel %vm35, %v340, 1.0
  %v350 = vsel %vm36, %v342, 1.0
  %351 = vrot.lane.b32.xlu0 %v21, 125
  %v352 = vpop.permute.xlu0 %351
  %353 = vrot.lane.b32.xlu0 %v22, 125
  %v354 = vpop.permute.xlu0 %353
  %355 = vrot.lane.b32.xlu0 %v23, 125
  %v356 = vpop.permute.xlu0 %355
  %357 = vrot.lane.b32.xlu0 %v24, 125
  %v358 = vpop.permute.xlu0 %357
  %v363 = vsel %vm33, %v352, 1.0
  %v364 = vsel %vm34, %v354, 1.0
  %v365 = vsel %vm35, %v356, 1.0
  %v366 = vsel %vm36, %v358, 1.0
  %367 = vrot.lane.b32.xlu0 %v21, 5
  %v368 = vpop.permute.xlu0 %367
  %369 = vrot.lane.b32.xlu0 %v22, 5
  %v370 = vpop.permute.xlu0 %369
  %371 = vrot.lane.b32.xlu0 %v23, 5
  %v372 = vpop.permute.xlu0 %371
  %373 = vrot.lane.b32.xlu0 %v24, 5
  %v374 = vpop.permute.xlu0 %373
  %v379 = vsub.f32 %v324, %v368
  %v380 = vsub.f32 %v326, %v370
  %v381 = vsub.f32 %v328, %v372
  %v382 = vsub.f32 %v330, %v374
  %v383 = vmul.f32 %v379, %v379
  %v384 = vmul.f32 %v380, %v380
  %v385 = vmul.f32 %v381, %v381
  %v386 = vmul.f32 %v382, %v382
  %391 = vrot.lane.b32.xlu0 %v383, 127
  %v392 = vpop.permute.xlu0 %391
  %393 = vrot.lane.b32.xlu0 %v384, 127
  %v394 = vpop.permute.xlu0 %393
  %395 = vrot.lane.b32.xlu0 %v385, 127
  %v396 = vpop.permute.xlu0 %395
  %397 = vrot.lane.b32.xlu0 %v386, 127
  %v398 = vpop.permute.xlu0 %397
  %v403 = vadd.f32 %v383, %v392
  %v404 = vadd.f32 %v384, %v394
  %v405 = vadd.f32 %v385, %v396
  %v406 = vadd.f32 %v386, %v398
  %v407 = vrsqrt.pop %v324
  %v408 = vmul.f32 %v324, %v407
  %vm409 = vcmp.eq.f32.partialorder %v324, inf
  %v410 = vsel %vm409, %v324, %v408
  %vm411 = vcmp.eq.f32.partialorder %v324, 0.0
  %v412 = vand.u32 %v324, 2147483648
  %v413 = vsel %vm411, %v412, %v410
  %v414 = vrsqrt.pop %v326
  %v415 = vmul.f32 %v326, %v414
  %vm416 = vcmp.eq.f32.partialorder %v326, inf
  %v417 = vsel %vm416, %v326, %v415
  %vm418 = vcmp.eq.f32.partialorder %v326, 0.0
  %v419 = vand.u32 %v326, 2147483648
  %v420 = vsel %vm418, %v419, %v417
  %v421 = vrsqrt.pop %v328
  %v422 = vmul.f32 %v328, %v421
  %vm423 = vcmp.eq.f32.partialorder %v328, inf
  %v424 = vsel %vm423, %v328, %v422
  %vm425 = vcmp.eq.f32.partialorder %v328, 0.0
  %v426 = vand.u32 %v328, 2147483648
  %v427 = vsel %vm425, %v426, %v424
  %v428 = vrsqrt.pop %v330
  %v429 = vmul.f32 %v330, %v428
  %vm430 = vcmp.eq.f32.partialorder %v330, inf
  %v431 = vsel %vm430, %v330, %v429
  %vm432 = vcmp.eq.f32.partialorder %v330, 0.0
  %v433 = vand.u32 %v330, 2147483648
  %v434 = vsel %vm432, %v433, %v431
  %v435 = vrsqrt.pop %v347
  %v436 = vmul.f32 %v347, %v435
  %vm437 = vcmp.eq.f32.partialorder %v347, inf
  %v438 = vsel %vm437, %v347, %v436
  %vm439 = vcmp.eq.f32.partialorder %v347, 0.0
  %v440 = vand.u32 %v347, 2147483648
  %v441 = vsel %vm439, %v440, %v438
  %v442 = vrsqrt.pop %v348
  %v443 = vmul.f32 %v348, %v442
  %vm444 = vcmp.eq.f32.partialorder %v348, inf
  %v445 = vsel %vm444, %v348, %v443
  %vm446 = vcmp.eq.f32.partialorder %v348, 0.0
  %v447 = vand.u32 %v348, 2147483648
  %v448 = vsel %vm446, %v447, %v445
  %v449 = vrsqrt.pop %v349
  %v450 = vmul.f32 %v349, %v449
  %vm451 = vcmp.eq.f32.partialorder %v349, inf
  %v452 = vsel %vm451, %v349, %v450
  %vm453 = vcmp.eq.f32.partialorder %v349, 0.0
  %v454 = vand.u32 %v349, 2147483648
  %v455 = vsel %vm453, %v454, %v452
  %v456 = vrsqrt.pop %v350
  %v457 = vmul.f32 %v350, %v456
  %vm458 = vcmp.eq.f32.partialorder %v350, inf
  %v459 = vsel %vm458, %v350, %v457
  %vm460 = vcmp.eq.f32.partialorder %v350, 0.0
  %v461 = vand.u32 %v350, 2147483648
  %v462 = vsel %vm460, %v461, %v459
  %467 = vrot.lane.b32.xlu0 %v441, 7
  %v468 = vpop.permute.xlu0 %467
  %469 = vrot.lane.b32.xlu0 %v448, 7
  %v470 = vpop.permute.xlu0 %469
  %471 = vrot.lane.b32.xlu0 %v455, 7
  %v472 = vpop.permute.xlu0 %471
  %473 = vrot.lane.b32.xlu0 %v462, 7
  %v474 = vpop.permute.xlu0 %473
  %v479 = vsub.f32 %v413, %v468
  %v480 = vsub.f32 %v420, %v470
  %v481 = vsub.f32 %v427, %v472
  %v482 = vsub.f32 %v434, %v474
  %v483 = vmul.f32 %v479, %v479
  %v484 = vmul.f32 %v480, %v480
  %v485 = vmul.f32 %v481, %v481
  %v486 = vmul.f32 %v482, %v482
  %491 = vrot.lane.b32.xlu0 %v483, 126
  %v492 = vpop.permute.xlu0 %491
  %493 = vrot.lane.b32.xlu0 %v484, 126
  %v494 = vpop.permute.xlu0 %493
  %495 = vrot.lane.b32.xlu0 %v485, 126
  %v496 = vpop.permute.xlu0 %495
  %497 = vrot.lane.b32.xlu0 %v486, 126
  %v498 = vpop.permute.xlu0 %497
  %v503 = vadd.f32 %v403, %v492
  %v504 = vadd.f32 %v404, %v494
  %v505 = vadd.f32 %v405, %v496
  %v506 = vadd.f32 %v406, %v498
  %v507 = vrsqrt.pop %v363
  %v508 = vmul.f32 %v363, %v507
  %vm509 = vcmp.eq.f32.partialorder %v363, inf
  %v510 = vsel %vm509, %v363, %v508
  %vm511 = vcmp.eq.f32.partialorder %v363, 0.0
  %v512 = vand.u32 %v363, 2147483648
  %v513 = vsel %vm511, %v512, %v510
  %v514 = vrsqrt.pop %v364
  %v515 = vmul.f32 %v364, %v514
  %vm516 = vcmp.eq.f32.partialorder %v364, inf
  %v517 = vsel %vm516, %v364, %v515
  %vm518 = vcmp.eq.f32.partialorder %v364, 0.0
  %v519 = vand.u32 %v364, 2147483648
  %v520 = vsel %vm518, %v519, %v517
  %v521 = vrsqrt.pop %v365
  %v522 = vmul.f32 %v365, %v521
  %vm523 = vcmp.eq.f32.partialorder %v365, inf
  %v524 = vsel %vm523, %v365, %v522
  %vm525 = vcmp.eq.f32.partialorder %v365, 0.0
  %v526 = vand.u32 %v365, 2147483648
  %v527 = vsel %vm525, %v526, %v524
  %v528 = vrsqrt.pop %v366
  %v529 = vmul.f32 %v366, %v528
  %vm530 = vcmp.eq.f32.partialorder %v366, inf
  %v531 = vsel %vm530, %v366, %v529
  %vm532 = vcmp.eq.f32.partialorder %v366, 0.0
  %v533 = vand.u32 %v366, 2147483648
  %v534 = vsel %vm532, %v533, %v531
  %539 = vrot.lane.b32.xlu0 %v513, 8
  %v540 = vpop.permute.xlu0 %539
  %541 = vrot.lane.b32.xlu0 %v520, 8
  %v542 = vpop.permute.xlu0 %541
  %543 = vrot.lane.b32.xlu0 %v527, 8
  %v544 = vpop.permute.xlu0 %543
  %545 = vrot.lane.b32.xlu0 %v534, 8
  %v546 = vpop.permute.xlu0 %545
  %v551 = vsub.f32 %v413, %v540
  %v552 = vsub.f32 %v420, %v542
  %v553 = vsub.f32 %v427, %v544
  %v554 = vsub.f32 %v434, %v546
  %v555 = vmul.f32 %v551, %v551
  %v556 = vmul.f32 %v552, %v552
  %v557 = vmul.f32 %v553, %v553
  %v558 = vmul.f32 %v554, %v554
  %563 = vrot.lane.b32.xlu0 %v555, 125
  %v564 = vpop.permute.xlu0 %563
  %565 = vrot.lane.b32.xlu0 %v556, 125
  %v566 = vpop.permute.xlu0 %565
  %567 = vrot.lane.b32.xlu0 %v557, 125
  %v568 = vpop.permute.xlu0 %567
  %569 = vrot.lane.b32.xlu0 %v558, 125
  %v570 = vpop.permute.xlu0 %569
  %v575 = vadd.f32 %v503, %v564
  %v576 = vadd.f32 %v504, %v566
  %v577 = vadd.f32 %v505, %v568
  %v578 = vadd.f32 %v506, %v570
  %579 = vrot.lane.b32.xlu0 %v41, 5
  %v580 = vpop.permute.xlu0 %579
  %581 = vrot.lane.b32.xlu0 %v42, 5
  %v582 = vpop.permute.xlu0 %581
  %583 = vrot.lane.b32.xlu0 %v43, 5
  %v584 = vpop.permute.xlu0 %583
  %585 = vrot.lane.b32.xlu0 %v44, 5
  %v586 = vpop.permute.xlu0 %585
  %v591 = vmul.f32 %v575, %v580
  %v592 = vmul.f32 %v576, %v582
  %v593 = vmul.f32 %v577, %v584
  %v594 = vmul.f32 %v578, %v586
  %vm595 = vcmask 48168
  %v596 = vsel %vm595, %v591, 0.0
  %v597 = vsel %vm595, %v592, 0.0
  %v598 = vadd.f32 %v596, %v597
  %v599 = vrot.slane %v598, 4
  %v600 = vadd.f32 %v598, %v599
  %v601 = vrot.slane %v600, 2
  %v602 = vadd.f32 %v600, %v601
  %v603 = vrot.slane %v602, 1
  %v604 = vadd.f32 %v602, %v603
  %v605 = vsel %vm595, %v593, 0.0
  %v606 = vsel %vm595, %v594, 0.0
  %v607 = vadd.f32 %v605, %v606
  %v608 = vrot.slane %v607, 4
  %v609 = vadd.f32 %v607, %v608
  %v610 = vrot.slane %v609, 2
  %v611 = vadd.f32 %v609, %v610
  %v612 = vrot.slane %v611, 1
  %v613 = vadd.f32 %v611, %v612
  %vm614 = vcmask 130128
  %v615 = vsel %vm614, %v17, -inf
  %616 = vmax.xlane.f32.xlu0 %v615
  %v617 = vpop.xlane.xlu0 %616
  %v618 = vsel %vm614, %v18, -inf
  %619 = vmax.xlane.f32.xlu0 %v618
  %v620 = vpop.xlane.xlu0 %619
  %v621 = vsel %vm614, %v19, -inf
  %622 = vmax.xlane.f32.xlu0 %v621
  %v623 = vpop.xlane.xlu0 %622
  %v624 = vsel %vm614, %v20, -inf
  %625 = vmax.xlane.f32.xlu0 %v624
  %v626 = vpop.xlane.xlu0 %625
  %v627 = vsub.f32 %v17, %v617
  %v628 = vsub.f32 %v18, %v620
  %v629 = vsub.f32 %v19, %v623
  %v630 = vsub.f32 %v20, %v626
  %v631 = vmul.f32 %v627, 1.442695
  %v632 = vpow.pop %v631
  %v633 = vmul.f32 %v628, 1.442695
  %v634 = vpow.pop %v633
  %v635 = vmul.f32 %v629, 1.442695
  %v636 = vpow.pop %v635
  %v637 = vmul.f32 %v630, 1.442695
  %v638 = vpow.pop %v637
  %643 = vrot.lane.b32.xlu0 %v632, 118
  %v644 = vpop.permute.xlu0 %643
  %645 = vrot.lane.b32.xlu0 %v634, 118
  %v646 = vpop.permute.xlu0 %645
  %647 = vrot.lane.b32.xlu0 %v636, 118
  %v648 = vpop.permute.xlu0 %647
  %649 = vrot.lane.b32.xlu0 %v638, 118
  %v650 = vpop.permute.xlu0 %649
  %vm655 = vcmask 48128
  %v656 = vsel %vm655, %v644, 0.0
  %657 = vadd.xlane.f32.xlu0 %v656
  %v658 = vpop.xlane.xlu0 %657
  %v659 = vsel %vm655, %v646, 0.0
  %660 = vadd.xlane.f32.xlu0 %v659
  %v661 = vpop.xlane.xlu0 %660
  %v662 = vsel %vm655, %v648, 0.0
  %663 = vadd.xlane.f32.xlu0 %v662
  %v664 = vpop.xlane.xlu0 %663
  %v665 = vsel %vm655, %v650, 0.0
  %666 = vadd.xlane.f32.xlu0 %v665
  %v667 = vpop.xlane.xlu0 %666
  %v668 = vlog2.pop %v658
  %v669 = vmul.f32 %v668, 0.6931472
  %v670 = vlog2.pop %v661
  %v671 = vmul.f32 %v670, 0.6931472
  %v672 = vlog2.pop %v664
  %v673 = vmul.f32 %v672, 0.6931472
  %v674 = vlog2.pop %v667
  %v675 = vmul.f32 %v674, 0.6931472
  %v676 = vadd.f32 %v617, %v669
  %v677 = vadd.f32 %v620, %v671
  %v678 = vadd.f32 %v623, %v673
  %v679 = vadd.f32 %v626, %v675
  %v680 = vlaneseq
  %v681 = vand.u32 %v680, 127
  %682 = vset.pattern.permute.xlu0 0
  %683 = vperm.xlu0 %682, %v25
  %v684 = vpop.permute.xlu0 %683
  %685 = vset.pattern.permute.xlu0 0
  %686 = vperm.xlu0 %685, %v26
  %v687 = vpop.permute.xlu0 %686
  %688 = vset.pattern.permute.xlu0 0
  %689 = vperm.xlu0 %688, %v27
  %v690 = vpop.permute.xlu0 %689
  %691 = vset.pattern.permute.xlu0 0
  %692 = vperm.xlu0 %691, %v28
  %v693 = vpop.permute.xlu0 %692
  %vm694 = vcmp.eq.s32.totalorder %v681, %v684
  %vm695 = vcmp.eq.s32.totalorder %v681, %v687
  %vm696 = vcmp.eq.s32.totalorder %v681, %v690
  %vm697 = vcmp.eq.s32.totalorder %v681, %v693
  %698 = vrot.lane.b32.xlu0 %v17, 118
  %v699 = vpop.permute.xlu0 %698
  %700 = vrot.lane.b32.xlu0 %v18, 118
  %v701 = vpop.permute.xlu0 %700
  %702 = vrot.lane.b32.xlu0 %v19, 118
  %v703 = vpop.permute.xlu0 %702
  %704 = vrot.lane.b32.xlu0 %v20, 118
  %v705 = vpop.permute.xlu0 %704
  %v710 = vsel %vm694, %v699, 0.0
  %v711 = vsel %vm695, %v701, 0.0
  %v712 = vsel %vm696, %v703, 0.0
  %v713 = vsel %vm697, %v705, 0.0
  %v714 = vsel %vm655, %v710, 0.0
  %715 = vadd.xlane.f32.xlu0 %v714
  %v716 = vpop.xlane.xlu0 %715
  %v717 = vsel %vm655, %v711, 0.0
  %718 = vadd.xlane.f32.xlu0 %v717
  %v719 = vpop.xlane.xlu0 %718
  %v720 = vsel %vm655, %v712, 0.0
  %721 = vadd.xlane.f32.xlu0 %v720
  %v722 = vpop.xlane.xlu0 %721
  %v723 = vsel %vm655, %v713, 0.0
  %724 = vadd.xlane.f32.xlu0 %v723
  %v725 = vpop.xlane.xlu0 %724
  %v726 = vsub.f32 %v676, %v716
  %v727 = vsub.f32 %v677, %v719
  %v728 = vsub.f32 %v678, %v722
  %v729 = vsub.f32 %v679, %v725
  %v730 = vmul.f32 %v726, %v41
  %v731 = vmul.f32 %v727, %v42
  %v732 = vmul.f32 %v728, %v43
  %v733 = vmul.f32 %v729, %v44
  %v734 = vsel %vm172, %v730, 0.0
  %v735 = vsel %vm172, %v731, 0.0
  %v736 = vadd.f32 %v734, %v735
  %v737 = vrot.slane %v736, 4
  %v738 = vadd.f32 %v736, %v737
  %v739 = vrot.slane %v738, 2
  %v740 = vadd.f32 %v738, %v739
  %v741 = vrot.slane %v740, 1
  %v742 = vadd.f32 %v740, %v741
  %v743 = vsel %vm172, %v732, 0.0
  %v744 = vsel %vm172, %v733, 0.0
  %v745 = vadd.f32 %v743, %v744
  %v746 = vrot.slane %v745, 4
  %v747 = vadd.f32 %v745, %v746
  %v748 = vrot.slane %v747, 2
  %v749 = vadd.f32 %v747, %v748
  %v750 = vrot.slane %v749, 1
  %v751 = vadd.f32 %v749, %v750
  %753 = vset.pattern.permute.xlu0 4
  %754 = vperm.xlu0 %753, %v162
  %v755 = vpop.permute.xlu0 %754
  %758 = vset.pattern.permute.xlu0 4
  %759 = vperm.xlu0 %758, %v171
  %v760 = vpop.permute.xlu0 %759
  %763 = vset.pattern.permute.xlu0 0
  %764 = vperm.xlu0 %763, %v181
  %v765 = vpop.permute.xlu0 %764
  %768 = vset.pattern.permute.xlu0 0
  %769 = vperm.xlu0 %768, %v190
  %v770 = vpop.permute.xlu0 %769
  %773 = vset.pattern.permute.xlu0 4
  %774 = vperm.xlu0 %773, %v223
  %v775 = vpop.permute.xlu0 %774
  %778 = vset.pattern.permute.xlu0 4
  %779 = vperm.xlu0 %778, %v232
  %v780 = vpop.permute.xlu0 %779
  %783 = vset.pattern.permute.xlu0 0
  %784 = vperm.xlu0 %783, %v233
  %v785 = vpop.permute.xlu0 %784
  %788 = vset.pattern.permute.xlu0 0
  %789 = vperm.xlu0 %788, %v234
  %v790 = vpop.permute.xlu0 %789
  %793 = vset.pattern.permute.xlu0 5
  %794 = vperm.xlu0 %793, %v604
  %v795 = vpop.permute.xlu0 %794
  %798 = vset.pattern.permute.xlu0 5
  %799 = vperm.xlu0 %798, %v613
  %v800 = vpop.permute.xlu0 %799
  %803 = vset.pattern.permute.xlu0 0
  %804 = vperm.xlu0 %803, %v742
  %v805 = vpop.permute.xlu0 %804
  %808 = vset.pattern.permute.xlu0 0
  %809 = vperm.xlu0 %808, %v751
  %v810 = vpop.permute.xlu0 %809
  %vm812 = vcmask 1040384
  %v813 = vsel %vm812, %v755, %v765
  %v814 = vsel %vm812, %v760, %v770
  %vm815 = vcmask 1041408
  %v816 = vsel %vm815, %v813, %v775
  %v817 = vsel %vm815, %v814, %v780
  %vm818 = vcmask 1042432
  %v819 = vsel %vm818, %v816, %v785
  %v820 = vsel %vm818, %v817, %v790
  %vm821 = vcmask 1043456
  %v822 = vsel %vm821, %v819, %v795
  %v823 = vsel %vm821, %v820, %v800
  %vm824 = vcmask 1044480
  %v825 = vsel %vm824, %v822, %v805
  %v826 = vsel %vm824, %v823, %v810
  %vm827 = vcmask 1045504
  %v828 = vsel %vm827, %v825, 0.0
  %v829 = vsel %vm827, %v826, 0.0
  %vm830 = vcmask 1046528
  %v831 = vsel %vm830, %v828, 0.0
  %v832 = vsel %vm830, %v829, 0.0
  %833 = vst [vmem:[%s4] sm:$0xff] %v831
  %834 = vst [vmem:[%s4 + $0x8] sm:$0xff] %v832
  // Predicated region
  $region18: #{_yolo1_device.7} parent=0 // pred_check
    _
  $region19: #{_yolo1_device.7} parent=0 // pred_check_branch
    %836 = sbr.rel (0) target = $region21
  $region20: #{_yolo1_device.7} parent=0 // pred_region
    _
  $region21: #{_yolo1_device.7} parent=0 // pred_fallthru
    _
  // Predicated region
  $region22: #{_yolo1_device.7} parent=0 // pred_check
    _
  $region23: #{_yolo1_device.7} parent=0 // pred_check_branch
    %838 = sbr.rel (0) target = $region25
  $region24: #{_yolo1_device.7} parent=0 // pred_region
    _
  $region25: #{_yolo1_device.7} parent=0 // pred_fallthru
    _

</llo_original>
